<compile_context>
chip_gen: v6e
topology: v6e:2x2x1
jax: 0.10.0
libtpu: 0.0.40
codegen_flags: <defaults>
</compile_context>

<pallas_src>
import jax
import jax.numpy as jnp
from jax.experimental import pallas as pl
from jax.experimental.pallas import tpu as pltpu

GN_EPS = 1e-5
NUM_GROUPS = 32


def _make_kernel(NB, H, W, Cin, Cout):
    """Fused BasePenet forward kernel for a block of NB batch elements."""
    M = NB * H * W

    def _group_norm_silu(x3, gamma, beta, gmat):
        # x3: (NB, H*W, C) f32; gamma/beta: (1, C); gmat: (C, C) group-average
        # matrix (1/group_size within a group, 0 elsewhere).  Two-pass stats
        # (mean first, then E[(x-mu)^2]) avoid E[x^2]-E[x]^2 cancellation.
        mean_c = jnp.mean(x3, axis=1)                                   # (NB, C)
        mu = jnp.dot(mean_c, gmat, preferred_element_type=jnp.float32)  # group mean / ch
        d = x3 - mu[:, None, :]
        var_c = jnp.mean(d * d, axis=1)                                 # (NB, C)
        var = jnp.dot(var_c, gmat, preferred_element_type=jnp.float32)  # group var / ch
        scale = gamma * jax.lax.rsqrt(var + GN_EPS)                     # (NB, C)
        h = d * scale[:, None, :] + beta[None, :, :]
        return h * jax.nn.sigmoid(h)                                    # SiLU on the EUP

    def _conv3x3(h, pad_ref, w_ref, bias, Ci, Co):
        # 3x3 / stride 1 / pad 1 conv as 9 shifted (M, Ci) @ (Ci, Co) MXU
        # matmuls, bf16 operands with f32 accumulation.
        #
        # Halo handling (no full-buffer zeroing): only the two halo *rows*
        # (outer dim -> cheap stores) are zeroed every step; the two halo
        # *columns* are never written - the taps that would read them mask
        # those positions with an iota select instead.
        zero_row = jnp.zeros((NB, 1, W + 2, Ci), jnp.bfloat16)
        pad_ref[:, pl.ds(0, 1), :, :] = zero_row
        pad_ref[:, pl.ds(H + 1, 1), :, :] = zero_row
        pad_ref[:, pl.ds(1, H), pl.ds(1, W), :] = (
            h.reshape(NB, H, W, Ci).astype(jnp.bfloat16))

        wpos = jax.lax.broadcasted_iota(jnp.int32, (NB, H, W, Ci), 2)
        left_ok = wpos >= 1          # dx == 0 taps read halo column x_pad = 0
        right_ok = wpos <= W - 2     # dx == 2 taps read halo column x_pad = W+1

        acc = jnp.zeros((M, Co), jnp.float32)
        # Taps stay as 9 separate K=Ci contractions (not lane-concatenated into
        # K=3*Ci / 9*Ci): for Ci >= 128 each tap already feeds a full-lane K
        # slab and the concat would add XLU relayout copies.
        for k in range(9):
            dy, dx = k // 3, k % 3
            patch = pad_ref[:, pl.ds(dy, H), pl.ds(dx, W), :]   # (NB,H,W,Ci) bf16
            if dx == 0:
                patch = jnp.where(left_ok, patch, jnp.zeros_like(patch))
            elif dx == 2:
                patch = jnp.where(right_ok, patch, jnp.zeros_like(patch))
            acc = acc + jnp.dot(patch.reshape(M, Ci), w_ref[k],
                                preferred_element_type=jnp.float32)
        return (acc + bias).reshape(NB, H * W, Co)

    def kernel(x_ref, g1_ref, b1_ref, m1_ref, w1_ref, c1b_ref,
               g2_ref, b2_ref, m2_ref, w2_ref, c2b_ref,
               o_ref, pad1, pad2):
        x = x_ref[...].reshape(NB, H * W, Cin)                  # f32
        # ---- in_layers: GroupNorm32 -> SiLU -> Conv3x3(pad=1) ----
        h = _group_norm_silu(x, g1_ref[...], b1_ref[...], m1_ref[...])
        h = _conv3x3(h, pad1, w1_ref, c1b_ref[...], Cin, Cout)
        # ---- out_layers: GroupNorm32 -> SiLU -> Dropout -> Conv3x3(zero-init) ----
        h = _group_norm_silu(h, g2_ref[...], b2_ref[...], m2_ref[...])
        # TODO(synk): nn.Dropout(p=0.1) is the inference-mode identity here;
        # training-mode dropout would use pltpu.prng_seed / prng_random_bits.
        h = _conv3x3(h, pad2, w2_ref, c2b_ref[...], Cout, Cout)
        o_ref[...] = h.reshape(NB, H, W, Cout).astype(o_ref.dtype)

    return kernel


def _group_mat(C, groups=NUM_GROUPS):
    gs = C // groups
    gid = jnp.arange(C) // gs
    return (gid[:, None] == gid[None, :]).astype(jnp.float32) / float(gs)


def _pick_batch_block(N, cap=8):
    """Largest divisor of N (<= cap) that still leaves >= 2 grid steps."""
    best = 1
    for nb in range(1, min(N, cap) + 1):
        if N % nb == 0 and N // nb >= 2:
            best = nb
    return best


def init_base_penet_params(key, channels, out_channels):
    """Deterministic parameter init matching the module's __init__ shapes."""
    k1, k2 = jax.random.split(key, 2)
    bound1 = (channels * 9) ** -0.5                    # PyTorch Conv2d default bound
    return {
        # in_layers
        "gn1_gamma": jnp.ones((channels,), jnp.float32),
        "gn1_beta": jnp.zeros((channels,), jnp.float32),
        "conv1_w": jax.random.uniform(k1, (out_channels, channels, 3, 3),
                                      jnp.float32, -bound1, bound1),
        "conv1_b": jax.random.uniform(k2, (out_channels,), jnp.float32,
                                      -bound1, bound1),
        # out_layers (final conv is zero_module -> zeros)
        "gn2_gamma": jnp.ones((out_channels,), jnp.float32),
        "gn2_beta": jnp.zeros((out_channels,), jnp.float32),
        "conv2_w": jnp.zeros((out_channels, out_channels, 3, 3), jnp.float32),
        "conv2_b": jnp.zeros((out_channels,), jnp.float32),
    }


def base_penet_forward(x_nchw, params, batch_block=None):
    N, C, H, W = x_nchw.shape
    Cout = params["conv1_w"].shape[0]
    assert C % NUM_GROUPS == 0 and Cout % NUM_GROUPS == 0
    NB = _pick_batch_block(N) if batch_block is None else batch_block
    assert N % NB == 0

    # NCHW -> NHWC (channels on the lane axis).
    x_nhwc = jnp.transpose(x_nchw, (0, 2, 3, 1)).astype(jnp.float32)

    # (Cout, Cin, 3, 3) -> (9, Cin, Cout), tap k = ky*3 + kx; bf16 for the MXU.
    w1 = jnp.transpose(params["conv1_w"], (2, 3, 1, 0)).reshape(9, C, Cout)
    w1 = w1.astype(jnp.bfloat16)
    w2 = jnp.transpose(params["conv2_w"], (2, 3, 1, 0)).reshape(9, Cout, Cout)
    w2 = w2.astype(jnp.bfloat16)

    g1 = params["gn1_gamma"].reshape(1, C).astype(jnp.float32)
    b1 = params["gn1_beta"].reshape(1, C).astype(jnp.float32)
    g2 = params["gn2_gamma"].reshape(1, Cout).astype(jnp.float32)
    b2 = params["gn2_beta"].reshape(1, Cout).astype(jnp.float32)
    cb1 = params["conv1_b"].reshape(1, Cout).astype(jnp.float32)
    cb2 = params["conv2_b"].reshape(1, Cout).astype(jnp.float32)
    m1 = _group_mat(C)
    m2 = _group_mat(Cout)

    kernel = _make_kernel(NB, H, W, C, Cout)

    out_nhwc = pl.pallas_call(
        kernel,
        out_shape=jax.ShapeDtypeStruct((N, H, W, Cout), jnp.float32),
        grid=(N // NB,),
        in_specs=[
            pl.BlockSpec((NB, H, W, C), lambda n: (n, 0, 0, 0)),
            pl.BlockSpec((1, C), lambda n: (0, 0)),
            pl.BlockSpec((1, C), lambda n: (0, 0)),
            pl.BlockSpec((C, C), lambda n: (0, 0)),
            pl.BlockSpec((9, C, Cout), lambda n: (0, 0, 0)),
            pl.BlockSpec((1, Cout), lambda n: (0, 0)),
            pl.BlockSpec((1, Cout), lambda n: (0, 0)),
            pl.BlockSpec((1, Cout), lambda n: (0, 0)),
            pl.BlockSpec((Cout, Cout), lambda n: (0, 0)),
            pl.BlockSpec((9, Cout, Cout), lambda n: (0, 0, 0)),
            pl.BlockSpec((1, Cout), lambda n: (0, 0)),
        ],
        out_specs=pl.BlockSpec((NB, H, W, Cout), lambda n: (n, 0, 0, 0)),
        scratch_shapes=[
            pltpu.VMEM((NB, H + 2, W + 2, C), jnp.bfloat16),
            pltpu.VMEM((NB, H + 2, W + 2, Cout), jnp.bfloat16),
        ],
        # Batch blocks are independent -> "parallel" lets Mosaic shard the grid
        # across both TensorCores on v7x (no-op on single-TC v5e/v6e).
        compiler_params=pltpu.CompilerParams(dimension_semantics=("parallel",)),
    )(x_nhwc, g1, b1, m1, w1, cb1, g2, b2, m2, w2, cb2)

    # NHWC -> NCHW to match the PyTorch module's output convention.
    return jnp.transpose(out_nhwc, (0, 3, 1, 2))


def _reference_forward(x_nchw, params):
    """Pure-XLA reference (same bf16-operand / f32-accumulate conv policy)."""
    def gn(x, gamma, beta):
        n, c, h, w = x.shape
        xg = x.reshape(n, NUM_GROUPS, c // NUM_GROUPS, h, w)
        mu = xg.mean(axis=(2, 3, 4), keepdims=True)
        var = ((xg - mu) ** 2).mean(axis=(2, 3, 4), keepdims=True)
        xn = ((xg - mu) * jax.lax.rsqrt(var + GN_EPS)).reshape(n, c, h, w)
        return xn * gamma[None, :, None, None] + beta[None, :, None, None]

    def silu(x):
        return x * jax.nn.sigmoid(x)

    def conv(x, w, b):
        y = jax.lax.conv_general_dilated(
            x.astype(jnp.bfloat16), w.astype(jnp.bfloat16),
            window_strides=(1, 1), padding=((1, 1), (1, 1)),
            dimension_numbers=("NCHW", "OIHW", "NCHW"),
            preferred_element_type=jnp.float32)
        return y + b[None, :, None, None]

    x = x_nchw.astype(jnp.float32)
    h = conv(silu(gn(x, params["gn1_gamma"], params["gn1_beta"])),
             params["conv1_w"], params["conv1_b"])
    h = conv(silu(gn(h, params["gn2_gamma"], params["gn2_beta"])),
             params["conv2_w"], params["conv2_b"])
    return h


if __name__ == "__main__":
    key = jax.random.PRNGKey(0)
    k_x, k_p, k_w2, k_b2 = jax.random.split(key, 4)

    # GroupNorm32 requires channels % 32 == 0; 128 channels keeps the kernel's
    # loads / stores lane-dense while staying small (x is 128 KiB).
    N, C, H, W = 4, 128, 8, 8
    Cout = 128

    x = jax.random.normal(k_x, (N, C, H, W), jnp.float32)       # NCHW like PyTorch
    params = init_base_penet_params(k_p, C, Cout)

    out = jax.block_until_ready(base_penet_forward(x, params))
    assert out.shape == (N, Cout, H, W), out.shape
    assert bool(jnp.all(jnp.isfinite(out)))
    # zero_module on the final conv -> the module's forward output is exactly 0.
    assert bool(jnp.allclose(out, 0.0))

    # Validate the full GN/SiLU/conv path numerically (not just the zero tail)
    # against an XLA reference using a non-zero second conv.
    bound2 = (Cout * 9) ** -0.5
    params_nz = dict(params)
    params_nz["conv2_w"] = jax.random.uniform(
        k_w2, (Cout, Cout, 3, 3), jnp.float32, -bound2, bound2)
    params_nz["conv2_b"] = jax.random.uniform(
        k_b2, (Cout,), jnp.float32, -bound2, bound2)
    out_nz = jax.block_until_ready(base_penet_forward(x, params_nz))
    ref_nz = _reference_forward(x, params_nz)
    err = float(jnp.max(jnp.abs(out_nz - ref_nz)))
    assert err < 5e-2, f"max abs diff vs reference too large: {err}"

    print("KERNEL_OK")
</pallas_src>

<mosaic_0001>
module attributes {stable_mosaic.version = 11 : i64} {
  func.func @kernel(%arg0: i32, %arg1: memref<2x8x8x128xf32, #tpu.memory_space<vmem>>, %arg2: memref<1x128xf32, #tpu.memory_space<vmem>>, %arg3: memref<1x128xf32, #tpu.memory_space<vmem>>, %arg4: memref<128x128xf32, #tpu.memory_space<vmem>>, %arg5: memref<9x128x128xbf16, #tpu.memory_space<vmem>>, %arg6: memref<1x128xf32, #tpu.memory_space<vmem>>, %arg7: memref<1x128xf32, #tpu.memory_space<vmem>>, %arg8: memref<1x128xf32, #tpu.memory_space<vmem>>, %arg9: memref<128x128xf32, #tpu.memory_space<vmem>>, %arg10: memref<9x128x128xbf16, #tpu.memory_space<vmem>>, %arg11: memref<1x128xf32, #tpu.memory_space<vmem>>, %arg12: memref<2x8x8x128xf32, #tpu.memory_space<vmem>>, %arg13: memref<2x10x10x128xbf16, #tpu.memory_space<vmem>>, %arg14: memref<2x10x10x128xbf16, #tpu.memory_space<vmem>>) attributes {dimension_semantics = [#tpu.dimension_semantics<parallel>], iteration_bounds = array<i64: 2>, scalar_prefetch = 0 : i64, scratch_operands = 2 : i64, tpu.core_type = #tpu.core_type<tc>, window_params = [{transform_indices = @transform_0, window_bounds = array<i64: 2, 8, 8, 128>}, {pipeline_mode = #tpu.pipeline_mode<synchronous>, transform_indices = @transform_1, window_bounds = array<i64: 1, 128>}, {pipeline_mode = #tpu.pipeline_mode<synchronous>, transform_indices = @transform_2, window_bounds = array<i64: 1, 128>}, {pipeline_mode = #tpu.pipeline_mode<synchronous>, transform_indices = @transform_3, window_bounds = array<i64: 128, 128>}, {pipeline_mode = #tpu.pipeline_mode<synchronous>, transform_indices = @transform_4, window_bounds = array<i64: 9, 128, 128>}, {pipeline_mode = #tpu.pipeline_mode<synchronous>, transform_indices = @transform_5, window_bounds = array<i64: 1, 128>}, {pipeline_mode = #tpu.pipeline_mode<synchronous>, transform_indices = @transform_6, window_bounds = array<i64: 1, 128>}, {pipeline_mode = #tpu.pipeline_mode<synchronous>, transform_indices = @transform_7, window_bounds = array<i64: 1, 128>}, {pipeline_mode = #tpu.pipeline_mode<synchronous>, transform_indices = @transform_8, window_bounds = array<i64: 128, 128>}, {pipeline_mode = #tpu.pipeline_mode<synchronous>, transform_indices = @transform_9, window_bounds = array<i64: 9, 128, 128>}, {pipeline_mode = #tpu.pipeline_mode<synchronous>, transform_indices = @transform_10, window_bounds = array<i64: 1, 128>}, {transform_indices = @transform_11, window_bounds = array<i64: 2, 8, 8, 128>}]} {
    %c0 = arith.constant 0 : index
    %c0_0 = arith.constant 0 : index
    %c0_1 = arith.constant 0 : index
    %c0_2 = arith.constant 0 : index
    %0 = vector.load %arg1[%c0, %c0_0, %c0_1, %c0_2] : memref<2x8x8x128xf32, #tpu.memory_space<vmem>>, vector<2x8x8x128xf32>
    %1 = vector.shape_cast %0 : vector<2x8x8x128xf32> to vector<2x64x128xf32>
    %c0_3 = arith.constant 0 : index
    %c0_4 = arith.constant 0 : index
    %2 = vector.load %arg2[%c0_3, %c0_4] : memref<1x128xf32, #tpu.memory_space<vmem>>, vector<1x128xf32>
    %c0_5 = arith.constant 0 : index
    %c0_6 = arith.constant 0 : index
    %3 = vector.load %arg3[%c0_5, %c0_6] : memref<1x128xf32, #tpu.memory_space<vmem>>, vector<1x128xf32>
    %c0_7 = arith.constant 0 : index
    %c0_8 = arith.constant 0 : index
    %4 = vector.load %arg4[%c0_7, %c0_8] : memref<128x128xf32, #tpu.memory_space<vmem>>, vector<128x128xf32>
    %cst = arith.constant dense<0.000000e+00> : vector<2x128xf32>
    %5 = vector.multi_reduction <add>, %1, %cst [1] : vector<2x64x128xf32> to vector<2x128xf32>
    %cst_9 = arith.constant 6.400000e+01 : f32
    %6 = vector.broadcast %cst_9 : f32 to vector<2x128xf32>
    %7 = arith.divf %5, %6 : vector<2x128xf32>
    %cst_10 = arith.constant dense<0.000000e+00> : vector<2x128xf32>
    %8 = tpu.matmul %7, %4, %cst_10 {dimension_numbers = #tpu.dot_dimension_numbers<[1], [0], [0], [1], [0, 0, 1, 1], [], []>} : vector<2x128xf32>, vector<128x128xf32>, vector<2x128xf32> -> vector<2x128xf32>
    %9 = vector.shape_cast %8 : vector<2x128xf32> to vector<2x1x128xf32>
    %10 = vector.broadcast %9 : vector<2x1x128xf32> to vector<2x64x128xf32>
    %11 = arith.subf %1, %10 : vector<2x64x128xf32>
    %12 = arith.mulf %11, %11 : vector<2x64x128xf32>
    %cst_11 = arith.constant dense<0.000000e+00> : vector<2x128xf32>
    %13 = vector.multi_reduction <add>, %12, %cst_11 [1] : vector<2x64x128xf32> to vector<2x128xf32>
    %cst_12 = arith.constant 6.400000e+01 : f32
    %14 = vector.broadcast %cst_12 : f32 to vector<2x128xf32>
    %15 = arith.divf %13, %14 : vector<2x128xf32>
    %cst_13 = arith.constant dense<0.000000e+00> : vector<2x128xf32>
    %16 = tpu.matmul %15, %4, %cst_13 {dimension_numbers = #tpu.dot_dimension_numbers<[1], [0], [0], [1], [0, 0, 1, 1], [], []>} : vector<2x128xf32>, vector<128x128xf32>, vector<2x128xf32> -> vector<2x128xf32>
    %cst_14 = arith.constant 9.99999974E-6 : f32
    %17 = vector.broadcast %cst_14 : f32 to vector<2x128xf32>
    %18 = arith.addf %16, %17 : vector<2x128xf32>
    %19 = math.rsqrt %18 : vector<2x128xf32>
    %20 = vector.broadcast %2 : vector<1x128xf32> to vector<2x128xf32>
    %21 = arith.mulf %20, %19 : vector<2x128xf32>
    %22 = vector.shape_cast %21 : vector<2x128xf32> to vector<2x1x128xf32>
    %23 = vector.broadcast %22 : vector<2x1x128xf32> to vector<2x64x128xf32>
    %24 = arith.mulf %11, %23 : vector<2x64x128xf32>
    %25 = vector.shape_cast %3 : vector<1x128xf32> to vector<1x1x128xf32>
    %26 = vector.broadcast %25 : vector<1x1x128xf32> to vector<2x64x128xf32>
    %27 = arith.addf %24, %26 : vector<2x64x128xf32>
    %28 = arith.negf %27 : vector<2x64x128xf32>
    %29 = math.exp %28 : vector<2x64x128xf32>
    %cst_15 = arith.constant 1.000000e+00 : f32
    %30 = vector.broadcast %cst_15 : f32 to vector<2x64x128xf32>
    %31 = arith.addf %30, %29 : vector<2x64x128xf32>
    %32 = arith.divf %30, %31 : vector<2x64x128xf32>
    %33 = arith.mulf %27, %32 : vector<2x64x128xf32>
    %c0_16 = arith.constant 0 : index
    %c0_17 = arith.constant 0 : index
    %34 = vector.load %arg6[%c0_16, %c0_17] : memref<1x128xf32, #tpu.memory_space<vmem>>, vector<1x128xf32>
    %cst_18 = arith.constant 0.000000e+00 : bf16
    %35 = vector.broadcast %cst_18 : bf16 to vector<2x1x10x128xbf16>
    %c0_19 = arith.constant 0 : index
    %c0_20 = arith.constant 0 : index
    %c0_21 = arith.constant 0 : index
    %c0_22 = arith.constant 0 : index
    %36 = vector.load %arg13[%c0_19, %c0_20, %c0_21, %c0_22] : memref<2x10x10x128xbf16, #tpu.memory_space<vmem>>, vector<2x1x10x128xbf16>
    tpu.vector_store %arg13[%c0_19, %c0_20, %c0_21, %c0_22], %35 {strides = array<i32>} : memref<2x10x10x128xbf16, #tpu.memory_space<vmem>>, vector<2x1x10x128xbf16>,
    %c0_23 = arith.constant 0 : index
    %c9 = arith.constant 9 : index
    %c0_24 = arith.constant 0 : index
    %c0_25 = arith.constant 0 : index
    %37 = vector.load %arg13[%c0_23, %c9, %c0_24, %c0_25] : memref<2x10x10x128xbf16, #tpu.memory_space<vmem>>, vector<2x1x10x128xbf16>
    tpu.vector_store %arg13[%c0_23, %c9, %c0_24, %c0_25], %35 {strides = array<i32>} : memref<2x10x10x128xbf16, #tpu.memory_space<vmem>>, vector<2x1x10x128xbf16>,
    %38 = vector.shape_cast %33 : vector<2x64x128xf32> to vector<2x8x8x128xf32>
    %39 = arith.truncf %38 : vector<2x8x8x128xf32> to vector<2x8x8x128xbf16>
    %c0_26 = arith.constant 0 : index
    %c1 = arith.constant 1 : index
    %c1_27 = arith.constant 1 : index
    %c0_28 = arith.constant 0 : index
    %40 = vector.load %arg13[%c0_26, %c1, %c1_27, %c0_28] : memref<2x10x10x128xbf16, #tpu.memory_space<vmem>>, vector<2x8x8x128xbf16>
    tpu.vector_store %arg13[%c0_26, %c1, %c1_27, %c0_28], %39 {strides = array<i32>} : memref<2x10x10x128xbf16, #tpu.memory_space<vmem>>, vector<2x8x8x128xbf16>,
    %41 = tpu.iota {dimensions = array<i32: 2>} : vector<2x8x8x128xi32>
    %c1_i32 = arith.constant 1 : i32
    %42 = vector.broadcast %c1_i32 : i32 to vector<2x8x8x128xi32>
    %43 = arith.cmpi sge, %41, %42 : vector<2x8x8x128xi32>
    %c6_i32 = arith.constant 6 : i32
    %44 = vector.broadcast %c6_i32 : i32 to vector<2x8x8x128xi32>
    %45 = arith.cmpi sle, %41, %44 : vector<2x8x8x128xi32>
    %cst_29 = arith.constant 0.000000e+00 : f32
    %46 = vector.broadcast %cst_29 : f32 to vector<128x128xf32>
    %c0_30 = arith.constant 0 : index
    %c0_31 = arith.constant 0 : index
    %c0_32 = arith.constant 0 : index
    %c0_33 = arith.constant 0 : index
    %47 = vector.load %arg13[%c0_30, %c0_31, %c0_32, %c0_33] : memref<2x10x10x128xbf16, #tpu.memory_space<vmem>>, vector<2x8x8x128xbf16>
    %cst_34 = arith.constant 0.000000e+00 : bf16
    %48 = vector.broadcast %cst_34 : bf16 to vector<2x8x8x128xbf16>
    %49 = arith.select %43, %47, %48 : vector<2x8x8x128xi1>, vector<2x8x8x128xbf16>
    %50 = vector.shape_cast %49 : vector<2x8x8x128xbf16> to vector<128x128xbf16>
    %c0_35 = arith.constant 0 : index
    %c0_36 = arith.constant 0 : index
    %c0_37 = arith.constant 0 : index
    %51 = vector.load %arg5[%c0_35, %c0_36, %c0_37] : memref<9x128x128xbf16, #tpu.memory_space<vmem>>, vector<1x128x128xbf16>
    %52 = vector.shape_cast %51 : vector<1x128x128xbf16> to vector<128x128xbf16>
    %cst_38 = arith.constant dense<0.000000e+00> : vector<128x128xf32>
    %53 = tpu.matmul %50, %52, %cst_38 {dimension_numbers = #tpu.dot_dimension_numbers<[1], [0], [0], [1], [0, 0, 1, 1], [], []>} : vector<128x128xbf16>, vector<128x128xbf16>, vector<128x128xf32> -> vector<128x128xf32>
    %54 = arith.addf %46, %53 : vector<128x128xf32>
    %c0_39 = arith.constant 0 : index
    %c0_40 = arith.constant 0 : index
    %c1_41 = arith.constant 1 : index
    %c0_42 = arith.constant 0 : index
    %55 = vector.load %arg13[%c0_39, %c0_40, %c1_41, %c0_42] : memref<2x10x10x128xbf16, #tpu.memory_space<vmem>>, vector<2x8x8x128xbf16>
    %56 = vector.shape_cast %55 : vector<2x8x8x128xbf16> to vector<128x128xbf16>
    %c1_43 = arith.constant 1 : index
    %c0_44 = arith.constant 0 : index
    %c0_45 = arith.constant 0 : index
    %57 = vector.load %arg5[%c1_43, %c0_44, %c0_45] : memref<9x128x128xbf16, #tpu.memory_space<vmem>>, vector<1x128x128xbf16>
    %58 = vector.shape_cast %57 : vector<1x128x128xbf16> to vector<128x128xbf16>
    %cst_46 = arith.constant dense<0.000000e+00> : vector<128x128xf32>
    %59 = tpu.matmul %56, %58, %cst_46 {dimension_numbers = #tpu.dot_dimension_numbers<[1], [0], [0], [1], [0, 0, 1, 1], [], []>} : vector<128x128xbf16>, vector<128x128xbf16>, vector<128x128xf32> -> vector<128x128xf32>
    %60 = arith.addf %54, %59 : vector<128x128xf32>
    %c0_47 = arith.constant 0 : index
    %c0_48 = arith.constant 0 : index
    %c2 = arith.constant 2 : index
    %c0_49 = arith.constant 0 : index
    %61 = vector.load %arg13[%c0_47, %c0_48, %c2, %c0_49] : memref<2x10x10x128xbf16, #tpu.memory_space<vmem>>, vector<2x8x8x128xbf16>
    %cst_50 = arith.constant 0.000000e+00 : bf16
    %62 = vector.broadcast %cst_50 : bf16 to vector<2x8x8x128xbf16>
    %63 = arith.select %45, %61, %62 : vector<2x8x8x128xi1>, vector<2x8x8x128xbf16>
    %64 = vector.shape_cast %63 : vector<2x8x8x128xbf16> to vector<128x128xbf16>
    %c2_51 = arith.constant 2 : index
    %c0_52 = arith.constant 0 : index
    %c0_53 = arith.constant 0 : index
    %65 = vector.load %arg5[%c2_51, %c0_52, %c0_53] : memref<9x128x128xbf16, #tpu.memory_space<vmem>>, vector<1x128x128xbf16>
    %66 = vector.shape_cast %65 : vector<1x128x128xbf16> to vector<128x128xbf16>
    %cst_54 = arith.constant dense<0.000000e+00> : vector<128x128xf32>
    %67 = tpu.matmul %64, %66, %cst_54 {dimension_numbers = #tpu.dot_dimension_numbers<[1], [0], [0], [1], [0, 0, 1, 1], [], []>} : vector<128x128xbf16>, vector<128x128xbf16>, vector<128x128xf32> -> vector<128x128xf32>
    %68 = arith.addf %60, %67 : vector<128x128xf32>
    %c0_55 = arith.constant 0 : index
    %c1_56 = arith.constant 1 : index
    %c0_57 = arith.constant 0 : index
    %c0_58 = arith.constant 0 : index
    %69 = vector.load %arg13[%c0_55, %c1_56, %c0_57, %c0_58] : memref<2x10x10x128xbf16, #tpu.memory_space<vmem>>, vector<2x8x8x128xbf16>
    %cst_59 = arith.constant 0.000000e+00 : bf16
    %70 = vector.broadcast %cst_59 : bf16 to vector<2x8x8x128xbf16>
    %71 = arith.select %43, %69, %70 : vector<2x8x8x128xi1>, vector<2x8x8x128xbf16>
    %72 = vector.shape_cast %71 : vector<2x8x8x128xbf16> to vector<128x128xbf16>
    %c3 = arith.constant 3 : index
    %c0_60 = arith.constant 0 : index
    %c0_61 = arith.constant 0 : index
    %73 = vector.load %arg5[%c3, %c0_60, %c0_61] : memref<9x128x128xbf16, #tpu.memory_space<vmem>>, vector<1x128x128xbf16>
    %74 = vector.shape_cast %73 : vector<1x128x128xbf16> to vector<128x128xbf16>
    %cst_62 = arith.constant dense<0.000000e+00> : vector<128x128xf32>
    %75 = tpu.matmul %72, %74, %cst_62 {dimension_numbers = #tpu.dot_dimension_numbers<[1], [0], [0], [1], [0, 0, 1, 1], [], []>} : vector<128x128xbf16>, vector<128x128xbf16>, vector<128x128xf32> -> vector<128x128xf32>
    %76 = arith.addf %68, %75 : vector<128x128xf32>
    %c0_63 = arith.constant 0 : index
    %c1_64 = arith.constant 1 : index
    %c1_65 = arith.constant 1 : index
    %c0_66 = arith.constant 0 : index
    %77 = vector.load %arg13[%c0_63, %c1_64, %c1_65, %c0_66] : memref<2x10x10x128xbf16, #tpu.memory_space<vmem>>, vector<2x8x8x128xbf16>
    %78 = vector.shape_cast %77 : vector<2x8x8x128xbf16> to vector<128x128xbf16>
    %c4 = arith.constant 4 : index
    %c0_67 = arith.constant 0 : index
    %c0_68 = arith.constant 0 : index
    %79 = vector.load %arg5[%c4, %c0_67, %c0_68] : memref<9x128x128xbf16, #tpu.memory_space<vmem>>, vector<1x128x128xbf16>
    %80 = vector.shape_cast %79 : vector<1x128x128xbf16> to vector<128x128xbf16>
    %cst_69 = arith.constant dense<0.000000e+00> : vector<128x128xf32>
    %81 = tpu.matmul %78, %80, %cst_69 {dimension_numbers = #tpu.dot_dimension_numbers<[1], [0], [0], [1], [0, 0, 1, 1], [], []>} : vector<128x128xbf16>, vector<128x128xbf16>, vector<128x128xf32> -> vector<128x128xf32>
    %82 = arith.addf %76, %81 : vector<128x128xf32>
    %c0_70 = arith.constant 0 : index
    %c1_71 = arith.constant 1 : index
    %c2_72 = arith.constant 2 : index
    %c0_73 = arith.constant 0 : index
    %83 = vector.load %arg13[%c0_70, %c1_71, %c2_72, %c0_73] : memref<2x10x10x128xbf16, #tpu.memory_space<vmem>>, vector<2x8x8x128xbf16>
    %cst_74 = arith.constant 0.000000e+00 : bf16
    %84 = vector.broadcast %cst_74 : bf16 to vector<2x8x8x128xbf16>
    %85 = arith.select %45, %83, %84 : vector<2x8x8x128xi1>, vector<2x8x8x128xbf16>
    %86 = vector.shape_cast %85 : vector<2x8x8x128xbf16> to vector<128x128xbf16>
    %c5 = arith.constant 5 : index
    %c0_75 = arith.constant 0 : index
    %c0_76 = arith.constant 0 : index
    %87 = vector.load %arg5[%c5, %c0_75, %c0_76] : memref<9x128x128xbf16, #tpu.memory_space<vmem>>, vector<1x128x128xbf16>
    %88 = vector.shape_cast %87 : vector<1x128x128xbf16> to vector<128x128xbf16>
    %cst_77 = arith.constant dense<0.000000e+00> : vector<128x128xf32>
    %89 = tpu.matmul %86, %88, %cst_77 {dimension_numbers = #tpu.dot_dimension_numbers<[1], [0], [0], [1], [0, 0, 1, 1], [], []>} : vector<128x128xbf16>, vector<128x128xbf16>, vector<128x128xf32> -> vector<128x128xf32>
    %90 = arith.addf %82, %89 : vector<128x128xf32>
    %c0_78 = arith.constant 0 : index
    %c2_79 = arith.constant 2 : index
    %c0_80 = arith.constant 0 : index
    %c0_81 = arith.constant 0 : index
    %91 = vector.load %arg13[%c0_78, %c2_79, %c0_80, %c0_81] : memref<2x10x10x128xbf16, #tpu.memory_space<vmem>>, vector<2x8x8x128xbf16>
    %cst_82 = arith.constant 0.000000e+00 : bf16
    %92 = vector.broadcast %cst_82 : bf16 to vector<2x8x8x128xbf16>
    %93 = arith.select %43, %91, %92 : vector<2x8x8x128xi1>, vector<2x8x8x128xbf16>
    %94 = vector.shape_cast %93 : vector<2x8x8x128xbf16> to vector<128x128xbf16>
    %c6 = arith.constant 6 : index
    %c0_83 = arith.constant 0 : index
    %c0_84 = arith.constant 0 : index
    %95 = vector.load %arg5[%c6, %c0_83, %c0_84] : memref<9x128x128xbf16, #tpu.memory_space<vmem>>, vector<1x128x128xbf16>
    %96 = vector.shape_cast %95 : vector<1x128x128xbf16> to vector<128x128xbf16>
    %cst_85 = arith.constant dense<0.000000e+00> : vector<128x128xf32>
    %97 = tpu.matmul %94, %96, %cst_85 {dimension_numbers = #tpu.dot_dimension_numbers<[1], [0], [0], [1], [0, 0, 1, 1], [], []>} : vector<128x128xbf16>, vector<128x128xbf16>, vector<128x128xf32> -> vector<128x128xf32>
    %98 = arith.addf %90, %97 : vector<128x128xf32>
    %c0_86 = arith.constant 0 : index
    %c2_87 = arith.constant 2 : index
    %c1_88 = arith.constant 1 : index
    %c0_89 = arith.constant 0 : index
    %99 = vector.load %arg13[%c0_86, %c2_87, %c1_88, %c0_89] : memref<2x10x10x128xbf16, #tpu.memory_space<vmem>>, vector<2x8x8x128xbf16>
    %100 = vector.shape_cast %99 : vector<2x8x8x128xbf16> to vector<128x128xbf16>
    %c7 = arith.constant 7 : index
    %c0_90 = arith.constant 0 : index
    %c0_91 = arith.constant 0 : index
    %101 = vector.load %arg5[%c7, %c0_90, %c0_91] : memref<9x128x128xbf16, #tpu.memory_space<vmem>>, vector<1x128x128xbf16>
    %102 = vector.shape_cast %101 : vector<1x128x128xbf16> to vector<128x128xbf16>
    %cst_92 = arith.constant dense<0.000000e+00> : vector<128x128xf32>
    %103 = tpu.matmul %100, %102, %cst_92 {dimension_numbers = #tpu.dot_dimension_numbers<[1], [0], [0], [1], [0, 0, 1, 1], [], []>} : vector<128x128xbf16>, vector<128x128xbf16>, vector<128x128xf32> -> vector<128x128xf32>
    %104 = arith.addf %98, %103 : vector<128x128xf32>
    %c0_93 = arith.constant 0 : index
    %c2_94 = arith.constant 2 : index
    %c2_95 = arith.constant 2 : index
    %c0_96 = arith.constant 0 : index
    %105 = vector.load %arg13[%c0_93, %c2_94, %c2_95, %c0_96] : memref<2x10x10x128xbf16, #tpu.memory_space<vmem>>, vector<2x8x8x128xbf16>
    %cst_97 = arith.constant 0.000000e+00 : bf16
    %106 = vector.broadcast %cst_97 : bf16 to vector<2x8x8x128xbf16>
    %107 = arith.select %45, %105, %106 : vector<2x8x8x128xi1>, vector<2x8x8x128xbf16>
    %108 = vector.shape_cast %107 : vector<2x8x8x128xbf16> to vector<128x128xbf16>
    %c8 = arith.constant 8 : index
    %c0_98 = arith.constant 0 : index
    %c0_99 = arith.constant 0 : index
    %109 = vector.load %arg5[%c8, %c0_98, %c0_99] : memref<9x128x128xbf16, #tpu.memory_space<vmem>>, vector<1x128x128xbf16>
    %110 = vector.shape_cast %109 : vector<1x128x128xbf16> to vector<128x128xbf16>
    %cst_100 = arith.constant dense<0.000000e+00> : vector<128x128xf32>
    %111 = tpu.matmul %108, %110, %cst_100 {dimension_numbers = #tpu.dot_dimension_numbers<[1], [0], [0], [1], [0, 0, 1, 1], [], []>} : vector<128x128xbf16>, vector<128x128xbf16>, vector<128x128xf32> -> vector<128x128xf32>
    %112 = arith.addf %104, %111 : vector<128x128xf32>
    %113 = vector.broadcast %34 : vector<1x128xf32> to vector<128x128xf32>
    %114 = arith.addf %112, %113 : vector<128x128xf32>
    %115 = vector.shape_cast %114 : vector<128x128xf32> to vector<2x64x128xf32>
    %c0_101 = arith.constant 0 : index
    %c0_102 = arith.constant 0 : index
    %116 = vector.load %arg7[%c0_101, %c0_102] : memref<1x128xf32, #tpu.memory_space<vmem>>, vector<1x128xf32>
    %c0_103 = arith.constant 0 : index
    %c0_104 = arith.constant 0 : index
    %117 = vector.load %arg8[%c0_103, %c0_104] : memref<1x128xf32, #tpu.memory_space<vmem>>, vector<1x128xf32>
    %c0_105 = arith.constant 0 : index
    %c0_106 = arith.constant 0 : index
    %118 = vector.load %arg9[%c0_105, %c0_106] : memref<128x128xf32, #tpu.memory_space<vmem>>, vector<128x128xf32>
    %cst_107 = arith.constant dense<0.000000e+00> : vector<2x128xf32>
    %119 = vector.multi_reduction <add>, %115, %cst_107 [1] : vector<2x64x128xf32> to vector<2x128xf32>
    %cst_108 = arith.constant 6.400000e+01 : f32
    %120 = vector.broadcast %cst_108 : f32 to vector<2x128xf32>
    %121 = arith.divf %119, %120 : vector<2x128xf32>
    %cst_109 = arith.constant dense<0.000000e+00> : vector<2x128xf32>
    %122 = tpu.matmul %121, %118, %cst_109 {dimension_numbers = #tpu.dot_dimension_numbers<[1], [0], [0], [1], [0, 0, 1, 1], [], []>} : vector<2x128xf32>, vector<128x128xf32>, vector<2x128xf32> -> vector<2x128xf32>
    %123 = vector.shape_cast %122 : vector<2x128xf32> to vector<2x1x128xf32>
    %124 = vector.broadcast %123 : vector<2x1x128xf32> to vector<2x64x128xf32>
    %125 = arith.subf %115, %124 : vector<2x64x128xf32>
    %126 = arith.mulf %125, %125 : vector<2x64x128xf32>
    %cst_110 = arith.constant dense<0.000000e+00> : vector<2x128xf32>
    %127 = vector.multi_reduction <add>, %126, %cst_110 [1] : vector<2x64x128xf32> to vector<2x128xf32>
    %cst_111 = arith.constant 6.400000e+01 : f32
    %128 = vector.broadcast %cst_111 : f32 to vector<2x128xf32>
    %129 = arith.divf %127, %128 : vector<2x128xf32>
    %cst_112 = arith.constant dense<0.000000e+00> : vector<2x128xf32>
    %130 = tpu.matmul %129, %118, %cst_112 {dimension_numbers = #tpu.dot_dimension_numbers<[1], [0], [0], [1], [0, 0, 1, 1], [], []>} : vector<2x128xf32>, vector<128x128xf32>, vector<2x128xf32> -> vector<2x128xf32>
    %cst_113 = arith.constant 9.99999974E-6 : f32
    %131 = vector.broadcast %cst_113 : f32 to vector<2x128xf32>
    %132 = arith.addf %130, %131 : vector<2x128xf32>
    %133 = math.rsqrt %132 : vector<2x128xf32>
    %134 = vector.broadcast %116 : vector<1x128xf32> to vector<2x128xf32>
    %135 = arith.mulf %134, %133 : vector<2x128xf32>
    %136 = vector.shape_cast %135 : vector<2x128xf32> to vector<2x1x128xf32>
    %137 = vector.broadcast %136 : vector<2x1x128xf32> to vector<2x64x128xf32>
    %138 = arith.mulf %125, %137 : vector<2x64x128xf32>
    %139 = vector.shape_cast %117 : vector<1x128xf32> to vector<1x1x128xf32>
    %140 = vector.broadcast %139 : vector<1x1x128xf32> to vector<2x64x128xf32>
    %141 = arith.addf %138, %140 : vector<2x64x128xf32>
    %142 = arith.negf %141 : vector<2x64x128xf32>
    %143 = math.exp %142 : vector<2x64x128xf32>
    %cst_114 = arith.constant 1.000000e+00 : f32
    %144 = vector.broadcast %cst_114 : f32 to vector<2x64x128xf32>
    %145 = arith.addf %144, %143 : vector<2x64x128xf32>
    %146 = arith.divf %144, %145 : vector<2x64x128xf32>
    %147 = arith.mulf %141, %146 : vector<2x64x128xf32>
    %c0_115 = arith.constant 0 : index
    %c0_116 = arith.constant 0 : index
    %148 = vector.load %arg11[%c0_115, %c0_116] : memref<1x128xf32, #tpu.memory_space<vmem>>, vector<1x128xf32>
    %cst_117 = arith.constant 0.000000e+00 : bf16
    %149 = vector.broadcast %cst_117 : bf16 to vector<2x1x10x128xbf16>
    %c0_118 = arith.constant 0 : index
    %c0_119 = arith.constant 0 : index
    %c0_120 = arith.constant 0 : index
    %c0_121 = arith.constant 0 : index
    %150 = vector.load %arg14[%c0_118, %c0_119, %c0_120, %c0_121] : memref<2x10x10x128xbf16, #tpu.memory_space<vmem>>, vector<2x1x10x128xbf16>
    tpu.vector_store %arg14[%c0_118, %c0_119, %c0_120, %c0_121], %149 {strides = array<i32>} : memref<2x10x10x128xbf16, #tpu.memory_space<vmem>>, vector<2x1x10x128xbf16>,
    %c0_122 = arith.constant 0 : index
    %c9_123 = arith.constant 9 : index
    %c0_124 = arith.constant 0 : index
    %c0_125 = arith.constant 0 : index
    %151 = vector.load %arg14[%c0_122, %c9_123, %c0_124, %c0_125] : memref<2x10x10x128xbf16, #tpu.memory_space<vmem>>, vector<2x1x10x128xbf16>
    tpu.vector_store %arg14[%c0_122, %c9_123, %c0_124, %c0_125], %149 {strides = array<i32>} : memref<2x10x10x128xbf16, #tpu.memory_space<vmem>>, vector<2x1x10x128xbf16>,
    %152 = vector.shape_cast %147 : vector<2x64x128xf32> to vector<2x8x8x128xf32>
    %153 = arith.truncf %152 : vector<2x8x8x128xf32> to vector<2x8x8x128xbf16>
    %c0_126 = arith.constant 0 : index
    %c1_127 = arith.constant 1 : index
    %c1_128 = arith.constant 1 : index
    %c0_129 = arith.constant 0 : index
    %154 = vector.load %arg14[%c0_126, %c1_127, %c1_128, %c0_129] : memref<2x10x10x128xbf16, #tpu.memory_space<vmem>>, vector<2x8x8x128xbf16>
    tpu.vector_store %arg14[%c0_126, %c1_127, %c1_128, %c0_129], %153 {strides = array<i32>} : memref<2x10x10x128xbf16, #tpu.memory_space<vmem>>, vector<2x8x8x128xbf16>,
    %155 = tpu.iota {dimensions = array<i32: 2>} : vector<2x8x8x128xi32>
    %c1_i32_130 = arith.constant 1 : i32
    %156 = vector.broadcast %c1_i32_130 : i32 to vector<2x8x8x128xi32>
    %157 = arith.cmpi sge, %155, %156 : vector<2x8x8x128xi32>
    %c6_i32_131 = arith.constant 6 : i32
    %158 = vector.broadcast %c6_i32_131 : i32 to vector<2x8x8x128xi32>
    %159 = arith.cmpi sle, %155, %158 : vector<2x8x8x128xi32>
    %cst_132 = arith.constant 0.000000e+00 : f32
    %160 = vector.broadcast %cst_132 : f32 to vector<128x128xf32>
    %c0_133 = arith.constant 0 : index
    %c0_134 = arith.constant 0 : index
    %c0_135 = arith.constant 0 : index
    %c0_136 = arith.constant 0 : index
    %161 = vector.load %arg14[%c0_133, %c0_134, %c0_135, %c0_136] : memref<2x10x10x128xbf16, #tpu.memory_space<vmem>>, vector<2x8x8x128xbf16>
    %cst_137 = arith.constant 0.000000e+00 : bf16
    %162 = vector.broadcast %cst_137 : bf16 to vector<2x8x8x128xbf16>
    %163 = arith.select %157, %161, %162 : vector<2x8x8x128xi1>, vector<2x8x8x128xbf16>
    %164 = vector.shape_cast %163 : vector<2x8x8x128xbf16> to vector<128x128xbf16>
    %c0_138 = arith.constant 0 : index
    %c0_139 = arith.constant 0 : index
    %c0_140 = arith.constant 0 : index
    %165 = vector.load %arg10[%c0_138, %c0_139, %c0_140] : memref<9x128x128xbf16, #tpu.memory_space<vmem>>, vector<1x128x128xbf16>
    %166 = vector.shape_cast %165 : vector<1x128x128xbf16> to vector<128x128xbf16>
    %cst_141 = arith.constant dense<0.000000e+00> : vector<128x128xf32>
    %167 = tpu.matmul %164, %166, %cst_141 {dimension_numbers = #tpu.dot_dimension_numbers<[1], [0], [0], [1], [0, 0, 1, 1], [], []>} : vector<128x128xbf16>, vector<128x128xbf16>, vector<128x128xf32> -> vector<128x128xf32>
    %168 = arith.addf %160, %167 : vector<128x128xf32>
    %c0_142 = arith.constant 0 : index
    %c0_143 = arith.constant 0 : index
    %c1_144 = arith.constant 1 : index
    %c0_145 = arith.constant 0 : index
    %169 = vector.load %arg14[%c0_142, %c0_143, %c1_144, %c0_145] : memref<2x10x10x128xbf16, #tpu.memory_space<vmem>>, vector<2x8x8x128xbf16>
    %170 = vector.shape_cast %169 : vector<2x8x8x128xbf16> to vector<128x128xbf16>
    %c1_146 = arith.constant 1 : index
    %c0_147 = arith.constant 0 : index
    %c0_148 = arith.constant 0 : index
    %171 = vector.load %arg10[%c1_146, %c0_147, %c0_148] : memref<9x128x128xbf16, #tpu.memory_space<vmem>>, vector<1x128x128xbf16>
    %172 = vector.shape_cast %171 : vector<1x128x128xbf16> to vector<128x128xbf16>
    %cst_149 = arith.constant dense<0.000000e+00> : vector<128x128xf32>
    %173 = tpu.matmul %170, %172, %cst_149 {dimension_numbers = #tpu.dot_dimension_numbers<[1], [0], [0], [1], [0, 0, 1, 1], [], []>} : vector<128x128xbf16>, vector<128x128xbf16>, vector<128x128xf32> -> vector<128x128xf32>
    %174 = arith.addf %168, %173 : vector<128x128xf32>
    %c0_150 = arith.constant 0 : index
    %c0_151 = arith.constant 0 : index
    %c2_152 = arith.constant 2 : index
    %c0_153 = arith.constant 0 : index
    %175 = vector.load %arg14[%c0_150, %c0_151, %c2_152, %c0_153] : memref<2x10x10x128xbf16, #tpu.memory_space<vmem>>, vector<2x8x8x128xbf16>
    %cst_154 = arith.constant 0.000000e+00 : bf16
    %176 = vector.broadcast %cst_154 : bf16 to vector<2x8x8x128xbf16>
    %177 = arith.select %159, %175, %176 : vector<2x8x8x128xi1>, vector<2x8x8x128xbf16>
    %178 = vector.shape_cast %177 : vector<2x8x8x128xbf16> to vector<128x128xbf16>
    %c2_155 = arith.constant 2 : index
    %c0_156 = arith.constant 0 : index
    %c0_157 = arith.constant 0 : index
    %179 = vector.load %arg10[%c2_155, %c0_156, %c0_157] : memref<9x128x128xbf16, #tpu.memory_space<vmem>>, vector<1x128x128xbf16>
    %180 = vector.shape_cast %179 : vector<1x128x128xbf16> to vector<128x128xbf16>
    %cst_158 = arith.constant dense<0.000000e+00> : vector<128x128xf32>
    %181 = tpu.matmul %178, %180, %cst_158 {dimension_numbers = #tpu.dot_dimension_numbers<[1], [0], [0], [1], [0, 0, 1, 1], [], []>} : vector<128x128xbf16>, vector<128x128xbf16>, vector<128x128xf32> -> vector<128x128xf32>
    %182 = arith.addf %174, %181 : vector<128x128xf32>
    %c0_159 = arith.constant 0 : index
    %c1_160 = arith.constant 1 : index
    %c0_161 = arith.constant 0 : index
    %c0_162 = arith.constant 0 : index
    %183 = vector.load %arg14[%c0_159, %c1_160, %c0_161, %c0_162] : memref<2x10x10x128xbf16, #tpu.memory_space<vmem>>, vector<2x8x8x128xbf16>
    %cst_163 = arith.constant 0.000000e+00 : bf16
    %184 = vector.broadcast %cst_163 : bf16 to vector<2x8x8x128xbf16>
    %185 = arith.select %157, %183, %184 : vector<2x8x8x128xi1>, vector<2x8x8x128xbf16>
    %186 = vector.shape_cast %185 : vector<2x8x8x128xbf16> to vector<128x128xbf16>
    %c3_164 = arith.constant 3 : index
    %c0_165 = arith.constant 0 : index
    %c0_166 = arith.constant 0 : index
    %187 = vector.load %arg10[%c3_164, %c0_165, %c0_166] : memref<9x128x128xbf16, #tpu.memory_space<vmem>>, vector<1x128x128xbf16>
    %188 = vector.shape_cast %187 : vector<1x128x128xbf16> to vector<128x128xbf16>
    %cst_167 = arith.constant dense<0.000000e+00> : vector<128x128xf32>
    %189 = tpu.matmul %186, %188, %cst_167 {dimension_numbers = #tpu.dot_dimension_numbers<[1], [0], [0], [1], [0, 0, 1, 1], [], []>} : vector<128x128xbf16>, vector<128x128xbf16>, vector<128x128xf32> -> vector<128x128xf32>
    %190 = arith.addf %182, %189 : vector<128x128xf32>
    %c0_168 = arith.constant 0 : index
    %c1_169 = arith.constant 1 : index
    %c1_170 = arith.constant 1 : index
    %c0_171 = arith.constant 0 : index
    %191 = vector.load %arg14[%c0_168, %c1_169, %c1_170, %c0_171] : memref<2x10x10x128xbf16, #tpu.memory_space<vmem>>, vector<2x8x8x128xbf16>
    %192 = vector.shape_cast %191 : vector<2x8x8x128xbf16> to vector<128x128xbf16>
    %c4_172 = arith.constant 4 : index
    %c0_173 = arith.constant 0 : index
    %c0_174 = arith.constant 0 : index
    %193 = vector.load %arg10[%c4_172, %c0_173, %c0_174] : memref<9x128x128xbf16, #tpu.memory_space<vmem>>, vector<1x128x128xbf16>
    %194 = vector.shape_cast %193 : vector<1x128x128xbf16> to vector<128x128xbf16>
    %cst_175 = arith.constant dense<0.000000e+00> : vector<128x128xf32>
    %195 = tpu.matmul %192, %194, %cst_175 {dimension_numbers = #tpu.dot_dimension_numbers<[1], [0], [0], [1], [0, 0, 1, 1], [], []>} : vector<128x128xbf16>, vector<128x128xbf16>, vector<128x128xf32> -> vector<128x128xf32>
    %196 = arith.addf %190, %195 : vector<128x128xf32>
    %c0_176 = arith.constant 0 : index
    %c1_177 = arith.constant 1 : index
    %c2_178 = arith.constant 2 : index
    %c0_179 = arith.constant 0 : index
    %197 = vector.load %arg14[%c0_176, %c1_177, %c2_178, %c0_179] : memref<2x10x10x128xbf16, #tpu.memory_space<vmem>>, vector<2x8x8x128xbf16>
    %cst_180 = arith.constant 0.000000e+00 : bf16
    %198 = vector.broadcast %cst_180 : bf16 to vector<2x8x8x128xbf16>
    %199 = arith.select %159, %197, %198 : vector<2x8x8x128xi1>, vector<2x8x8x128xbf16>
    %200 = vector.shape_cast %199 : vector<2x8x8x128xbf16> to vector<128x128xbf16>
    %c5_181 = arith.constant 5 : index
    %c0_182 = arith.constant 0 : index
    %c0_183 = arith.constant 0 : index
    %201 = vector.load %arg10[%c5_181, %c0_182, %c0_183] : memref<9x128x128xbf16, #tpu.memory_space<vmem>>, vector<1x128x128xbf16>
    %202 = vector.shape_cast %201 : vector<1x128x128xbf16> to vector<128x128xbf16>
    %cst_184 = arith.constant dense<0.000000e+00> : vector<128x128xf32>
    %203 = tpu.matmul %200, %202, %cst_184 {dimension_numbers = #tpu.dot_dimension_numbers<[1], [0], [0], [1], [0, 0, 1, 1], [], []>} : vector<128x128xbf16>, vector<128x128xbf16>, vector<128x128xf32> -> vector<128x128xf32>
    %204 = arith.addf %196, %203 : vector<128x128xf32>
    %c0_185 = arith.constant 0 : index
    %c2_186 = arith.constant 2 : index
    %c0_187 = arith.constant 0 : index
    %c0_188 = arith.constant 0 : index
    %205 = vector.load %arg14[%c0_185, %c2_186, %c0_187, %c0_188] : memref<2x10x10x128xbf16, #tpu.memory_space<vmem>>, vector<2x8x8x128xbf16>
    %cst_189 = arith.constant 0.000000e+00 : bf16
    %206 = vector.broadcast %cst_189 : bf16 to vector<2x8x8x128xbf16>
    %207 = arith.select %157, %205, %206 : vector<2x8x8x128xi1>, vector<2x8x8x128xbf16>
    %208 = vector.shape_cast %207 : vector<2x8x8x128xbf16> to vector<128x128xbf16>
    %c6_190 = arith.constant 6 : index
    %c0_191 = arith.constant 0 : index
    %c0_192 = arith.constant 0 : index
    %209 = vector.load %arg10[%c6_190, %c0_191, %c0_192] : memref<9x128x128xbf16, #tpu.memory_space<vmem>>, vector<1x128x128xbf16>
    %210 = vector.shape_cast %209 : vector<1x128x128xbf16> to vector<128x128xbf16>
    %cst_193 = arith.constant dense<0.000000e+00> : vector<128x128xf32>
    %211 = tpu.matmul %208, %210, %cst_193 {dimension_numbers = #tpu.dot_dimension_numbers<[1], [0], [0], [1], [0, 0, 1, 1], [], []>} : vector<128x128xbf16>, vector<128x128xbf16>, vector<128x128xf32> -> vector<128x128xf32>
    %212 = arith.addf %204, %211 : vector<128x128xf32>
    %c0_194 = arith.constant 0 : index
    %c2_195 = arith.constant 2 : index
    %c1_196 = arith.constant 1 : index
    %c0_197 = arith.constant 0 : index
    %213 = vector.load %arg14[%c0_194, %c2_195, %c1_196, %c0_197] : memref<2x10x10x128xbf16, #tpu.memory_space<vmem>>, vector<2x8x8x128xbf16>
    %214 = vector.shape_cast %213 : vector<2x8x8x128xbf16> to vector<128x128xbf16>
    %c7_198 = arith.constant 7 : index
    %c0_199 = arith.constant 0 : index
    %c0_200 = arith.constant 0 : index
    %215 = vector.load %arg10[%c7_198, %c0_199, %c0_200] : memref<9x128x128xbf16, #tpu.memory_space<vmem>>, vector<1x128x128xbf16>
    %216 = vector.shape_cast %215 : vector<1x128x128xbf16> to vector<128x128xbf16>
    %cst_201 = arith.constant dense<0.000000e+00> : vector<128x128xf32>
    %217 = tpu.matmul %214, %216, %cst_201 {dimension_numbers = #tpu.dot_dimension_numbers<[1], [0], [0], [1], [0, 0, 1, 1], [], []>} : vector<128x128xbf16>, vector<128x128xbf16>, vector<128x128xf32> -> vector<128x128xf32>
    %218 = arith.addf %212, %217 : vector<128x128xf32>
    %c0_202 = arith.constant 0 : index
    %c2_203 = arith.constant 2 : index
    %c2_204 = arith.constant 2 : index
    %c0_205 = arith.constant 0 : index
    %219 = vector.load %arg14[%c0_202, %c2_203, %c2_204, %c0_205] : memref<2x10x10x128xbf16, #tpu.memory_space<vmem>>, vector<2x8x8x128xbf16>
    %cst_206 = arith.constant 0.000000e+00 : bf16
    %220 = vector.broadcast %cst_206 : bf16 to vector<2x8x8x128xbf16>
    %221 = arith.select %159, %219, %220 : vector<2x8x8x128xi1>, vector<2x8x8x128xbf16>
    %222 = vector.shape_cast %221 : vector<2x8x8x128xbf16> to vector<128x128xbf16>
    %c8_207 = arith.constant 8 : index
    %c0_208 = arith.constant 0 : index
    %c0_209 = arith.constant 0 : index
    %223 = vector.load %arg10[%c8_207, %c0_208, %c0_209] : memref<9x128x128xbf16, #tpu.memory_space<vmem>>, vector<1x128x128xbf16>
    %224 = vector.shape_cast %223 : vector<1x128x128xbf16> to vector<128x128xbf16>
    %cst_210 = arith.constant dense<0.000000e+00> : vector<128x128xf32>
    %225 = tpu.matmul %222, %224, %cst_210 {dimension_numbers = #tpu.dot_dimension_numbers<[1], [0], [0], [1], [0, 0, 1, 1], [], []>} : vector<128x128xbf16>, vector<128x128xbf16>, vector<128x128xf32> -> vector<128x128xf32>
    %226 = arith.addf %218, %225 : vector<128x128xf32>
    %227 = vector.broadcast %148 : vector<1x128xf32> to vector<128x128xf32>
    %228 = arith.addf %226, %227 : vector<128x128xf32>
    %229 = vector.shape_cast %228 : vector<128x128xf32> to vector<2x64x128xf32>
    %230 = vector.shape_cast %229 : vector<2x64x128xf32> to vector<2x8x8x128xf32>
    %c0_211 = arith.constant 0 : index
    %c0_212 = arith.constant 0 : index
    %c0_213 = arith.constant 0 : index
    %c0_214 = arith.constant 0 : index
    %231 = vector.load %arg12[%c0_211, %c0_212, %c0_213, %c0_214] : memref<2x8x8x128xf32, #tpu.memory_space<vmem>>, vector<2x8x8x128xf32>
    tpu.vector_store %arg12[%c0_211, %c0_212, %c0_213, %c0_214], %230 {strides = array<i32>} : memref<2x8x8x128xf32, #tpu.memory_space<vmem>>, vector<2x8x8x128xf32>,
    return
  }
  func.func @transform_0(%arg0: i32) -> (i32, i32, i32, i32) {
    %c0_i32 = arith.constant 0 : i32
    %c0_i32_0 = arith.constant 0 : i32
    %c0_i32_1 = arith.constant 0 : i32
    %c0_i32_2 = arith.constant 0 : i32
    return %arg0, %c0_i32, %c0_i32_0, %c0_i32_1 : i32, i32, i32, i32
  }
  func.func @transform_1(%arg0: i32) -> (i32, i32) {
    %c0_i32 = arith.constant 0 : i32
    %c0_i32_0 = arith.constant 0 : i32
    %c0_i32_1 = arith.constant 0 : i32
    return %c0_i32, %c0_i32_0 : i32, i32
  }
  func.func @transform_2(%arg0: i32) -> (i32, i32) {
    %c0_i32 = arith.constant 0 : i32
    %c0_i32_0 = arith.constant 0 : i32
    %c0_i32_1 = arith.constant 0 : i32
    return %c0_i32, %c0_i32_0 : i32, i32
  }
  func.func @transform_3(%arg0: i32) -> (i32, i32) {
    %c0_i32 = arith.constant 0 : i32
    %c0_i32_0 = arith.constant 0 : i32
    %c0_i32_1 = arith.constant 0 : i32
    return %c0_i32, %c0_i32_0 : i32, i32
  }
  func.func @transform_4(%arg0: i32) -> (i32, i32, i32) {
    %c0_i32 = arith.constant 0 : i32
    %c0_i32_0 = arith.constant 0 : i32
    %c0_i32_1 = arith.constant 0 : i32
    %c0_i32_2 = arith.constant 0 : i32
    return %c0_i32, %c0_i32_0, %c0_i32_1 : i32, i32, i32
  }
  func.func @transform_5(%arg0: i32) -> (i32, i32) {
    %c0_i32 = arith.constant 0 : i32
    %c0_i32_0 = arith.constant 0 : i32
    %c0_i32_1 = arith.constant 0 : i32
    return %c0_i32, %c0_i32_0 : i32, i32
  }
  func.func @transform_6(%arg0: i32) -> (i32, i32) {
    %c0_i32 = arith.constant 0 : i32
    %c0_i32_0 = arith.constant 0 : i32
    %c0_i32_1 = arith.constant 0 : i32
    return %c0_i32, %c0_i32_0 : i32, i32
  }
  func.func @transform_7(%arg0: i32) -> (i32, i32) {
    %c0_i32 = arith.constant 0 : i32
    %c0_i32_0 = arith.constant 0 : i32
    %c0_i32_1 = arith.constant 0 : i32
    return %c0_i32, %c0_i32_0 : i32, i32
  }
  func.func @transform_8(%arg0: i32) -> (i32, i32) {
    %c0_i32 = arith.constant 0 : i32
    %c0_i32_0 = arith.constant 0 : i32
    %c0_i32_1 = arith.constant 0 : i32
    return %c0_i32, %c0_i32_0 : i32, i32
  }
  func.func @transform_9(%arg0: i32) -> (i32, i32, i32) {
    %c0_i32 = arith.constant 0 : i32
    %c0_i32_0 = arith.constant 0 : i32
    %c0_i32_1 = arith.constant 0 : i32
    %c0_i32_2 = arith.constant 0 : i32
    return %c0_i32, %c0_i32_0, %c0_i32_1 : i32, i32, i32
  }
  func.func @transform_10(%arg0: i32) -> (i32, i32) {
    %c0_i32 = arith.constant 0 : i32
    %c0_i32_0 = arith.constant 0 : i32
    %c0_i32_1 = arith.constant 0 : i32
    return %c0_i32, %c0_i32_0 : i32, i32
  }
  func.func @transform_11(%arg0: i32) -> (i32, i32, i32, i32) {
    %c0_i32 = arith.constant 0 : i32
    %c0_i32_0 = arith.constant 0 : i32
    %c0_i32_1 = arith.constant 0 : i32
    %c0_i32_2 = arith.constant 0 : i32
    return %arg0, %c0_i32, %c0_i32_0, %c0_i32_1 : i32, i32, i32, i32
  }
}

</mosaic_0001>

<llo_original>
// kernel: tpu_custom_call.1
$region0: #{tpu_custom_call.1}
  #allocation0 [shape = 'u32[]', space=smem, size = 0x4, offset = 0x4, fixed_abs, tag = 'smem constant byte address 0x4 - core index']
  #allocation1 [shape = 'u32[144,128]{1,0:T(1,128)}', space=vmem, size = 0x12000, scoped, tag = 'internal scratch']
  #allocation2 [shape = 'bf16[2,10,10,128]{3,2,1,0:T(8,128)(2,1)}', space=vmem, size = 0x14000, scoped, tag = 'scratch operand']
  #allocation3 [shape = 'bf16[2,10,10,128]{3,2,1,0:T(8,128)(2,1)}', space=vmem, size = 0x14000, scoped, tag = 'scratch operand']
  %s0 = inlined_call_operand.hbm [shape: f32[4,8,8,128], index: 0, kind: input, shape index: {}]
  %s1 = inlined_call_operand.vmem [shape: f32[1,128], index: 1, kind: input, shape index: {}]
  %s2 = inlined_call_operand.vmem [shape: f32[1,128], index: 2, kind: input, shape index: {}]
  %s3 = inlined_call_operand.hbm [shape: f32[128,128], index: 3, kind: input, shape index: {}]
  %s4 = inlined_call_operand.hbm [shape: bf16[9,128,128], index: 4, kind: input, shape index: {}]
  %s5 = inlined_call_operand.vmem [shape: f32[1,128], index: 5, kind: input, shape index: {}]
  %s6 = inlined_call_operand.vmem [shape: f32[1,128], index: 6, kind: input, shape index: {}]
  %s7 = inlined_call_operand.vmem [shape: f32[1,128], index: 7, kind: input, shape index: {}]
  %s8 = inlined_call_operand.hbm [shape: f32[128,128], index: 8, kind: input, shape index: {}]
  %s9 = inlined_call_operand.hbm [shape: bf16[9,128,128], index: 9, kind: input, shape index: {}]
  %s10 = inlined_call_operand.vmem [shape: f32[1,128], index: 10, kind: input, shape index: {}]
  %s11 = inlined_call_operand.hbm [shape: f32[4,8,8,128], index: 11, kind: output, shape index: {}]
  %s12 = sld [smem:[#allocation0]]
  $region97: #{tpu_custom_call.1} parent=0
    _
  %s14 = ssub.s32 1, %s12
  %s15 = scalar_select 0, %s14, %s12
  $region1: #{tpu_custom_call.1} parent=0
    #allocation4 [shape = 'u8[131072]{0}', space=vmem, size = 0x20000, scoped, tag = 'input window, operand 0']
    #allocation5 [shape = 's32[2]{0}', space=sflag, size = 0x8, scoped, tag = 'scoped memory for tpu_custom_call.1']
    #allocation6 [shape = 's32[2]{0}', space=sflag, size = 0x8, scoped, tag = 'scoped memory for tpu_custom_call.1']
    #allocation7 [shape = 'u8[65536]{0}', space=vmem, size = 0x10000, scoped, tag = 'input window, operand 3, single buffered']
    #allocation8 [shape = 's32[1]{0}', space=sflag, size = 0x4, scoped, tag = 'scoped memory for tpu_custom_call.1']
    #allocation9 [shape = 'u8[294912]{0}', space=vmem, size = 0x48000, scoped, tag = 'input window, operand 4, single buffered']
    #allocation10 [shape = 'u8[65536]{0}', space=vmem, size = 0x10000, scoped, tag = 'input window, operand 8, single buffered']
    #allocation11 [shape = 's32[1]{0}', space=sflag, size = 0x4, scoped, tag = 'scoped memory for tpu_custom_call.1']
    #allocation12 [shape = 'u8[294912]{0}', space=vmem, size = 0x48000, scoped, tag = 'input window, operand 9, single buffered']
    #allocation13 [shape = 'u8[131072]{0}', space=vmem, size = 0x20000, scoped, tag = 'output window, operand 0']
    %16 = vsyncpa [#allocation5], 0
    %s17 = scalar_lea.sflag [#allocation5], 1
    %18 = vsyncpa %s17, 0
    %19 = vsyncpa [#allocation8], 0
    %20 = vsyncpa [#allocation11], 0
    %21 = vsyncpa [#allocation6], 0
    %s22 = scalar_lea.sflag [#allocation6], 1
    %23 = vsyncpa %s22, 0
    loop: start=0, step=1, limit=4
    $region2: #{tpu_custom_call.1} parent=1 // loop_pre_header
      _
    $region3: #{tpu_custom_call.1} parent=1 // loop_header
      %s25 = sphi 0, %s29
      %p26 = scmp.ge.s32.totalorder %s25, 4
      %s35 = sphi 0, %s37
      %s38 = sphi 0, %s35
      %s39 = sphi 0, %s38
      %s55 = sphi 0, %s39
      %s59 = sphi 0, %s59
      %s61 = sphi 0, %s59
      %s62 = sphi 0, %s61
      %s76 = sphi 0, %s62
      %s80 = sphi 0, %s80
      %s82 = sphi 0, %s80
      %s83 = sphi 0, %s82
      %s97 = sphi 0, %s83
      %s101 = sphi 0, %s101
      %s103 = sphi 0, %s101
      %s104 = sphi 0, %s103
      %s118 = sphi 0, %s104
      %s122 = sphi 0, %s122
      %s124 = sphi 0, %s122
      %s125 = sphi 0, %s124
      %s139 = sphi 0, %s125
      %s143 = sphi 0, %s143
      %s145 = sphi 0, %s143
      %s146 = sphi 0, %s145
      %s160 = sphi 0, %s146
      %s164 = sphi 0, %s164
      %s166 = sphi 0, %s164
      %s167 = sphi 0, %s166
      %s181 = sphi 0, %s167
      %s185 = sphi 0, %s185
      %s187 = sphi 0, %s185
      %s188 = sphi 0, %s187
      %s202 = sphi 0, %s188
      %s206 = sphi 0, %s206
      %s208 = sphi 0, %s206
      %s209 = sphi 0, %s208
      %s223 = sphi 0, %s209
      %s227 = sphi 0, %s227
      %s229 = sphi 0, %s227
      %s230 = sphi 0, %s229
      %s244 = sphi 0, %s230
      %s248 = sphi 0, %s248
      %s250 = sphi 0, %s248
      %s251 = sphi 0, %s250
      %s265 = sphi 0, %s251
      %s271 = sphi 0, %s273
      %s274 = sphi 0, %s271
      %s275 = sphi 0, %s274
      %s291 = sphi 0, %s275
    $region4: #{tpu_custom_call.1} parent=1 // loop_header_branch
      %28 = sbr.rel (%p26) target = $region8
    $region5: #{tpu_custom_call.1} parent=1 // loop_body
      %s30 = ssub.s32 %s25, 1
      %s31 = ssub.s32 %s25, 2
      %s32 = sadd.s32 %s25, 1
      %s33 = ssub.s32 %s25, %s32
      %p34 = scmp.eq.s32.totalorder %s33, 0
      %s36 = sadd.s32 %s35, 1
      %s37 = scalar_select %p34, %s35, %s36
      %p40 = pneg %p34
      %p41 = scmp.eq.s32.totalorder %s25, 1
      %p42 = por %p40, %p41
      %p43 = scmp.ne.s32.totalorder %s35, %s38
      %p44 = scmp.eq.s32.totalorder %s25, 0
      %p45 = por %p43, %p44
      %p46 = scmp.ne.s32.totalorder %s35, %s38
      %p47 = scmp.eq.s32.totalorder %s30, 1
      %p48 = por %p46, %p47
      %p49 = scmp.ne.s32.totalorder %s38, %s39
      %p50 = scmp.eq.s32.totalorder %s30, 0
      %p51 = por %p49, %p50
      %p52 = scmp.ne.s32.totalorder %s38, %s39
      %p53 = scmp.eq.s32.totalorder %s31, 1
      %p54 = por %p52, %p53
      %p56 = scmp.ne.s32.totalorder %s39, %s55
      %p57 = scmp.eq.s32.totalorder %s31, 0
      %p58 = por %p56, %p57
      %s60 = sadd.s32 %s59, 1
      %p63 = scmp.eq.s32.totalorder %s25, 1
      %p64 = scmp.ne.s32.totalorder %s59, %s61
      %p65 = scmp.eq.s32.totalorder %s25, 0
      %p66 = por %p64, %p65
      %p67 = scmp.ne.s32.totalorder %s59, %s61
      %p68 = scmp.eq.s32.totalorder %s30, 1
      %p69 = por %p67, %p68
      %p70 = scmp.ne.s32.totalorder %s61, %s62
      %p71 = scmp.eq.s32.totalorder %s30, 0
      %p72 = por %p70, %p71
      %p73 = scmp.ne.s32.totalorder %s61, %s62
      %p74 = scmp.eq.s32.totalorder %s31, 1
      %p75 = por %p73, %p74
      %p77 = scmp.ne.s32.totalorder %s62, %s76
      %p78 = scmp.eq.s32.totalorder %s31, 0
      %p79 = por %p77, %p78
      %s81 = sadd.s32 %s80, 1
      %p84 = scmp.eq.s32.totalorder %s25, 1
      %p85 = scmp.ne.s32.totalorder %s80, %s82
      %p86 = scmp.eq.s32.totalorder %s25, 0
      %p87 = por %p85, %p86
      %p88 = scmp.ne.s32.totalorder %s80, %s82
      %p89 = scmp.eq.s32.totalorder %s30, 1
      %p90 = por %p88, %p89
      %p91 = scmp.ne.s32.totalorder %s82, %s83
      %p92 = scmp.eq.s32.totalorder %s30, 0
      %p93 = por %p91, %p92
      %p94 = scmp.ne.s32.totalorder %s82, %s83
      %p95 = scmp.eq.s32.totalorder %s31, 1
      %p96 = por %p94, %p95
      %p98 = scmp.ne.s32.totalorder %s83, %s97
      %p99 = scmp.eq.s32.totalorder %s31, 0
      %p100 = por %p98, %p99
      %s102 = sadd.s32 %s101, 1
      %p105 = scmp.eq.s32.totalorder %s25, 1
      %p106 = scmp.ne.s32.totalorder %s101, %s103
      %p107 = scmp.eq.s32.totalorder %s25, 0
      %p108 = por %p106, %p107
      %p109 = scmp.ne.s32.totalorder %s101, %s103
      %p110 = scmp.eq.s32.totalorder %s30, 1
      %p111 = por %p109, %p110
      %p112 = scmp.ne.s32.totalorder %s103, %s104
      %p113 = scmp.eq.s32.totalorder %s30, 0
      %p114 = por %p112, %p113
      %p115 = scmp.ne.s32.totalorder %s103, %s104
      %p116 = scmp.eq.s32.totalorder %s31, 1
      %p117 = por %p115, %p116
      %p119 = scmp.ne.s32.totalorder %s104, %s118
      %p120 = scmp.eq.s32.totalorder %s31, 0
      %p121 = por %p119, %p120
      %s123 = sadd.s32 %s122, 1
      %p126 = scmp.eq.s32.totalorder %s25, 1
      %p127 = scmp.ne.s32.totalorder %s122, %s124
      %p128 = scmp.eq.s32.totalorder %s25, 0
      %p129 = por %p127, %p128
      %p130 = scmp.ne.s32.totalorder %s122, %s124
      %p131 = scmp.eq.s32.totalorder %s30, 1
      %p132 = por %p130, %p131
      %p133 = scmp.ne.s32.totalorder %s124, %s125
      %p134 = scmp.eq.s32.totalorder %s30, 0
      %p135 = por %p133, %p134
      %p136 = scmp.ne.s32.totalorder %s124, %s125
      %p137 = scmp.eq.s32.totalorder %s31, 1
      %p138 = por %p136, %p137
      %p140 = scmp.ne.s32.totalorder %s125, %s139
      %p141 = scmp.eq.s32.totalorder %s31, 0
      %p142 = por %p140, %p141
      %s144 = sadd.s32 %s143, 1
      %p147 = scmp.eq.s32.totalorder %s25, 1
      %p148 = scmp.ne.s32.totalorder %s143, %s145
      %p149 = scmp.eq.s32.totalorder %s25, 0
      %p150 = por %p148, %p149
      %p151 = scmp.ne.s32.totalorder %s143, %s145
      %p152 = scmp.eq.s32.totalorder %s30, 1
      %p153 = por %p151, %p152
      %p154 = scmp.ne.s32.totalorder %s145, %s146
      %p155 = scmp.eq.s32.totalorder %s30, 0
      %p156 = por %p154, %p155
      %p157 = scmp.ne.s32.totalorder %s145, %s146
      %p158 = scmp.eq.s32.totalorder %s31, 1
      %p159 = por %p157, %p158
      %p161 = scmp.ne.s32.totalorder %s146, %s160
      %p162 = scmp.eq.s32.totalorder %s31, 0
      %p163 = por %p161, %p162
      %s165 = sadd.s32 %s164, 1
      %p168 = scmp.eq.s32.totalorder %s25, 1
      %p169 = scmp.ne.s32.totalorder %s164, %s166
      %p170 = scmp.eq.s32.totalorder %s25, 0
      %p171 = por %p169, %p170
      %p172 = scmp.ne.s32.totalorder %s164, %s166
      %p173 = scmp.eq.s32.totalorder %s30, 1
      %p174 = por %p172, %p173
      %p175 = scmp.ne.s32.totalorder %s166, %s167
      %p176 = scmp.eq.s32.totalorder %s30, 0
      %p177 = por %p175, %p176
      %p178 = scmp.ne.s32.totalorder %s166, %s167
      %p179 = scmp.eq.s32.totalorder %s31, 1
      %p180 = por %p178, %p179
      %p182 = scmp.ne.s32.totalorder %s167, %s181
      %p183 = scmp.eq.s32.totalorder %s31, 0
      %p184 = por %p182, %p183
      %s186 = sadd.s32 %s185, 1
      %p189 = scmp.eq.s32.totalorder %s25, 1
      %p190 = scmp.ne.s32.totalorder %s185, %s187
      %p191 = scmp.eq.s32.totalorder %s25, 0
      %p192 = por %p190, %p191
      %p193 = scmp.ne.s32.totalorder %s185, %s187
      %p194 = scmp.eq.s32.totalorder %s30, 1
      %p195 = por %p193, %p194
      %p196 = scmp.ne.s32.totalorder %s187, %s188
      %p197 = scmp.eq.s32.totalorder %s30, 0
      %p198 = por %p196, %p197
      %p199 = scmp.ne.s32.totalorder %s187, %s188
      %p200 = scmp.eq.s32.totalorder %s31, 1
      %p201 = por %p199, %p200
      %p203 = scmp.ne.s32.totalorder %s188, %s202
      %p204 = scmp.eq.s32.totalorder %s31, 0
      %p205 = por %p203, %p204
      %s207 = sadd.s32 %s206, 1
      %p210 = scmp.eq.s32.totalorder %s25, 1
      %p211 = scmp.ne.s32.totalorder %s206, %s208
      %p212 = scmp.eq.s32.totalorder %s25, 0
      %p213 = por %p211, %p212
      %p214 = scmp.ne.s32.totalorder %s206, %s208
      %p215 = scmp.eq.s32.totalorder %s30, 1
      %p216 = por %p214, %p215
      %p217 = scmp.ne.s32.totalorder %s208, %s209
      %p218 = scmp.eq.s32.totalorder %s30, 0
      %p219 = por %p217, %p218
      %p220 = scmp.ne.s32.totalorder %s208, %s209
      %p221 = scmp.eq.s32.totalorder %s31, 1
      %p222 = por %p220, %p221
      %p224 = scmp.ne.s32.totalorder %s209, %s223
      %p225 = scmp.eq.s32.totalorder %s31, 0
      %p226 = por %p224, %p225
      %s228 = sadd.s32 %s227, 1
      %p231 = scmp.eq.s32.totalorder %s25, 1
      %p232 = scmp.ne.s32.totalorder %s227, %s229
      %p233 = scmp.eq.s32.totalorder %s25, 0
      %p234 = por %p232, %p233
      %p235 = scmp.ne.s32.totalorder %s227, %s229
      %p236 = scmp.eq.s32.totalorder %s30, 1
      %p237 = por %p235, %p236
      %p238 = scmp.ne.s32.totalorder %s229, %s230
      %p239 = scmp.eq.s32.totalorder %s30, 0
      %p240 = por %p238, %p239
      %p241 = scmp.ne.s32.totalorder %s229, %s230
      %p242 = scmp.eq.s32.totalorder %s31, 1
      %p243 = por %p241, %p242
      %p245 = scmp.ne.s32.totalorder %s230, %s244
      %p246 = scmp.eq.s32.totalorder %s31, 0
      %p247 = por %p245, %p246
      %s249 = sadd.s32 %s248, 1
      %p252 = scmp.eq.s32.totalorder %s25, 1
      %p253 = scmp.ne.s32.totalorder %s248, %s250
      %p254 = scmp.eq.s32.totalorder %s25, 0
      %p255 = por %p253, %p254
      %p256 = scmp.ne.s32.totalorder %s248, %s250
      %p257 = scmp.eq.s32.totalorder %s30, 1
      %p258 = por %p256, %p257
      %p259 = scmp.ne.s32.totalorder %s250, %s251
      %p260 = scmp.eq.s32.totalorder %s30, 0
      %p261 = por %p259, %p260
      %p262 = scmp.ne.s32.totalorder %s250, %s251
      %p263 = scmp.eq.s32.totalorder %s31, 1
      %p264 = por %p262, %p263
      %p266 = scmp.ne.s32.totalorder %s251, %s265
      %p267 = scmp.eq.s32.totalorder %s31, 0
      %p268 = por %p266, %p267
      %s269 = ssub.s32 %s25, %s32
      %p270 = scmp.eq.s32.totalorder %s269, 0
      %s272 = sadd.s32 %s271, 1
      %s273 = scalar_select %p270, %s271, %s272
      %p276 = pneg %p270
      %p277 = scmp.eq.s32.totalorder %s25, 1
      %p278 = por %p276, %p277
      %p279 = scmp.ne.s32.totalorder %s271, %s274
      %p280 = scmp.eq.s32.totalorder %s25, 0
      %p281 = por %p279, %p280
      %p282 = scmp.ne.s32.totalorder %s271, %s274
      %p283 = scmp.eq.s32.totalorder %s30, 1
      %p284 = por %p282, %p283
      %p285 = scmp.ne.s32.totalorder %s274, %s275
      %p286 = scmp.eq.s32.totalorder %s30, 0
      %p287 = por %p285, %p286
      %p288 = scmp.ne.s32.totalorder %s274, %s275
      %p289 = scmp.eq.s32.totalorder %s31, 1
      %p290 = por %p288, %p289
      %p292 = scmp.ne.s32.totalorder %s275, %s291
      %p293 = scmp.eq.s32.totalorder %s31, 0
      %p294 = por %p292, %p293
      %p295 = scmp.le.s32.totalorder 1, %s25
      %p296 = scmp.lt.s32.totalorder %s25, 3
      %p297 = pnand %p295, %p296
      %p298 = pneg %p297
      // Predicated region
      $region9: #{tpu_custom_call.1} parent=5 // pred_check
        _
      $region10: #{tpu_custom_call.1} parent=5 // pred_check_branch
        %300 = sbr.rel (%p297) target = $region12
      $region11: #{tpu_custom_call.1} parent=5 // pred_region
        %s301 = ssub.s32 %s25, 1
        // Predicated region
        $region13: #{tpu_custom_call.1} parent=11 // pred_check
          %p302 = pneg %p72
        $region14: #{tpu_custom_call.1} parent=11 // pred_check_branch
          %304 = sbr.rel (%p302) target = $region16
        $region15: #{tpu_custom_call.1} parent=11 // pred_region
          _
        $region16: #{tpu_custom_call.1} parent=11 // pred_fallthru
          _
        // Predicated region
        $region17: #{tpu_custom_call.1} parent=11 // pred_check
          %p305 = pneg %p93
        $region18: #{tpu_custom_call.1} parent=11 // pred_check_branch
          %307 = sbr.rel (%p305) target = $region20
        $region19: #{tpu_custom_call.1} parent=11 // pred_region
          _
        $region20: #{tpu_custom_call.1} parent=11 // pred_fallthru
          _
        // Predicated region
        $region21: #{tpu_custom_call.1} parent=11 // pred_check
          %p308 = pneg %p114
        $region22: #{tpu_custom_call.1} parent=11 // pred_check_branch
          %310 = sbr.rel (%p308) target = $region24
        $region23: #{tpu_custom_call.1} parent=11 // pred_region
          %s312 = ssub.s32 2048, 2048
          %313 = vsyncadd [#allocation8], %s312
          %s314 = sshll.u32 [#allocation7], 4
          %s315 = int_to_ptr.vmem [resolvable:$true] %s314
          %320 = dma.hbm_to_vmem [thread:$0]  %s3, 2048, %s315, [#allocation8], 128, 128, 8
        $region24: #{tpu_custom_call.1} parent=11 // pred_fallthru
          _
        // Predicated region
        $region25: #{tpu_custom_call.1} parent=11 // pred_check
          %p321 = pneg %p135
        $region26: #{tpu_custom_call.1} parent=11 // pred_check_branch
          %323 = sbr.rel (%p321) target = $region28
        $region27: #{tpu_custom_call.1} parent=11 // pred_region
          %s325 = ssub.s32 9216, 9216
          %326 = vsyncadd [#allocation8], %s325
          %s327 = sshll.u32 [#allocation9], 4
          %s328 = int_to_ptr.vmem [resolvable:$true] %s327
          %333 = dma.hbm_to_vmem [thread:$0]  %s4, 9216, %s328, [#allocation8], 64, 64, 4
        $region28: #{tpu_custom_call.1} parent=11 // pred_fallthru
          _
        // Predicated region
        $region29: #{tpu_custom_call.1} parent=11 // pred_check
          %p334 = pneg %p156
        $region30: #{tpu_custom_call.1} parent=11 // pred_check_branch
          %336 = sbr.rel (%p334) target = $region32
        $region31: #{tpu_custom_call.1} parent=11 // pred_region
          _
        $region32: #{tpu_custom_call.1} parent=11 // pred_fallthru
          _
        // Predicated region
        $region33: #{tpu_custom_call.1} parent=11 // pred_check
          %p337 = pneg %p177
        $region34: #{tpu_custom_call.1} parent=11 // pred_check_branch
          %339 = sbr.rel (%p337) target = $region36
        $region35: #{tpu_custom_call.1} parent=11 // pred_region
          _
        $region36: #{tpu_custom_call.1} parent=11 // pred_fallthru
          _
        // Predicated region
        $region37: #{tpu_custom_call.1} parent=11 // pred_check
          %p340 = pneg %p198
        $region38: #{tpu_custom_call.1} parent=11 // pred_check_branch
          %342 = sbr.rel (%p340) target = $region40
        $region39: #{tpu_custom_call.1} parent=11 // pred_region
          _
        $region40: #{tpu_custom_call.1} parent=11 // pred_fallthru
          _
        // Predicated region
        $region41: #{tpu_custom_call.1} parent=11 // pred_check
          %p343 = pneg %p219
        $region42: #{tpu_custom_call.1} parent=11 // pred_check_branch
          %345 = sbr.rel (%p343) target = $region44
        $region43: #{tpu_custom_call.1} parent=11 // pred_region
          %s347 = ssub.s32 2048, 2048
          %348 = vsyncadd [#allocation11], %s347
          %s349 = sshll.u32 [#allocation10], 4
          %s350 = int_to_ptr.vmem [resolvable:$true] %s349
          %355 = dma.hbm_to_vmem [thread:$0]  %s8, 2048, %s350, [#allocation11], 128, 128, 8
        $region44: #{tpu_custom_call.1} parent=11 // pred_fallthru
          _
        // Predicated region
        $region45: #{tpu_custom_call.1} parent=11 // pred_check
          %p356 = pneg %p240
        $region46: #{tpu_custom_call.1} parent=11 // pred_check_branch
          %358 = sbr.rel (%p356) target = $region48
        $region47: #{tpu_custom_call.1} parent=11 // pred_region
          %s360 = ssub.s32 9216, 9216
          %361 = vsyncadd [#allocation11], %s360
          %s362 = sshll.u32 [#allocation12], 4
          %s363 = int_to_ptr.vmem [resolvable:$true] %s362
          %368 = dma.hbm_to_vmem [thread:$0]  %s9, 9216, %s363, [#allocation11], 64, 64, 4
        $region48: #{tpu_custom_call.1} parent=11 // pred_fallthru
          _
        // Predicated region
        $region49: #{tpu_custom_call.1} parent=11 // pred_check
          %p369 = pneg %p261
        $region50: #{tpu_custom_call.1} parent=11 // pred_check_branch
          %371 = sbr.rel (%p369) target = $region52
        $region51: #{tpu_custom_call.1} parent=11 // pred_region
          _
        $region52: #{tpu_custom_call.1} parent=11 // pred_fallthru
          _
      $region12: #{tpu_custom_call.1} parent=5 // pred_fallthru
        _
      %p372 = scmp.lt.s32.totalorder %s25, 2
      // Predicated region
      $region53: #{tpu_custom_call.1} parent=5 // pred_check
        %p373 = pneg %p372
      $region54: #{tpu_custom_call.1} parent=5 // pred_check_branch
        %375 = sbr.rel (%p373) target = $region56
      $region55: #{tpu_custom_call.1} parent=5 // pred_region
        // Predicated region
        $region57: #{tpu_custom_call.1} parent=55 // pred_check
          %p376 = pneg %p45
        $region58: #{tpu_custom_call.1} parent=55 // pred_check_branch
          %378 = sbr.rel (%p376) target = $region60
        $region59: #{tpu_custom_call.1} parent=55 // pred_region
          %s379 = sand.u32 %s35, 1
          %s380 = scalar_lea.sflag [#allocation5], %s379
          %s381 = sand.u32 %s35, 1
          %s382 = smul.addr %s381, 128
          %s383 = scalar_lea.vmem [#allocation4], %s382
          %s384 = smul.u32 2, %s25
          %s386 = ssub.s32 2048, 2048
          %387 = vsyncadd %s380, %s386
          %s388 = smul.addr %s384, 8
          %s389 = smul.addr %s388, 128
          %s390 = scalar_lea.hbm %s0, %s389
          %s391 = sshll.u32 %s383, 4
          %s392 = int_to_ptr.vmem [resolvable:$true] %s391
          %397 = dma.hbm_to_vmem [thread:$0]  %s390, 2048, %s392, %s380, 128, 128, 8
        $region60: #{tpu_custom_call.1} parent=55 // pred_fallthru
          _
      $region56: #{tpu_custom_call.1} parent=5 // pred_fallthru
        _
      %p398 = scmp.le.s32.totalorder 1, %s25
      %p399 = scmp.lt.s32.totalorder %s25, 3
      %p400 = pnand %p398, %p399
      %p401 = pneg %p400
      // Predicated region
      $region61: #{tpu_custom_call.1} parent=5 // pred_check
        _
      $region62: #{tpu_custom_call.1} parent=5 // pred_check_branch
        %403 = sbr.rel (%p400) target = $region64
      $region63: #{tpu_custom_call.1} parent=5 // pred_region
        %s404 = ssub.s32 %s25, 1
        %s405 = sand.u32 %s38, 1
        %s406 = scalar_lea.sflag [#allocation5], %s405
        %s407 = sand.u32 %s38, 1
        %s408 = smul.addr %s407, 128
        %s409 = scalar_lea.vmem [#allocation4], %s408
        // Predicated region
        $region65: #{tpu_custom_call.1} parent=63 // pred_check
          %p410 = pneg %p51
        $region66: #{tpu_custom_call.1} parent=63 // pred_check_branch
          %412 = sbr.rel (%p410) target = $region68
        $region67: #{tpu_custom_call.1} parent=63 // pred_region
          %413 = dma.done %s406, 2048
        $region68: #{tpu_custom_call.1} parent=63 // pred_fallthru
          _
        // Predicated region
        $region69: #{tpu_custom_call.1} parent=63 // pred_check
          %p414 = pneg %p114
        $region70: #{tpu_custom_call.1} parent=63 // pred_check_branch
          %416 = sbr.rel (%p414) target = $region72
        $region71: #{tpu_custom_call.1} parent=63 // pred_region
          %417 = dma.done [#allocation8], 2048
        $region72: #{tpu_custom_call.1} parent=63 // pred_fallthru
          _
        // Predicated region
        $region73: #{tpu_custom_call.1} parent=63 // pred_check
          %p418 = pneg %p135
        $region74: #{tpu_custom_call.1} parent=63 // pred_check_branch
          %420 = sbr.rel (%p418) target = $region76
        $region75: #{tpu_custom_call.1} parent=63 // pred_region
          %421 = dma.done [#allocation8], 9216
        $region76: #{tpu_custom_call.1} parent=63 // pred_fallthru
          _
        // Predicated region
        $region77: #{tpu_custom_call.1} parent=63 // pred_check
          %p422 = pneg %p219
        $region78: #{tpu_custom_call.1} parent=63 // pred_check_branch
          %424 = sbr.rel (%p422) target = $region80
        $region79: #{tpu_custom_call.1} parent=63 // pred_region
          %425 = dma.done [#allocation11], 2048
        $region80: #{tpu_custom_call.1} parent=63 // pred_fallthru
          _
        // Predicated region
        $region81: #{tpu_custom_call.1} parent=63 // pred_check
          %p426 = pneg %p240
        $region82: #{tpu_custom_call.1} parent=63 // pred_check_branch
          %428 = sbr.rel (%p426) target = $region84
        $region83: #{tpu_custom_call.1} parent=63 // pred_region
          %429 = dma.done [#allocation11], 9216
        $region84: #{tpu_custom_call.1} parent=63 // pred_fallthru
          _
        %s430 = sand.u32 %s38, 1
        %s431 = scalar_lea.sflag [#allocation5], %s430
        %s432 = sand.u32 %s38, 1
        %s433 = smul.addr %s432, 128
        %s434 = scalar_lea.vmem [#allocation4], %s433
        %p435 = pneg %p51
        %p436 = pneg %p48
        %p437 = pneg %p72
        %p438 = pneg %p69
        %p439 = pneg %p93
        %p440 = pneg %p90
        %p441 = pneg %p114
        %p442 = pneg %p111
        %p443 = pneg %p135
        %p444 = pneg %p132
        %p445 = pneg %p156
        %p446 = pneg %p153
        %p447 = pneg %p177
        %p448 = pneg %p174
        %p449 = pneg %p198
        %p450 = pneg %p195
        %p451 = pneg %p219
        %p452 = pneg %p216
        %p453 = pneg %p240
        %p454 = pneg %p237
        %p455 = pneg %p261
        %p456 = pneg %p258
        %p457 = pneg %p287
        %p458 = pneg %p284
        %s459 = sand.u32 %s274, 1
        %s460 = scalar_lea.sflag [#allocation6], %s459
        %s461 = sand.u32 %s274, 1
        %s462 = smul.addr %s461, 128
        %s463 = scalar_lea.vmem [#allocation13], %s462
        %s464 = smul.u32 2, %s30
        %s465 = smul.u32 2, %s30
        %v469 = vld [vmem:[%s409] sm:$0xff]
        %v470 = vld [vmem:[%s409 + $0x8] sm:$0xff]
        %v471 = vld [vmem:[%s409 + $0x10] sm:$0xff]
        %v472 = vld [vmem:[%s409 + $0x18] sm:$0xff]
        %v473 = vld [vmem:[%s409 + $0x20] sm:$0xff]
        %v474 = vld [vmem:[%s409 + $0x28] sm:$0xff]
        %v475 = vld [vmem:[%s409 + $0x30] sm:$0xff]
        %v476 = vld [vmem:[%s409 + $0x38] sm:$0xff]
        %v477 = vld [vmem:[%s409 + $0x40] sm:$0xff]
        %v478 = vld [vmem:[%s409 + $0x48] sm:$0xff]
        %v479 = vld [vmem:[%s409 + $0x50] sm:$0xff]
        %v480 = vld [vmem:[%s409 + $0x58] sm:$0xff]
        %v481 = vld [vmem:[%s409 + $0x60] sm:$0xff]
        %v482 = vld [vmem:[%s409 + $0x68] sm:$0xff]
        %v483 = vld [vmem:[%s409 + $0x70] sm:$0xff]
        %v484 = vld [vmem:[%s409 + $0x78] sm:$0xff]
        %v485 = vld [vmem:[%s1] sm:$0x1]
        %v486 = vld [vmem:[%s2] sm:$0x1]
        %v487 = vld [vmem:[#allocation7] sm:$0xff]
        %v488 = vld [vmem:[#allocation7 + $0x8] sm:$0xff]
        %v489 = vld [vmem:[#allocation7 + $0x10] sm:$0xff]
        %v490 = vld [vmem:[#allocation7 + $0x18] sm:$0xff]
        %v491 = vld [vmem:[#allocation7 + $0x20] sm:$0xff]
        %v492 = vld [vmem:[#allocation7 + $0x28] sm:$0xff]
        %v493 = vld [vmem:[#allocation7 + $0x30] sm:$0xff]
        %v494 = vld [vmem:[#allocation7 + $0x38] sm:$0xff]
        %v495 = vld [vmem:[#allocation7 + $0x40] sm:$0xff]
        %v496 = vld [vmem:[#allocation7 + $0x48] sm:$0xff]
        %v497 = vld [vmem:[#allocation7 + $0x50] sm:$0xff]
        %v498 = vld [vmem:[#allocation7 + $0x58] sm:$0xff]
        %v499 = vld [vmem:[#allocation7 + $0x60] sm:$0xff]
        %v500 = vld [vmem:[#allocation7 + $0x68] sm:$0xff]
        %v501 = vld [vmem:[#allocation7 + $0x70] sm:$0xff]
        %v502 = vld [vmem:[#allocation7 + $0x78] sm:$0xff]
        %v503 = vadd.f32 %v469, %v470
        %v504 = vadd.f32 %v503, %v471
        %v505 = vadd.f32 %v504, %v472
        %v506 = vadd.f32 %v505, %v473
        %v507 = vadd.f32 %v506, %v474
        %v508 = vadd.f32 %v507, %v475
        %v509 = vadd.f32 %v508, %v476
        %v510 = vrot.slane %v509, 4
        %v511 = vadd.f32 %v509, %v510
        %v512 = vrot.slane %v511, 2
        %v513 = vadd.f32 %v511, %v512
        %v514 = vrot.slane %v513, 1
        %v515 = vadd.f32 %v513, %v514
        %v516 = vadd.f32 %v477, %v478
        %v517 = vadd.f32 %v516, %v479
        %v518 = vadd.f32 %v517, %v480
        %v519 = vadd.f32 %v518, %v481
        %v520 = vadd.f32 %v519, %v482
        %v521 = vadd.f32 %v520, %v483
        %v522 = vadd.f32 %v521, %v484
        %v523 = vrot.slane %v522, 4
        %v524 = vadd.f32 %v522, %v523
        %v525 = vrot.slane %v524, 2
        %v526 = vadd.f32 %v524, %v525
        %v527 = vrot.slane %v526, 1
        %v528 = vadd.f32 %v526, %v527
        %v529 = vrcp.pop 64.0
        %v530 = vmul.f32 %v515, %v529
        %v531 = vmul.f32 %v528, %v529
        %vm534 = vcmask 1041409
        %v535 = vsel %vm534, %v531, %v530
        %537 = vmatprep.subr.mxu0 0.0
        %538 = vmatpush1.msra.mxu0 %v502
        %539 = vmatprep.subr.mxu0 0.0
        %540 = vmatpush1.msra.mxu0 %v501
        %541 = vmatprep.subr.mxu0 0.0
        %542 = vmatpush1.msra.mxu0 %v500
        %543 = vmatprep.subr.mxu0 0.0
        %544 = vmatpush1.msra.mxu0 %v499
        %545 = vmatprep.subr.mxu0 0.0
        %546 = vmatpush1.msra.mxu0 %v498
        %547 = vmatprep.subr.mxu0 0.0
        %548 = vmatpush1.msra.mxu0 %v497
        %549 = vmatprep.subr.mxu0 0.0
        %550 = vmatpush1.msra.mxu0 %v496
        %551 = vmatprep.subr.mxu0 0.0
        %552 = vmatpush1.msra.mxu0 %v495
        %553 = vmatprep.subr.mxu0 0.0
        %554 = vmatpush1.msra.mxu0 %v494
        %555 = vmatprep.subr.mxu0 0.0
        %556 = vmatpush1.msra.mxu0 %v493
        %557 = vmatprep.subr.mxu0 0.0
        %558 = vmatpush1.msra.mxu0 %v492
        %559 = vmatprep.subr.mxu0 0.0
        %560 = vmatpush1.msra.mxu0 %v491
        %561 = vmatprep.subr.mxu0 0.0
        %562 = vmatpush1.msra.mxu0 %v490
        %563 = vmatprep.subr.mxu0 0.0
        %564 = vmatpush1.msra.mxu0 %v489
        %565 = vmatprep.subr.mxu0 0.0
        %566 = vmatpush1.msra.mxu0 %v488
        %567 = vmatprep.subr.mxu0 0.0
        %568 = vmatpush1.msra.mxu0 %v487
        %569 = vmatprep.subr.mxu0 0.0
        %570 = vmatpush2.msra.mxu0 0.0
        %571 = vmatprep.subr.mxu0 0.0
        %572 = vmatpush2.msra.mxu0 0.0
        %573 = vmatprep.subr.mxu0 0.0
        %574 = vmatpush2.msra.mxu0 0.0
        %575 = vmatprep.subr.mxu0 0.0
        %576 = vmatpush2.msra.mxu0 0.0
        %577 = vmatprep.subr.mxu0 0.0
        %578 = vmatpush2.msra.mxu0 0.0
        %579 = vmatprep.subr.mxu0 0.0
        %580 = vmatpush2.msra.mxu0 0.0
        %581 = vmatprep.subr.mxu0 0.0
        %582 = vmatpush2.msra.mxu0 0.0
        %583 = vmatprep.subr.mxu0 0.0
        %584 = vmatpush2.msra.mxu0 0.0
        %585 = vmatprep.subr.mxu0 0.0
        %586 = vmatpush2.msra.mxu0 0.0
        %587 = vmatprep.subr.mxu0 0.0
        %588 = vmatpush2.msra.mxu0 0.0
        %589 = vmatprep.subr.mxu0 0.0
        %590 = vmatpush2.msra.mxu0 0.0
        %591 = vmatprep.subr.mxu0 0.0
        %592 = vmatpush2.msra.mxu0 0.0
        %593 = vmatprep.subr.mxu0 0.0
        %594 = vmatpush2.msra.mxu0 0.0
        %595 = vmatprep.subr.mxu0 0.0
        %596 = vmatpush2.msra.mxu0 0.0
        %597 = vmatprep.subr.mxu0 0.0
        %598 = vmatpush2.msra.mxu0 0.0
        %599 = vmatprep.subr.mxu0 0.0
        %600 = vmatpush2.msra.mxu0 0.0
        %601 = vmatprep.mubr.f32.mxu0 0.0
        %602 = vmatmul.mubr.f32.gmra.mxu0 %v535
        %v603 = vpop.f32.mrf.mxu0
        %v604 = vadd.f32 0.0, %v603
        %v605 = vpop.f32.mrf.mxu0
        %606 = vdwg.mxu0
        %v609 = vunpack.c.l.s4 1966171168
        %v610 = vunpack.c.0.s8 %v609
        %v611 = vlaneseq
        %v612 = vshrl.u32 %v611, 7
        %v613 = vsub.s32 %v610, %v612
        %v614 = vrot.slane %v604, %v613
        %v615 = vcombine.high %v614, %v614
        %v617 = vunpack.c.l.s4 1966171168
        %v618 = vunpack.c.0.s8 %v617
        %v619 = vlaneseq
        %v620 = vshrl.u32 %v619, 7
        %v621 = vsub.s32 %v618, %v620
        %v622 = vrot.slane %v614, %v621
        %v624 = vunpack.c.l.s4 1966171168
        %v625 = vunpack.c.0.s8 %v624
        %v626 = vlaneseq
        %v627 = vshrl.u32 %v626, 7
        %v628 = vsub.s32 %v625, %v627
        %v629 = vrot.slane %v615, %v628
        %v630 = vlaneseq
        %v631 = vshrl.u32 %v630, 7
        %v632 = vsub.s32 0, %v631
        %v633 = vrot.slane %v622, %v632
        %v634 = vlaneseq
        %v635 = vshrl.u32 %v634, 7
        %v636 = vsub.s32 0, %v635
        %v637 = vrot.slane %v629, %v636
        %v640 = vsub.f32 %v469, %v633
        %v641 = vsub.f32 %v470, %v633
        %v642 = vsub.f32 %v471, %v633
        %v643 = vsub.f32 %v472, %v633
        %v644 = vsub.f32 %v473, %v633
        %v645 = vsub.f32 %v474, %v633
        %v646 = vsub.f32 %v475, %v633
        %v647 = vsub.f32 %v476, %v633
        %v648 = vsub.f32 %v477, %v637
        %v649 = vsub.f32 %v478, %v637
        %v650 = vsub.f32 %v479, %v637
        %v651 = vsub.f32 %v480, %v637
        %v652 = vsub.f32 %v481, %v637
        %v653 = vsub.f32 %v482, %v637
        %v654 = vsub.f32 %v483, %v637
        %v655 = vsub.f32 %v484, %v637
        %v656 = vmul.f32 %v640, %v640
        %v657 = vmul.f32 %v641, %v641
        %v658 = vmul.f32 %v642, %v642
        %v659 = vmul.f32 %v643, %v643
        %v660 = vmul.f32 %v644, %v644
        %v661 = vmul.f32 %v645, %v645
        %v662 = vmul.f32 %v646, %v646
        %v663 = vmul.f32 %v647, %v647
        %v664 = vmul.f32 %v648, %v648
        %v665 = vmul.f32 %v649, %v649
        %v666 = vmul.f32 %v650, %v650
        %v667 = vmul.f32 %v651, %v651
        %v668 = vmul.f32 %v652, %v652
        %v669 = vmul.f32 %v653, %v653
        %v670 = vmul.f32 %v654, %v654
        %v671 = vmul.f32 %v655, %v655
        %v672 = vadd.f32 %v656, %v657
        %v673 = vadd.f32 %v672, %v658
        %v674 = vadd.f32 %v673, %v659
        %v675 = vadd.f32 %v674, %v660
        %v676 = vadd.f32 %v675, %v661
        %v677 = vadd.f32 %v676, %v662
        %v678 = vadd.f32 %v677, %v663
        %v679 = vrot.slane %v678, 4
        %v680 = vadd.f32 %v678, %v679
        %v681 = vrot.slane %v680, 2
        %v682 = vadd.f32 %v680, %v681
        %v683 = vrot.slane %v682, 1
        %v684 = vadd.f32 %v682, %v683
        %v685 = vadd.f32 %v664, %v665
        %v686 = vadd.f32 %v685, %v666
        %v687 = vadd.f32 %v686, %v667
        %v688 = vadd.f32 %v687, %v668
        %v689 = vadd.f32 %v688, %v669
        %v690 = vadd.f32 %v689, %v670
        %v691 = vadd.f32 %v690, %v671
        %v692 = vrot.slane %v691, 4
        %v693 = vadd.f32 %v691, %v692
        %v694 = vrot.slane %v693, 2
        %v695 = vadd.f32 %v693, %v694
        %v696 = vrot.slane %v695, 1
        %v697 = vadd.f32 %v695, %v696
        %v698 = vmul.f32 %v684, %v529
        %v699 = vmul.f32 %v697, %v529
        %v702 = vsel %vm534, %v699, %v698
        %704 = vmatprep.subr.mxu0 0.0
        %705 = vmatpush1.msra.mxu0 %v502
        %706 = vmatprep.subr.mxu0 0.0
        %707 = vmatpush1.msra.mxu0 %v501
        %708 = vmatprep.subr.mxu0 0.0
        %709 = vmatpush1.msra.mxu0 %v500
        %710 = vmatprep.subr.mxu0 0.0
        %711 = vmatpush1.msra.mxu0 %v499
        %712 = vmatprep.subr.mxu0 0.0
        %713 = vmatpush1.msra.mxu0 %v498
        %714 = vmatprep.subr.mxu0 0.0
        %715 = vmatpush1.msra.mxu0 %v497
        %716 = vmatprep.subr.mxu0 0.0
        %717 = vmatpush1.msra.mxu0 %v496
        %718 = vmatprep.subr.mxu0 0.0
        %719 = vmatpush1.msra.mxu0 %v495
        %720 = vmatprep.subr.mxu0 0.0
        %721 = vmatpush1.msra.mxu0 %v494
        %722 = vmatprep.subr.mxu0 0.0
        %723 = vmatpush1.msra.mxu0 %v493
        %724 = vmatprep.subr.mxu0 0.0
        %725 = vmatpush1.msra.mxu0 %v492
        %726 = vmatprep.subr.mxu0 0.0
        %727 = vmatpush1.msra.mxu0 %v491
        %728 = vmatprep.subr.mxu0 0.0
        %729 = vmatpush1.msra.mxu0 %v490
        %730 = vmatprep.subr.mxu0 0.0
        %731 = vmatpush1.msra.mxu0 %v489
        %732 = vmatprep.subr.mxu0 0.0
        %733 = vmatpush1.msra.mxu0 %v488
        %734 = vmatprep.subr.mxu0 0.0
        %735 = vmatpush1.msra.mxu0 %v487
        %736 = vmatprep.subr.mxu0 0.0
        %737 = vmatpush2.msra.mxu0 0.0
        %738 = vmatprep.subr.mxu0 0.0
        %739 = vmatpush2.msra.mxu0 0.0
        %740 = vmatprep.subr.mxu0 0.0
        %741 = vmatpush2.msra.mxu0 0.0
        %742 = vmatprep.subr.mxu0 0.0
        %743 = vmatpush2.msra.mxu0 0.0
        %744 = vmatprep.subr.mxu0 0.0
        %745 = vmatpush2.msra.mxu0 0.0
        %746 = vmatprep.subr.mxu0 0.0
        %747 = vmatpush2.msra.mxu0 0.0
        %748 = vmatprep.subr.mxu0 0.0
        %749 = vmatpush2.msra.mxu0 0.0
        %750 = vmatprep.subr.mxu0 0.0
        %751 = vmatpush2.msra.mxu0 0.0
        %752 = vmatprep.subr.mxu0 0.0
        %753 = vmatpush2.msra.mxu0 0.0
        %754 = vmatprep.subr.mxu0 0.0
        %755 = vmatpush2.msra.mxu0 0.0
        %756 = vmatprep.subr.mxu0 0.0
        %757 = vmatpush2.msra.mxu0 0.0
        %758 = vmatprep.subr.mxu0 0.0
        %759 = vmatpush2.msra.mxu0 0.0
        %760 = vmatprep.subr.mxu0 0.0
        %761 = vmatpush2.msra.mxu0 0.0
        %762 = vmatprep.subr.mxu0 0.0
        %763 = vmatpush2.msra.mxu0 0.0
        %764 = vmatprep.subr.mxu0 0.0
        %765 = vmatpush2.msra.mxu0 0.0
        %766 = vmatprep.subr.mxu0 0.0
        %767 = vmatpush2.msra.mxu0 0.0
        %768 = vmatprep.mubr.f32.mxu0 0.0
        %769 = vmatmul.mubr.f32.gmra.mxu0 %v702
        %v770 = vpop.f32.mrf.mxu0
        %v771 = vadd.f32 1e-05, %v770
        %v772 = vpop.f32.mrf.mxu0
        %773 = vdwg.mxu0
        %v774 = vrsqrt.pop %v771
        %v776 = vlaneseq
        %v777 = vshrl.u32 %v776, 7
        %v778 = vsub.s32 0, %v777
        %v779 = vrot.slane %v485, %v778
        %v781 = vmul.f32 %v779, %v774
        %v784 = vunpack.c.l.s4 1966171168
        %v785 = vunpack.c.0.s8 %v784
        %v786 = vlaneseq
        %v787 = vshrl.u32 %v786, 7
        %v788 = vsub.s32 %v785, %v787
        %v789 = vrot.slane %v781, %v788
        %v790 = vcombine.high %v789, %v789
        %v792 = vunpack.c.l.s4 1966171168
        %v793 = vunpack.c.0.s8 %v792
        %v794 = vlaneseq
        %v795 = vshrl.u32 %v794, 7
        %v796 = vsub.s32 %v793, %v795
        %v797 = vrot.slane %v789, %v796
        %v799 = vunpack.c.l.s4 1966171168
        %v800 = vunpack.c.0.s8 %v799
        %v801 = vlaneseq
        %v802 = vshrl.u32 %v801, 7
        %v803 = vsub.s32 %v800, %v802
        %v804 = vrot.slane %v790, %v803
        %v805 = vlaneseq
        %v806 = vshrl.u32 %v805, 7
        %v807 = vsub.s32 0, %v806
        %v808 = vrot.slane %v797, %v807
        %v809 = vlaneseq
        %v810 = vshrl.u32 %v809, 7
        %v811 = vsub.s32 0, %v810
        %v812 = vrot.slane %v804, %v811
        %v815 = vmul.f32 %v640, %v808
        %v816 = vmul.f32 %v641, %v808
        %v817 = vmul.f32 %v642, %v808
        %v818 = vmul.f32 %v643, %v808
        %v819 = vmul.f32 %v644, %v808
        %v820 = vmul.f32 %v645, %v808
        %v821 = vmul.f32 %v646, %v808
        %v822 = vmul.f32 %v647, %v808
        %v823 = vmul.f32 %v648, %v812
        %v824 = vmul.f32 %v649, %v812
        %v825 = vmul.f32 %v650, %v812
        %v826 = vmul.f32 %v651, %v812
        %v827 = vmul.f32 %v652, %v812
        %v828 = vmul.f32 %v653, %v812
        %v829 = vmul.f32 %v654, %v812
        %v830 = vmul.f32 %v655, %v812
        %v832 = vlaneseq
        %v833 = vshrl.u32 %v832, 7
        %v834 = vsub.s32 0, %v833
        %v835 = vrot.slane %v486, %v834
        %v837 = vadd.f32 %v815, %v835
        %v838 = vadd.f32 %v816, %v835
        %v839 = vadd.f32 %v817, %v835
        %v840 = vadd.f32 %v818, %v835
        %v841 = vadd.f32 %v819, %v835
        %v842 = vadd.f32 %v820, %v835
        %v843 = vadd.f32 %v821, %v835
        %v844 = vadd.f32 %v822, %v835
        %v845 = vadd.f32 %v823, %v835
        %v846 = vadd.f32 %v824, %v835
        %v847 = vadd.f32 %v825, %v835
        %v848 = vadd.f32 %v826, %v835
        %v849 = vadd.f32 %v827, %v835
        %v850 = vadd.f32 %v828, %v835
        %v851 = vadd.f32 %v829, %v835
        %v852 = vadd.f32 %v830, %v835
        %v853 = vxor.u32 %v837, 2147483648
        %v854 = vxor.u32 %v838, 2147483648
        %v855 = vxor.u32 %v839, 2147483648
        %v856 = vxor.u32 %v840, 2147483648
        %v857 = vxor.u32 %v841, 2147483648
        %v858 = vxor.u32 %v842, 2147483648
        %v859 = vxor.u32 %v843, 2147483648
        %v860 = vxor.u32 %v844, 2147483648
        %v861 = vxor.u32 %v845, 2147483648
        %v862 = vxor.u32 %v846, 2147483648
        %v863 = vxor.u32 %v847, 2147483648
        %v864 = vxor.u32 %v848, 2147483648
        %v865 = vxor.u32 %v849, 2147483648
        %v866 = vxor.u32 %v850, 2147483648
        %v867 = vxor.u32 %v851, 2147483648
        %v868 = vxor.u32 %v852, 2147483648
        %v869 = vmul.f32 %v853, 1.442695
        %v870 = vpow.pop %v869
        %v871 = vmul.f32 %v854, 1.442695
        %v872 = vpow.pop %v871
        %v873 = vmul.f32 %v855, 1.442695
        %v874 = vpow.pop %v873
        %v875 = vmul.f32 %v856, 1.442695
        %v876 = vpow.pop %v875
        %v877 = vmul.f32 %v857, 1.442695
        %v878 = vpow.pop %v877
        %v879 = vmul.f32 %v858, 1.442695
        %v880 = vpow.pop %v879
        %v881 = vmul.f32 %v859, 1.442695
        %v882 = vpow.pop %v881
        %v883 = vmul.f32 %v860, 1.442695
        %v884 = vpow.pop %v883
        %v885 = vmul.f32 %v861, 1.442695
        %v886 = vpow.pop %v885
        %v887 = vmul.f32 %v862, 1.442695
        %v888 = vpow.pop %v887
        %v889 = vmul.f32 %v863, 1.442695
        %v890 = vpow.pop %v889
        %v891 = vmul.f32 %v864, 1.442695
        %v892 = vpow.pop %v891
        %v893 = vmul.f32 %v865, 1.442695
        %v894 = vpow.pop %v893
        %v895 = vmul.f32 %v866, 1.442695
        %v896 = vpow.pop %v895
        %v897 = vmul.f32 %v867, 1.442695
        %v898 = vpow.pop %v897
        %v899 = vmul.f32 %v868, 1.442695
        %v900 = vpow.pop %v899
        %v901 = vadd.f32 %v870, 1.0
        %v902 = vadd.f32 %v872, 1.0
        %v903 = vadd.f32 %v874, 1.0
        %v904 = vadd.f32 %v876, 1.0
        %v905 = vadd.f32 %v878, 1.0
        %v906 = vadd.f32 %v880, 1.0
        %v907 = vadd.f32 %v882, 1.0
        %v908 = vadd.f32 %v884, 1.0
        %v909 = vadd.f32 %v886, 1.0
        %v910 = vadd.f32 %v888, 1.0
        %v911 = vadd.f32 %v890, 1.0
        %v912 = vadd.f32 %v892, 1.0
        %v913 = vadd.f32 %v894, 1.0
        %v914 = vadd.f32 %v896, 1.0
        %v915 = vadd.f32 %v898, 1.0
        %v916 = vadd.f32 %v900, 1.0
        %v917 = vrcp.pop %v901
        %v918 = vmul.f32 1.0, %v917
        %v919 = vrcp.pop %v902
        %v920 = vmul.f32 1.0, %v919
        %v921 = vrcp.pop %v903
        %v922 = vmul.f32 1.0, %v921
        %v923 = vrcp.pop %v904
        %v924 = vmul.f32 1.0, %v923
        %v925 = vrcp.pop %v905
        %v926 = vmul.f32 1.0, %v925
        %v927 = vrcp.pop %v906
        %v928 = vmul.f32 1.0, %v927
        %v929 = vrcp.pop %v907
        %v930 = vmul.f32 1.0, %v929
        %v931 = vrcp.pop %v908
        %v932 = vmul.f32 1.0, %v931
        %v933 = vrcp.pop %v909
        %v934 = vmul.f32 1.0, %v933
        %v935 = vrcp.pop %v910
        %v936 = vmul.f32 1.0, %v935
        %v937 = vrcp.pop %v911
        %v938 = vmul.f32 1.0, %v937
        %v939 = vrcp.pop %v912
        %v940 = vmul.f32 1.0, %v939
        %v941 = vrcp.pop %v913
        %v942 = vmul.f32 1.0, %v941
        %v943 = vrcp.pop %v914
        %v944 = vmul.f32 1.0, %v943
        %v945 = vrcp.pop %v915
        %v946 = vmul.f32 1.0, %v945
        %v947 = vrcp.pop %v916
        %v948 = vmul.f32 1.0, %v947
        %v949 = vmul.f32 %v837, %v918
        %v950 = vmul.f32 %v838, %v920
        %v951 = vmul.f32 %v839, %v922
        %v952 = vmul.f32 %v840, %v924
        %v953 = vmul.f32 %v841, %v926
        %v954 = vmul.f32 %v842, %v928
        %v955 = vmul.f32 %v843, %v930
        %v956 = vmul.f32 %v844, %v932
        %v957 = vmul.f32 %v845, %v934
        %v958 = vmul.f32 %v846, %v936
        %v959 = vmul.f32 %v847, %v938
        %v960 = vmul.f32 %v848, %v940
        %v961 = vmul.f32 %v849, %v942
        %v962 = vmul.f32 %v850, %v944
        %v963 = vmul.f32 %v851, %v946
        %v964 = vmul.f32 %v852, %v948
        %v965 = vld [vmem:[%s5] sm:$0x1]
        %966 = vst [vmem:[#allocation2] sm:$0xf] 0
        %967 = vst [vmem:[#allocation2 + $0x4] sm:$0x1] 0
        %968 = vst [vmem:[#allocation2 + $0x50] sm:$0xf] 0
        %969 = vst [vmem:[#allocation2 + $0x54] sm:$0x1] 0
        %s970 = scalar_lea.vmem [#allocation2], 72
        %971 = vst [vmem:[%s970] sm:$0xf] 0
        %972 = vst [vmem:[%s970 + $0x4] sm:$0x1] 0
        %973 = vst [vmem:[%s970 + $0x50] sm:$0xf] 0
        %974 = vst [vmem:[%s970 + $0x54] sm:$0x1] 0
        %v975 = vpack.c.bf16 %v949, %v949
        %v976 = vpack.c.bf16 %v950, %v950
        %v977 = vpack.c.bf16 %v951, %v951
        %v978 = vpack.c.bf16 %v952, %v952
        %v979 = vpack.c.bf16 %v953, %v953
        %v980 = vpack.c.bf16 %v954, %v954
        %v981 = vpack.c.bf16 %v955, %v955
        %v982 = vpack.c.bf16 %v956, %v956
        %v983 = vpack.c.bf16 %v957, %v957
        %v984 = vpack.c.bf16 %v958, %v958
        %v985 = vpack.c.bf16 %v959, %v959
        %v986 = vpack.c.bf16 %v960, %v960
        %v987 = vpack.c.bf16 %v961, %v961
        %v988 = vpack.c.bf16 %v962, %v962
        %v989 = vpack.c.bf16 %v963, %v963
        %v990 = vpack.c.bf16 %v964, %v964
        %v1007 = vunpack.c.l.b16 %v975
        %v1008 = vunpack.c.l.b16 %v976
        %v1009 = vunpack.c.l.b16 %v977
        %v1010 = vunpack.c.l.b16 %v978
        %v1011 = vunpack.c.l.b16 %v979
        %v1012 = vunpack.c.l.b16 %v980
        %v1013 = vunpack.c.l.b16 %v981
        %v1014 = vunpack.c.l.b16 %v982
        %v1015 = vunpack.c.l.b16 %v983
        %v1016 = vunpack.c.l.b16 %v984
        %v1017 = vunpack.c.l.b16 %v985
        %v1018 = vunpack.c.l.b16 %v986
        %v1019 = vunpack.c.l.b16 %v987
        %v1020 = vunpack.c.l.b16 %v988
        %v1021 = vunpack.c.l.b16 %v989
        %v1022 = vunpack.c.l.b16 %v990
        %v1023 = vpack.c.b16 %v1007, %v1007
        %v1024 = vpack.c.b16 %v1008, %v1008
        %v1025 = vpack.c.b16 %v1009, %v1009
        %v1026 = vpack.c.b16 %v1010, %v1010
        %v1027 = vpack.c.b16 %v1011, %v1011
        %v1028 = vpack.c.b16 %v1012, %v1012
        %v1029 = vpack.c.b16 %v1013, %v1013
        %v1030 = vpack.c.b16 %v1014, %v1014
        %v1031 = vpack.c.b16 %v1015, %v1015
        %v1032 = vpack.c.b16 %v1016, %v1016
        %v1033 = vpack.c.b16 %v1017, %v1017
        %v1034 = vpack.c.b16 %v1018, %v1018
        %v1035 = vpack.c.b16 %v1019, %v1019
        %v1036 = vpack.c.b16 %v1020, %v1020
        %v1037 = vpack.c.b16 %v1021, %v1021
        %v1038 = vpack.c.b16 %v1022, %v1022
        %v1040 = vshrl.u32 %v1023, 16
        %v1042 = vrot.slane %v1040, 7
        %v1043 = vshll.u32 %v1023, 16
        %v1045 = vor.u32 %v1042, %v1043
        %v1046 = vrot.slane %v1042, 4
        %v1048 = vshrl.u32 %v1024, 16
        %v1050 = vrot.slane %v1048, 7
        %v1051 = vshll.u32 %v1024, 16
        %v1053 = vor.u32 %v1050, %v1051
        %v1054 = vrot.slane %v1050, 4
        %v1056 = vshrl.u32 %v1025, 16
        %v1058 = vrot.slane %v1056, 7
        %v1059 = vshll.u32 %v1025, 16
        %v1061 = vor.u32 %v1058, %v1059
        %v1062 = vrot.slane %v1058, 4
        %v1064 = vshrl.u32 %v1026, 16
        %v1066 = vrot.slane %v1064, 7
        %v1067 = vshll.u32 %v1026, 16
        %v1069 = vor.u32 %v1066, %v1067
        %v1070 = vrot.slane %v1066, 4
        %v1072 = vshrl.u32 %v1027, 16
        %v1074 = vrot.slane %v1072, 7
        %v1075 = vshll.u32 %v1027, 16
        %v1077 = vor.u32 %v1074, %v1075
        %v1078 = vrot.slane %v1074, 4
        %v1080 = vshrl.u32 %v1028, 16
        %v1082 = vrot.slane %v1080, 7
        %v1083 = vshll.u32 %v1028, 16
        %v1085 = vor.u32 %v1082, %v1083
        %v1086 = vrot.slane %v1082, 4
        %v1088 = vshrl.u32 %v1029, 16
        %v1090 = vrot.slane %v1088, 7
        %v1091 = vshll.u32 %v1029, 16
        %v1093 = vor.u32 %v1090, %v1091
        %v1094 = vrot.slane %v1090, 4
        %v1096 = vshrl.u32 %v1030, 16
        %v1098 = vrot.slane %v1096, 7
        %v1099 = vshll.u32 %v1030, 16
        %v1101 = vor.u32 %v1098, %v1099
        %v1102 = vrot.slane %v1098, 4
        %v1104 = vshrl.u32 %v1031, 16
        %v1106 = vrot.slane %v1104, 7
        %v1107 = vshll.u32 %v1031, 16
        %v1109 = vor.u32 %v1106, %v1107
        %v1110 = vrot.slane %v1106, 4
        %v1112 = vshrl.u32 %v1032, 16
        %v1114 = vrot.slane %v1112, 7
        %v1115 = vshll.u32 %v1032, 16
        %v1117 = vor.u32 %v1114, %v1115
        %v1118 = vrot.slane %v1114, 4
        %v1120 = vshrl.u32 %v1033, 16
        %v1122 = vrot.slane %v1120, 7
        %v1123 = vshll.u32 %v1033, 16
        %v1125 = vor.u32 %v1122, %v1123
        %v1126 = vrot.slane %v1122, 4
        %v1128 = vshrl.u32 %v1034, 16
        %v1130 = vrot.slane %v1128, 7
        %v1131 = vshll.u32 %v1034, 16
        %v1133 = vor.u32 %v1130, %v1131
        %v1134 = vrot.slane %v1130, 4
        %v1136 = vshrl.u32 %v1035, 16
        %v1138 = vrot.slane %v1136, 7
        %v1139 = vshll.u32 %v1035, 16
        %v1141 = vor.u32 %v1138, %v1139
        %v1142 = vrot.slane %v1138, 4
        %v1144 = vshrl.u32 %v1036, 16
        %v1146 = vrot.slane %v1144, 7
        %v1147 = vshll.u32 %v1036, 16
        %v1149 = vor.u32 %v1146, %v1147
        %v1150 = vrot.slane %v1146, 4
        %v1152 = vshrl.u32 %v1037, 16
        %v1154 = vrot.slane %v1152, 7
        %v1155 = vshll.u32 %v1037, 16
        %v1157 = vor.u32 %v1154, %v1155
        %v1158 = vrot.slane %v1154, 4
        %v1160 = vshrl.u32 %v1038, 16
        %v1162 = vrot.slane %v1160, 7
        %v1163 = vshll.u32 %v1038, 16
        %v1165 = vor.u32 %v1162, %v1163
        %v1166 = vrot.slane %v1162, 4
        %s1199 = scalar_lea.vmem [#allocation2], 8
        %vm1200 = vcmask 1043456
        %vm1201 = vsmask.f32 7938
        %vm1202 = vmand %vm1200, %vm1201
        %v1203 = vld [vmem:[%s1199] sm:$0xf]
        %v1204 = vsel %vm1202, %v1045, %v1203
        %1205 = vst [vmem:[%s1199] sm:$0xf] %v1204
        %vm1206 = vcmask 1040384
        %vm1207 = vsmask.f32 256
        %vm1208 = vmand %vm1206, %vm1207
        %v1209 = vld [vmem:[%s1199 + $0x4] sm:$0x1]
        %v1210 = vsel %vm1208, %v1046, %v1209
        %1211 = vst [vmem:[%s1199 + $0x4] sm:$0x1] %v1210
        %v1212 = vld [vmem:[%s1199 + $0x8] sm:$0xf]
        %v1213 = vsel %vm1202, %v1053, %v1212
        %1214 = vst [vmem:[%s1199 + $0x8] sm:$0xf] %v1213
        %v1215 = vld [vmem:[%s1199 + $0xc] sm:$0x1]
        %v1216 = vsel %vm1208, %v1054, %v1215
        %1217 = vst [vmem:[%s1199 + $0xc] sm:$0x1] %v1216
        %v1218 = vld [vmem:[%s1199 + $0x10] sm:$0xf]
        %v1219 = vsel %vm1202, %v1061, %v1218
        %1220 = vst [vmem:[%s1199 + $0x10] sm:$0xf] %v1219
        %v1221 = vld [vmem:[%s1199 + $0x14] sm:$0x1]
        %v1222 = vsel %vm1208, %v1062, %v1221
        %1223 = vst [vmem:[%s1199 + $0x14] sm:$0x1] %v1222
        %v1224 = vld [vmem:[%s1199 + $0x18] sm:$0xf]
        %v1225 = vsel %vm1202, %v1069, %v1224
        %1226 = vst [vmem:[%s1199 + $0x18] sm:$0xf] %v1225
        %v1227 = vld [vmem:[%s1199 + $0x1c] sm:$0x1]
        %v1228 = vsel %vm1208, %v1070, %v1227
        %1229 = vst [vmem:[%s1199 + $0x1c] sm:$0x1] %v1228
        %v1230 = vld [vmem:[%s1199 + $0x20] sm:$0xf]
        %v1231 = vsel %vm1202, %v1077, %v1230
        %1232 = vst [vmem:[%s1199 + $0x20] sm:$0xf] %v1231
        %v1233 = vld [vmem:[%s1199 + $0x24] sm:$0x1]
        %v1234 = vsel %vm1208, %v1078, %v1233
        %1235 = vst [vmem:[%s1199 + $0x24] sm:$0x1] %v1234
        %v1236 = vld [vmem:[%s1199 + $0x28] sm:$0xf]
        %v1237 = vsel %vm1202, %v1085, %v1236
        %1238 = vst [vmem:[%s1199 + $0x28] sm:$0xf] %v1237
        %v1239 = vld [vmem:[%s1199 + $0x2c] sm:$0x1]
        %v1240 = vsel %vm1208, %v1086, %v1239
        %1241 = vst [vmem:[%s1199 + $0x2c] sm:$0x1] %v1240
        %v1242 = vld [vmem:[%s1199 + $0x30] sm:$0xf]
        %v1243 = vsel %vm1202, %v1093, %v1242
        %1244 = vst [vmem:[%s1199 + $0x30] sm:$0xf] %v1243
        %v1245 = vld [vmem:[%s1199 + $0x34] sm:$0x1]
        %v1246 = vsel %vm1208, %v1094, %v1245
        %1247 = vst [vmem:[%s1199 + $0x34] sm:$0x1] %v1246
        %v1248 = vld [vmem:[%s1199 + $0x38] sm:$0xf]
        %v1249 = vsel %vm1202, %v1101, %v1248
        %1250 = vst [vmem:[%s1199 + $0x38] sm:$0xf] %v1249
        %v1251 = vld [vmem:[%s1199 + $0x3c] sm:$0x1]
        %v1252 = vsel %vm1208, %v1102, %v1251
        %1253 = vst [vmem:[%s1199 + $0x3c] sm:$0x1] %v1252
        %v1254 = vld [vmem:[%s1199 + $0x50] sm:$0xf]
        %v1255 = vsel %vm1202, %v1109, %v1254
        %1256 = vst [vmem:[%s1199 + $0x50] sm:$0xf] %v1255
        %v1257 = vld [vmem:[%s1199 + $0x54] sm:$0x1]
        %v1258 = vsel %vm1208, %v1110, %v1257
        %1259 = vst [vmem:[%s1199 + $0x54] sm:$0x1] %v1258
        %v1260 = vld [vmem:[%s1199 + $0x58] sm:$0xf]
        %v1261 = vsel %vm1202, %v1117, %v1260
        %1262 = vst [vmem:[%s1199 + $0x58] sm:$0xf] %v1261
        %v1263 = vld [vmem:[%s1199 + $0x5c] sm:$0x1]
        %v1264 = vsel %vm1208, %v1118, %v1263
        %1265 = vst [vmem:[%s1199 + $0x5c] sm:$0x1] %v1264
        %v1266 = vld [vmem:[%s1199 + $0x60] sm:$0xf]
        %v1267 = vsel %vm1202, %v1125, %v1266
        %1268 = vst [vmem:[%s1199 + $0x60] sm:$0xf] %v1267
        %v1269 = vld [vmem:[%s1199 + $0x64] sm:$0x1]
        %v1270 = vsel %vm1208, %v1126, %v1269
        %1271 = vst [vmem:[%s1199 + $0x64] sm:$0x1] %v1270
        %v1272 = vld [vmem:[%s1199 + $0x68] sm:$0xf]
        %v1273 = vsel %vm1202, %v1133, %v1272
        %1274 = vst [vmem:[%s1199 + $0x68] sm:$0xf] %v1273
        %v1275 = vld [vmem:[%s1199 + $0x6c] sm:$0x1]
        %v1276 = vsel %vm1208, %v1134, %v1275
        %1277 = vst [vmem:[%s1199 + $0x6c] sm:$0x1] %v1276
        %v1278 = vld [vmem:[%s1199 + $0x70] sm:$0xf]
        %v1279 = vsel %vm1202, %v1141, %v1278
        %1280 = vst [vmem:[%s1199 + $0x70] sm:$0xf] %v1279
        %v1281 = vld [vmem:[%s1199 + $0x74] sm:$0x1]
        %v1282 = vsel %vm1208, %v1142, %v1281
        %1283 = vst [vmem:[%s1199 + $0x74] sm:$0x1] %v1282
        %v1284 = vld [vmem:[%s1199 + $0x78] sm:$0xf]
        %v1285 = vsel %vm1202, %v1149, %v1284
        %1286 = vst [vmem:[%s1199 + $0x78] sm:$0xf] %v1285
        %v1287 = vld [vmem:[%s1199 + $0x7c] sm:$0x1]
        %v1288 = vsel %vm1208, %v1150, %v1287
        %1289 = vst [vmem:[%s1199 + $0x7c] sm:$0x1] %v1288
        %v1290 = vld [vmem:[%s1199 + $0x80] sm:$0xf]
        %v1291 = vsel %vm1202, %v1157, %v1290
        %1292 = vst [vmem:[%s1199 + $0x80] sm:$0xf] %v1291
        %v1293 = vld [vmem:[%s1199 + $0x84] sm:$0x1]
        %v1294 = vsel %vm1208, %v1158, %v1293
        %1295 = vst [vmem:[%s1199 + $0x84] sm:$0x1] %v1294
        %v1296 = vld [vmem:[%s1199 + $0x88] sm:$0xf]
        %v1297 = vsel %vm1202, %v1165, %v1296
        %1298 = vst [vmem:[%s1199 + $0x88] sm:$0xf] %v1297
        %v1299 = vld [vmem:[%s1199 + $0x8c] sm:$0x1]
        %v1300 = vsel %vm1208, %v1166, %v1299
        %1301 = vst [vmem:[%s1199 + $0x8c] sm:$0x1] %v1300
        %v1302 = vlaneseq
        %v1303 = vshrl.u32 %v1302, 7
        %vm1304 = vcmp.ge.s32.totalorder %v1303, 1
        %vm1305 = vcmp.le.s32.totalorder %v1303, 6
        %v1306 = vld [vmem:[#allocation2] sm:$0xf]
        %v1307 = vld [vmem:[#allocation2 + $0x8] sm:$0xf]
        %v1308 = vld [vmem:[#allocation2 + $0x10] sm:$0xf]
        %v1309 = vld [vmem:[#allocation2 + $0x18] sm:$0xf]
        %v1310 = vld [vmem:[#allocation2 + $0x20] sm:$0xf]
        %v1311 = vld [vmem:[#allocation2 + $0x28] sm:$0xf]
        %v1312 = vld [vmem:[#allocation2 + $0x30] sm:$0xf]
        %v1313 = vld [vmem:[#allocation2 + $0x38] sm:$0xf]
        %v1314 = vld [vmem:[#allocation2 + $0x50] sm:$0xf]
        %v1315 = vld [vmem:[#allocation2 + $0x58] sm:$0xf]
        %v1316 = vld [vmem:[#allocation2 + $0x60] sm:$0xf]
        %v1317 = vld [vmem:[#allocation2 + $0x68] sm:$0xf]
        %v1318 = vld [vmem:[#allocation2 + $0x70] sm:$0xf]
        %v1319 = vld [vmem:[#allocation2 + $0x78] sm:$0xf]
        %v1320 = vld [vmem:[#allocation2 + $0x80] sm:$0xf]
        %v1321 = vld [vmem:[#allocation2 + $0x88] sm:$0xf]
        %vm1322 = vmpackc.low %vm1304, %vm1304
        %v1323 = vsel %vm1322, %v1306, 0
        %v1324 = vsel %vm1322, %v1307, 0
        %v1325 = vsel %vm1322, %v1308, 0
        %v1326 = vsel %vm1322, %v1309, 0
        %v1327 = vsel %vm1322, %v1310, 0
        %v1328 = vsel %vm1322, %v1311, 0
        %v1329 = vsel %vm1322, %v1312, 0
        %v1330 = vsel %vm1322, %v1313, 0
        %v1331 = vsel %vm1322, %v1314, 0
        %v1332 = vsel %vm1322, %v1315, 0
        %v1333 = vsel %vm1322, %v1316, 0
        %v1334 = vsel %vm1322, %v1317, 0
        %v1335 = vsel %vm1322, %v1318, 0
        %v1336 = vsel %vm1322, %v1319, 0
        %v1337 = vsel %vm1322, %v1320, 0
        %v1338 = vsel %vm1322, %v1321, 0
        %v1339 = vld [vmem:[#allocation9] sm:$0xf]
        %v1340 = vld [vmem:[#allocation9 + $0x4] sm:$0xf]
        %v1341 = vld [vmem:[#allocation9 + $0x8] sm:$0xf]
        %v1342 = vld [vmem:[#allocation9 + $0xc] sm:$0xf]
        %v1343 = vld [vmem:[#allocation9 + $0x10] sm:$0xf]
        %v1344 = vld [vmem:[#allocation9 + $0x14] sm:$0xf]
        %v1345 = vld [vmem:[#allocation9 + $0x18] sm:$0xf]
        %v1346 = vld [vmem:[#allocation9 + $0x1c] sm:$0xf]
        %v1347 = vld [vmem:[#allocation9 + $0x20] sm:$0xf]
        %v1348 = vld [vmem:[#allocation9 + $0x24] sm:$0xf]
        %v1349 = vld [vmem:[#allocation9 + $0x28] sm:$0xf]
        %v1350 = vld [vmem:[#allocation9 + $0x2c] sm:$0xf]
        %v1351 = vld [vmem:[#allocation9 + $0x30] sm:$0xf]
        %v1352 = vld [vmem:[#allocation9 + $0x34] sm:$0xf]
        %v1353 = vld [vmem:[#allocation9 + $0x38] sm:$0xf]
        %v1354 = vld [vmem:[#allocation9 + $0x3c] sm:$0xf]
        %v1355 = vld [vmem:[#allocation2 + $0x4] sm:$0x1]
        %v1356 = vld [vmem:[#allocation2 + $0xc] sm:$0x1]
        %v1357 = vld [vmem:[#allocation2 + $0x14] sm:$0x1]
        %v1358 = vld [vmem:[#allocation2 + $0x1c] sm:$0x1]
        %v1359 = vld [vmem:[#allocation2 + $0x24] sm:$0x1]
        %v1360 = vld [vmem:[#allocation2 + $0x2c] sm:$0x1]
        %v1361 = vld [vmem:[#allocation2 + $0x34] sm:$0x1]
        %v1362 = vld [vmem:[#allocation2 + $0x3c] sm:$0x1]
        %v1363 = vld [vmem:[#allocation2 + $0x54] sm:$0x1]
        %v1364 = vld [vmem:[#allocation2 + $0x5c] sm:$0x1]
        %v1365 = vld [vmem:[#allocation2 + $0x64] sm:$0x1]
        %v1366 = vld [vmem:[#allocation2 + $0x6c] sm:$0x1]
        %v1367 = vld [vmem:[#allocation2 + $0x74] sm:$0x1]
        %v1368 = vld [vmem:[#allocation2 + $0x7c] sm:$0x1]
        %v1369 = vld [vmem:[#allocation2 + $0x84] sm:$0x1]
        %v1370 = vld [vmem:[#allocation2 + $0x8c] sm:$0x1]
        %vm1371 = vsmask.f32 3328
        %vm1372 = vsmask.f32 7440
        %vm1373 = vmor %vm1371, %vm1372
        %v1375 = vshrl.u32 %v1306, 16
        %v1377 = vrot.slane %v1375, 4
        %v1378 = vshll.u32 %v1306, 16
        %v1380 = vrot.slane %v1378, 5
        %v1381 = vor.u32 %v1377, %v1380
        %v1382 = vrot.slane %v1381, 4
        %v1384 = vshll.u32 %v1355, 16
        %v1386 = vrot.slane %v1384, 5
        %v1387 = vsel %vm1373, %v1382, %v1386
        %v1389 = vshrl.u32 %v1307, 16
        %v1391 = vrot.slane %v1389, 4
        %v1392 = vshll.u32 %v1307, 16
        %v1394 = vrot.slane %v1392, 5
        %v1395 = vor.u32 %v1391, %v1394
        %v1396 = vrot.slane %v1395, 4
        %v1398 = vshll.u32 %v1356, 16
        %v1400 = vrot.slane %v1398, 5
        %v1401 = vsel %vm1373, %v1396, %v1400
        %v1403 = vshrl.u32 %v1308, 16
        %v1405 = vrot.slane %v1403, 4
        %v1406 = vshll.u32 %v1308, 16
        %v1408 = vrot.slane %v1406, 5
        %v1409 = vor.u32 %v1405, %v1408
        %v1410 = vrot.slane %v1409, 4
        %v1412 = vshll.u32 %v1357, 16
        %v1414 = vrot.slane %v1412, 5
        %v1415 = vsel %vm1373, %v1410, %v1414
        %v1417 = vshrl.u32 %v1309, 16
        %v1419 = vrot.slane %v1417, 4
        %v1420 = vshll.u32 %v1309, 16
        %v1422 = vrot.slane %v1420, 5
        %v1423 = vor.u32 %v1419, %v1422
        %v1424 = vrot.slane %v1423, 4
        %v1426 = vshll.u32 %v1358, 16
        %v1428 = vrot.slane %v1426, 5
        %v1429 = vsel %vm1373, %v1424, %v1428
        %v1431 = vshrl.u32 %v1310, 16
        %v1433 = vrot.slane %v1431, 4
        %v1434 = vshll.u32 %v1310, 16
        %v1436 = vrot.slane %v1434, 5
        %v1437 = vor.u32 %v1433, %v1436
        %v1438 = vrot.slane %v1437, 4
        %v1440 = vshll.u32 %v1359, 16
        %v1442 = vrot.slane %v1440, 5
        %v1443 = vsel %vm1373, %v1438, %v1442
        %v1445 = vshrl.u32 %v1311, 16
        %v1447 = vrot.slane %v1445, 4
        %v1448 = vshll.u32 %v1311, 16
        %v1450 = vrot.slane %v1448, 5
        %v1451 = vor.u32 %v1447, %v1450
        %v1452 = vrot.slane %v1451, 4
        %v1454 = vshll.u32 %v1360, 16
        %v1456 = vrot.slane %v1454, 5
        %v1457 = vsel %vm1373, %v1452, %v1456
        %v1459 = vshrl.u32 %v1312, 16
        %v1461 = vrot.slane %v1459, 4
        %v1462 = vshll.u32 %v1312, 16
        %v1464 = vrot.slane %v1462, 5
        %v1465 = vor.u32 %v1461, %v1464
        %v1466 = vrot.slane %v1465, 4
        %v1468 = vshll.u32 %v1361, 16
        %v1470 = vrot.slane %v1468, 5
        %v1471 = vsel %vm1373, %v1466, %v1470
        %v1473 = vshrl.u32 %v1313, 16
        %v1475 = vrot.slane %v1473, 4
        %v1476 = vshll.u32 %v1313, 16
        %v1478 = vrot.slane %v1476, 5
        %v1479 = vor.u32 %v1475, %v1478
        %v1480 = vrot.slane %v1479, 4
        %v1482 = vshll.u32 %v1362, 16
        %v1484 = vrot.slane %v1482, 5
        %v1485 = vsel %vm1373, %v1480, %v1484
        %v1487 = vshrl.u32 %v1314, 16
        %v1489 = vrot.slane %v1487, 4
        %v1490 = vshll.u32 %v1314, 16
        %v1492 = vrot.slane %v1490, 5
        %v1493 = vor.u32 %v1489, %v1492
        %v1494 = vrot.slane %v1493, 4
        %v1496 = vshll.u32 %v1363, 16
        %v1498 = vrot.slane %v1496, 5
        %v1499 = vsel %vm1373, %v1494, %v1498
        %v1501 = vshrl.u32 %v1315, 16
        %v1503 = vrot.slane %v1501, 4
        %v1504 = vshll.u32 %v1315, 16
        %v1506 = vrot.slane %v1504, 5
        %v1507 = vor.u32 %v1503, %v1506
        %v1508 = vrot.slane %v1507, 4
        %v1510 = vshll.u32 %v1364, 16
        %v1512 = vrot.slane %v1510, 5
        %v1513 = vsel %vm1373, %v1508, %v1512
        %v1515 = vshrl.u32 %v1316, 16
        %v1517 = vrot.slane %v1515, 4
        %v1518 = vshll.u32 %v1316, 16
        %v1520 = vrot.slane %v1518, 5
        %v1521 = vor.u32 %v1517, %v1520
        %v1522 = vrot.slane %v1521, 4
        %v1524 = vshll.u32 %v1365, 16
        %v1526 = vrot.slane %v1524, 5
        %v1527 = vsel %vm1373, %v1522, %v1526
        %v1529 = vshrl.u32 %v1317, 16
        %v1531 = vrot.slane %v1529, 4
        %v1532 = vshll.u32 %v1317, 16
        %v1534 = vrot.slane %v1532, 5
        %v1535 = vor.u32 %v1531, %v1534
        %v1536 = vrot.slane %v1535, 4
        %v1538 = vshll.u32 %v1366, 16
        %v1540 = vrot.slane %v1538, 5
        %v1541 = vsel %vm1373, %v1536, %v1540
        %v1543 = vshrl.u32 %v1318, 16
        %v1545 = vrot.slane %v1543, 4
        %v1546 = vshll.u32 %v1318, 16
        %v1548 = vrot.slane %v1546, 5
        %v1549 = vor.u32 %v1545, %v1548
        %v1550 = vrot.slane %v1549, 4
        %v1552 = vshll.u32 %v1367, 16
        %v1554 = vrot.slane %v1552, 5
        %v1555 = vsel %vm1373, %v1550, %v1554
        %v1557 = vshrl.u32 %v1319, 16
        %v1559 = vrot.slane %v1557, 4
        %v1560 = vshll.u32 %v1319, 16
        %v1562 = vrot.slane %v1560, 5
        %v1563 = vor.u32 %v1559, %v1562
        %v1564 = vrot.slane %v1563, 4
        %v1566 = vshll.u32 %v1368, 16
        %v1568 = vrot.slane %v1566, 5
        %v1569 = vsel %vm1373, %v1564, %v1568
        %v1571 = vshrl.u32 %v1320, 16
        %v1573 = vrot.slane %v1571, 4
        %v1574 = vshll.u32 %v1320, 16
        %v1576 = vrot.slane %v1574, 5
        %v1577 = vor.u32 %v1573, %v1576
        %v1578 = vrot.slane %v1577, 4
        %v1580 = vshll.u32 %v1369, 16
        %v1582 = vrot.slane %v1580, 5
        %v1583 = vsel %vm1373, %v1578, %v1582
        %v1585 = vshrl.u32 %v1321, 16
        %v1587 = vrot.slane %v1585, 4
        %v1588 = vshll.u32 %v1321, 16
        %v1590 = vrot.slane %v1588, 5
        %v1591 = vor.u32 %v1587, %v1590
        %v1592 = vrot.slane %v1591, 4
        %v1594 = vshll.u32 %v1370, 16
        %v1596 = vrot.slane %v1594, 5
        %v1597 = vsel %vm1373, %v1592, %v1596
        %s1598 = scalar_lea.vmem [#allocation9], 64
        %v1599 = vld [vmem:[%s1598] sm:$0xf]
        %v1600 = vld [vmem:[%s1598 + $0x4] sm:$0xf]
        %v1601 = vld [vmem:[%s1598 + $0x8] sm:$0xf]
        %v1602 = vld [vmem:[%s1598 + $0xc] sm:$0xf]
        %v1603 = vld [vmem:[%s1598 + $0x10] sm:$0xf]
        %v1604 = vld [vmem:[%s1598 + $0x14] sm:$0xf]
        %v1605 = vld [vmem:[%s1598 + $0x18] sm:$0xf]
        %v1606 = vld [vmem:[%s1598 + $0x1c] sm:$0xf]
        %v1607 = vld [vmem:[%s1598 + $0x20] sm:$0xf]
        %v1608 = vld [vmem:[%s1598 + $0x24] sm:$0xf]
        %v1609 = vld [vmem:[%s1598 + $0x28] sm:$0xf]
        %v1610 = vld [vmem:[%s1598 + $0x2c] sm:$0xf]
        %v1611 = vld [vmem:[%s1598 + $0x30] sm:$0xf]
        %v1612 = vld [vmem:[%s1598 + $0x34] sm:$0xf]
        %v1613 = vld [vmem:[%s1598 + $0x38] sm:$0xf]
        %v1614 = vld [vmem:[%s1598 + $0x3c] sm:$0xf]
        %v1615 = vunpack.c.l.b16 %v1387
        %v1616 = vunpack.c.l.b16 %v1401
        %v1617 = vunpack.c.l.b16 %v1415
        %v1618 = vunpack.c.l.b16 %v1429
        %v1619 = vunpack.c.l.b16 %v1443
        %v1620 = vunpack.c.l.b16 %v1457
        %v1621 = vunpack.c.l.b16 %v1471
        %v1622 = vunpack.c.l.b16 %v1485
        %v1623 = vunpack.c.l.b16 %v1499
        %v1624 = vunpack.c.l.b16 %v1513
        %v1625 = vunpack.c.l.b16 %v1527
        %v1626 = vunpack.c.l.b16 %v1541
        %v1627 = vunpack.c.l.b16 %v1555
        %v1628 = vunpack.c.l.b16 %v1569
        %v1629 = vunpack.c.l.b16 %v1583
        %v1630 = vunpack.c.l.b16 %v1597
        %v1631 = vpack.c.b16 %v1616, %v1615
        %v1632 = vpack.c.b16 %v1618, %v1617
        %v1633 = vpack.c.b16 %v1620, %v1619
        %v1634 = vpack.c.b16 %v1622, %v1621
        %v1635 = vpack.c.b16 %v1624, %v1623
        %v1636 = vpack.c.b16 %v1626, %v1625
        %v1637 = vpack.c.b16 %v1628, %v1627
        %v1638 = vpack.c.b16 %v1630, %v1629
        %v1663 = vunpack.c.l.b16 %v1599
        %v1664 = vunpack.c.l.b16 %v1600
        %v1665 = vunpack.c.l.b16 %v1601
        %v1666 = vunpack.c.l.b16 %v1602
        %v1667 = vunpack.c.l.b16 %v1603
        %v1668 = vunpack.c.l.b16 %v1604
        %v1669 = vunpack.c.l.b16 %v1605
        %v1670 = vunpack.c.l.b16 %v1606
        %v1671 = vunpack.c.l.b16 %v1607
        %v1672 = vunpack.c.l.b16 %v1608
        %v1673 = vunpack.c.l.b16 %v1609
        %v1674 = vunpack.c.l.b16 %v1610
        %v1675 = vunpack.c.l.b16 %v1611
        %v1676 = vunpack.c.l.b16 %v1612
        %v1677 = vunpack.c.l.b16 %v1613
        %v1678 = vunpack.c.l.b16 %v1614
        %v1679 = vpack.c.b16 %v1664, %v1663
        %v1680 = vpack.c.b16 %v1666, %v1665
        %v1681 = vpack.c.b16 %v1668, %v1667
        %v1682 = vpack.c.b16 %v1670, %v1669
        %v1683 = vpack.c.b16 %v1672, %v1671
        %v1684 = vpack.c.b16 %v1674, %v1673
        %v1685 = vpack.c.b16 %v1676, %v1675
        %v1686 = vpack.c.b16 %v1678, %v1677
        %1695 = vmatprep.subr.bf16.mxu0 0
        %1696 = vmatpush1.bf16.msra.mxu0 %v1686
        %1697 = vmatprep.subr.bf16.mxu0 0
        %1698 = vmatpush1.bf16.msra.mxu0 %v1685
        %1699 = vmatprep.subr.bf16.mxu0 0
        %1700 = vmatpush1.bf16.msra.mxu0 %v1684
        %1701 = vmatprep.subr.bf16.mxu0 0
        %1702 = vmatpush1.bf16.msra.mxu0 %v1683
        %1703 = vmatprep.subr.bf16.mxu0 0
        %1704 = vmatpush1.bf16.msra.mxu0 %v1682
        %1705 = vmatprep.subr.bf16.mxu0 0
        %1706 = vmatpush1.bf16.msra.mxu0 %v1681
        %1707 = vmatprep.subr.bf16.mxu0 0
        %1708 = vmatpush1.bf16.msra.mxu0 %v1680
        %1709 = vmatprep.subr.bf16.mxu0 0
        %1710 = vmatpush1.bf16.msra.mxu0 %v1679
        %1711 = vmatprep.subr.bf16.mxu0 0
        %1712 = vmatpush2.bf16.msra.mxu0 0
        %1713 = vmatprep.subr.bf16.mxu0 0
        %1714 = vmatpush2.bf16.msra.mxu0 0
        %1715 = vmatprep.subr.bf16.mxu0 0
        %1716 = vmatpush2.bf16.msra.mxu0 0
        %1717 = vmatprep.subr.bf16.mxu0 0
        %1718 = vmatpush2.bf16.msra.mxu0 0
        %1719 = vmatprep.subr.bf16.mxu0 0
        %1720 = vmatpush2.bf16.msra.mxu0 0
        %1721 = vmatprep.subr.bf16.mxu0 0
        %1722 = vmatpush2.bf16.msra.mxu0 0
        %1723 = vmatprep.subr.bf16.mxu0 0
        %1724 = vmatpush2.bf16.msra.mxu0 0
        %1725 = vmatprep.subr.bf16.mxu0 0
        %1726 = vmatpush2.bf16.msra.mxu0 0
        %1727 = vmatprep.mubr.bf16.mxu0 0
        %1728 = vmatmul.mubr.bf16.gmra.mxu0 %v1631
        %v1729 = vpop.f32.mrf.mxu0
        %v1730 = vadd.f32 0.0, %v1729
        %v1731 = vpop.f32.mrf.mxu0
        %v1732 = vpop.f32.mrf.mxu0
        %v1733 = vadd.f32 0.0, %v1732
        %v1734 = vpop.f32.mrf.mxu0
        %1735 = vmatprep.mubr.bf16.mxu0 0
        %1736 = vmatmul.mubr.bf16.gmra.mxu0 %v1632
        %v1737 = vpop.f32.mrf.mxu0
        %v1738 = vadd.f32 0.0, %v1737
        %v1739 = vpop.f32.mrf.mxu0
        %v1740 = vpop.f32.mrf.mxu0
        %v1741 = vadd.f32 0.0, %v1740
        %v1742 = vpop.f32.mrf.mxu0
        %1743 = vmatprep.mubr.bf16.mxu0 0
        %1744 = vmatmul.mubr.bf16.gmra.mxu0 %v1633
        %v1745 = vpop.f32.mrf.mxu0
        %v1746 = vadd.f32 0.0, %v1745
        %v1747 = vpop.f32.mrf.mxu0
        %v1748 = vpop.f32.mrf.mxu0
        %v1749 = vadd.f32 0.0, %v1748
        %v1750 = vpop.f32.mrf.mxu0
        %1751 = vmatprep.mubr.bf16.mxu0 0
        %1752 = vmatmul.mubr.bf16.gmra.mxu0 %v1634
        %v1753 = vpop.f32.mrf.mxu0
        %v1754 = vadd.f32 0.0, %v1753
        %v1755 = vpop.f32.mrf.mxu0
        %v1756 = vpop.f32.mrf.mxu0
        %v1757 = vadd.f32 0.0, %v1756
        %v1758 = vpop.f32.mrf.mxu0
        %1759 = vmatprep.mubr.bf16.mxu0 0
        %1760 = vmatmul.mubr.bf16.gmra.mxu0 %v1635
        %v1761 = vpop.f32.mrf.mxu0
        %v1762 = vadd.f32 0.0, %v1761
        %v1763 = vpop.f32.mrf.mxu0
        %v1764 = vpop.f32.mrf.mxu0
        %v1765 = vadd.f32 0.0, %v1764
        %v1766 = vpop.f32.mrf.mxu0
        %1767 = vmatprep.mubr.bf16.mxu0 0
        %1768 = vmatmul.mubr.bf16.gmra.mxu0 %v1636
        %v1769 = vpop.f32.mrf.mxu0
        %v1770 = vadd.f32 0.0, %v1769
        %v1771 = vpop.f32.mrf.mxu0
        %v1772 = vpop.f32.mrf.mxu0
        %v1773 = vadd.f32 0.0, %v1772
        %v1774 = vpop.f32.mrf.mxu0
        %1775 = vmatprep.mubr.bf16.mxu0 0
        %1776 = vmatmul.mubr.bf16.gmra.mxu0 %v1637
        %v1777 = vpop.f32.mrf.mxu0
        %v1778 = vadd.f32 0.0, %v1777
        %v1779 = vpop.f32.mrf.mxu0
        %v1780 = vpop.f32.mrf.mxu0
        %v1781 = vadd.f32 0.0, %v1780
        %v1782 = vpop.f32.mrf.mxu0
        %1783 = vmatprep.mubr.bf16.mxu0 0
        %1784 = vmatmul.mubr.bf16.gmra.mxu0 %v1638
        %v1785 = vpop.f32.mrf.mxu0
        %v1786 = vadd.f32 0.0, %v1785
        %v1787 = vpop.f32.mrf.mxu0
        %v1788 = vpop.f32.mrf.mxu0
        %v1789 = vadd.f32 0.0, %v1788
        %v1790 = vpop.f32.mrf.mxu0
        %1791 = vdwg.mxu0
        %v1808 = vunpack.c.l.b16 %v1323
        %v1809 = vunpack.c.l.b16 %v1324
        %v1810 = vunpack.c.l.b16 %v1325
        %v1811 = vunpack.c.l.b16 %v1326
        %v1812 = vunpack.c.l.b16 %v1327
        %v1813 = vunpack.c.l.b16 %v1328
        %v1814 = vunpack.c.l.b16 %v1329
        %v1815 = vunpack.c.l.b16 %v1330
        %v1816 = vunpack.c.l.b16 %v1331
        %v1817 = vunpack.c.l.b16 %v1332
        %v1818 = vunpack.c.l.b16 %v1333
        %v1819 = vunpack.c.l.b16 %v1334
        %v1820 = vunpack.c.l.b16 %v1335
        %v1821 = vunpack.c.l.b16 %v1336
        %v1822 = vunpack.c.l.b16 %v1337
        %v1823 = vunpack.c.l.b16 %v1338
        %v1824 = vpack.c.b16 %v1809, %v1808
        %v1825 = vpack.c.b16 %v1811, %v1810
        %v1826 = vpack.c.b16 %v1813, %v1812
        %v1827 = vpack.c.b16 %v1815, %v1814
        %v1828 = vpack.c.b16 %v1817, %v1816
        %v1829 = vpack.c.b16 %v1819, %v1818
        %v1830 = vpack.c.b16 %v1821, %v1820
        %v1831 = vpack.c.b16 %v1823, %v1822
        %v1856 = vunpack.c.l.b16 %v1339
        %v1857 = vunpack.c.l.b16 %v1340
        %v1858 = vunpack.c.l.b16 %v1341
        %v1859 = vunpack.c.l.b16 %v1342
        %v1860 = vunpack.c.l.b16 %v1343
        %v1861 = vunpack.c.l.b16 %v1344
        %v1862 = vunpack.c.l.b16 %v1345
        %v1863 = vunpack.c.l.b16 %v1346
        %v1864 = vunpack.c.l.b16 %v1347
        %v1865 = vunpack.c.l.b16 %v1348
        %v1866 = vunpack.c.l.b16 %v1349
        %v1867 = vunpack.c.l.b16 %v1350
        %v1868 = vunpack.c.l.b16 %v1351
        %v1869 = vunpack.c.l.b16 %v1352
        %v1870 = vunpack.c.l.b16 %v1353
        %v1871 = vunpack.c.l.b16 %v1354
        %v1872 = vpack.c.b16 %v1857, %v1856
        %v1873 = vpack.c.b16 %v1859, %v1858
        %v1874 = vpack.c.b16 %v1861, %v1860
        %v1875 = vpack.c.b16 %v1863, %v1862
        %v1876 = vpack.c.b16 %v1865, %v1864
        %v1877 = vpack.c.b16 %v1867, %v1866
        %v1878 = vpack.c.b16 %v1869, %v1868
        %v1879 = vpack.c.b16 %v1871, %v1870
        %1888 = vmatprep.subr.bf16.mxu0 0
        %1889 = vmatpush1.bf16.msra.mxu0 %v1879
        %1890 = vmatprep.subr.bf16.mxu0 0
        %1891 = vmatpush1.bf16.msra.mxu0 %v1878
        %1892 = vmatprep.subr.bf16.mxu0 0
        %1893 = vmatpush1.bf16.msra.mxu0 %v1877
        %1894 = vmatprep.subr.bf16.mxu0 0
        %1895 = vmatpush1.bf16.msra.mxu0 %v1876
        %1896 = vmatprep.subr.bf16.mxu0 0
        %1897 = vmatpush1.bf16.msra.mxu0 %v1875
        %1898 = vmatprep.subr.bf16.mxu0 0
        %1899 = vmatpush1.bf16.msra.mxu0 %v1874
        %1900 = vmatprep.subr.bf16.mxu0 0
        %1901 = vmatpush1.bf16.msra.mxu0 %v1873
        %1902 = vmatprep.subr.bf16.mxu0 0
        %1903 = vmatpush1.bf16.msra.mxu0 %v1872
        %1904 = vmatprep.subr.bf16.mxu0 0
        %1905 = vmatpush2.bf16.msra.mxu0 0
        %1906 = vmatprep.subr.bf16.mxu0 0
        %1907 = vmatpush2.bf16.msra.mxu0 0
        %1908 = vmatprep.subr.bf16.mxu0 0
        %1909 = vmatpush2.bf16.msra.mxu0 0
        %1910 = vmatprep.subr.bf16.mxu0 0
        %1911 = vmatpush2.bf16.msra.mxu0 0
        %1912 = vmatprep.subr.bf16.mxu0 0
        %1913 = vmatpush2.bf16.msra.mxu0 0
        %1914 = vmatprep.subr.bf16.mxu0 0
        %1915 = vmatpush2.bf16.msra.mxu0 0
        %1916 = vmatprep.subr.bf16.mxu0 0
        %1917 = vmatpush2.bf16.msra.mxu0 0
        %1918 = vmatprep.subr.bf16.mxu0 0
        %1919 = vmatpush2.bf16.msra.mxu0 0
        %1920 = vmatprep.mubr.bf16.mxu0 0
        %1921 = vmatmul.mubr.bf16.gmra.mxu0 %v1824
        %v1922 = vpop.f32.mrf.mxu0
        %v1923 = vadd.f32 %v1730, %v1922
        %v1924 = vpop.f32.mrf.mxu0
        %v1925 = vpop.f32.mrf.mxu0
        %v1926 = vadd.f32 %v1733, %v1925
        %v1927 = vpop.f32.mrf.mxu0
        %1928 = vmatprep.mubr.bf16.mxu0 0
        %1929 = vmatmul.mubr.bf16.gmra.mxu0 %v1825
        %v1930 = vpop.f32.mrf.mxu0
        %v1931 = vadd.f32 %v1738, %v1930
        %v1932 = vpop.f32.mrf.mxu0
        %v1933 = vpop.f32.mrf.mxu0
        %v1934 = vadd.f32 %v1741, %v1933
        %v1935 = vpop.f32.mrf.mxu0
        %1936 = vmatprep.mubr.bf16.mxu0 0
        %1937 = vmatmul.mubr.bf16.gmra.mxu0 %v1826
        %v1938 = vpop.f32.mrf.mxu0
        %v1939 = vadd.f32 %v1746, %v1938
        %v1940 = vpop.f32.mrf.mxu0
        %v1941 = vpop.f32.mrf.mxu0
        %v1942 = vadd.f32 %v1749, %v1941
        %v1943 = vpop.f32.mrf.mxu0
        %1944 = vmatprep.mubr.bf16.mxu0 0
        %1945 = vmatmul.mubr.bf16.gmra.mxu0 %v1827
        %v1946 = vpop.f32.mrf.mxu0
        %v1947 = vadd.f32 %v1754, %v1946
        %v1948 = vpop.f32.mrf.mxu0
        %v1949 = vpop.f32.mrf.mxu0
        %v1950 = vadd.f32 %v1757, %v1949
        %v1951 = vpop.f32.mrf.mxu0
        %1952 = vmatprep.mubr.bf16.mxu0 0
        %1953 = vmatmul.mubr.bf16.gmra.mxu0 %v1828
        %v1954 = vpop.f32.mrf.mxu0
        %v1955 = vadd.f32 %v1762, %v1954
        %v1956 = vpop.f32.mrf.mxu0
        %v1957 = vpop.f32.mrf.mxu0
        %v1958 = vadd.f32 %v1765, %v1957
        %v1959 = vpop.f32.mrf.mxu0
        %1960 = vmatprep.mubr.bf16.mxu0 0
        %1961 = vmatmul.mubr.bf16.gmra.mxu0 %v1829
        %v1962 = vpop.f32.mrf.mxu0
        %v1963 = vadd.f32 %v1770, %v1962
        %v1964 = vpop.f32.mrf.mxu0
        %v1965 = vpop.f32.mrf.mxu0
        %v1966 = vadd.f32 %v1773, %v1965
        %v1967 = vpop.f32.mrf.mxu0
        %1968 = vmatprep.mubr.bf16.mxu0 0
        %1969 = vmatmul.mubr.bf16.gmra.mxu0 %v1830
        %v1970 = vpop.f32.mrf.mxu0
        %v1971 = vadd.f32 %v1778, %v1970
        %v1972 = vpop.f32.mrf.mxu0
        %v1973 = vpop.f32.mrf.mxu0
        %v1974 = vadd.f32 %v1781, %v1973
        %v1975 = vpop.f32.mrf.mxu0
        %1976 = vmatprep.mubr.bf16.mxu0 0
        %1977 = vmatmul.mubr.bf16.gmra.mxu0 %v1831
        %v1978 = vpop.f32.mrf.mxu0
        %v1979 = vadd.f32 %v1786, %v1978
        %v1980 = vpop.f32.mrf.mxu0
        %v1981 = vpop.f32.mrf.mxu0
        %v1982 = vadd.f32 %v1789, %v1981
        %v1983 = vpop.f32.mrf.mxu0
        %1984 = vdwg.mxu0
        %v1985 = vld [vmem:[#allocation2] sm:$0xe]
        %v1986 = vld [vmem:[#allocation2 + $0x8] sm:$0xe]
        %v1987 = vld [vmem:[#allocation2 + $0x10] sm:$0xe]
        %v1988 = vld [vmem:[#allocation2 + $0x18] sm:$0xe]
        %v1989 = vld [vmem:[#allocation2 + $0x20] sm:$0xe]
        %v1990 = vld [vmem:[#allocation2 + $0x28] sm:$0xe]
        %v1991 = vld [vmem:[#allocation2 + $0x30] sm:$0xe]
        %v1992 = vld [vmem:[#allocation2 + $0x38] sm:$0xe]
        %v1993 = vld [vmem:[#allocation2 + $0x50] sm:$0xe]
        %v1994 = vld [vmem:[#allocation2 + $0x58] sm:$0xe]
        %v1995 = vld [vmem:[#allocation2 + $0x60] sm:$0xe]
        %v1996 = vld [vmem:[#allocation2 + $0x68] sm:$0xe]
        %v1997 = vld [vmem:[#allocation2 + $0x70] sm:$0xe]
        %v1998 = vld [vmem:[#allocation2 + $0x78] sm:$0xe]
        %v1999 = vld [vmem:[#allocation2 + $0x80] sm:$0xe]
        %v2000 = vld [vmem:[#allocation2 + $0x88] sm:$0xe]
        %vm2001 = vmpackc.low %vm1305, %vm1305
        %v2002 = vsel %vm2001, 65537, 0
        %v2003 = vrot.slane %v2002, 7
        %v2004 = vrot.slane %v2003, 4
        %vm2005 = vcmp.ne.s16.totalorder %v2003, 0
        %vm2006 = vcmp.ne.s16.totalorder %v2004, 0
        %v2007 = vsel %vm2005, %v1985, 0
        %v2008 = vsel %vm2006, %v1355, 0
        %v2009 = vsel %vm2005, %v1986, 0
        %v2010 = vsel %vm2006, %v1356, 0
        %v2011 = vsel %vm2005, %v1987, 0
        %v2012 = vsel %vm2006, %v1357, 0
        %v2013 = vsel %vm2005, %v1988, 0
        %v2014 = vsel %vm2006, %v1358, 0
        %v2015 = vsel %vm2005, %v1989, 0
        %v2016 = vsel %vm2006, %v1359, 0
        %v2017 = vsel %vm2005, %v1990, 0
        %v2018 = vsel %vm2006, %v1360, 0
        %v2019 = vsel %vm2005, %v1991, 0
        %v2020 = vsel %vm2006, %v1361, 0
        %v2021 = vsel %vm2005, %v1992, 0
        %v2022 = vsel %vm2006, %v1362, 0
        %v2023 = vsel %vm2005, %v1993, 0
        %v2024 = vsel %vm2006, %v1363, 0
        %v2025 = vsel %vm2005, %v1994, 0
        %v2026 = vsel %vm2006, %v1364, 0
        %v2027 = vsel %vm2005, %v1995, 0
        %v2028 = vsel %vm2006, %v1365, 0
        %v2029 = vsel %vm2005, %v1996, 0
        %v2030 = vsel %vm2006, %v1366, 0
        %v2031 = vsel %vm2005, %v1997, 0
        %v2032 = vsel %vm2006, %v1367, 0
        %v2033 = vsel %vm2005, %v1998, 0
        %v2034 = vsel %vm2006, %v1368, 0
        %v2035 = vsel %vm2005, %v1999, 0
        %v2036 = vsel %vm2006, %v1369, 0
        %v2037 = vsel %vm2005, %v2000, 0
        %v2038 = vsel %vm2006, %v1370, 0
        %vm2071 = vcmask 1042432
        %vm2072 = vcmask 1046532
        %vm2073 = vmor %vm2071, %vm2072
        %v2074 = vrot.slane %v2007, 5
        %v2075 = vrot.slane %v2074, 4
        %v2076 = vrot.slane %v2008, 5
        %v2077 = vsel %vm2073, %v2075, %v2076
        %v2078 = vrot.slane %v2009, 5
        %v2079 = vrot.slane %v2078, 4
        %v2080 = vrot.slane %v2010, 5
        %v2081 = vsel %vm2073, %v2079, %v2080
        %v2082 = vrot.slane %v2011, 5
        %v2083 = vrot.slane %v2082, 4
        %v2084 = vrot.slane %v2012, 5
        %v2085 = vsel %vm2073, %v2083, %v2084
        %v2086 = vrot.slane %v2013, 5
        %v2087 = vrot.slane %v2086, 4
        %v2088 = vrot.slane %v2014, 5
        %v2089 = vsel %vm2073, %v2087, %v2088
        %v2090 = vrot.slane %v2015, 5
        %v2091 = vrot.slane %v2090, 4
        %v2092 = vrot.slane %v2016, 5
        %v2093 = vsel %vm2073, %v2091, %v2092
        %v2094 = vrot.slane %v2017, 5
        %v2095 = vrot.slane %v2094, 4
        %v2096 = vrot.slane %v2018, 5
        %v2097 = vsel %vm2073, %v2095, %v2096
        %v2098 = vrot.slane %v2019, 5
        %v2099 = vrot.slane %v2098, 4
        %v2100 = vrot.slane %v2020, 5
        %v2101 = vsel %vm2073, %v2099, %v2100
        %v2102 = vrot.slane %v2021, 5
        %v2103 = vrot.slane %v2102, 4
        %v2104 = vrot.slane %v2022, 5
        %v2105 = vsel %vm2073, %v2103, %v2104
        %v2106 = vrot.slane %v2023, 5
        %v2107 = vrot.slane %v2106, 4
        %v2108 = vrot.slane %v2024, 5
        %v2109 = vsel %vm2073, %v2107, %v2108
        %v2110 = vrot.slane %v2025, 5
        %v2111 = vrot.slane %v2110, 4
        %v2112 = vrot.slane %v2026, 5
        %v2113 = vsel %vm2073, %v2111, %v2112
        %v2114 = vrot.slane %v2027, 5
        %v2115 = vrot.slane %v2114, 4
        %v2116 = vrot.slane %v2028, 5
        %v2117 = vsel %vm2073, %v2115, %v2116
        %v2118 = vrot.slane %v2029, 5
        %v2119 = vrot.slane %v2118, 4
        %v2120 = vrot.slane %v2030, 5
        %v2121 = vsel %vm2073, %v2119, %v2120
        %v2122 = vrot.slane %v2031, 5
        %v2123 = vrot.slane %v2122, 4
        %v2124 = vrot.slane %v2032, 5
        %v2125 = vsel %vm2073, %v2123, %v2124
        %v2126 = vrot.slane %v2033, 5
        %v2127 = vrot.slane %v2126, 4
        %v2128 = vrot.slane %v2034, 5
        %v2129 = vsel %vm2073, %v2127, %v2128
        %v2130 = vrot.slane %v2035, 5
        %v2131 = vrot.slane %v2130, 4
        %v2132 = vrot.slane %v2036, 5
        %v2133 = vsel %vm2073, %v2131, %v2132
        %v2134 = vrot.slane %v2037, 5
        %v2135 = vrot.slane %v2134, 4
        %v2136 = vrot.slane %v2038, 5
        %v2137 = vsel %vm2073, %v2135, %v2136
        %s2138 = scalar_lea.vmem [#allocation9], 128
        %v2139 = vld [vmem:[%s2138] sm:$0xf]
        %v2140 = vld [vmem:[%s2138 + $0x4] sm:$0xf]
        %v2141 = vld [vmem:[%s2138 + $0x8] sm:$0xf]
        %v2142 = vld [vmem:[%s2138 + $0xc] sm:$0xf]
        %v2143 = vld [vmem:[%s2138 + $0x10] sm:$0xf]
        %v2144 = vld [vmem:[%s2138 + $0x14] sm:$0xf]
        %v2145 = vld [vmem:[%s2138 + $0x18] sm:$0xf]
        %v2146 = vld [vmem:[%s2138 + $0x1c] sm:$0xf]
        %v2147 = vld [vmem:[%s2138 + $0x20] sm:$0xf]
        %v2148 = vld [vmem:[%s2138 + $0x24] sm:$0xf]
        %v2149 = vld [vmem:[%s2138 + $0x28] sm:$0xf]
        %v2150 = vld [vmem:[%s2138 + $0x2c] sm:$0xf]
        %v2151 = vld [vmem:[%s2138 + $0x30] sm:$0xf]
        %v2152 = vld [vmem:[%s2138 + $0x34] sm:$0xf]
        %v2153 = vld [vmem:[%s2138 + $0x38] sm:$0xf]
        %v2154 = vld [vmem:[%s2138 + $0x3c] sm:$0xf]
        %v2155 = vunpack.c.l.b16 %v2077
        %v2156 = vunpack.c.l.b16 %v2081
        %v2157 = vunpack.c.l.b16 %v2085
        %v2158 = vunpack.c.l.b16 %v2089
        %v2159 = vunpack.c.l.b16 %v2093
        %v2160 = vunpack.c.l.b16 %v2097
        %v2161 = vunpack.c.l.b16 %v2101
        %v2162 = vunpack.c.l.b16 %v2105
        %v2163 = vunpack.c.l.b16 %v2109
        %v2164 = vunpack.c.l.b16 %v2113
        %v2165 = vunpack.c.l.b16 %v2117
        %v2166 = vunpack.c.l.b16 %v2121
        %v2167 = vunpack.c.l.b16 %v2125
        %v2168 = vunpack.c.l.b16 %v2129
        %v2169 = vunpack.c.l.b16 %v2133
        %v2170 = vunpack.c.l.b16 %v2137
        %v2171 = vpack.c.b16 %v2156, %v2155
        %v2172 = vpack.c.b16 %v2158, %v2157
        %v2173 = vpack.c.b16 %v2160, %v2159
        %v2174 = vpack.c.b16 %v2162, %v2161
        %v2175 = vpack.c.b16 %v2164, %v2163
        %v2176 = vpack.c.b16 %v2166, %v2165
        %v2177 = vpack.c.b16 %v2168, %v2167
        %v2178 = vpack.c.b16 %v2170, %v2169
        %v2203 = vunpack.c.l.b16 %v2139
        %v2204 = vunpack.c.l.b16 %v2140
        %v2205 = vunpack.c.l.b16 %v2141
        %v2206 = vunpack.c.l.b16 %v2142
        %v2207 = vunpack.c.l.b16 %v2143
        %v2208 = vunpack.c.l.b16 %v2144
        %v2209 = vunpack.c.l.b16 %v2145
        %v2210 = vunpack.c.l.b16 %v2146
        %v2211 = vunpack.c.l.b16 %v2147
        %v2212 = vunpack.c.l.b16 %v2148
        %v2213 = vunpack.c.l.b16 %v2149
        %v2214 = vunpack.c.l.b16 %v2150
        %v2215 = vunpack.c.l.b16 %v2151
        %v2216 = vunpack.c.l.b16 %v2152
        %v2217 = vunpack.c.l.b16 %v2153
        %v2218 = vunpack.c.l.b16 %v2154
        %v2219 = vpack.c.b16 %v2204, %v2203
        %v2220 = vpack.c.b16 %v2206, %v2205
        %v2221 = vpack.c.b16 %v2208, %v2207
        %v2222 = vpack.c.b16 %v2210, %v2209
        %v2223 = vpack.c.b16 %v2212, %v2211
        %v2224 = vpack.c.b16 %v2214, %v2213
        %v2225 = vpack.c.b16 %v2216, %v2215
        %v2226 = vpack.c.b16 %v2218, %v2217
        %2235 = vmatprep.subr.bf16.mxu0 0
        %2236 = vmatpush1.bf16.msra.mxu0 %v2226
        %2237 = vmatprep.subr.bf16.mxu0 0
        %2238 = vmatpush1.bf16.msra.mxu0 %v2225
        %2239 = vmatprep.subr.bf16.mxu0 0
        %2240 = vmatpush1.bf16.msra.mxu0 %v2224
        %2241 = vmatprep.subr.bf16.mxu0 0
        %2242 = vmatpush1.bf16.msra.mxu0 %v2223
        %2243 = vmatprep.subr.bf16.mxu0 0
        %2244 = vmatpush1.bf16.msra.mxu0 %v2222
        %2245 = vmatprep.subr.bf16.mxu0 0
        %2246 = vmatpush1.bf16.msra.mxu0 %v2221
        %2247 = vmatprep.subr.bf16.mxu0 0
        %2248 = vmatpush1.bf16.msra.mxu0 %v2220
        %2249 = vmatprep.subr.bf16.mxu0 0
        %2250 = vmatpush1.bf16.msra.mxu0 %v2219
        %2251 = vmatprep.subr.bf16.mxu0 0
        %2252 = vmatpush2.bf16.msra.mxu0 0
        %2253 = vmatprep.subr.bf16.mxu0 0
        %2254 = vmatpush2.bf16.msra.mxu0 0
        %2255 = vmatprep.subr.bf16.mxu0 0
        %2256 = vmatpush2.bf16.msra.mxu0 0
        %2257 = vmatprep.subr.bf16.mxu0 0
        %2258 = vmatpush2.bf16.msra.mxu0 0
        %2259 = vmatprep.subr.bf16.mxu0 0
        %2260 = vmatpush2.bf16.msra.mxu0 0
        %2261 = vmatprep.subr.bf16.mxu0 0
        %2262 = vmatpush2.bf16.msra.mxu0 0
        %2263 = vmatprep.subr.bf16.mxu0 0
        %2264 = vmatpush2.bf16.msra.mxu0 0
        %2265 = vmatprep.subr.bf16.mxu0 0
        %2266 = vmatpush2.bf16.msra.mxu0 0
        %2267 = vmatprep.mubr.bf16.mxu0 0
        %2268 = vmatmul.mubr.bf16.gmra.mxu0 %v2171
        %v2269 = vpop.f32.mrf.mxu0
        %v2270 = vadd.f32 0.0, %v2269
        %v2271 = vpop.f32.mrf.mxu0
        %v2272 = vpop.f32.mrf.mxu0
        %v2273 = vadd.f32 0.0, %v2272
        %v2274 = vpop.f32.mrf.mxu0
        %2275 = vmatprep.mubr.bf16.mxu0 0
        %2276 = vmatmul.mubr.bf16.gmra.mxu0 %v2172
        %v2277 = vpop.f32.mrf.mxu0
        %v2278 = vadd.f32 0.0, %v2277
        %v2279 = vpop.f32.mrf.mxu0
        %v2280 = vpop.f32.mrf.mxu0
        %v2281 = vadd.f32 0.0, %v2280
        %v2282 = vpop.f32.mrf.mxu0
        %2283 = vmatprep.mubr.bf16.mxu0 0
        %2284 = vmatmul.mubr.bf16.gmra.mxu0 %v2173
        %v2285 = vpop.f32.mrf.mxu0
        %v2286 = vadd.f32 0.0, %v2285
        %v2287 = vpop.f32.mrf.mxu0
        %v2288 = vpop.f32.mrf.mxu0
        %v2289 = vadd.f32 0.0, %v2288
        %v2290 = vpop.f32.mrf.mxu0
        %2291 = vmatprep.mubr.bf16.mxu0 0
        %2292 = vmatmul.mubr.bf16.gmra.mxu0 %v2174
        %v2293 = vpop.f32.mrf.mxu0
        %v2294 = vadd.f32 0.0, %v2293
        %v2295 = vpop.f32.mrf.mxu0
        %v2296 = vpop.f32.mrf.mxu0
        %v2297 = vadd.f32 0.0, %v2296
        %v2298 = vpop.f32.mrf.mxu0
        %2299 = vmatprep.mubr.bf16.mxu0 0
        %2300 = vmatmul.mubr.bf16.gmra.mxu0 %v2175
        %v2301 = vpop.f32.mrf.mxu0
        %v2302 = vadd.f32 0.0, %v2301
        %v2303 = vpop.f32.mrf.mxu0
        %v2304 = vpop.f32.mrf.mxu0
        %v2305 = vadd.f32 0.0, %v2304
        %v2306 = vpop.f32.mrf.mxu0
        %2307 = vmatprep.mubr.bf16.mxu0 0
        %2308 = vmatmul.mubr.bf16.gmra.mxu0 %v2176
        %v2309 = vpop.f32.mrf.mxu0
        %v2310 = vadd.f32 0.0, %v2309
        %v2311 = vpop.f32.mrf.mxu0
        %v2312 = vpop.f32.mrf.mxu0
        %v2313 = vadd.f32 0.0, %v2312
        %v2314 = vpop.f32.mrf.mxu0
        %2315 = vmatprep.mubr.bf16.mxu0 0
        %2316 = vmatmul.mubr.bf16.gmra.mxu0 %v2177
        %v2317 = vpop.f32.mrf.mxu0
        %v2318 = vadd.f32 0.0, %v2317
        %v2319 = vpop.f32.mrf.mxu0
        %v2320 = vpop.f32.mrf.mxu0
        %v2321 = vadd.f32 0.0, %v2320
        %v2322 = vpop.f32.mrf.mxu0
        %2323 = vmatprep.mubr.bf16.mxu0 0
        %2324 = vmatmul.mubr.bf16.gmra.mxu0 %v2178
        %v2325 = vpop.f32.mrf.mxu0
        %v2326 = vadd.f32 0.0, %v2325
        %v2327 = vpop.f32.mrf.mxu0
        %v2328 = vpop.f32.mrf.mxu0
        %v2329 = vadd.f32 0.0, %v2328
        %v2330 = vpop.f32.mrf.mxu0
        %2331 = vdwg.mxu0
        %v2332 = vadd.f32 %v1923, %v2270
        %v2333 = vadd.f32 %v1926, %v2273
        %v2334 = vadd.f32 %v1931, %v2278
        %v2335 = vadd.f32 %v1934, %v2281
        %v2336 = vadd.f32 %v1939, %v2286
        %v2337 = vadd.f32 %v1942, %v2289
        %v2338 = vadd.f32 %v1947, %v2294
        %v2339 = vadd.f32 %v1950, %v2297
        %v2340 = vadd.f32 %v1955, %v2302
        %v2341 = vadd.f32 %v1958, %v2305
        %v2342 = vadd.f32 %v1963, %v2310
        %v2343 = vadd.f32 %v1966, %v2313
        %v2344 = vadd.f32 %v1971, %v2318
        %v2345 = vadd.f32 %v1974, %v2321
        %v2346 = vadd.f32 %v1979, %v2326
        %v2347 = vadd.f32 %v1982, %v2329
        %v2348 = vld [vmem:[%s1199] sm:$0xf]
        %v2349 = vld [vmem:[%s1199 + $0x8] sm:$0xf]
        %v2350 = vld [vmem:[%s1199 + $0x10] sm:$0xf]
        %v2351 = vld [vmem:[%s1199 + $0x18] sm:$0xf]
        %v2352 = vld [vmem:[%s1199 + $0x20] sm:$0xf]
        %v2353 = vld [vmem:[%s1199 + $0x28] sm:$0xf]
        %v2354 = vld [vmem:[%s1199 + $0x30] sm:$0xf]
        %v2355 = vld [vmem:[%s1199 + $0x38] sm:$0xf]
        %v2356 = vld [vmem:[%s1199 + $0x50] sm:$0xf]
        %v2357 = vld [vmem:[%s1199 + $0x58] sm:$0xf]
        %v2358 = vld [vmem:[%s1199 + $0x60] sm:$0xf]
        %v2359 = vld [vmem:[%s1199 + $0x68] sm:$0xf]
        %v2360 = vld [vmem:[%s1199 + $0x70] sm:$0xf]
        %v2361 = vld [vmem:[%s1199 + $0x78] sm:$0xf]
        %v2362 = vld [vmem:[%s1199 + $0x80] sm:$0xf]
        %v2363 = vld [vmem:[%s1199 + $0x88] sm:$0xf]
        %v2364 = vsel %vm1322, %v2348, 0
        %v2365 = vsel %vm1322, %v2349, 0
        %v2366 = vsel %vm1322, %v2350, 0
        %v2367 = vsel %vm1322, %v2351, 0
        %v2368 = vsel %vm1322, %v2352, 0
        %v2369 = vsel %vm1322, %v2353, 0
        %v2370 = vsel %vm1322, %v2354, 0
        %v2371 = vsel %vm1322, %v2355, 0
        %v2372 = vsel %vm1322, %v2356, 0
        %v2373 = vsel %vm1322, %v2357, 0
        %v2374 = vsel %vm1322, %v2358, 0
        %v2375 = vsel %vm1322, %v2359, 0
        %v2376 = vsel %vm1322, %v2360, 0
        %v2377 = vsel %vm1322, %v2361, 0
        %v2378 = vsel %vm1322, %v2362, 0
        %v2379 = vsel %vm1322, %v2363, 0
        %s2380 = scalar_lea.vmem [#allocation9], 192
        %v2381 = vld [vmem:[%s2380] sm:$0xf]
        %v2382 = vld [vmem:[%s2380 + $0x4] sm:$0xf]
        %v2383 = vld [vmem:[%s2380 + $0x8] sm:$0xf]
        %v2384 = vld [vmem:[%s2380 + $0xc] sm:$0xf]
        %v2385 = vld [vmem:[%s2380 + $0x10] sm:$0xf]
        %v2386 = vld [vmem:[%s2380 + $0x14] sm:$0xf]
        %v2387 = vld [vmem:[%s2380 + $0x18] sm:$0xf]
        %v2388 = vld [vmem:[%s2380 + $0x1c] sm:$0xf]
        %v2389 = vld [vmem:[%s2380 + $0x20] sm:$0xf]
        %v2390 = vld [vmem:[%s2380 + $0x24] sm:$0xf]
        %v2391 = vld [vmem:[%s2380 + $0x28] sm:$0xf]
        %v2392 = vld [vmem:[%s2380 + $0x2c] sm:$0xf]
        %v2393 = vld [vmem:[%s2380 + $0x30] sm:$0xf]
        %v2394 = vld [vmem:[%s2380 + $0x34] sm:$0xf]
        %v2395 = vld [vmem:[%s2380 + $0x38] sm:$0xf]
        %v2396 = vld [vmem:[%s2380 + $0x3c] sm:$0xf]
        %v2413 = vunpack.c.l.b16 %v2364
        %v2414 = vunpack.c.l.b16 %v2365
        %v2415 = vunpack.c.l.b16 %v2366
        %v2416 = vunpack.c.l.b16 %v2367
        %v2417 = vunpack.c.l.b16 %v2368
        %v2418 = vunpack.c.l.b16 %v2369
        %v2419 = vunpack.c.l.b16 %v2370
        %v2420 = vunpack.c.l.b16 %v2371
        %v2421 = vunpack.c.l.b16 %v2372
        %v2422 = vunpack.c.l.b16 %v2373
        %v2423 = vunpack.c.l.b16 %v2374
        %v2424 = vunpack.c.l.b16 %v2375
        %v2425 = vunpack.c.l.b16 %v2376
        %v2426 = vunpack.c.l.b16 %v2377
        %v2427 = vunpack.c.l.b16 %v2378
        %v2428 = vunpack.c.l.b16 %v2379
        %v2429 = vpack.c.b16 %v2414, %v2413
        %v2430 = vpack.c.b16 %v2416, %v2415
        %v2431 = vpack.c.b16 %v2418, %v2417
        %v2432 = vpack.c.b16 %v2420, %v2419
        %v2433 = vpack.c.b16 %v2422, %v2421
        %v2434 = vpack.c.b16 %v2424, %v2423
        %v2435 = vpack.c.b16 %v2426, %v2425
        %v2436 = vpack.c.b16 %v2428, %v2427
        %v2461 = vunpack.c.l.b16 %v2381
        %v2462 = vunpack.c.l.b16 %v2382
        %v2463 = vunpack.c.l.b16 %v2383
        %v2464 = vunpack.c.l.b16 %v2384
        %v2465 = vunpack.c.l.b16 %v2385
        %v2466 = vunpack.c.l.b16 %v2386
        %v2467 = vunpack.c.l.b16 %v2387
        %v2468 = vunpack.c.l.b16 %v2388
        %v2469 = vunpack.c.l.b16 %v2389
        %v2470 = vunpack.c.l.b16 %v2390
        %v2471 = vunpack.c.l.b16 %v2391
        %v2472 = vunpack.c.l.b16 %v2392
        %v2473 = vunpack.c.l.b16 %v2393
        %v2474 = vunpack.c.l.b16 %v2394
        %v2475 = vunpack.c.l.b16 %v2395
        %v2476 = vunpack.c.l.b16 %v2396
        %v2477 = vpack.c.b16 %v2462, %v2461
        %v2478 = vpack.c.b16 %v2464, %v2463
        %v2479 = vpack.c.b16 %v2466, %v2465
        %v2480 = vpack.c.b16 %v2468, %v2467
        %v2481 = vpack.c.b16 %v2470, %v2469
        %v2482 = vpack.c.b16 %v2472, %v2471
        %v2483 = vpack.c.b16 %v2474, %v2473
        %v2484 = vpack.c.b16 %v2476, %v2475
        %2493 = vmatprep.subr.bf16.mxu0 0
        %2494 = vmatpush1.bf16.msra.mxu0 %v2484
        %2495 = vmatprep.subr.bf16.mxu0 0
        %2496 = vmatpush1.bf16.msra.mxu0 %v2483
        %2497 = vmatprep.subr.bf16.mxu0 0
        %2498 = vmatpush1.bf16.msra.mxu0 %v2482
        %2499 = vmatprep.subr.bf16.mxu0 0
        %2500 = vmatpush1.bf16.msra.mxu0 %v2481
        %2501 = vmatprep.subr.bf16.mxu0 0
        %2502 = vmatpush1.bf16.msra.mxu0 %v2480
        %2503 = vmatprep.subr.bf16.mxu0 0
        %2504 = vmatpush1.bf16.msra.mxu0 %v2479
        %2505 = vmatprep.subr.bf16.mxu0 0
        %2506 = vmatpush1.bf16.msra.mxu0 %v2478
        %2507 = vmatprep.subr.bf16.mxu0 0
        %2508 = vmatpush1.bf16.msra.mxu0 %v2477
        %2509 = vmatprep.subr.bf16.mxu0 0
        %2510 = vmatpush2.bf16.msra.mxu0 0
        %2511 = vmatprep.subr.bf16.mxu0 0
        %2512 = vmatpush2.bf16.msra.mxu0 0
        %2513 = vmatprep.subr.bf16.mxu0 0
        %2514 = vmatpush2.bf16.msra.mxu0 0
        %2515 = vmatprep.subr.bf16.mxu0 0
        %2516 = vmatpush2.bf16.msra.mxu0 0
        %2517 = vmatprep.subr.bf16.mxu0 0
        %2518 = vmatpush2.bf16.msra.mxu0 0
        %2519 = vmatprep.subr.bf16.mxu0 0
        %2520 = vmatpush2.bf16.msra.mxu0 0
        %2521 = vmatprep.subr.bf16.mxu0 0
        %2522 = vmatpush2.bf16.msra.mxu0 0
        %2523 = vmatprep.subr.bf16.mxu0 0
        %2524 = vmatpush2.bf16.msra.mxu0 0
        %2525 = vmatprep.mubr.bf16.mxu0 0
        %2526 = vmatmul.mubr.bf16.gmra.mxu0 %v2429
        %v2527 = vpop.f32.mrf.mxu0
        %v2528 = vadd.f32 0.0, %v2527
        %v2529 = vpop.f32.mrf.mxu0
        %v2530 = vpop.f32.mrf.mxu0
        %v2531 = vadd.f32 0.0, %v2530
        %v2532 = vpop.f32.mrf.mxu0
        %2533 = vmatprep.mubr.bf16.mxu0 0
        %2534 = vmatmul.mubr.bf16.gmra.mxu0 %v2430
        %v2535 = vpop.f32.mrf.mxu0
        %v2536 = vadd.f32 0.0, %v2535
        %v2537 = vpop.f32.mrf.mxu0
        %v2538 = vpop.f32.mrf.mxu0
        %v2539 = vadd.f32 0.0, %v2538
        %v2540 = vpop.f32.mrf.mxu0
        %2541 = vmatprep.mubr.bf16.mxu0 0
        %2542 = vmatmul.mubr.bf16.gmra.mxu0 %v2431
        %v2543 = vpop.f32.mrf.mxu0
        %v2544 = vadd.f32 0.0, %v2543
        %v2545 = vpop.f32.mrf.mxu0
        %v2546 = vpop.f32.mrf.mxu0
        %v2547 = vadd.f32 0.0, %v2546
        %v2548 = vpop.f32.mrf.mxu0
        %2549 = vmatprep.mubr.bf16.mxu0 0
        %2550 = vmatmul.mubr.bf16.gmra.mxu0 %v2432
        %v2551 = vpop.f32.mrf.mxu0
        %v2552 = vadd.f32 0.0, %v2551
        %v2553 = vpop.f32.mrf.mxu0
        %v2554 = vpop.f32.mrf.mxu0
        %v2555 = vadd.f32 0.0, %v2554
        %v2556 = vpop.f32.mrf.mxu0
        %2557 = vmatprep.mubr.bf16.mxu0 0
        %2558 = vmatmul.mubr.bf16.gmra.mxu0 %v2433
        %v2559 = vpop.f32.mrf.mxu0
        %v2560 = vadd.f32 0.0, %v2559
        %v2561 = vpop.f32.mrf.mxu0
        %v2562 = vpop.f32.mrf.mxu0
        %v2563 = vadd.f32 0.0, %v2562
        %v2564 = vpop.f32.mrf.mxu0
        %2565 = vmatprep.mubr.bf16.mxu0 0
        %2566 = vmatmul.mubr.bf16.gmra.mxu0 %v2434
        %v2567 = vpop.f32.mrf.mxu0
        %v2568 = vadd.f32 0.0, %v2567
        %v2569 = vpop.f32.mrf.mxu0
        %v2570 = vpop.f32.mrf.mxu0
        %v2571 = vadd.f32 0.0, %v2570
        %v2572 = vpop.f32.mrf.mxu0
        %2573 = vmatprep.mubr.bf16.mxu0 0
        %2574 = vmatmul.mubr.bf16.gmra.mxu0 %v2435
        %v2575 = vpop.f32.mrf.mxu0
        %v2576 = vadd.f32 0.0, %v2575
        %v2577 = vpop.f32.mrf.mxu0
        %v2578 = vpop.f32.mrf.mxu0
        %v2579 = vadd.f32 0.0, %v2578
        %v2580 = vpop.f32.mrf.mxu0
        %2581 = vmatprep.mubr.bf16.mxu0 0
        %2582 = vmatmul.mubr.bf16.gmra.mxu0 %v2436
        %v2583 = vpop.f32.mrf.mxu0
        %v2584 = vadd.f32 0.0, %v2583
        %v2585 = vpop.f32.mrf.mxu0
        %v2586 = vpop.f32.mrf.mxu0
        %v2587 = vadd.f32 0.0, %v2586
        %v2588 = vpop.f32.mrf.mxu0
        %2589 = vdwg.mxu0
        %v2590 = vadd.f32 %v2332, %v2528
        %v2591 = vadd.f32 %v2333, %v2531
        %v2592 = vadd.f32 %v2334, %v2536
        %v2593 = vadd.f32 %v2335, %v2539
        %v2594 = vadd.f32 %v2336, %v2544
        %v2595 = vadd.f32 %v2337, %v2547
        %v2596 = vadd.f32 %v2338, %v2552
        %v2597 = vadd.f32 %v2339, %v2555
        %v2598 = vadd.f32 %v2340, %v2560
        %v2599 = vadd.f32 %v2341, %v2563
        %v2600 = vadd.f32 %v2342, %v2568
        %v2601 = vadd.f32 %v2343, %v2571
        %v2602 = vadd.f32 %v2344, %v2576
        %v2603 = vadd.f32 %v2345, %v2579
        %v2604 = vadd.f32 %v2346, %v2584
        %v2605 = vadd.f32 %v2347, %v2587
        %v2606 = vld [vmem:[%s1199] sm:$0xf]
        %v2607 = vld [vmem:[%s1199 + $0x4] sm:$0x1]
        %v2608 = vld [vmem:[%s1199 + $0x8] sm:$0xf]
        %v2609 = vld [vmem:[%s1199 + $0xc] sm:$0x1]
        %v2610 = vld [vmem:[%s1199 + $0x10] sm:$0xf]
        %v2611 = vld [vmem:[%s1199 + $0x14] sm:$0x1]
        %v2612 = vld [vmem:[%s1199 + $0x18] sm:$0xf]
        %v2613 = vld [vmem:[%s1199 + $0x1c] sm:$0x1]
        %v2614 = vld [vmem:[%s1199 + $0x20] sm:$0xf]
        %v2615 = vld [vmem:[%s1199 + $0x24] sm:$0x1]
        %v2616 = vld [vmem:[%s1199 + $0x28] sm:$0xf]
        %v2617 = vld [vmem:[%s1199 + $0x2c] sm:$0x1]
        %v2618 = vld [vmem:[%s1199 + $0x30] sm:$0xf]
        %v2619 = vld [vmem:[%s1199 + $0x34] sm:$0x1]
        %v2620 = vld [vmem:[%s1199 + $0x38] sm:$0xf]
        %v2621 = vld [vmem:[%s1199 + $0x3c] sm:$0x1]
        %v2622 = vld [vmem:[%s1199 + $0x50] sm:$0xf]
        %v2623 = vld [vmem:[%s1199 + $0x54] sm:$0x1]
        %v2624 = vld [vmem:[%s1199 + $0x58] sm:$0xf]
        %v2625 = vld [vmem:[%s1199 + $0x5c] sm:$0x1]
        %v2626 = vld [vmem:[%s1199 + $0x60] sm:$0xf]
        %v2627 = vld [vmem:[%s1199 + $0x64] sm:$0x1]
        %v2628 = vld [vmem:[%s1199 + $0x68] sm:$0xf]
        %v2629 = vld [vmem:[%s1199 + $0x6c] sm:$0x1]
        %v2630 = vld [vmem:[%s1199 + $0x70] sm:$0xf]
        %v2631 = vld [vmem:[%s1199 + $0x74] sm:$0x1]
        %v2632 = vld [vmem:[%s1199 + $0x78] sm:$0xf]
        %v2633 = vld [vmem:[%s1199 + $0x7c] sm:$0x1]
        %v2634 = vld [vmem:[%s1199 + $0x80] sm:$0xf]
        %v2635 = vld [vmem:[%s1199 + $0x84] sm:$0x1]
        %v2636 = vld [vmem:[%s1199 + $0x88] sm:$0xf]
        %v2637 = vld [vmem:[%s1199 + $0x8c] sm:$0x1]
        %v2639 = vshrl.u32 %v2606, 16
        %v2641 = vrot.slane %v2639, 4
        %v2642 = vshll.u32 %v2606, 16
        %v2644 = vrot.slane %v2642, 5
        %v2645 = vor.u32 %v2641, %v2644
        %v2646 = vrot.slane %v2645, 4
        %v2648 = vshll.u32 %v2607, 16
        %v2650 = vrot.slane %v2648, 5
        %v2651 = vsel %vm1373, %v2646, %v2650
        %v2653 = vshrl.u32 %v2608, 16
        %v2655 = vrot.slane %v2653, 4
        %v2656 = vshll.u32 %v2608, 16
        %v2658 = vrot.slane %v2656, 5
        %v2659 = vor.u32 %v2655, %v2658
        %v2660 = vrot.slane %v2659, 4
        %v2662 = vshll.u32 %v2609, 16
        %v2664 = vrot.slane %v2662, 5
        %v2665 = vsel %vm1373, %v2660, %v2664
        %v2667 = vshrl.u32 %v2610, 16
        %v2669 = vrot.slane %v2667, 4
        %v2670 = vshll.u32 %v2610, 16
        %v2672 = vrot.slane %v2670, 5
        %v2673 = vor.u32 %v2669, %v2672
        %v2674 = vrot.slane %v2673, 4
        %v2676 = vshll.u32 %v2611, 16
        %v2678 = vrot.slane %v2676, 5
        %v2679 = vsel %vm1373, %v2674, %v2678
        %v2681 = vshrl.u32 %v2612, 16
        %v2683 = vrot.slane %v2681, 4
        %v2684 = vshll.u32 %v2612, 16
        %v2686 = vrot.slane %v2684, 5
        %v2687 = vor.u32 %v2683, %v2686
        %v2688 = vrot.slane %v2687, 4
        %v2690 = vshll.u32 %v2613, 16
        %v2692 = vrot.slane %v2690, 5
        %v2693 = vsel %vm1373, %v2688, %v2692
        %v2695 = vshrl.u32 %v2614, 16
        %v2697 = vrot.slane %v2695, 4
        %v2698 = vshll.u32 %v2614, 16
        %v2700 = vrot.slane %v2698, 5
        %v2701 = vor.u32 %v2697, %v2700
        %v2702 = vrot.slane %v2701, 4
        %v2704 = vshll.u32 %v2615, 16
        %v2706 = vrot.slane %v2704, 5
        %v2707 = vsel %vm1373, %v2702, %v2706
        %v2709 = vshrl.u32 %v2616, 16
        %v2711 = vrot.slane %v2709, 4
        %v2712 = vshll.u32 %v2616, 16
        %v2714 = vrot.slane %v2712, 5
        %v2715 = vor.u32 %v2711, %v2714
        %v2716 = vrot.slane %v2715, 4
        %v2718 = vshll.u32 %v2617, 16
        %v2720 = vrot.slane %v2718, 5
        %v2721 = vsel %vm1373, %v2716, %v2720
        %v2723 = vshrl.u32 %v2618, 16
        %v2725 = vrot.slane %v2723, 4
        %v2726 = vshll.u32 %v2618, 16
        %v2728 = vrot.slane %v2726, 5
        %v2729 = vor.u32 %v2725, %v2728
        %v2730 = vrot.slane %v2729, 4
        %v2732 = vshll.u32 %v2619, 16
        %v2734 = vrot.slane %v2732, 5
        %v2735 = vsel %vm1373, %v2730, %v2734
        %v2737 = vshrl.u32 %v2620, 16
        %v2739 = vrot.slane %v2737, 4
        %v2740 = vshll.u32 %v2620, 16
        %v2742 = vrot.slane %v2740, 5
        %v2743 = vor.u32 %v2739, %v2742
        %v2744 = vrot.slane %v2743, 4
        %v2746 = vshll.u32 %v2621, 16
        %v2748 = vrot.slane %v2746, 5
        %v2749 = vsel %vm1373, %v2744, %v2748
        %v2751 = vshrl.u32 %v2622, 16
        %v2753 = vrot.slane %v2751, 4
        %v2754 = vshll.u32 %v2622, 16
        %v2756 = vrot.slane %v2754, 5
        %v2757 = vor.u32 %v2753, %v2756
        %v2758 = vrot.slane %v2757, 4
        %v2760 = vshll.u32 %v2623, 16
        %v2762 = vrot.slane %v2760, 5
        %v2763 = vsel %vm1373, %v2758, %v2762
        %v2765 = vshrl.u32 %v2624, 16
        %v2767 = vrot.slane %v2765, 4
        %v2768 = vshll.u32 %v2624, 16
        %v2770 = vrot.slane %v2768, 5
        %v2771 = vor.u32 %v2767, %v2770
        %v2772 = vrot.slane %v2771, 4
        %v2774 = vshll.u32 %v2625, 16
        %v2776 = vrot.slane %v2774, 5
        %v2777 = vsel %vm1373, %v2772, %v2776
        %v2779 = vshrl.u32 %v2626, 16
        %v2781 = vrot.slane %v2779, 4
        %v2782 = vshll.u32 %v2626, 16
        %v2784 = vrot.slane %v2782, 5
        %v2785 = vor.u32 %v2781, %v2784
        %v2786 = vrot.slane %v2785, 4
        %v2788 = vshll.u32 %v2627, 16
        %v2790 = vrot.slane %v2788, 5
        %v2791 = vsel %vm1373, %v2786, %v2790
        %v2793 = vshrl.u32 %v2628, 16
        %v2795 = vrot.slane %v2793, 4
        %v2796 = vshll.u32 %v2628, 16
        %v2798 = vrot.slane %v2796, 5
        %v2799 = vor.u32 %v2795, %v2798
        %v2800 = vrot.slane %v2799, 4
        %v2802 = vshll.u32 %v2629, 16
        %v2804 = vrot.slane %v2802, 5
        %v2805 = vsel %vm1373, %v2800, %v2804
        %v2807 = vshrl.u32 %v2630, 16
        %v2809 = vrot.slane %v2807, 4
        %v2810 = vshll.u32 %v2630, 16
        %v2812 = vrot.slane %v2810, 5
        %v2813 = vor.u32 %v2809, %v2812
        %v2814 = vrot.slane %v2813, 4
        %v2816 = vshll.u32 %v2631, 16
        %v2818 = vrot.slane %v2816, 5
        %v2819 = vsel %vm1373, %v2814, %v2818
        %v2821 = vshrl.u32 %v2632, 16
        %v2823 = vrot.slane %v2821, 4
        %v2824 = vshll.u32 %v2632, 16
        %v2826 = vrot.slane %v2824, 5
        %v2827 = vor.u32 %v2823, %v2826
        %v2828 = vrot.slane %v2827, 4
        %v2830 = vshll.u32 %v2633, 16
        %v2832 = vrot.slane %v2830, 5
        %v2833 = vsel %vm1373, %v2828, %v2832
        %v2835 = vshrl.u32 %v2634, 16
        %v2837 = vrot.slane %v2835, 4
        %v2838 = vshll.u32 %v2634, 16
        %v2840 = vrot.slane %v2838, 5
        %v2841 = vor.u32 %v2837, %v2840
        %v2842 = vrot.slane %v2841, 4
        %v2844 = vshll.u32 %v2635, 16
        %v2846 = vrot.slane %v2844, 5
        %v2847 = vsel %vm1373, %v2842, %v2846
        %v2849 = vshrl.u32 %v2636, 16
        %v2851 = vrot.slane %v2849, 4
        %v2852 = vshll.u32 %v2636, 16
        %v2854 = vrot.slane %v2852, 5
        %v2855 = vor.u32 %v2851, %v2854
        %v2856 = vrot.slane %v2855, 4
        %v2858 = vshll.u32 %v2637, 16
        %v2860 = vrot.slane %v2858, 5
        %v2861 = vsel %vm1373, %v2856, %v2860
        %s2862 = scalar_lea.vmem [#allocation9], 256
        %v2863 = vld [vmem:[%s2862] sm:$0xf]
        %v2864 = vld [vmem:[%s2862 + $0x4] sm:$0xf]
        %v2865 = vld [vmem:[%s2862 + $0x8] sm:$0xf]
        %v2866 = vld [vmem:[%s2862 + $0xc] sm:$0xf]
        %v2867 = vld [vmem:[%s2862 + $0x10] sm:$0xf]
        %v2868 = vld [vmem:[%s2862 + $0x14] sm:$0xf]
        %v2869 = vld [vmem:[%s2862 + $0x18] sm:$0xf]
        %v2870 = vld [vmem:[%s2862 + $0x1c] sm:$0xf]
        %v2871 = vld [vmem:[%s2862 + $0x20] sm:$0xf]
        %v2872 = vld [vmem:[%s2862 + $0x24] sm:$0xf]
        %v2873 = vld [vmem:[%s2862 + $0x28] sm:$0xf]
        %v2874 = vld [vmem:[%s2862 + $0x2c] sm:$0xf]
        %v2875 = vld [vmem:[%s2862 + $0x30] sm:$0xf]
        %v2876 = vld [vmem:[%s2862 + $0x34] sm:$0xf]
        %v2877 = vld [vmem:[%s2862 + $0x38] sm:$0xf]
        %v2878 = vld [vmem:[%s2862 + $0x3c] sm:$0xf]
        %v2879 = vunpack.c.l.b16 %v2651
        %v2880 = vunpack.c.l.b16 %v2665
        %v2881 = vunpack.c.l.b16 %v2679
        %v2882 = vunpack.c.l.b16 %v2693
        %v2883 = vunpack.c.l.b16 %v2707
        %v2884 = vunpack.c.l.b16 %v2721
        %v2885 = vunpack.c.l.b16 %v2735
        %v2886 = vunpack.c.l.b16 %v2749
        %v2887 = vunpack.c.l.b16 %v2763
        %v2888 = vunpack.c.l.b16 %v2777
        %v2889 = vunpack.c.l.b16 %v2791
        %v2890 = vunpack.c.l.b16 %v2805
        %v2891 = vunpack.c.l.b16 %v2819
        %v2892 = vunpack.c.l.b16 %v2833
        %v2893 = vunpack.c.l.b16 %v2847
        %v2894 = vunpack.c.l.b16 %v2861
        %v2895 = vpack.c.b16 %v2880, %v2879
        %v2896 = vpack.c.b16 %v2882, %v2881
        %v2897 = vpack.c.b16 %v2884, %v2883
        %v2898 = vpack.c.b16 %v2886, %v2885
        %v2899 = vpack.c.b16 %v2888, %v2887
        %v2900 = vpack.c.b16 %v2890, %v2889
        %v2901 = vpack.c.b16 %v2892, %v2891
        %v2902 = vpack.c.b16 %v2894, %v2893
        %v2927 = vunpack.c.l.b16 %v2863
        %v2928 = vunpack.c.l.b16 %v2864
        %v2929 = vunpack.c.l.b16 %v2865
        %v2930 = vunpack.c.l.b16 %v2866
        %v2931 = vunpack.c.l.b16 %v2867
        %v2932 = vunpack.c.l.b16 %v2868
        %v2933 = vunpack.c.l.b16 %v2869
        %v2934 = vunpack.c.l.b16 %v2870
        %v2935 = vunpack.c.l.b16 %v2871
        %v2936 = vunpack.c.l.b16 %v2872
        %v2937 = vunpack.c.l.b16 %v2873
        %v2938 = vunpack.c.l.b16 %v2874
        %v2939 = vunpack.c.l.b16 %v2875
        %v2940 = vunpack.c.l.b16 %v2876
        %v2941 = vunpack.c.l.b16 %v2877
        %v2942 = vunpack.c.l.b16 %v2878
        %v2943 = vpack.c.b16 %v2928, %v2927
        %v2944 = vpack.c.b16 %v2930, %v2929
        %v2945 = vpack.c.b16 %v2932, %v2931
        %v2946 = vpack.c.b16 %v2934, %v2933
        %v2947 = vpack.c.b16 %v2936, %v2935
        %v2948 = vpack.c.b16 %v2938, %v2937
        %v2949 = vpack.c.b16 %v2940, %v2939
        %v2950 = vpack.c.b16 %v2942, %v2941
        %2959 = vmatprep.subr.bf16.mxu0 0
        %2960 = vmatpush1.bf16.msra.mxu0 %v2950
        %2961 = vmatprep.subr.bf16.mxu0 0
        %2962 = vmatpush1.bf16.msra.mxu0 %v2949
        %2963 = vmatprep.subr.bf16.mxu0 0
        %2964 = vmatpush1.bf16.msra.mxu0 %v2948
        %2965 = vmatprep.subr.bf16.mxu0 0
        %2966 = vmatpush1.bf16.msra.mxu0 %v2947
        %2967 = vmatprep.subr.bf16.mxu0 0
        %2968 = vmatpush1.bf16.msra.mxu0 %v2946
        %2969 = vmatprep.subr.bf16.mxu0 0
        %2970 = vmatpush1.bf16.msra.mxu0 %v2945
        %2971 = vmatprep.subr.bf16.mxu0 0
        %2972 = vmatpush1.bf16.msra.mxu0 %v2944
        %2973 = vmatprep.subr.bf16.mxu0 0
        %2974 = vmatpush1.bf16.msra.mxu0 %v2943
        %2975 = vmatprep.subr.bf16.mxu0 0
        %2976 = vmatpush2.bf16.msra.mxu0 0
        %2977 = vmatprep.subr.bf16.mxu0 0
        %2978 = vmatpush2.bf16.msra.mxu0 0
        %2979 = vmatprep.subr.bf16.mxu0 0
        %2980 = vmatpush2.bf16.msra.mxu0 0
        %2981 = vmatprep.subr.bf16.mxu0 0
        %2982 = vmatpush2.bf16.msra.mxu0 0
        %2983 = vmatprep.subr.bf16.mxu0 0
        %2984 = vmatpush2.bf16.msra.mxu0 0
        %2985 = vmatprep.subr.bf16.mxu0 0
        %2986 = vmatpush2.bf16.msra.mxu0 0
        %2987 = vmatprep.subr.bf16.mxu0 0
        %2988 = vmatpush2.bf16.msra.mxu0 0
        %2989 = vmatprep.subr.bf16.mxu0 0
        %2990 = vmatpush2.bf16.msra.mxu0 0
        %2991 = vmatprep.mubr.bf16.mxu0 0
        %2992 = vmatmul.mubr.bf16.gmra.mxu0 %v2895
        %v2993 = vpop.f32.mrf.mxu0
        %v2994 = vadd.f32 0.0, %v2993
        %v2995 = vpop.f32.mrf.mxu0
        %v2996 = vpop.f32.mrf.mxu0
        %v2997 = vadd.f32 0.0, %v2996
        %v2998 = vpop.f32.mrf.mxu0
        %2999 = vmatprep.mubr.bf16.mxu0 0
        %3000 = vmatmul.mubr.bf16.gmra.mxu0 %v2896
        %v3001 = vpop.f32.mrf.mxu0
        %v3002 = vadd.f32 0.0, %v3001
        %v3003 = vpop.f32.mrf.mxu0
        %v3004 = vpop.f32.mrf.mxu0
        %v3005 = vadd.f32 0.0, %v3004
        %v3006 = vpop.f32.mrf.mxu0
        %3007 = vmatprep.mubr.bf16.mxu0 0
        %3008 = vmatmul.mubr.bf16.gmra.mxu0 %v2897
        %v3009 = vpop.f32.mrf.mxu0
        %v3010 = vadd.f32 0.0, %v3009
        %v3011 = vpop.f32.mrf.mxu0
        %v3012 = vpop.f32.mrf.mxu0
        %v3013 = vadd.f32 0.0, %v3012
        %v3014 = vpop.f32.mrf.mxu0
        %3015 = vmatprep.mubr.bf16.mxu0 0
        %3016 = vmatmul.mubr.bf16.gmra.mxu0 %v2898
        %v3017 = vpop.f32.mrf.mxu0
        %v3018 = vadd.f32 0.0, %v3017
        %v3019 = vpop.f32.mrf.mxu0
        %v3020 = vpop.f32.mrf.mxu0
        %v3021 = vadd.f32 0.0, %v3020
        %v3022 = vpop.f32.mrf.mxu0
        %3023 = vmatprep.mubr.bf16.mxu0 0
        %3024 = vmatmul.mubr.bf16.gmra.mxu0 %v2899
        %v3025 = vpop.f32.mrf.mxu0
        %v3026 = vadd.f32 0.0, %v3025
        %v3027 = vpop.f32.mrf.mxu0
        %v3028 = vpop.f32.mrf.mxu0
        %v3029 = vadd.f32 0.0, %v3028
        %v3030 = vpop.f32.mrf.mxu0
        %3031 = vmatprep.mubr.bf16.mxu0 0
        %3032 = vmatmul.mubr.bf16.gmra.mxu0 %v2900
        %v3033 = vpop.f32.mrf.mxu0
        %v3034 = vadd.f32 0.0, %v3033
        %v3035 = vpop.f32.mrf.mxu0
        %v3036 = vpop.f32.mrf.mxu0
        %v3037 = vadd.f32 0.0, %v3036
        %v3038 = vpop.f32.mrf.mxu0
        %3039 = vmatprep.mubr.bf16.mxu0 0
        %3040 = vmatmul.mubr.bf16.gmra.mxu0 %v2901
        %v3041 = vpop.f32.mrf.mxu0
        %v3042 = vadd.f32 0.0, %v3041
        %v3043 = vpop.f32.mrf.mxu0
        %v3044 = vpop.f32.mrf.mxu0
        %v3045 = vadd.f32 0.0, %v3044
        %v3046 = vpop.f32.mrf.mxu0
        %3047 = vmatprep.mubr.bf16.mxu0 0
        %3048 = vmatmul.mubr.bf16.gmra.mxu0 %v2902
        %v3049 = vpop.f32.mrf.mxu0
        %v3050 = vadd.f32 0.0, %v3049
        %v3051 = vpop.f32.mrf.mxu0
        %v3052 = vpop.f32.mrf.mxu0
        %v3053 = vadd.f32 0.0, %v3052
        %v3054 = vpop.f32.mrf.mxu0
        %3055 = vdwg.mxu0
        %v3056 = vadd.f32 %v2590, %v2994
        %v3057 = vadd.f32 %v2591, %v2997
        %v3058 = vadd.f32 %v2592, %v3002
        %v3059 = vadd.f32 %v2593, %v3005
        %v3060 = vadd.f32 %v2594, %v3010
        %v3061 = vadd.f32 %v2595, %v3013
        %v3062 = vadd.f32 %v2596, %v3018
        %v3063 = vadd.f32 %v2597, %v3021
        %v3064 = vadd.f32 %v2598, %v3026
        %v3065 = vadd.f32 %v2599, %v3029
        %v3066 = vadd.f32 %v2600, %v3034
        %v3067 = vadd.f32 %v2601, %v3037
        %v3068 = vadd.f32 %v2602, %v3042
        %v3069 = vadd.f32 %v2603, %v3045
        %v3070 = vadd.f32 %v2604, %v3050
        %v3071 = vadd.f32 %v2605, %v3053
        %v3072 = vld [vmem:[%s1199] sm:$0xe]
        %v3073 = vld [vmem:[%s1199 + $0x8] sm:$0xe]
        %v3074 = vld [vmem:[%s1199 + $0x10] sm:$0xe]
        %v3075 = vld [vmem:[%s1199 + $0x18] sm:$0xe]
        %v3076 = vld [vmem:[%s1199 + $0x20] sm:$0xe]
        %v3077 = vld [vmem:[%s1199 + $0x28] sm:$0xe]
        %v3078 = vld [vmem:[%s1199 + $0x30] sm:$0xe]
        %v3079 = vld [vmem:[%s1199 + $0x38] sm:$0xe]
        %v3080 = vld [vmem:[%s1199 + $0x50] sm:$0xe]
        %v3081 = vld [vmem:[%s1199 + $0x58] sm:$0xe]
        %v3082 = vld [vmem:[%s1199 + $0x60] sm:$0xe]
        %v3083 = vld [vmem:[%s1199 + $0x68] sm:$0xe]
        %v3084 = vld [vmem:[%s1199 + $0x70] sm:$0xe]
        %v3085 = vld [vmem:[%s1199 + $0x78] sm:$0xe]
        %v3086 = vld [vmem:[%s1199 + $0x80] sm:$0xe]
        %v3087 = vld [vmem:[%s1199 + $0x88] sm:$0xe]
        %v3088 = vsel %vm2005, %v3072, 0
        %v3089 = vsel %vm2006, %v2607, 0
        %v3090 = vsel %vm2005, %v3073, 0
        %v3091 = vsel %vm2006, %v2609, 0
        %v3092 = vsel %vm2005, %v3074, 0
        %v3093 = vsel %vm2006, %v2611, 0
        %v3094 = vsel %vm2005, %v3075, 0
        %v3095 = vsel %vm2006, %v2613, 0
        %v3096 = vsel %vm2005, %v3076, 0
        %v3097 = vsel %vm2006, %v2615, 0
        %v3098 = vsel %vm2005, %v3077, 0
        %v3099 = vsel %vm2006, %v2617, 0
        %v3100 = vsel %vm2005, %v3078, 0
        %v3101 = vsel %vm2006, %v2619, 0
        %v3102 = vsel %vm2005, %v3079, 0
        %v3103 = vsel %vm2006, %v2621, 0
        %v3104 = vsel %vm2005, %v3080, 0
        %v3105 = vsel %vm2006, %v2623, 0
        %v3106 = vsel %vm2005, %v3081, 0
        %v3107 = vsel %vm2006, %v2625, 0
        %v3108 = vsel %vm2005, %v3082, 0
        %v3109 = vsel %vm2006, %v2627, 0
        %v3110 = vsel %vm2005, %v3083, 0
        %v3111 = vsel %vm2006, %v2629, 0
        %v3112 = vsel %vm2005, %v3084, 0
        %v3113 = vsel %vm2006, %v2631, 0
        %v3114 = vsel %vm2005, %v3085, 0
        %v3115 = vsel %vm2006, %v2633, 0
        %v3116 = vsel %vm2005, %v3086, 0
        %v3117 = vsel %vm2006, %v2635, 0
        %v3118 = vsel %vm2005, %v3087, 0
        %v3119 = vsel %vm2006, %v2637, 0
        %v3152 = vrot.slane %v3088, 5
        %v3153 = vrot.slane %v3152, 4
        %v3154 = vrot.slane %v3089, 5
        %v3155 = vsel %vm2073, %v3153, %v3154
        %v3156 = vrot.slane %v3090, 5
        %v3157 = vrot.slane %v3156, 4
        %v3158 = vrot.slane %v3091, 5
        %v3159 = vsel %vm2073, %v3157, %v3158
        %v3160 = vrot.slane %v3092, 5
        %v3161 = vrot.slane %v3160, 4
        %v3162 = vrot.slane %v3093, 5
        %v3163 = vsel %vm2073, %v3161, %v3162
        %v3164 = vrot.slane %v3094, 5
        %v3165 = vrot.slane %v3164, 4
        %v3166 = vrot.slane %v3095, 5
        %v3167 = vsel %vm2073, %v3165, %v3166
        %v3168 = vrot.slane %v3096, 5
        %v3169 = vrot.slane %v3168, 4
        %v3170 = vrot.slane %v3097, 5
        %v3171 = vsel %vm2073, %v3169, %v3170
        %v3172 = vrot.slane %v3098, 5
        %v3173 = vrot.slane %v3172, 4
        %v3174 = vrot.slane %v3099, 5
        %v3175 = vsel %vm2073, %v3173, %v3174
        %v3176 = vrot.slane %v3100, 5
        %v3177 = vrot.slane %v3176, 4
        %v3178 = vrot.slane %v3101, 5
        %v3179 = vsel %vm2073, %v3177, %v3178
        %v3180 = vrot.slane %v3102, 5
        %v3181 = vrot.slane %v3180, 4
        %v3182 = vrot.slane %v3103, 5
        %v3183 = vsel %vm2073, %v3181, %v3182
        %v3184 = vrot.slane %v3104, 5
        %v3185 = vrot.slane %v3184, 4
        %v3186 = vrot.slane %v3105, 5
        %v3187 = vsel %vm2073, %v3185, %v3186
        %v3188 = vrot.slane %v3106, 5
        %v3189 = vrot.slane %v3188, 4
        %v3190 = vrot.slane %v3107, 5
        %v3191 = vsel %vm2073, %v3189, %v3190
        %v3192 = vrot.slane %v3108, 5
        %v3193 = vrot.slane %v3192, 4
        %v3194 = vrot.slane %v3109, 5
        %v3195 = vsel %vm2073, %v3193, %v3194
        %v3196 = vrot.slane %v3110, 5
        %v3197 = vrot.slane %v3196, 4
        %v3198 = vrot.slane %v3111, 5
        %v3199 = vsel %vm2073, %v3197, %v3198
        %v3200 = vrot.slane %v3112, 5
        %v3201 = vrot.slane %v3200, 4
        %v3202 = vrot.slane %v3113, 5
        %v3203 = vsel %vm2073, %v3201, %v3202
        %v3204 = vrot.slane %v3114, 5
        %v3205 = vrot.slane %v3204, 4
        %v3206 = vrot.slane %v3115, 5
        %v3207 = vsel %vm2073, %v3205, %v3206
        %v3208 = vrot.slane %v3116, 5
        %v3209 = vrot.slane %v3208, 4
        %v3210 = vrot.slane %v3117, 5
        %v3211 = vsel %vm2073, %v3209, %v3210
        %v3212 = vrot.slane %v3118, 5
        %v3213 = vrot.slane %v3212, 4
        %v3214 = vrot.slane %v3119, 5
        %v3215 = vsel %vm2073, %v3213, %v3214
        %s3216 = scalar_lea.vmem [#allocation9], 320
        %v3217 = vld [vmem:[%s3216] sm:$0xf]
        %v3218 = vld [vmem:[%s3216 + $0x4] sm:$0xf]
        %v3219 = vld [vmem:[%s3216 + $0x8] sm:$0xf]
        %v3220 = vld [vmem:[%s3216 + $0xc] sm:$0xf]
        %v3221 = vld [vmem:[%s3216 + $0x10] sm:$0xf]
        %v3222 = vld [vmem:[%s3216 + $0x14] sm:$0xf]
        %v3223 = vld [vmem:[%s3216 + $0x18] sm:$0xf]
        %v3224 = vld [vmem:[%s3216 + $0x1c] sm:$0xf]
        %v3225 = vld [vmem:[%s3216 + $0x20] sm:$0xf]
        %v3226 = vld [vmem:[%s3216 + $0x24] sm:$0xf]
        %v3227 = vld [vmem:[%s3216 + $0x28] sm:$0xf]
        %v3228 = vld [vmem:[%s3216 + $0x2c] sm:$0xf]
        %v3229 = vld [vmem:[%s3216 + $0x30] sm:$0xf]
        %v3230 = vld [vmem:[%s3216 + $0x34] sm:$0xf]
        %v3231 = vld [vmem:[%s3216 + $0x38] sm:$0xf]
        %v3232 = vld [vmem:[%s3216 + $0x3c] sm:$0xf]
        %v3233 = vunpack.c.l.b16 %v3155
        %v3234 = vunpack.c.l.b16 %v3159
        %v3235 = vunpack.c.l.b16 %v3163
        %v3236 = vunpack.c.l.b16 %v3167
        %v3237 = vunpack.c.l.b16 %v3171
        %v3238 = vunpack.c.l.b16 %v3175
        %v3239 = vunpack.c.l.b16 %v3179
        %v3240 = vunpack.c.l.b16 %v3183
        %v3241 = vunpack.c.l.b16 %v3187
        %v3242 = vunpack.c.l.b16 %v3191
        %v3243 = vunpack.c.l.b16 %v3195
        %v3244 = vunpack.c.l.b16 %v3199
        %v3245 = vunpack.c.l.b16 %v3203
        %v3246 = vunpack.c.l.b16 %v3207
        %v3247 = vunpack.c.l.b16 %v3211
        %v3248 = vunpack.c.l.b16 %v3215
        %v3249 = vpack.c.b16 %v3234, %v3233
        %v3250 = vpack.c.b16 %v3236, %v3235
        %v3251 = vpack.c.b16 %v3238, %v3237
        %v3252 = vpack.c.b16 %v3240, %v3239
        %v3253 = vpack.c.b16 %v3242, %v3241
        %v3254 = vpack.c.b16 %v3244, %v3243
        %v3255 = vpack.c.b16 %v3246, %v3245
        %v3256 = vpack.c.b16 %v3248, %v3247
        %v3281 = vunpack.c.l.b16 %v3217
        %v3282 = vunpack.c.l.b16 %v3218
        %v3283 = vunpack.c.l.b16 %v3219
        %v3284 = vunpack.c.l.b16 %v3220
        %v3285 = vunpack.c.l.b16 %v3221
        %v3286 = vunpack.c.l.b16 %v3222
        %v3287 = vunpack.c.l.b16 %v3223
        %v3288 = vunpack.c.l.b16 %v3224
        %v3289 = vunpack.c.l.b16 %v3225
        %v3290 = vunpack.c.l.b16 %v3226
        %v3291 = vunpack.c.l.b16 %v3227
        %v3292 = vunpack.c.l.b16 %v3228
        %v3293 = vunpack.c.l.b16 %v3229
        %v3294 = vunpack.c.l.b16 %v3230
        %v3295 = vunpack.c.l.b16 %v3231
        %v3296 = vunpack.c.l.b16 %v3232
        %v3297 = vpack.c.b16 %v3282, %v3281
        %v3298 = vpack.c.b16 %v3284, %v3283
        %v3299 = vpack.c.b16 %v3286, %v3285
        %v3300 = vpack.c.b16 %v3288, %v3287
        %v3301 = vpack.c.b16 %v3290, %v3289
        %v3302 = vpack.c.b16 %v3292, %v3291
        %v3303 = vpack.c.b16 %v3294, %v3293
        %v3304 = vpack.c.b16 %v3296, %v3295
        %3313 = vmatprep.subr.bf16.mxu0 0
        %3314 = vmatpush1.bf16.msra.mxu0 %v3304
        %3315 = vmatprep.subr.bf16.mxu0 0
        %3316 = vmatpush1.bf16.msra.mxu0 %v3303
        %3317 = vmatprep.subr.bf16.mxu0 0
        %3318 = vmatpush1.bf16.msra.mxu0 %v3302
        %3319 = vmatprep.subr.bf16.mxu0 0
        %3320 = vmatpush1.bf16.msra.mxu0 %v3301
        %3321 = vmatprep.subr.bf16.mxu0 0
        %3322 = vmatpush1.bf16.msra.mxu0 %v3300
        %3323 = vmatprep.subr.bf16.mxu0 0
        %3324 = vmatpush1.bf16.msra.mxu0 %v3299
        %3325 = vmatprep.subr.bf16.mxu0 0
        %3326 = vmatpush1.bf16.msra.mxu0 %v3298
        %3327 = vmatprep.subr.bf16.mxu0 0
        %3328 = vmatpush1.bf16.msra.mxu0 %v3297
        %3329 = vmatprep.subr.bf16.mxu0 0
        %3330 = vmatpush2.bf16.msra.mxu0 0
        %3331 = vmatprep.subr.bf16.mxu0 0
        %3332 = vmatpush2.bf16.msra.mxu0 0
        %3333 = vmatprep.subr.bf16.mxu0 0
        %3334 = vmatpush2.bf16.msra.mxu0 0
        %3335 = vmatprep.subr.bf16.mxu0 0
        %3336 = vmatpush2.bf16.msra.mxu0 0
        %3337 = vmatprep.subr.bf16.mxu0 0
        %3338 = vmatpush2.bf16.msra.mxu0 0
        %3339 = vmatprep.subr.bf16.mxu0 0
        %3340 = vmatpush2.bf16.msra.mxu0 0
        %3341 = vmatprep.subr.bf16.mxu0 0
        %3342 = vmatpush2.bf16.msra.mxu0 0
        %3343 = vmatprep.subr.bf16.mxu0 0
        %3344 = vmatpush2.bf16.msra.mxu0 0
        %3345 = vmatprep.mubr.bf16.mxu0 0
        %3346 = vmatmul.mubr.bf16.gmra.mxu0 %v3249
        %v3347 = vpop.f32.mrf.mxu0
        %v3348 = vadd.f32 0.0, %v3347
        %v3349 = vpop.f32.mrf.mxu0
        %v3350 = vpop.f32.mrf.mxu0
        %v3351 = vadd.f32 0.0, %v3350
        %v3352 = vpop.f32.mrf.mxu0
        %3353 = vmatprep.mubr.bf16.mxu0 0
        %3354 = vmatmul.mubr.bf16.gmra.mxu0 %v3250
        %v3355 = vpop.f32.mrf.mxu0
        %v3356 = vadd.f32 0.0, %v3355
        %v3357 = vpop.f32.mrf.mxu0
        %v3358 = vpop.f32.mrf.mxu0
        %v3359 = vadd.f32 0.0, %v3358
        %v3360 = vpop.f32.mrf.mxu0
        %3361 = vmatprep.mubr.bf16.mxu0 0
        %3362 = vmatmul.mubr.bf16.gmra.mxu0 %v3251
        %v3363 = vpop.f32.mrf.mxu0
        %v3364 = vadd.f32 0.0, %v3363
        %v3365 = vpop.f32.mrf.mxu0
        %v3366 = vpop.f32.mrf.mxu0
        %v3367 = vadd.f32 0.0, %v3366
        %v3368 = vpop.f32.mrf.mxu0
        %3369 = vmatprep.mubr.bf16.mxu0 0
        %3370 = vmatmul.mubr.bf16.gmra.mxu0 %v3252
        %v3371 = vpop.f32.mrf.mxu0
        %v3372 = vadd.f32 0.0, %v3371
        %v3373 = vpop.f32.mrf.mxu0
        %v3374 = vpop.f32.mrf.mxu0
        %v3375 = vadd.f32 0.0, %v3374
        %v3376 = vpop.f32.mrf.mxu0
        %3377 = vmatprep.mubr.bf16.mxu0 0
        %3378 = vmatmul.mubr.bf16.gmra.mxu0 %v3253
        %v3379 = vpop.f32.mrf.mxu0
        %v3380 = vadd.f32 0.0, %v3379
        %v3381 = vpop.f32.mrf.mxu0
        %v3382 = vpop.f32.mrf.mxu0
        %v3383 = vadd.f32 0.0, %v3382
        %v3384 = vpop.f32.mrf.mxu0
        %3385 = vmatprep.mubr.bf16.mxu0 0
        %3386 = vmatmul.mubr.bf16.gmra.mxu0 %v3254
        %v3387 = vpop.f32.mrf.mxu0
        %v3388 = vadd.f32 0.0, %v3387
        %v3389 = vpop.f32.mrf.mxu0
        %v3390 = vpop.f32.mrf.mxu0
        %v3391 = vadd.f32 0.0, %v3390
        %v3392 = vpop.f32.mrf.mxu0
        %3393 = vmatprep.mubr.bf16.mxu0 0
        %3394 = vmatmul.mubr.bf16.gmra.mxu0 %v3255
        %v3395 = vpop.f32.mrf.mxu0
        %v3396 = vadd.f32 0.0, %v3395
        %v3397 = vpop.f32.mrf.mxu0
        %v3398 = vpop.f32.mrf.mxu0
        %v3399 = vadd.f32 0.0, %v3398
        %v3400 = vpop.f32.mrf.mxu0
        %3401 = vmatprep.mubr.bf16.mxu0 0
        %3402 = vmatmul.mubr.bf16.gmra.mxu0 %v3256
        %v3403 = vpop.f32.mrf.mxu0
        %v3404 = vadd.f32 0.0, %v3403
        %v3405 = vpop.f32.mrf.mxu0
        %v3406 = vpop.f32.mrf.mxu0
        %v3407 = vadd.f32 0.0, %v3406
        %v3408 = vpop.f32.mrf.mxu0
        %3409 = vdwg.mxu0
        %v3410 = vadd.f32 %v3056, %v3348
        %v3411 = vadd.f32 %v3057, %v3351
        %v3412 = vadd.f32 %v3058, %v3356
        %v3413 = vadd.f32 %v3059, %v3359
        %v3414 = vadd.f32 %v3060, %v3364
        %v3415 = vadd.f32 %v3061, %v3367
        %v3416 = vadd.f32 %v3062, %v3372
        %v3417 = vadd.f32 %v3063, %v3375
        %v3418 = vadd.f32 %v3064, %v3380
        %v3419 = vadd.f32 %v3065, %v3383
        %v3420 = vadd.f32 %v3066, %v3388
        %v3421 = vadd.f32 %v3067, %v3391
        %v3422 = vadd.f32 %v3068, %v3396
        %v3423 = vadd.f32 %v3069, %v3399
        %v3424 = vadd.f32 %v3070, %v3404
        %v3425 = vadd.f32 %v3071, %v3407
        %s3426 = scalar_lea.vmem [#allocation2], 16
        %v3427 = vld [vmem:[%s3426] sm:$0xf]
        %v3428 = vld [vmem:[%s3426 + $0x8] sm:$0xf]
        %v3429 = vld [vmem:[%s3426 + $0x10] sm:$0xf]
        %v3430 = vld [vmem:[%s3426 + $0x18] sm:$0xf]
        %v3431 = vld [vmem:[%s3426 + $0x20] sm:$0xf]
        %v3432 = vld [vmem:[%s3426 + $0x28] sm:$0xf]
        %v3433 = vld [vmem:[%s3426 + $0x30] sm:$0xf]
        %v3434 = vld [vmem:[%s3426 + $0x38] sm:$0xf]
        %v3435 = vld [vmem:[%s3426 + $0x50] sm:$0xf]
        %v3436 = vld [vmem:[%s3426 + $0x58] sm:$0xf]
        %v3437 = vld [vmem:[%s3426 + $0x60] sm:$0xf]
        %v3438 = vld [vmem:[%s3426 + $0x68] sm:$0xf]
        %v3439 = vld [vmem:[%s3426 + $0x70] sm:$0xf]
        %v3440 = vld [vmem:[%s3426 + $0x78] sm:$0xf]
        %v3441 = vld [vmem:[%s3426 + $0x80] sm:$0xf]
        %v3442 = vld [vmem:[%s3426 + $0x88] sm:$0xf]
        %v3443 = vsel %vm1322, %v3427, 0
        %v3444 = vsel %vm1322, %v3428, 0
        %v3445 = vsel %vm1322, %v3429, 0
        %v3446 = vsel %vm1322, %v3430, 0
        %v3447 = vsel %vm1322, %v3431, 0
        %v3448 = vsel %vm1322, %v3432, 0
        %v3449 = vsel %vm1322, %v3433, 0
        %v3450 = vsel %vm1322, %v3434, 0
        %v3451 = vsel %vm1322, %v3435, 0
        %v3452 = vsel %vm1322, %v3436, 0
        %v3453 = vsel %vm1322, %v3437, 0
        %v3454 = vsel %vm1322, %v3438, 0
        %v3455 = vsel %vm1322, %v3439, 0
        %v3456 = vsel %vm1322, %v3440, 0
        %v3457 = vsel %vm1322, %v3441, 0
        %v3458 = vsel %vm1322, %v3442, 0
        %s3459 = scalar_lea.vmem [#allocation9], 384
        %v3460 = vld [vmem:[%s3459] sm:$0xf]
        %v3461 = vld [vmem:[%s3459 + $0x4] sm:$0xf]
        %v3462 = vld [vmem:[%s3459 + $0x8] sm:$0xf]
        %v3463 = vld [vmem:[%s3459 + $0xc] sm:$0xf]
        %v3464 = vld [vmem:[%s3459 + $0x10] sm:$0xf]
        %v3465 = vld [vmem:[%s3459 + $0x14] sm:$0xf]
        %v3466 = vld [vmem:[%s3459 + $0x18] sm:$0xf]
        %v3467 = vld [vmem:[%s3459 + $0x1c] sm:$0xf]
        %v3468 = vld [vmem:[%s3459 + $0x20] sm:$0xf]
        %v3469 = vld [vmem:[%s3459 + $0x24] sm:$0xf]
        %v3470 = vld [vmem:[%s3459 + $0x28] sm:$0xf]
        %v3471 = vld [vmem:[%s3459 + $0x2c] sm:$0xf]
        %v3472 = vld [vmem:[%s3459 + $0x30] sm:$0xf]
        %v3473 = vld [vmem:[%s3459 + $0x34] sm:$0xf]
        %v3474 = vld [vmem:[%s3459 + $0x38] sm:$0xf]
        %v3475 = vld [vmem:[%s3459 + $0x3c] sm:$0xf]
        %v3492 = vunpack.c.l.b16 %v3443
        %v3493 = vunpack.c.l.b16 %v3444
        %v3494 = vunpack.c.l.b16 %v3445
        %v3495 = vunpack.c.l.b16 %v3446
        %v3496 = vunpack.c.l.b16 %v3447
        %v3497 = vunpack.c.l.b16 %v3448
        %v3498 = vunpack.c.l.b16 %v3449
        %v3499 = vunpack.c.l.b16 %v3450
        %v3500 = vunpack.c.l.b16 %v3451
        %v3501 = vunpack.c.l.b16 %v3452
        %v3502 = vunpack.c.l.b16 %v3453
        %v3503 = vunpack.c.l.b16 %v3454
        %v3504 = vunpack.c.l.b16 %v3455
        %v3505 = vunpack.c.l.b16 %v3456
        %v3506 = vunpack.c.l.b16 %v3457
        %v3507 = vunpack.c.l.b16 %v3458
        %v3508 = vpack.c.b16 %v3493, %v3492
        %v3509 = vpack.c.b16 %v3495, %v3494
        %v3510 = vpack.c.b16 %v3497, %v3496
        %v3511 = vpack.c.b16 %v3499, %v3498
        %v3512 = vpack.c.b16 %v3501, %v3500
        %v3513 = vpack.c.b16 %v3503, %v3502
        %v3514 = vpack.c.b16 %v3505, %v3504
        %v3515 = vpack.c.b16 %v3507, %v3506
        %v3540 = vunpack.c.l.b16 %v3460
        %v3541 = vunpack.c.l.b16 %v3461
        %v3542 = vunpack.c.l.b16 %v3462
        %v3543 = vunpack.c.l.b16 %v3463
        %v3544 = vunpack.c.l.b16 %v3464
        %v3545 = vunpack.c.l.b16 %v3465
        %v3546 = vunpack.c.l.b16 %v3466
        %v3547 = vunpack.c.l.b16 %v3467
        %v3548 = vunpack.c.l.b16 %v3468
        %v3549 = vunpack.c.l.b16 %v3469
        %v3550 = vunpack.c.l.b16 %v3470
        %v3551 = vunpack.c.l.b16 %v3471
        %v3552 = vunpack.c.l.b16 %v3472
        %v3553 = vunpack.c.l.b16 %v3473
        %v3554 = vunpack.c.l.b16 %v3474
        %v3555 = vunpack.c.l.b16 %v3475
        %v3556 = vpack.c.b16 %v3541, %v3540
        %v3557 = vpack.c.b16 %v3543, %v3542
        %v3558 = vpack.c.b16 %v3545, %v3544
        %v3559 = vpack.c.b16 %v3547, %v3546
        %v3560 = vpack.c.b16 %v3549, %v3548
        %v3561 = vpack.c.b16 %v3551, %v3550
        %v3562 = vpack.c.b16 %v3553, %v3552
        %v3563 = vpack.c.b16 %v3555, %v3554
        %3572 = vmatprep.subr.bf16.mxu0 0
        %3573 = vmatpush1.bf16.msra.mxu0 %v3563
        %3574 = vmatprep.subr.bf16.mxu0 0
        %3575 = vmatpush1.bf16.msra.mxu0 %v3562
        %3576 = vmatprep.subr.bf16.mxu0 0
        %3577 = vmatpush1.bf16.msra.mxu0 %v3561
        %3578 = vmatprep.subr.bf16.mxu0 0
        %3579 = vmatpush1.bf16.msra.mxu0 %v3560
        %3580 = vmatprep.subr.bf16.mxu0 0
        %3581 = vmatpush1.bf16.msra.mxu0 %v3559
        %3582 = vmatprep.subr.bf16.mxu0 0
        %3583 = vmatpush1.bf16.msra.mxu0 %v3558
        %3584 = vmatprep.subr.bf16.mxu0 0
        %3585 = vmatpush1.bf16.msra.mxu0 %v3557
        %3586 = vmatprep.subr.bf16.mxu0 0
        %3587 = vmatpush1.bf16.msra.mxu0 %v3556
        %3588 = vmatprep.subr.bf16.mxu0 0
        %3589 = vmatpush2.bf16.msra.mxu0 0
        %3590 = vmatprep.subr.bf16.mxu0 0
        %3591 = vmatpush2.bf16.msra.mxu0 0
        %3592 = vmatprep.subr.bf16.mxu0 0
        %3593 = vmatpush2.bf16.msra.mxu0 0
        %3594 = vmatprep.subr.bf16.mxu0 0
        %3595 = vmatpush2.bf16.msra.mxu0 0
        %3596 = vmatprep.subr.bf16.mxu0 0
        %3597 = vmatpush2.bf16.msra.mxu0 0
        %3598 = vmatprep.subr.bf16.mxu0 0
        %3599 = vmatpush2.bf16.msra.mxu0 0
        %3600 = vmatprep.subr.bf16.mxu0 0
        %3601 = vmatpush2.bf16.msra.mxu0 0
        %3602 = vmatprep.subr.bf16.mxu0 0
        %3603 = vmatpush2.bf16.msra.mxu0 0
        %3604 = vmatprep.mubr.bf16.mxu0 0
        %3605 = vmatmul.mubr.bf16.gmra.mxu0 %v3508
        %v3606 = vpop.f32.mrf.mxu0
        %v3607 = vadd.f32 0.0, %v3606
        %v3608 = vpop.f32.mrf.mxu0
        %v3609 = vpop.f32.mrf.mxu0
        %v3610 = vadd.f32 0.0, %v3609
        %v3611 = vpop.f32.mrf.mxu0
        %3612 = vmatprep.mubr.bf16.mxu0 0
        %3613 = vmatmul.mubr.bf16.gmra.mxu0 %v3509
        %v3614 = vpop.f32.mrf.mxu0
        %v3615 = vadd.f32 0.0, %v3614
        %v3616 = vpop.f32.mrf.mxu0
        %v3617 = vpop.f32.mrf.mxu0
        %v3618 = vadd.f32 0.0, %v3617
        %v3619 = vpop.f32.mrf.mxu0
        %3620 = vmatprep.mubr.bf16.mxu0 0
        %3621 = vmatmul.mubr.bf16.gmra.mxu0 %v3510
        %v3622 = vpop.f32.mrf.mxu0
        %v3623 = vadd.f32 0.0, %v3622
        %v3624 = vpop.f32.mrf.mxu0
        %v3625 = vpop.f32.mrf.mxu0
        %v3626 = vadd.f32 0.0, %v3625
        %v3627 = vpop.f32.mrf.mxu0
        %3628 = vmatprep.mubr.bf16.mxu0 0
        %3629 = vmatmul.mubr.bf16.gmra.mxu0 %v3511
        %v3630 = vpop.f32.mrf.mxu0
        %v3631 = vadd.f32 0.0, %v3630
        %v3632 = vpop.f32.mrf.mxu0
        %v3633 = vpop.f32.mrf.mxu0
        %v3634 = vadd.f32 0.0, %v3633
        %v3635 = vpop.f32.mrf.mxu0
        %3636 = vmatprep.mubr.bf16.mxu0 0
        %3637 = vmatmul.mubr.bf16.gmra.mxu0 %v3512
        %v3638 = vpop.f32.mrf.mxu0
        %v3639 = vadd.f32 0.0, %v3638
        %v3640 = vpop.f32.mrf.mxu0
        %v3641 = vpop.f32.mrf.mxu0
        %v3642 = vadd.f32 0.0, %v3641
        %v3643 = vpop.f32.mrf.mxu0
        %3644 = vmatprep.mubr.bf16.mxu0 0
        %3645 = vmatmul.mubr.bf16.gmra.mxu0 %v3513
        %v3646 = vpop.f32.mrf.mxu0
        %v3647 = vadd.f32 0.0, %v3646
        %v3648 = vpop.f32.mrf.mxu0
        %v3649 = vpop.f32.mrf.mxu0
        %v3650 = vadd.f32 0.0, %v3649
        %v3651 = vpop.f32.mrf.mxu0
        %3652 = vmatprep.mubr.bf16.mxu0 0
        %3653 = vmatmul.mubr.bf16.gmra.mxu0 %v3514
        %v3654 = vpop.f32.mrf.mxu0
        %v3655 = vadd.f32 0.0, %v3654
        %v3656 = vpop.f32.mrf.mxu0
        %v3657 = vpop.f32.mrf.mxu0
        %v3658 = vadd.f32 0.0, %v3657
        %v3659 = vpop.f32.mrf.mxu0
        %3660 = vmatprep.mubr.bf16.mxu0 0
        %3661 = vmatmul.mubr.bf16.gmra.mxu0 %v3515
        %v3662 = vpop.f32.mrf.mxu0
        %v3663 = vadd.f32 0.0, %v3662
        %v3664 = vpop.f32.mrf.mxu0
        %v3665 = vpop.f32.mrf.mxu0
        %v3666 = vadd.f32 0.0, %v3665
        %v3667 = vpop.f32.mrf.mxu0
        %3668 = vdwg.mxu0
        %v3669 = vadd.f32 %v3410, %v3607
        %v3670 = vadd.f32 %v3411, %v3610
        %v3671 = vadd.f32 %v3412, %v3615
        %v3672 = vadd.f32 %v3413, %v3618
        %v3673 = vadd.f32 %v3414, %v3623
        %v3674 = vadd.f32 %v3415, %v3626
        %v3675 = vadd.f32 %v3416, %v3631
        %v3676 = vadd.f32 %v3417, %v3634
        %v3677 = vadd.f32 %v3418, %v3639
        %v3678 = vadd.f32 %v3419, %v3642
        %v3679 = vadd.f32 %v3420, %v3647
        %v3680 = vadd.f32 %v3421, %v3650
        %v3681 = vadd.f32 %v3422, %v3655
        %v3682 = vadd.f32 %v3423, %v3658
        %v3683 = vadd.f32 %v3424, %v3663
        %v3684 = vadd.f32 %v3425, %v3666
        %v3685 = vld [vmem:[%s3426] sm:$0xf]
        %v3686 = vld [vmem:[%s3426 + $0x4] sm:$0x1]
        %v3687 = vld [vmem:[%s3426 + $0x8] sm:$0xf]
        %v3688 = vld [vmem:[%s3426 + $0xc] sm:$0x1]
        %v3689 = vld [vmem:[%s3426 + $0x10] sm:$0xf]
        %v3690 = vld [vmem:[%s3426 + $0x14] sm:$0x1]
        %v3691 = vld [vmem:[%s3426 + $0x18] sm:$0xf]
        %v3692 = vld [vmem:[%s3426 + $0x1c] sm:$0x1]
        %v3693 = vld [vmem:[%s3426 + $0x20] sm:$0xf]
        %v3694 = vld [vmem:[%s3426 + $0x24] sm:$0x1]
        %v3695 = vld [vmem:[%s3426 + $0x28] sm:$0xf]
        %v3696 = vld [vmem:[%s3426 + $0x2c] sm:$0x1]
        %v3697 = vld [vmem:[%s3426 + $0x30] sm:$0xf]
        %v3698 = vld [vmem:[%s3426 + $0x34] sm:$0x1]
        %v3699 = vld [vmem:[%s3426 + $0x38] sm:$0xf]
        %v3700 = vld [vmem:[%s3426 + $0x3c] sm:$0x1]
        %v3701 = vld [vmem:[%s3426 + $0x50] sm:$0xf]
        %v3702 = vld [vmem:[%s3426 + $0x54] sm:$0x1]
        %v3703 = vld [vmem:[%s3426 + $0x58] sm:$0xf]
        %v3704 = vld [vmem:[%s3426 + $0x5c] sm:$0x1]
        %v3705 = vld [vmem:[%s3426 + $0x60] sm:$0xf]
        %v3706 = vld [vmem:[%s3426 + $0x64] sm:$0x1]
        %v3707 = vld [vmem:[%s3426 + $0x68] sm:$0xf]
        %v3708 = vld [vmem:[%s3426 + $0x6c] sm:$0x1]
        %v3709 = vld [vmem:[%s3426 + $0x70] sm:$0xf]
        %v3710 = vld [vmem:[%s3426 + $0x74] sm:$0x1]
        %v3711 = vld [vmem:[%s3426 + $0x78] sm:$0xf]
        %v3712 = vld [vmem:[%s3426 + $0x7c] sm:$0x1]
        %v3713 = vld [vmem:[%s3426 + $0x80] sm:$0xf]
        %v3714 = vld [vmem:[%s3426 + $0x84] sm:$0x1]
        %v3715 = vld [vmem:[%s3426 + $0x88] sm:$0xf]
        %v3716 = vld [vmem:[%s3426 + $0x8c] sm:$0x1]
        %v3718 = vshrl.u32 %v3685, 16
        %v3720 = vrot.slane %v3718, 4
        %v3721 = vshll.u32 %v3685, 16
        %v3723 = vrot.slane %v3721, 5
        %v3724 = vor.u32 %v3720, %v3723
        %v3725 = vrot.slane %v3724, 4
        %v3727 = vshll.u32 %v3686, 16
        %v3729 = vrot.slane %v3727, 5
        %v3730 = vsel %vm1373, %v3725, %v3729
        %v3732 = vshrl.u32 %v3687, 16
        %v3734 = vrot.slane %v3732, 4
        %v3735 = vshll.u32 %v3687, 16
        %v3737 = vrot.slane %v3735, 5
        %v3738 = vor.u32 %v3734, %v3737
        %v3739 = vrot.slane %v3738, 4
        %v3741 = vshll.u32 %v3688, 16
        %v3743 = vrot.slane %v3741, 5
        %v3744 = vsel %vm1373, %v3739, %v3743
        %v3746 = vshrl.u32 %v3689, 16
        %v3748 = vrot.slane %v3746, 4
        %v3749 = vshll.u32 %v3689, 16
        %v3751 = vrot.slane %v3749, 5
        %v3752 = vor.u32 %v3748, %v3751
        %v3753 = vrot.slane %v3752, 4
        %v3755 = vshll.u32 %v3690, 16
        %v3757 = vrot.slane %v3755, 5
        %v3758 = vsel %vm1373, %v3753, %v3757
        %v3760 = vshrl.u32 %v3691, 16
        %v3762 = vrot.slane %v3760, 4
        %v3763 = vshll.u32 %v3691, 16
        %v3765 = vrot.slane %v3763, 5
        %v3766 = vor.u32 %v3762, %v3765
        %v3767 = vrot.slane %v3766, 4
        %v3769 = vshll.u32 %v3692, 16
        %v3771 = vrot.slane %v3769, 5
        %v3772 = vsel %vm1373, %v3767, %v3771
        %v3774 = vshrl.u32 %v3693, 16
        %v3776 = vrot.slane %v3774, 4
        %v3777 = vshll.u32 %v3693, 16
        %v3779 = vrot.slane %v3777, 5
        %v3780 = vor.u32 %v3776, %v3779
        %v3781 = vrot.slane %v3780, 4
        %v3783 = vshll.u32 %v3694, 16
        %v3785 = vrot.slane %v3783, 5
        %v3786 = vsel %vm1373, %v3781, %v3785
        %v3788 = vshrl.u32 %v3695, 16
        %v3790 = vrot.slane %v3788, 4
        %v3791 = vshll.u32 %v3695, 16
        %v3793 = vrot.slane %v3791, 5
        %v3794 = vor.u32 %v3790, %v3793
        %v3795 = vrot.slane %v3794, 4
        %v3797 = vshll.u32 %v3696, 16
        %v3799 = vrot.slane %v3797, 5
        %v3800 = vsel %vm1373, %v3795, %v3799
        %v3802 = vshrl.u32 %v3697, 16
        %v3804 = vrot.slane %v3802, 4
        %v3805 = vshll.u32 %v3697, 16
        %v3807 = vrot.slane %v3805, 5
        %v3808 = vor.u32 %v3804, %v3807
        %v3809 = vrot.slane %v3808, 4
        %v3811 = vshll.u32 %v3698, 16
        %v3813 = vrot.slane %v3811, 5
        %v3814 = vsel %vm1373, %v3809, %v3813
        %v3816 = vshrl.u32 %v3699, 16
        %v3818 = vrot.slane %v3816, 4
        %v3819 = vshll.u32 %v3699, 16
        %v3821 = vrot.slane %v3819, 5
        %v3822 = vor.u32 %v3818, %v3821
        %v3823 = vrot.slane %v3822, 4
        %v3825 = vshll.u32 %v3700, 16
        %v3827 = vrot.slane %v3825, 5
        %v3828 = vsel %vm1373, %v3823, %v3827
        %v3830 = vshrl.u32 %v3701, 16
        %v3832 = vrot.slane %v3830, 4
        %v3833 = vshll.u32 %v3701, 16
        %v3835 = vrot.slane %v3833, 5
        %v3836 = vor.u32 %v3832, %v3835
        %v3837 = vrot.slane %v3836, 4
        %v3839 = vshll.u32 %v3702, 16
        %v3841 = vrot.slane %v3839, 5
        %v3842 = vsel %vm1373, %v3837, %v3841
        %v3844 = vshrl.u32 %v3703, 16
        %v3846 = vrot.slane %v3844, 4
        %v3847 = vshll.u32 %v3703, 16
        %v3849 = vrot.slane %v3847, 5
        %v3850 = vor.u32 %v3846, %v3849
        %v3851 = vrot.slane %v3850, 4
        %v3853 = vshll.u32 %v3704, 16
        %v3855 = vrot.slane %v3853, 5
        %v3856 = vsel %vm1373, %v3851, %v3855
        %v3858 = vshrl.u32 %v3705, 16
        %v3860 = vrot.slane %v3858, 4
        %v3861 = vshll.u32 %v3705, 16
        %v3863 = vrot.slane %v3861, 5
        %v3864 = vor.u32 %v3860, %v3863
        %v3865 = vrot.slane %v3864, 4
        %v3867 = vshll.u32 %v3706, 16
        %v3869 = vrot.slane %v3867, 5
        %v3870 = vsel %vm1373, %v3865, %v3869
        %v3872 = vshrl.u32 %v3707, 16
        %v3874 = vrot.slane %v3872, 4
        %v3875 = vshll.u32 %v3707, 16
        %v3877 = vrot.slane %v3875, 5
        %v3878 = vor.u32 %v3874, %v3877
        %v3879 = vrot.slane %v3878, 4
        %v3881 = vshll.u32 %v3708, 16
        %v3883 = vrot.slane %v3881, 5
        %v3884 = vsel %vm1373, %v3879, %v3883
        %v3886 = vshrl.u32 %v3709, 16
        %v3888 = vrot.slane %v3886, 4
        %v3889 = vshll.u32 %v3709, 16
        %v3891 = vrot.slane %v3889, 5
        %v3892 = vor.u32 %v3888, %v3891
        %v3893 = vrot.slane %v3892, 4
        %v3895 = vshll.u32 %v3710, 16
        %v3897 = vrot.slane %v3895, 5
        %v3898 = vsel %vm1373, %v3893, %v3897
        %v3900 = vshrl.u32 %v3711, 16
        %v3902 = vrot.slane %v3900, 4
        %v3903 = vshll.u32 %v3711, 16
        %v3905 = vrot.slane %v3903, 5
        %v3906 = vor.u32 %v3902, %v3905
        %v3907 = vrot.slane %v3906, 4
        %v3909 = vshll.u32 %v3712, 16
        %v3911 = vrot.slane %v3909, 5
        %v3912 = vsel %vm1373, %v3907, %v3911
        %v3914 = vshrl.u32 %v3713, 16
        %v3916 = vrot.slane %v3914, 4
        %v3917 = vshll.u32 %v3713, 16
        %v3919 = vrot.slane %v3917, 5
        %v3920 = vor.u32 %v3916, %v3919
        %v3921 = vrot.slane %v3920, 4
        %v3923 = vshll.u32 %v3714, 16
        %v3925 = vrot.slane %v3923, 5
        %v3926 = vsel %vm1373, %v3921, %v3925
        %v3928 = vshrl.u32 %v3715, 16
        %v3930 = vrot.slane %v3928, 4
        %v3931 = vshll.u32 %v3715, 16
        %v3933 = vrot.slane %v3931, 5
        %v3934 = vor.u32 %v3930, %v3933
        %v3935 = vrot.slane %v3934, 4
        %v3937 = vshll.u32 %v3716, 16
        %v3939 = vrot.slane %v3937, 5
        %v3940 = vsel %vm1373, %v3935, %v3939
        %s3941 = scalar_lea.vmem [#allocation9], 448
        %v3942 = vld [vmem:[%s3941] sm:$0xf]
        %v3943 = vld [vmem:[%s3941 + $0x4] sm:$0xf]
        %v3944 = vld [vmem:[%s3941 + $0x8] sm:$0xf]
        %v3945 = vld [vmem:[%s3941 + $0xc] sm:$0xf]
        %v3946 = vld [vmem:[%s3941 + $0x10] sm:$0xf]
        %v3947 = vld [vmem:[%s3941 + $0x14] sm:$0xf]
        %v3948 = vld [vmem:[%s3941 + $0x18] sm:$0xf]
        %v3949 = vld [vmem:[%s3941 + $0x1c] sm:$0xf]
        %v3950 = vld [vmem:[%s3941 + $0x20] sm:$0xf]
        %v3951 = vld [vmem:[%s3941 + $0x24] sm:$0xf]
        %v3952 = vld [vmem:[%s3941 + $0x28] sm:$0xf]
        %v3953 = vld [vmem:[%s3941 + $0x2c] sm:$0xf]
        %v3954 = vld [vmem:[%s3941 + $0x30] sm:$0xf]
        %v3955 = vld [vmem:[%s3941 + $0x34] sm:$0xf]
        %v3956 = vld [vmem:[%s3941 + $0x38] sm:$0xf]
        %v3957 = vld [vmem:[%s3941 + $0x3c] sm:$0xf]
        %v3958 = vunpack.c.l.b16 %v3730
        %v3959 = vunpack.c.l.b16 %v3744
        %v3960 = vunpack.c.l.b16 %v3758
        %v3961 = vunpack.c.l.b16 %v3772
        %v3962 = vunpack.c.l.b16 %v3786
        %v3963 = vunpack.c.l.b16 %v3800
        %v3964 = vunpack.c.l.b16 %v3814
        %v3965 = vunpack.c.l.b16 %v3828
        %v3966 = vunpack.c.l.b16 %v3842
        %v3967 = vunpack.c.l.b16 %v3856
        %v3968 = vunpack.c.l.b16 %v3870
        %v3969 = vunpack.c.l.b16 %v3884
        %v3970 = vunpack.c.l.b16 %v3898
        %v3971 = vunpack.c.l.b16 %v3912
        %v3972 = vunpack.c.l.b16 %v3926
        %v3973 = vunpack.c.l.b16 %v3940
        %v3974 = vpack.c.b16 %v3959, %v3958
        %v3975 = vpack.c.b16 %v3961, %v3960
        %v3976 = vpack.c.b16 %v3963, %v3962
        %v3977 = vpack.c.b16 %v3965, %v3964
        %v3978 = vpack.c.b16 %v3967, %v3966
        %v3979 = vpack.c.b16 %v3969, %v3968
        %v3980 = vpack.c.b16 %v3971, %v3970
        %v3981 = vpack.c.b16 %v3973, %v3972
        %v4006 = vunpack.c.l.b16 %v3942
        %v4007 = vunpack.c.l.b16 %v3943
        %v4008 = vunpack.c.l.b16 %v3944
        %v4009 = vunpack.c.l.b16 %v3945
        %v4010 = vunpack.c.l.b16 %v3946
        %v4011 = vunpack.c.l.b16 %v3947
        %v4012 = vunpack.c.l.b16 %v3948
        %v4013 = vunpack.c.l.b16 %v3949
        %v4014 = vunpack.c.l.b16 %v3950
        %v4015 = vunpack.c.l.b16 %v3951
        %v4016 = vunpack.c.l.b16 %v3952
        %v4017 = vunpack.c.l.b16 %v3953
        %v4018 = vunpack.c.l.b16 %v3954
        %v4019 = vunpack.c.l.b16 %v3955
        %v4020 = vunpack.c.l.b16 %v3956
        %v4021 = vunpack.c.l.b16 %v3957
        %v4022 = vpack.c.b16 %v4007, %v4006
        %v4023 = vpack.c.b16 %v4009, %v4008
        %v4024 = vpack.c.b16 %v4011, %v4010
        %v4025 = vpack.c.b16 %v4013, %v4012
        %v4026 = vpack.c.b16 %v4015, %v4014
        %v4027 = vpack.c.b16 %v4017, %v4016
        %v4028 = vpack.c.b16 %v4019, %v4018
        %v4029 = vpack.c.b16 %v4021, %v4020
        %4038 = vmatprep.subr.bf16.mxu0 0
        %4039 = vmatpush1.bf16.msra.mxu0 %v4029
        %4040 = vmatprep.subr.bf16.mxu0 0
        %4041 = vmatpush1.bf16.msra.mxu0 %v4028
        %4042 = vmatprep.subr.bf16.mxu0 0
        %4043 = vmatpush1.bf16.msra.mxu0 %v4027
        %4044 = vmatprep.subr.bf16.mxu0 0
        %4045 = vmatpush1.bf16.msra.mxu0 %v4026
        %4046 = vmatprep.subr.bf16.mxu0 0
        %4047 = vmatpush1.bf16.msra.mxu0 %v4025
        %4048 = vmatprep.subr.bf16.mxu0 0
        %4049 = vmatpush1.bf16.msra.mxu0 %v4024
        %4050 = vmatprep.subr.bf16.mxu0 0
        %4051 = vmatpush1.bf16.msra.mxu0 %v4023
        %4052 = vmatprep.subr.bf16.mxu0 0
        %4053 = vmatpush1.bf16.msra.mxu0 %v4022
        %4054 = vmatprep.subr.bf16.mxu0 0
        %4055 = vmatpush2.bf16.msra.mxu0 0
        %4056 = vmatprep.subr.bf16.mxu0 0
        %4057 = vmatpush2.bf16.msra.mxu0 0
        %4058 = vmatprep.subr.bf16.mxu0 0
        %4059 = vmatpush2.bf16.msra.mxu0 0
        %4060 = vmatprep.subr.bf16.mxu0 0
        %4061 = vmatpush2.bf16.msra.mxu0 0
        %4062 = vmatprep.subr.bf16.mxu0 0
        %4063 = vmatpush2.bf16.msra.mxu0 0
        %4064 = vmatprep.subr.bf16.mxu0 0
        %4065 = vmatpush2.bf16.msra.mxu0 0
        %4066 = vmatprep.subr.bf16.mxu0 0
        %4067 = vmatpush2.bf16.msra.mxu0 0
        %4068 = vmatprep.subr.bf16.mxu0 0
        %4069 = vmatpush2.bf16.msra.mxu0 0
        %4070 = vmatprep.mubr.bf16.mxu0 0
        %4071 = vmatmul.mubr.bf16.gmra.mxu0 %v3974
        %v4072 = vpop.f32.mrf.mxu0
        %v4073 = vadd.f32 0.0, %v4072
        %v4074 = vpop.f32.mrf.mxu0
        %v4075 = vpop.f32.mrf.mxu0
        %v4076 = vadd.f32 0.0, %v4075
        %v4077 = vpop.f32.mrf.mxu0
        %4078 = vmatprep.mubr.bf16.mxu0 0
        %4079 = vmatmul.mubr.bf16.gmra.mxu0 %v3975
        %v4080 = vpop.f32.mrf.mxu0
        %v4081 = vadd.f32 0.0, %v4080
        %v4082 = vpop.f32.mrf.mxu0
        %v4083 = vpop.f32.mrf.mxu0
        %v4084 = vadd.f32 0.0, %v4083
        %v4085 = vpop.f32.mrf.mxu0
        %4086 = vmatprep.mubr.bf16.mxu0 0
        %4087 = vmatmul.mubr.bf16.gmra.mxu0 %v3976
        %v4088 = vpop.f32.mrf.mxu0
        %v4089 = vadd.f32 0.0, %v4088
        %v4090 = vpop.f32.mrf.mxu0
        %v4091 = vpop.f32.mrf.mxu0
        %v4092 = vadd.f32 0.0, %v4091
        %v4093 = vpop.f32.mrf.mxu0
        %4094 = vmatprep.mubr.bf16.mxu0 0
        %4095 = vmatmul.mubr.bf16.gmra.mxu0 %v3977
        %v4096 = vpop.f32.mrf.mxu0
        %v4097 = vadd.f32 0.0, %v4096
        %v4098 = vpop.f32.mrf.mxu0
        %v4099 = vpop.f32.mrf.mxu0
        %v4100 = vadd.f32 0.0, %v4099
        %v4101 = vpop.f32.mrf.mxu0
        %4102 = vmatprep.mubr.bf16.mxu0 0
        %4103 = vmatmul.mubr.bf16.gmra.mxu0 %v3978
        %v4104 = vpop.f32.mrf.mxu0
        %v4105 = vadd.f32 0.0, %v4104
        %v4106 = vpop.f32.mrf.mxu0
        %v4107 = vpop.f32.mrf.mxu0
        %v4108 = vadd.f32 0.0, %v4107
        %v4109 = vpop.f32.mrf.mxu0
        %4110 = vmatprep.mubr.bf16.mxu0 0
        %4111 = vmatmul.mubr.bf16.gmra.mxu0 %v3979
        %v4112 = vpop.f32.mrf.mxu0
        %v4113 = vadd.f32 0.0, %v4112
        %v4114 = vpop.f32.mrf.mxu0
        %v4115 = vpop.f32.mrf.mxu0
        %v4116 = vadd.f32 0.0, %v4115
        %v4117 = vpop.f32.mrf.mxu0
        %4118 = vmatprep.mubr.bf16.mxu0 0
        %4119 = vmatmul.mubr.bf16.gmra.mxu0 %v3980
        %v4120 = vpop.f32.mrf.mxu0
        %v4121 = vadd.f32 0.0, %v4120
        %v4122 = vpop.f32.mrf.mxu0
        %v4123 = vpop.f32.mrf.mxu0
        %v4124 = vadd.f32 0.0, %v4123
        %v4125 = vpop.f32.mrf.mxu0
        %4126 = vmatprep.mubr.bf16.mxu0 0
        %4127 = vmatmul.mubr.bf16.gmra.mxu0 %v3981
        %v4128 = vpop.f32.mrf.mxu0
        %v4129 = vadd.f32 0.0, %v4128
        %v4130 = vpop.f32.mrf.mxu0
        %v4131 = vpop.f32.mrf.mxu0
        %v4132 = vadd.f32 0.0, %v4131
        %v4133 = vpop.f32.mrf.mxu0
        %4134 = vdwg.mxu0
        %v4135 = vadd.f32 %v3669, %v4073
        %v4136 = vadd.f32 %v3670, %v4076
        %v4137 = vadd.f32 %v3671, %v4081
        %v4138 = vadd.f32 %v3672, %v4084
        %v4139 = vadd.f32 %v3673, %v4089
        %v4140 = vadd.f32 %v3674, %v4092
        %v4141 = vadd.f32 %v3675, %v4097
        %v4142 = vadd.f32 %v3676, %v4100
        %v4143 = vadd.f32 %v3677, %v4105
        %v4144 = vadd.f32 %v3678, %v4108
        %v4145 = vadd.f32 %v3679, %v4113
        %v4146 = vadd.f32 %v3680, %v4116
        %v4147 = vadd.f32 %v3681, %v4121
        %v4148 = vadd.f32 %v3682, %v4124
        %v4149 = vadd.f32 %v3683, %v4129
        %v4150 = vadd.f32 %v3684, %v4132
        %v4151 = vld [vmem:[%s3426] sm:$0xe]
        %v4152 = vld [vmem:[%s3426 + $0x8] sm:$0xe]
        %v4153 = vld [vmem:[%s3426 + $0x10] sm:$0xe]
        %v4154 = vld [vmem:[%s3426 + $0x18] sm:$0xe]
        %v4155 = vld [vmem:[%s3426 + $0x20] sm:$0xe]
        %v4156 = vld [vmem:[%s3426 + $0x28] sm:$0xe]
        %v4157 = vld [vmem:[%s3426 + $0x30] sm:$0xe]
        %v4158 = vld [vmem:[%s3426 + $0x38] sm:$0xe]
        %v4159 = vld [vmem:[%s3426 + $0x50] sm:$0xe]
        %v4160 = vld [vmem:[%s3426 + $0x58] sm:$0xe]
        %v4161 = vld [vmem:[%s3426 + $0x60] sm:$0xe]
        %v4162 = vld [vmem:[%s3426 + $0x68] sm:$0xe]
        %v4163 = vld [vmem:[%s3426 + $0x70] sm:$0xe]
        %v4164 = vld [vmem:[%s3426 + $0x78] sm:$0xe]
        %v4165 = vld [vmem:[%s3426 + $0x80] sm:$0xe]
        %v4166 = vld [vmem:[%s3426 + $0x88] sm:$0xe]
        %v4167 = vsel %vm2005, %v4151, 0
        %v4168 = vsel %vm2006, %v3686, 0
        %v4169 = vsel %vm2005, %v4152, 0
        %v4170 = vsel %vm2006, %v3688, 0
        %v4171 = vsel %vm2005, %v4153, 0
        %v4172 = vsel %vm2006, %v3690, 0
        %v4173 = vsel %vm2005, %v4154, 0
        %v4174 = vsel %vm2006, %v3692, 0
        %v4175 = vsel %vm2005, %v4155, 0
        %v4176 = vsel %vm2006, %v3694, 0
        %v4177 = vsel %vm2005, %v4156, 0
        %v4178 = vsel %vm2006, %v3696, 0
        %v4179 = vsel %vm2005, %v4157, 0
        %v4180 = vsel %vm2006, %v3698, 0
        %v4181 = vsel %vm2005, %v4158, 0
        %v4182 = vsel %vm2006, %v3700, 0
        %v4183 = vsel %vm2005, %v4159, 0
        %v4184 = vsel %vm2006, %v3702, 0
        %v4185 = vsel %vm2005, %v4160, 0
        %v4186 = vsel %vm2006, %v3704, 0
        %v4187 = vsel %vm2005, %v4161, 0
        %v4188 = vsel %vm2006, %v3706, 0
        %v4189 = vsel %vm2005, %v4162, 0
        %v4190 = vsel %vm2006, %v3708, 0
        %v4191 = vsel %vm2005, %v4163, 0
        %v4192 = vsel %vm2006, %v3710, 0
        %v4193 = vsel %vm2005, %v4164, 0
        %v4194 = vsel %vm2006, %v3712, 0
        %v4195 = vsel %vm2005, %v4165, 0
        %v4196 = vsel %vm2006, %v3714, 0
        %v4197 = vsel %vm2005, %v4166, 0
        %v4198 = vsel %vm2006, %v3716, 0
        %v4231 = vrot.slane %v4167, 5
        %v4232 = vrot.slane %v4231, 4
        %v4233 = vrot.slane %v4168, 5
        %v4234 = vsel %vm2073, %v4232, %v4233
        %v4235 = vrot.slane %v4169, 5
        %v4236 = vrot.slane %v4235, 4
        %v4237 = vrot.slane %v4170, 5
        %v4238 = vsel %vm2073, %v4236, %v4237
        %v4239 = vrot.slane %v4171, 5
        %v4240 = vrot.slane %v4239, 4
        %v4241 = vrot.slane %v4172, 5
        %v4242 = vsel %vm2073, %v4240, %v4241
        %v4243 = vrot.slane %v4173, 5
        %v4244 = vrot.slane %v4243, 4
        %v4245 = vrot.slane %v4174, 5
        %v4246 = vsel %vm2073, %v4244, %v4245
        %v4247 = vrot.slane %v4175, 5
        %v4248 = vrot.slane %v4247, 4
        %v4249 = vrot.slane %v4176, 5
        %v4250 = vsel %vm2073, %v4248, %v4249
        %v4251 = vrot.slane %v4177, 5
        %v4252 = vrot.slane %v4251, 4
        %v4253 = vrot.slane %v4178, 5
        %v4254 = vsel %vm2073, %v4252, %v4253
        %v4255 = vrot.slane %v4179, 5
        %v4256 = vrot.slane %v4255, 4
        %v4257 = vrot.slane %v4180, 5
        %v4258 = vsel %vm2073, %v4256, %v4257
        %v4259 = vrot.slane %v4181, 5
        %v4260 = vrot.slane %v4259, 4
        %v4261 = vrot.slane %v4182, 5
        %v4262 = vsel %vm2073, %v4260, %v4261
        %v4263 = vrot.slane %v4183, 5
        %v4264 = vrot.slane %v4263, 4
        %v4265 = vrot.slane %v4184, 5
        %v4266 = vsel %vm2073, %v4264, %v4265
        %v4267 = vrot.slane %v4185, 5
        %v4268 = vrot.slane %v4267, 4
        %v4269 = vrot.slane %v4186, 5
        %v4270 = vsel %vm2073, %v4268, %v4269
        %v4271 = vrot.slane %v4187, 5
        %v4272 = vrot.slane %v4271, 4
        %v4273 = vrot.slane %v4188, 5
        %v4274 = vsel %vm2073, %v4272, %v4273
        %v4275 = vrot.slane %v4189, 5
        %v4276 = vrot.slane %v4275, 4
        %v4277 = vrot.slane %v4190, 5
        %v4278 = vsel %vm2073, %v4276, %v4277
        %v4279 = vrot.slane %v4191, 5
        %v4280 = vrot.slane %v4279, 4
        %v4281 = vrot.slane %v4192, 5
        %v4282 = vsel %vm2073, %v4280, %v4281
        %v4283 = vrot.slane %v4193, 5
        %v4284 = vrot.slane %v4283, 4
        %v4285 = vrot.slane %v4194, 5
        %v4286 = vsel %vm2073, %v4284, %v4285
        %v4287 = vrot.slane %v4195, 5
        %v4288 = vrot.slane %v4287, 4
        %v4289 = vrot.slane %v4196, 5
        %v4290 = vsel %vm2073, %v4288, %v4289
        %v4291 = vrot.slane %v4197, 5
        %v4292 = vrot.slane %v4291, 4
        %v4293 = vrot.slane %v4198, 5
        %v4294 = vsel %vm2073, %v4292, %v4293
        %s4295 = scalar_lea.vmem [#allocation9], 512
        %v4296 = vld [vmem:[%s4295] sm:$0xf]
        %v4297 = vld [vmem:[%s4295 + $0x4] sm:$0xf]
        %v4298 = vld [vmem:[%s4295 + $0x8] sm:$0xf]
        %v4299 = vld [vmem:[%s4295 + $0xc] sm:$0xf]
        %v4300 = vld [vmem:[%s4295 + $0x10] sm:$0xf]
        %v4301 = vld [vmem:[%s4295 + $0x14] sm:$0xf]
        %v4302 = vld [vmem:[%s4295 + $0x18] sm:$0xf]
        %v4303 = vld [vmem:[%s4295 + $0x1c] sm:$0xf]
        %v4304 = vld [vmem:[%s4295 + $0x20] sm:$0xf]
        %v4305 = vld [vmem:[%s4295 + $0x24] sm:$0xf]
        %v4306 = vld [vmem:[%s4295 + $0x28] sm:$0xf]
        %v4307 = vld [vmem:[%s4295 + $0x2c] sm:$0xf]
        %v4308 = vld [vmem:[%s4295 + $0x30] sm:$0xf]
        %v4309 = vld [vmem:[%s4295 + $0x34] sm:$0xf]
        %v4310 = vld [vmem:[%s4295 + $0x38] sm:$0xf]
        %v4311 = vld [vmem:[%s4295 + $0x3c] sm:$0xf]
        %v4312 = vunpack.c.l.b16 %v4234
        %v4313 = vunpack.c.l.b16 %v4238
        %v4314 = vunpack.c.l.b16 %v4242
        %v4315 = vunpack.c.l.b16 %v4246
        %v4316 = vunpack.c.l.b16 %v4250
        %v4317 = vunpack.c.l.b16 %v4254
        %v4318 = vunpack.c.l.b16 %v4258
        %v4319 = vunpack.c.l.b16 %v4262
        %v4320 = vunpack.c.l.b16 %v4266
        %v4321 = vunpack.c.l.b16 %v4270
        %v4322 = vunpack.c.l.b16 %v4274
        %v4323 = vunpack.c.l.b16 %v4278
        %v4324 = vunpack.c.l.b16 %v4282
        %v4325 = vunpack.c.l.b16 %v4286
        %v4326 = vunpack.c.l.b16 %v4290
        %v4327 = vunpack.c.l.b16 %v4294
        %v4328 = vpack.c.b16 %v4313, %v4312
        %v4329 = vpack.c.b16 %v4315, %v4314
        %v4330 = vpack.c.b16 %v4317, %v4316
        %v4331 = vpack.c.b16 %v4319, %v4318
        %v4332 = vpack.c.b16 %v4321, %v4320
        %v4333 = vpack.c.b16 %v4323, %v4322
        %v4334 = vpack.c.b16 %v4325, %v4324
        %v4335 = vpack.c.b16 %v4327, %v4326
        %v4360 = vunpack.c.l.b16 %v4296
        %v4361 = vunpack.c.l.b16 %v4297
        %v4362 = vunpack.c.l.b16 %v4298
        %v4363 = vunpack.c.l.b16 %v4299
        %v4364 = vunpack.c.l.b16 %v4300
        %v4365 = vunpack.c.l.b16 %v4301
        %v4366 = vunpack.c.l.b16 %v4302
        %v4367 = vunpack.c.l.b16 %v4303
        %v4368 = vunpack.c.l.b16 %v4304
        %v4369 = vunpack.c.l.b16 %v4305
        %v4370 = vunpack.c.l.b16 %v4306
        %v4371 = vunpack.c.l.b16 %v4307
        %v4372 = vunpack.c.l.b16 %v4308
        %v4373 = vunpack.c.l.b16 %v4309
        %v4374 = vunpack.c.l.b16 %v4310
        %v4375 = vunpack.c.l.b16 %v4311
        %v4376 = vpack.c.b16 %v4361, %v4360
        %v4377 = vpack.c.b16 %v4363, %v4362
        %v4378 = vpack.c.b16 %v4365, %v4364
        %v4379 = vpack.c.b16 %v4367, %v4366
        %v4380 = vpack.c.b16 %v4369, %v4368
        %v4381 = vpack.c.b16 %v4371, %v4370
        %v4382 = vpack.c.b16 %v4373, %v4372
        %v4383 = vpack.c.b16 %v4375, %v4374
        %4392 = vmatprep.subr.bf16.mxu0 0
        %4393 = vmatpush1.bf16.msra.mxu0 %v4383
        %4394 = vmatprep.subr.bf16.mxu0 0
        %4395 = vmatpush1.bf16.msra.mxu0 %v4382
        %4396 = vmatprep.subr.bf16.mxu0 0
        %4397 = vmatpush1.bf16.msra.mxu0 %v4381
        %4398 = vmatprep.subr.bf16.mxu0 0
        %4399 = vmatpush1.bf16.msra.mxu0 %v4380
        %4400 = vmatprep.subr.bf16.mxu0 0
        %4401 = vmatpush1.bf16.msra.mxu0 %v4379
        %4402 = vmatprep.subr.bf16.mxu0 0
        %4403 = vmatpush1.bf16.msra.mxu0 %v4378
        %4404 = vmatprep.subr.bf16.mxu0 0
        %4405 = vmatpush1.bf16.msra.mxu0 %v4377
        %4406 = vmatprep.subr.bf16.mxu0 0
        %4407 = vmatpush1.bf16.msra.mxu0 %v4376
        %4408 = vmatprep.subr.bf16.mxu0 0
        %4409 = vmatpush2.bf16.msra.mxu0 0
        %4410 = vmatprep.subr.bf16.mxu0 0
        %4411 = vmatpush2.bf16.msra.mxu0 0
        %4412 = vmatprep.subr.bf16.mxu0 0
        %4413 = vmatpush2.bf16.msra.mxu0 0
        %4414 = vmatprep.subr.bf16.mxu0 0
        %4415 = vmatpush2.bf16.msra.mxu0 0
        %4416 = vmatprep.subr.bf16.mxu0 0
        %4417 = vmatpush2.bf16.msra.mxu0 0
        %4418 = vmatprep.subr.bf16.mxu0 0
        %4419 = vmatpush2.bf16.msra.mxu0 0
        %4420 = vmatprep.subr.bf16.mxu0 0
        %4421 = vmatpush2.bf16.msra.mxu0 0
        %4422 = vmatprep.subr.bf16.mxu0 0
        %4423 = vmatpush2.bf16.msra.mxu0 0
        %4424 = vmatprep.mubr.bf16.mxu0 0
        %4425 = vmatmul.mubr.bf16.gmra.mxu0 %v4328
        %v4426 = vpop.f32.mrf.mxu0
        %v4427 = vadd.f32 0.0, %v4426
        %v4428 = vpop.f32.mrf.mxu0
        %v4429 = vpop.f32.mrf.mxu0
        %v4430 = vadd.f32 0.0, %v4429
        %v4431 = vpop.f32.mrf.mxu0
        %4432 = vmatprep.mubr.bf16.mxu0 0
        %4433 = vmatmul.mubr.bf16.gmra.mxu0 %v4329
        %v4434 = vpop.f32.mrf.mxu0
        %v4435 = vadd.f32 0.0, %v4434
        %v4436 = vpop.f32.mrf.mxu0
        %v4437 = vpop.f32.mrf.mxu0
        %v4438 = vadd.f32 0.0, %v4437
        %v4439 = vpop.f32.mrf.mxu0
        %4440 = vmatprep.mubr.bf16.mxu0 0
        %4441 = vmatmul.mubr.bf16.gmra.mxu0 %v4330
        %v4442 = vpop.f32.mrf.mxu0
        %v4443 = vadd.f32 0.0, %v4442
        %v4444 = vpop.f32.mrf.mxu0
        %v4445 = vpop.f32.mrf.mxu0
        %v4446 = vadd.f32 0.0, %v4445
        %v4447 = vpop.f32.mrf.mxu0
        %4448 = vmatprep.mubr.bf16.mxu0 0
        %4449 = vmatmul.mubr.bf16.gmra.mxu0 %v4331
        %v4450 = vpop.f32.mrf.mxu0
        %v4451 = vadd.f32 0.0, %v4450
        %v4452 = vpop.f32.mrf.mxu0
        %v4453 = vpop.f32.mrf.mxu0
        %v4454 = vadd.f32 0.0, %v4453
        %v4455 = vpop.f32.mrf.mxu0
        %4456 = vmatprep.mubr.bf16.mxu0 0
        %4457 = vmatmul.mubr.bf16.gmra.mxu0 %v4332
        %v4458 = vpop.f32.mrf.mxu0
        %v4459 = vadd.f32 0.0, %v4458
        %v4460 = vpop.f32.mrf.mxu0
        %v4461 = vpop.f32.mrf.mxu0
        %v4462 = vadd.f32 0.0, %v4461
        %v4463 = vpop.f32.mrf.mxu0
        %4464 = vmatprep.mubr.bf16.mxu0 0
        %4465 = vmatmul.mubr.bf16.gmra.mxu0 %v4333
        %v4466 = vpop.f32.mrf.mxu0
        %v4467 = vadd.f32 0.0, %v4466
        %v4468 = vpop.f32.mrf.mxu0
        %v4469 = vpop.f32.mrf.mxu0
        %v4470 = vadd.f32 0.0, %v4469
        %v4471 = vpop.f32.mrf.mxu0
        %4472 = vmatprep.mubr.bf16.mxu0 0
        %4473 = vmatmul.mubr.bf16.gmra.mxu0 %v4334
        %v4474 = vpop.f32.mrf.mxu0
        %v4475 = vadd.f32 0.0, %v4474
        %v4476 = vpop.f32.mrf.mxu0
        %v4477 = vpop.f32.mrf.mxu0
        %v4478 = vadd.f32 0.0, %v4477
        %v4479 = vpop.f32.mrf.mxu0
        %4480 = vmatprep.mubr.bf16.mxu0 0
        %4481 = vmatmul.mubr.bf16.gmra.mxu0 %v4335
        %v4482 = vpop.f32.mrf.mxu0
        %v4483 = vadd.f32 0.0, %v4482
        %v4484 = vpop.f32.mrf.mxu0
        %v4485 = vpop.f32.mrf.mxu0
        %v4486 = vadd.f32 0.0, %v4485
        %v4487 = vpop.f32.mrf.mxu0
        %4488 = vdwg.mxu0
        %v4489 = vadd.f32 %v4135, %v4427
        %v4490 = vadd.f32 %v4136, %v4430
        %v4491 = vadd.f32 %v4137, %v4435
        %v4492 = vadd.f32 %v4138, %v4438
        %v4493 = vadd.f32 %v4139, %v4443
        %v4494 = vadd.f32 %v4140, %v4446
        %v4495 = vadd.f32 %v4141, %v4451
        %v4496 = vadd.f32 %v4142, %v4454
        %v4497 = vadd.f32 %v4143, %v4459
        %v4498 = vadd.f32 %v4144, %v4462
        %v4499 = vadd.f32 %v4145, %v4467
        %v4500 = vadd.f32 %v4146, %v4470
        %v4501 = vadd.f32 %v4147, %v4475
        %v4502 = vadd.f32 %v4148, %v4478
        %v4503 = vadd.f32 %v4149, %v4483
        %v4504 = vadd.f32 %v4150, %v4486
        %v4506 = vlaneseq
        %v4507 = vshrl.u32 %v4506, 7
        %v4508 = vsub.s32 0, %v4507
        %v4509 = vrot.slane %v965, %v4508
        %v4511 = vadd.f32 %v4489, %v4509
        %v4512 = vadd.f32 %v4490, %v4509
        %v4513 = vadd.f32 %v4491, %v4509
        %v4514 = vadd.f32 %v4492, %v4509
        %v4515 = vadd.f32 %v4493, %v4509
        %v4516 = vadd.f32 %v4494, %v4509
        %v4517 = vadd.f32 %v4495, %v4509
        %v4518 = vadd.f32 %v4496, %v4509
        %v4519 = vadd.f32 %v4497, %v4509
        %v4520 = vadd.f32 %v4498, %v4509
        %v4521 = vadd.f32 %v4499, %v4509
        %v4522 = vadd.f32 %v4500, %v4509
        %v4523 = vadd.f32 %v4501, %v4509
        %v4524 = vadd.f32 %v4502, %v4509
        %v4525 = vadd.f32 %v4503, %v4509
        %v4526 = vadd.f32 %v4504, %v4509
        %v4527 = vld [vmem:[%s6] sm:$0x1]
        %v4528 = vld [vmem:[%s7] sm:$0x1]
        %v4529 = vld [vmem:[#allocation10] sm:$0xff]
        %v4530 = vld [vmem:[#allocation10 + $0x8] sm:$0xff]
        %v4531 = vld [vmem:[#allocation10 + $0x10] sm:$0xff]
        %v4532 = vld [vmem:[#allocation10 + $0x18] sm:$0xff]
        %v4533 = vld [vmem:[#allocation10 + $0x20] sm:$0xff]
        %v4534 = vld [vmem:[#allocation10 + $0x28] sm:$0xff]
        %v4535 = vld [vmem:[#allocation10 + $0x30] sm:$0xff]
        %v4536 = vld [vmem:[#allocation10 + $0x38] sm:$0xff]
        %v4537 = vld [vmem:[#allocation10 + $0x40] sm:$0xff]
        %v4538 = vld [vmem:[#allocation10 + $0x48] sm:$0xff]
        %v4539 = vld [vmem:[#allocation10 + $0x50] sm:$0xff]
        %v4540 = vld [vmem:[#allocation10 + $0x58] sm:$0xff]
        %v4541 = vld [vmem:[#allocation10 + $0x60] sm:$0xff]
        %v4542 = vld [vmem:[#allocation10 + $0x68] sm:$0xff]
        %v4543 = vld [vmem:[#allocation10 + $0x70] sm:$0xff]
        %v4544 = vld [vmem:[#allocation10 + $0x78] sm:$0xff]
        %v4545 = vadd.f32 %v4511, %v4512
        %v4546 = vadd.f32 %v4545, %v4513
        %v4547 = vadd.f32 %v4546, %v4514
        %v4548 = vadd.f32 %v4547, %v4515
        %v4549 = vadd.f32 %v4548, %v4516
        %v4550 = vadd.f32 %v4549, %v4517
        %v4551 = vadd.f32 %v4550, %v4518
        %v4552 = vrot.slane %v4551, 4
        %v4553 = vadd.f32 %v4551, %v4552
        %v4554 = vrot.slane %v4553, 2
        %v4555 = vadd.f32 %v4553, %v4554
        %v4556 = vrot.slane %v4555, 1
        %v4557 = vadd.f32 %v4555, %v4556
        %v4558 = vadd.f32 %v4519, %v4520
        %v4559 = vadd.f32 %v4558, %v4521
        %v4560 = vadd.f32 %v4559, %v4522
        %v4561 = vadd.f32 %v4560, %v4523
        %v4562 = vadd.f32 %v4561, %v4524
        %v4563 = vadd.f32 %v4562, %v4525
        %v4564 = vadd.f32 %v4563, %v4526
        %v4565 = vrot.slane %v4564, 4
        %v4566 = vadd.f32 %v4564, %v4565
        %v4567 = vrot.slane %v4566, 2
        %v4568 = vadd.f32 %v4566, %v4567
        %v4569 = vrot.slane %v4568, 1
        %v4570 = vadd.f32 %v4568, %v4569
        %v4571 = vmul.f32 %v4557, %v529
        %v4572 = vmul.f32 %v4570, %v529
        %v4575 = vsel %vm534, %v4572, %v4571
        %4577 = vmatprep.subr.mxu0 0.0
        %4578 = vmatpush1.msra.mxu0 %v4544
        %4579 = vmatprep.subr.mxu0 0.0
        %4580 = vmatpush1.msra.mxu0 %v4543
        %4581 = vmatprep.subr.mxu0 0.0
        %4582 = vmatpush1.msra.mxu0 %v4542
        %4583 = vmatprep.subr.mxu0 0.0
        %4584 = vmatpush1.msra.mxu0 %v4541
        %4585 = vmatprep.subr.mxu0 0.0
        %4586 = vmatpush1.msra.mxu0 %v4540
        %4587 = vmatprep.subr.mxu0 0.0
        %4588 = vmatpush1.msra.mxu0 %v4539
        %4589 = vmatprep.subr.mxu0 0.0
        %4590 = vmatpush1.msra.mxu0 %v4538
        %4591 = vmatprep.subr.mxu0 0.0
        %4592 = vmatpush1.msra.mxu0 %v4537
        %4593 = vmatprep.subr.mxu0 0.0
        %4594 = vmatpush1.msra.mxu0 %v4536
        %4595 = vmatprep.subr.mxu0 0.0
        %4596 = vmatpush1.msra.mxu0 %v4535
        %4597 = vmatprep.subr.mxu0 0.0
        %4598 = vmatpush1.msra.mxu0 %v4534
        %4599 = vmatprep.subr.mxu0 0.0
        %4600 = vmatpush1.msra.mxu0 %v4533
        %4601 = vmatprep.subr.mxu0 0.0
        %4602 = vmatpush1.msra.mxu0 %v4532
        %4603 = vmatprep.subr.mxu0 0.0
        %4604 = vmatpush1.msra.mxu0 %v4531
        %4605 = vmatprep.subr.mxu0 0.0
        %4606 = vmatpush1.msra.mxu0 %v4530
        %4607 = vmatprep.subr.mxu0 0.0
        %4608 = vmatpush1.msra.mxu0 %v4529
        %4609 = vmatprep.subr.mxu0 0.0
        %4610 = vmatpush2.msra.mxu0 0.0
        %4611 = vmatprep.subr.mxu0 0.0
        %4612 = vmatpush2.msra.mxu0 0.0
        %4613 = vmatprep.subr.mxu0 0.0
        %4614 = vmatpush2.msra.mxu0 0.0
        %4615 = vmatprep.subr.mxu0 0.0
        %4616 = vmatpush2.msra.mxu0 0.0
        %4617 = vmatprep.subr.mxu0 0.0
        %4618 = vmatpush2.msra.mxu0 0.0
        %4619 = vmatprep.subr.mxu0 0.0
        %4620 = vmatpush2.msra.mxu0 0.0
        %4621 = vmatprep.subr.mxu0 0.0
        %4622 = vmatpush2.msra.mxu0 0.0
        %4623 = vmatprep.subr.mxu0 0.0
        %4624 = vmatpush2.msra.mxu0 0.0
        %4625 = vmatprep.subr.mxu0 0.0
        %4626 = vmatpush2.msra.mxu0 0.0
        %4627 = vmatprep.subr.mxu0 0.0
        %4628 = vmatpush2.msra.mxu0 0.0
        %4629 = vmatprep.subr.mxu0 0.0
        %4630 = vmatpush2.msra.mxu0 0.0
        %4631 = vmatprep.subr.mxu0 0.0
        %4632 = vmatpush2.msra.mxu0 0.0
        %4633 = vmatprep.subr.mxu0 0.0
        %4634 = vmatpush2.msra.mxu0 0.0
        %4635 = vmatprep.subr.mxu0 0.0
        %4636 = vmatpush2.msra.mxu0 0.0
        %4637 = vmatprep.subr.mxu0 0.0
        %4638 = vmatpush2.msra.mxu0 0.0
        %4639 = vmatprep.subr.mxu0 0.0
        %4640 = vmatpush2.msra.mxu0 0.0
        %4641 = vmatprep.mubr.f32.mxu0 0.0
        %4642 = vmatmul.mubr.f32.gmra.mxu0 %v4575
        %v4643 = vpop.f32.mrf.mxu0
        %v4644 = vadd.f32 0.0, %v4643
        %v4645 = vpop.f32.mrf.mxu0
        %4646 = vdwg.mxu0
        %v4649 = vunpack.c.l.s4 1966171168
        %v4650 = vunpack.c.0.s8 %v4649
        %v4651 = vlaneseq
        %v4652 = vshrl.u32 %v4651, 7
        %v4653 = vsub.s32 %v4650, %v4652
        %v4654 = vrot.slane %v4644, %v4653
        %v4655 = vcombine.high %v4654, %v4654
        %v4657 = vunpack.c.l.s4 1966171168
        %v4658 = vunpack.c.0.s8 %v4657
        %v4659 = vlaneseq
        %v4660 = vshrl.u32 %v4659, 7
        %v4661 = vsub.s32 %v4658, %v4660
        %v4662 = vrot.slane %v4654, %v4661
        %v4664 = vunpack.c.l.s4 1966171168
        %v4665 = vunpack.c.0.s8 %v4664
        %v4666 = vlaneseq
        %v4667 = vshrl.u32 %v4666, 7
        %v4668 = vsub.s32 %v4665, %v4667
        %v4669 = vrot.slane %v4655, %v4668
        %v4670 = vlaneseq
        %v4671 = vshrl.u32 %v4670, 7
        %v4672 = vsub.s32 0, %v4671
        %v4673 = vrot.slane %v4662, %v4672
        %v4674 = vlaneseq
        %v4675 = vshrl.u32 %v4674, 7
        %v4676 = vsub.s32 0, %v4675
        %v4677 = vrot.slane %v4669, %v4676
        %v4680 = vsub.f32 %v4511, %v4673
        %v4681 = vsub.f32 %v4512, %v4673
        %v4682 = vsub.f32 %v4513, %v4673
        %v4683 = vsub.f32 %v4514, %v4673
        %v4684 = vsub.f32 %v4515, %v4673
        %v4685 = vsub.f32 %v4516, %v4673
        %v4686 = vsub.f32 %v4517, %v4673
        %v4687 = vsub.f32 %v4518, %v4673
        %v4688 = vsub.f32 %v4519, %v4677
        %v4689 = vsub.f32 %v4520, %v4677
        %v4690 = vsub.f32 %v4521, %v4677
        %v4691 = vsub.f32 %v4522, %v4677
        %v4692 = vsub.f32 %v4523, %v4677
        %v4693 = vsub.f32 %v4524, %v4677
        %v4694 = vsub.f32 %v4525, %v4677
        %v4695 = vsub.f32 %v4526, %v4677
        %v4696 = vmul.f32 %v4680, %v4680
        %v4697 = vmul.f32 %v4681, %v4681
        %v4698 = vmul.f32 %v4682, %v4682
        %v4699 = vmul.f32 %v4683, %v4683
        %v4700 = vmul.f32 %v4684, %v4684
        %v4701 = vmul.f32 %v4685, %v4685
        %v4702 = vmul.f32 %v4686, %v4686
        %v4703 = vmul.f32 %v4687, %v4687
        %v4704 = vmul.f32 %v4688, %v4688
        %v4705 = vmul.f32 %v4689, %v4689
        %v4706 = vmul.f32 %v4690, %v4690
        %v4707 = vmul.f32 %v4691, %v4691
        %v4708 = vmul.f32 %v4692, %v4692
        %v4709 = vmul.f32 %v4693, %v4693
        %v4710 = vmul.f32 %v4694, %v4694
        %v4711 = vmul.f32 %v4695, %v4695
        %v4712 = vadd.f32 %v4696, %v4697
        %v4713 = vadd.f32 %v4712, %v4698
        %v4714 = vadd.f32 %v4713, %v4699
        %v4715 = vadd.f32 %v4714, %v4700
        %v4716 = vadd.f32 %v4715, %v4701
        %v4717 = vadd.f32 %v4716, %v4702
        %v4718 = vadd.f32 %v4717, %v4703
        %v4719 = vrot.slane %v4718, 4
        %v4720 = vadd.f32 %v4718, %v4719
        %v4721 = vrot.slane %v4720, 2
        %v4722 = vadd.f32 %v4720, %v4721
        %v4723 = vrot.slane %v4722, 1
        %v4724 = vadd.f32 %v4722, %v4723
        %v4725 = vadd.f32 %v4704, %v4705
        %v4726 = vadd.f32 %v4725, %v4706
        %v4727 = vadd.f32 %v4726, %v4707
        %v4728 = vadd.f32 %v4727, %v4708
        %v4729 = vadd.f32 %v4728, %v4709
        %v4730 = vadd.f32 %v4729, %v4710
        %v4731 = vadd.f32 %v4730, %v4711
        %v4732 = vrot.slane %v4731, 4
        %v4733 = vadd.f32 %v4731, %v4732
        %v4734 = vrot.slane %v4733, 2
        %v4735 = vadd.f32 %v4733, %v4734
        %v4736 = vrot.slane %v4735, 1
        %v4737 = vadd.f32 %v4735, %v4736
        %v4738 = vmul.f32 %v4724, %v529
        %v4739 = vmul.f32 %v4737, %v529
        %v4742 = vsel %vm534, %v4739, %v4738
        %4744 = vmatprep.subr.mxu0 0.0
        %4745 = vmatpush1.msra.mxu0 %v4544
        %4746 = vmatprep.subr.mxu0 0.0
        %4747 = vmatpush1.msra.mxu0 %v4543
        %4748 = vmatprep.subr.mxu0 0.0
        %4749 = vmatpush1.msra.mxu0 %v4542
        %4750 = vmatprep.subr.mxu0 0.0
        %4751 = vmatpush1.msra.mxu0 %v4541
        %4752 = vmatprep.subr.mxu0 0.0
        %4753 = vmatpush1.msra.mxu0 %v4540
        %4754 = vmatprep.subr.mxu0 0.0
        %4755 = vmatpush1.msra.mxu0 %v4539
        %4756 = vmatprep.subr.mxu0 0.0
        %4757 = vmatpush1.msra.mxu0 %v4538
        %4758 = vmatprep.subr.mxu0 0.0
        %4759 = vmatpush1.msra.mxu0 %v4537
        %4760 = vmatprep.subr.mxu0 0.0
        %4761 = vmatpush1.msra.mxu0 %v4536
        %4762 = vmatprep.subr.mxu0 0.0
        %4763 = vmatpush1.msra.mxu0 %v4535
        %4764 = vmatprep.subr.mxu0 0.0
        %4765 = vmatpush1.msra.mxu0 %v4534
        %4766 = vmatprep.subr.mxu0 0.0
        %4767 = vmatpush1.msra.mxu0 %v4533
        %4768 = vmatprep.subr.mxu0 0.0
        %4769 = vmatpush1.msra.mxu0 %v4532
        %4770 = vmatprep.subr.mxu0 0.0
        %4771 = vmatpush1.msra.mxu0 %v4531
        %4772 = vmatprep.subr.mxu0 0.0
        %4773 = vmatpush1.msra.mxu0 %v4530
        %4774 = vmatprep.subr.mxu0 0.0
        %4775 = vmatpush1.msra.mxu0 %v4529
        %4776 = vmatprep.subr.mxu0 0.0
        %4777 = vmatpush2.msra.mxu0 0.0
        %4778 = vmatprep.subr.mxu0 0.0
        %4779 = vmatpush2.msra.mxu0 0.0
        %4780 = vmatprep.subr.mxu0 0.0
        %4781 = vmatpush2.msra.mxu0 0.0
        %4782 = vmatprep.subr.mxu0 0.0
        %4783 = vmatpush2.msra.mxu0 0.0
        %4784 = vmatprep.subr.mxu0 0.0
        %4785 = vmatpush2.msra.mxu0 0.0
        %4786 = vmatprep.subr.mxu0 0.0
        %4787 = vmatpush2.msra.mxu0 0.0
        %4788 = vmatprep.subr.mxu0 0.0
        %4789 = vmatpush2.msra.mxu0 0.0
        %4790 = vmatprep.subr.mxu0 0.0
        %4791 = vmatpush2.msra.mxu0 0.0
        %4792 = vmatprep.subr.mxu0 0.0
        %4793 = vmatpush2.msra.mxu0 0.0
        %4794 = vmatprep.subr.mxu0 0.0
        %4795 = vmatpush2.msra.mxu0 0.0
        %4796 = vmatprep.subr.mxu0 0.0
        %4797 = vmatpush2.msra.mxu0 0.0
        %4798 = vmatprep.subr.mxu0 0.0
        %4799 = vmatpush2.msra.mxu0 0.0
        %4800 = vmatprep.subr.mxu0 0.0
        %4801 = vmatpush2.msra.mxu0 0.0
        %4802 = vmatprep.subr.mxu0 0.0
        %4803 = vmatpush2.msra.mxu0 0.0
        %4804 = vmatprep.subr.mxu0 0.0
        %4805 = vmatpush2.msra.mxu0 0.0
        %4806 = vmatprep.subr.mxu0 0.0
        %4807 = vmatpush2.msra.mxu0 0.0
        %4808 = vmatprep.mubr.f32.mxu0 0.0
        %4809 = vmatmul.mubr.f32.gmra.mxu0 %v4742
        %v4810 = vpop.f32.mrf.mxu0
        %v4811 = vadd.f32 1e-05, %v4810
        %v4812 = vpop.f32.mrf.mxu0
        %4813 = vdwg.mxu0
        %v4814 = vrsqrt.pop %v4811
        %v4816 = vlaneseq
        %v4817 = vshrl.u32 %v4816, 7
        %v4818 = vsub.s32 0, %v4817
        %v4819 = vrot.slane %v4527, %v4818
        %v4821 = vmul.f32 %v4819, %v4814
        %v4824 = vunpack.c.l.s4 1966171168
        %v4825 = vunpack.c.0.s8 %v4824
        %v4826 = vlaneseq
        %v4827 = vshrl.u32 %v4826, 7
        %v4828 = vsub.s32 %v4825, %v4827
        %v4829 = vrot.slane %v4821, %v4828
        %v4830 = vcombine.high %v4829, %v4829
        %v4832 = vunpack.c.l.s4 1966171168
        %v4833 = vunpack.c.0.s8 %v4832
        %v4834 = vlaneseq
        %v4835 = vshrl.u32 %v4834, 7
        %v4836 = vsub.s32 %v4833, %v4835
        %v4837 = vrot.slane %v4829, %v4836
        %v4839 = vunpack.c.l.s4 1966171168
        %v4840 = vunpack.c.0.s8 %v4839
        %v4841 = vlaneseq
        %v4842 = vshrl.u32 %v4841, 7
        %v4843 = vsub.s32 %v4840, %v4842
        %v4844 = vrot.slane %v4830, %v4843
        %v4845 = vlaneseq
        %v4846 = vshrl.u32 %v4845, 7
        %v4847 = vsub.s32 0, %v4846
        %v4848 = vrot.slane %v4837, %v4847
        %v4849 = vlaneseq
        %v4850 = vshrl.u32 %v4849, 7
        %v4851 = vsub.s32 0, %v4850
        %v4852 = vrot.slane %v4844, %v4851
        %v4855 = vmul.f32 %v4680, %v4848
        %v4856 = vmul.f32 %v4681, %v4848
        %v4857 = vmul.f32 %v4682, %v4848
        %v4858 = vmul.f32 %v4683, %v4848
        %v4859 = vmul.f32 %v4684, %v4848
        %v4860 = vmul.f32 %v4685, %v4848
        %v4861 = vmul.f32 %v4686, %v4848
        %v4862 = vmul.f32 %v4687, %v4848
        %v4863 = vmul.f32 %v4688, %v4852
        %v4864 = vmul.f32 %v4689, %v4852
        %v4865 = vmul.f32 %v4690, %v4852
        %v4866 = vmul.f32 %v4691, %v4852
        %v4867 = vmul.f32 %v4692, %v4852
        %v4868 = vmul.f32 %v4693, %v4852
        %v4869 = vmul.f32 %v4694, %v4852
        %v4870 = vmul.f32 %v4695, %v4852
        %v4872 = vlaneseq
        %v4873 = vshrl.u32 %v4872, 7
        %v4874 = vsub.s32 0, %v4873
        %v4875 = vrot.slane %v4528, %v4874
        %v4877 = vadd.f32 %v4855, %v4875
        %v4878 = vadd.f32 %v4856, %v4875
        %v4879 = vadd.f32 %v4857, %v4875
        %v4880 = vadd.f32 %v4858, %v4875
        %v4881 = vadd.f32 %v4859, %v4875
        %v4882 = vadd.f32 %v4860, %v4875
        %v4883 = vadd.f32 %v4861, %v4875
        %v4884 = vadd.f32 %v4862, %v4875
        %v4885 = vadd.f32 %v4863, %v4875
        %v4886 = vadd.f32 %v4864, %v4875
        %v4887 = vadd.f32 %v4865, %v4875
        %v4888 = vadd.f32 %v4866, %v4875
        %v4889 = vadd.f32 %v4867, %v4875
        %v4890 = vadd.f32 %v4868, %v4875
        %v4891 = vadd.f32 %v4869, %v4875
        %v4892 = vadd.f32 %v4870, %v4875
        %v4893 = vxor.u32 %v4877, 2147483648
        %v4894 = vxor.u32 %v4878, 2147483648
        %v4895 = vxor.u32 %v4879, 2147483648
        %v4896 = vxor.u32 %v4880, 2147483648
        %v4897 = vxor.u32 %v4881, 2147483648
        %v4898 = vxor.u32 %v4882, 2147483648
        %v4899 = vxor.u32 %v4883, 2147483648
        %v4900 = vxor.u32 %v4884, 2147483648
        %v4901 = vxor.u32 %v4885, 2147483648
        %v4902 = vxor.u32 %v4886, 2147483648
        %v4903 = vxor.u32 %v4887, 2147483648
        %v4904 = vxor.u32 %v4888, 2147483648
        %v4905 = vxor.u32 %v4889, 2147483648
        %v4906 = vxor.u32 %v4890, 2147483648
        %v4907 = vxor.u32 %v4891, 2147483648
        %v4908 = vxor.u32 %v4892, 2147483648
        %v4909 = vmul.f32 %v4893, 1.442695
        %v4910 = vpow.pop %v4909
        %v4911 = vmul.f32 %v4894, 1.442695
        %v4912 = vpow.pop %v4911
        %v4913 = vmul.f32 %v4895, 1.442695
        %v4914 = vpow.pop %v4913
        %v4915 = vmul.f32 %v4896, 1.442695
        %v4916 = vpow.pop %v4915
        %v4917 = vmul.f32 %v4897, 1.442695
        %v4918 = vpow.pop %v4917
        %v4919 = vmul.f32 %v4898, 1.442695
        %v4920 = vpow.pop %v4919
        %v4921 = vmul.f32 %v4899, 1.442695
        %v4922 = vpow.pop %v4921
        %v4923 = vmul.f32 %v4900, 1.442695
        %v4924 = vpow.pop %v4923
        %v4925 = vmul.f32 %v4901, 1.442695
        %v4926 = vpow.pop %v4925
        %v4927 = vmul.f32 %v4902, 1.442695
        %v4928 = vpow.pop %v4927
        %v4929 = vmul.f32 %v4903, 1.442695
        %v4930 = vpow.pop %v4929
        %v4931 = vmul.f32 %v4904, 1.442695
        %v4932 = vpow.pop %v4931
        %v4933 = vmul.f32 %v4905, 1.442695
        %v4934 = vpow.pop %v4933
        %v4935 = vmul.f32 %v4906, 1.442695
        %v4936 = vpow.pop %v4935
        %v4937 = vmul.f32 %v4907, 1.442695
        %v4938 = vpow.pop %v4937
        %v4939 = vmul.f32 %v4908, 1.442695
        %v4940 = vpow.pop %v4939
        %v4941 = vadd.f32 %v4910, 1.0
        %v4942 = vadd.f32 %v4912, 1.0
        %v4943 = vadd.f32 %v4914, 1.0
        %v4944 = vadd.f32 %v4916, 1.0
        %v4945 = vadd.f32 %v4918, 1.0
        %v4946 = vadd.f32 %v4920, 1.0
        %v4947 = vadd.f32 %v4922, 1.0
        %v4948 = vadd.f32 %v4924, 1.0
        %v4949 = vadd.f32 %v4926, 1.0
        %v4950 = vadd.f32 %v4928, 1.0
        %v4951 = vadd.f32 %v4930, 1.0
        %v4952 = vadd.f32 %v4932, 1.0
        %v4953 = vadd.f32 %v4934, 1.0
        %v4954 = vadd.f32 %v4936, 1.0
        %v4955 = vadd.f32 %v4938, 1.0
        %v4956 = vadd.f32 %v4940, 1.0
        %v4957 = vrcp.pop %v4941
        %v4958 = vmul.f32 1.0, %v4957
        %v4959 = vrcp.pop %v4942
        %v4960 = vmul.f32 1.0, %v4959
        %v4961 = vrcp.pop %v4943
        %v4962 = vmul.f32 1.0, %v4961
        %v4963 = vrcp.pop %v4944
        %v4964 = vmul.f32 1.0, %v4963
        %v4965 = vrcp.pop %v4945
        %v4966 = vmul.f32 1.0, %v4965
        %v4967 = vrcp.pop %v4946
        %v4968 = vmul.f32 1.0, %v4967
        %v4969 = vrcp.pop %v4947
        %v4970 = vmul.f32 1.0, %v4969
        %v4971 = vrcp.pop %v4948
        %v4972 = vmul.f32 1.0, %v4971
        %v4973 = vrcp.pop %v4949
        %v4974 = vmul.f32 1.0, %v4973
        %v4975 = vrcp.pop %v4950
        %v4976 = vmul.f32 1.0, %v4975
        %v4977 = vrcp.pop %v4951
        %v4978 = vmul.f32 1.0, %v4977
        %v4979 = vrcp.pop %v4952
        %v4980 = vmul.f32 1.0, %v4979
        %v4981 = vrcp.pop %v4953
        %v4982 = vmul.f32 1.0, %v4981
        %v4983 = vrcp.pop %v4954
        %v4984 = vmul.f32 1.0, %v4983
        %v4985 = vrcp.pop %v4955
        %v4986 = vmul.f32 1.0, %v4985
        %v4987 = vrcp.pop %v4956
        %v4988 = vmul.f32 1.0, %v4987
        %v4989 = vmul.f32 %v4877, %v4958
        %v4990 = vmul.f32 %v4878, %v4960
        %v4991 = vmul.f32 %v4879, %v4962
        %v4992 = vmul.f32 %v4880, %v4964
        %v4993 = vmul.f32 %v4881, %v4966
        %v4994 = vmul.f32 %v4882, %v4968
        %v4995 = vmul.f32 %v4883, %v4970
        %v4996 = vmul.f32 %v4884, %v4972
        %v4997 = vmul.f32 %v4885, %v4974
        %v4998 = vmul.f32 %v4886, %v4976
        %v4999 = vmul.f32 %v4887, %v4978
        %v5000 = vmul.f32 %v4888, %v4980
        %v5001 = vmul.f32 %v4889, %v4982
        %v5002 = vmul.f32 %v4890, %v4984
        %v5003 = vmul.f32 %v4891, %v4986
        %v5004 = vmul.f32 %v4892, %v4988
        %v5005 = vld [vmem:[%s10] sm:$0x1]
        %5006 = vst [vmem:[#allocation3] sm:$0xf] 0
        %5007 = vst [vmem:[#allocation3 + $0x4] sm:$0x1] 0
        %5008 = vst [vmem:[#allocation3 + $0x50] sm:$0xf] 0
        %5009 = vst [vmem:[#allocation3 + $0x54] sm:$0x1] 0
        %s5010 = scalar_lea.vmem [#allocation3], 72
        %5011 = vst [vmem:[%s5010] sm:$0xf] 0
        %5012 = vst [vmem:[%s5010 + $0x4] sm:$0x1] 0
        %5013 = vst [vmem:[%s5010 + $0x50] sm:$0xf] 0
        %5014 = vst [vmem:[%s5010 + $0x54] sm:$0x1] 0
        %v5015 = vpack.c.bf16 %v4989, %v4989
        %v5016 = vpack.c.bf16 %v4990, %v4990
        %v5017 = vpack.c.bf16 %v4991, %v4991
        %v5018 = vpack.c.bf16 %v4992, %v4992
        %v5019 = vpack.c.bf16 %v4993, %v4993
        %v5020 = vpack.c.bf16 %v4994, %v4994
        %v5021 = vpack.c.bf16 %v4995, %v4995
        %v5022 = vpack.c.bf16 %v4996, %v4996
        %v5023 = vpack.c.bf16 %v4997, %v4997
        %v5024 = vpack.c.bf16 %v4998, %v4998
        %v5025 = vpack.c.bf16 %v4999, %v4999
        %v5026 = vpack.c.bf16 %v5000, %v5000
        %v5027 = vpack.c.bf16 %v5001, %v5001
        %v5028 = vpack.c.bf16 %v5002, %v5002
        %v5029 = vpack.c.bf16 %v5003, %v5003
        %v5030 = vpack.c.bf16 %v5004, %v5004
        %v5047 = vunpack.c.l.b16 %v5015
        %v5048 = vunpack.c.l.b16 %v5016
        %v5049 = vunpack.c.l.b16 %v5017
        %v5050 = vunpack.c.l.b16 %v5018
        %v5051 = vunpack.c.l.b16 %v5019
        %v5052 = vunpack.c.l.b16 %v5020
        %v5053 = vunpack.c.l.b16 %v5021
        %v5054 = vunpack.c.l.b16 %v5022
        %v5055 = vunpack.c.l.b16 %v5023
        %v5056 = vunpack.c.l.b16 %v5024
        %v5057 = vunpack.c.l.b16 %v5025
        %v5058 = vunpack.c.l.b16 %v5026
        %v5059 = vunpack.c.l.b16 %v5027
        %v5060 = vunpack.c.l.b16 %v5028
        %v5061 = vunpack.c.l.b16 %v5029
        %v5062 = vunpack.c.l.b16 %v5030
        %v5063 = vpack.c.b16 %v5047, %v5047
        %v5064 = vpack.c.b16 %v5048, %v5048
        %v5065 = vpack.c.b16 %v5049, %v5049
        %v5066 = vpack.c.b16 %v5050, %v5050
        %v5067 = vpack.c.b16 %v5051, %v5051
        %v5068 = vpack.c.b16 %v5052, %v5052
        %v5069 = vpack.c.b16 %v5053, %v5053
        %v5070 = vpack.c.b16 %v5054, %v5054
        %v5071 = vpack.c.b16 %v5055, %v5055
        %v5072 = vpack.c.b16 %v5056, %v5056
        %v5073 = vpack.c.b16 %v5057, %v5057
        %v5074 = vpack.c.b16 %v5058, %v5058
        %v5075 = vpack.c.b16 %v5059, %v5059
        %v5076 = vpack.c.b16 %v5060, %v5060
        %v5077 = vpack.c.b16 %v5061, %v5061
        %v5078 = vpack.c.b16 %v5062, %v5062
        %v5080 = vshrl.u32 %v5063, 16
        %v5082 = vrot.slane %v5080, 7
        %v5083 = vshll.u32 %v5063, 16
        %v5085 = vor.u32 %v5082, %v5083
        %v5086 = vrot.slane %v5082, 4
        %v5088 = vshrl.u32 %v5064, 16
        %v5090 = vrot.slane %v5088, 7
        %v5091 = vshll.u32 %v5064, 16
        %v5093 = vor.u32 %v5090, %v5091
        %v5094 = vrot.slane %v5090, 4
        %v5096 = vshrl.u32 %v5065, 16
        %v5098 = vrot.slane %v5096, 7
        %v5099 = vshll.u32 %v5065, 16
        %v5101 = vor.u32 %v5098, %v5099
        %v5102 = vrot.slane %v5098, 4
        %v5104 = vshrl.u32 %v5066, 16
        %v5106 = vrot.slane %v5104, 7
        %v5107 = vshll.u32 %v5066, 16
        %v5109 = vor.u32 %v5106, %v5107
        %v5110 = vrot.slane %v5106, 4
        %v5112 = vshrl.u32 %v5067, 16
        %v5114 = vrot.slane %v5112, 7
        %v5115 = vshll.u32 %v5067, 16
        %v5117 = vor.u32 %v5114, %v5115
        %v5118 = vrot.slane %v5114, 4
        %v5120 = vshrl.u32 %v5068, 16
        %v5122 = vrot.slane %v5120, 7
        %v5123 = vshll.u32 %v5068, 16
        %v5125 = vor.u32 %v5122, %v5123
        %v5126 = vrot.slane %v5122, 4
        %v5128 = vshrl.u32 %v5069, 16
        %v5130 = vrot.slane %v5128, 7
        %v5131 = vshll.u32 %v5069, 16
        %v5133 = vor.u32 %v5130, %v5131
        %v5134 = vrot.slane %v5130, 4
        %v5136 = vshrl.u32 %v5070, 16
        %v5138 = vrot.slane %v5136, 7
        %v5139 = vshll.u32 %v5070, 16
        %v5141 = vor.u32 %v5138, %v5139
        %v5142 = vrot.slane %v5138, 4
        %v5144 = vshrl.u32 %v5071, 16
        %v5146 = vrot.slane %v5144, 7
        %v5147 = vshll.u32 %v5071, 16
        %v5149 = vor.u32 %v5146, %v5147
        %v5150 = vrot.slane %v5146, 4
        %v5152 = vshrl.u32 %v5072, 16
        %v5154 = vrot.slane %v5152, 7
        %v5155 = vshll.u32 %v5072, 16
        %v5157 = vor.u32 %v5154, %v5155
        %v5158 = vrot.slane %v5154, 4
        %v5160 = vshrl.u32 %v5073, 16
        %v5162 = vrot.slane %v5160, 7
        %v5163 = vshll.u32 %v5073, 16
        %v5165 = vor.u32 %v5162, %v5163
        %v5166 = vrot.slane %v5162, 4
        %v5168 = vshrl.u32 %v5074, 16
        %v5170 = vrot.slane %v5168, 7
        %v5171 = vshll.u32 %v5074, 16
        %v5173 = vor.u32 %v5170, %v5171
        %v5174 = vrot.slane %v5170, 4
        %v5176 = vshrl.u32 %v5075, 16
        %v5178 = vrot.slane %v5176, 7
        %v5179 = vshll.u32 %v5075, 16
        %v5181 = vor.u32 %v5178, %v5179
        %v5182 = vrot.slane %v5178, 4
        %v5184 = vshrl.u32 %v5076, 16
        %v5186 = vrot.slane %v5184, 7
        %v5187 = vshll.u32 %v5076, 16
        %v5189 = vor.u32 %v5186, %v5187
        %v5190 = vrot.slane %v5186, 4
        %v5192 = vshrl.u32 %v5077, 16
        %v5194 = vrot.slane %v5192, 7
        %v5195 = vshll.u32 %v5077, 16
        %v5197 = vor.u32 %v5194, %v5195
        %v5198 = vrot.slane %v5194, 4
        %v5200 = vshrl.u32 %v5078, 16
        %v5202 = vrot.slane %v5200, 7
        %v5203 = vshll.u32 %v5078, 16
        %v5205 = vor.u32 %v5202, %v5203
        %v5206 = vrot.slane %v5202, 4
        %s5239 = scalar_lea.vmem [#allocation3], 8
        %v5240 = vld [vmem:[%s5239] sm:$0xf]
        %v5241 = vsel %vm1202, %v5085, %v5240
        %5242 = vst [vmem:[%s5239] sm:$0xf] %v5241
        %v5243 = vld [vmem:[%s5239 + $0x4] sm:$0x1]
        %v5244 = vsel %vm1208, %v5086, %v5243
        %5245 = vst [vmem:[%s5239 + $0x4] sm:$0x1] %v5244
        %v5246 = vld [vmem:[%s5239 + $0x8] sm:$0xf]
        %v5247 = vsel %vm1202, %v5093, %v5246
        %5248 = vst [vmem:[%s5239 + $0x8] sm:$0xf] %v5247
        %v5249 = vld [vmem:[%s5239 + $0xc] sm:$0x1]
        %v5250 = vsel %vm1208, %v5094, %v5249
        %5251 = vst [vmem:[%s5239 + $0xc] sm:$0x1] %v5250
        %v5252 = vld [vmem:[%s5239 + $0x10] sm:$0xf]
        %v5253 = vsel %vm1202, %v5101, %v5252
        %5254 = vst [vmem:[%s5239 + $0x10] sm:$0xf] %v5253
        %v5255 = vld [vmem:[%s5239 + $0x14] sm:$0x1]
        %v5256 = vsel %vm1208, %v5102, %v5255
        %5257 = vst [vmem:[%s5239 + $0x14] sm:$0x1] %v5256
        %v5258 = vld [vmem:[%s5239 + $0x18] sm:$0xf]
        %v5259 = vsel %vm1202, %v5109, %v5258
        %5260 = vst [vmem:[%s5239 + $0x18] sm:$0xf] %v5259
        %v5261 = vld [vmem:[%s5239 + $0x1c] sm:$0x1]
        %v5262 = vsel %vm1208, %v5110, %v5261
        %5263 = vst [vmem:[%s5239 + $0x1c] sm:$0x1] %v5262
        %v5264 = vld [vmem:[%s5239 + $0x20] sm:$0xf]
        %v5265 = vsel %vm1202, %v5117, %v5264
        %5266 = vst [vmem:[%s5239 + $0x20] sm:$0xf] %v5265
        %v5267 = vld [vmem:[%s5239 + $0x24] sm:$0x1]
        %v5268 = vsel %vm1208, %v5118, %v5267
        %5269 = vst [vmem:[%s5239 + $0x24] sm:$0x1] %v5268
        %v5270 = vld [vmem:[%s5239 + $0x28] sm:$0xf]
        %v5271 = vsel %vm1202, %v5125, %v5270
        %5272 = vst [vmem:[%s5239 + $0x28] sm:$0xf] %v5271
        %v5273 = vld [vmem:[%s5239 + $0x2c] sm:$0x1]
        %v5274 = vsel %vm1208, %v5126, %v5273
        %5275 = vst [vmem:[%s5239 + $0x2c] sm:$0x1] %v5274
        %v5276 = vld [vmem:[%s5239 + $0x30] sm:$0xf]
        %v5277 = vsel %vm1202, %v5133, %v5276
        %5278 = vst [vmem:[%s5239 + $0x30] sm:$0xf] %v5277
        %v5279 = vld [vmem:[%s5239 + $0x34] sm:$0x1]
        %v5280 = vsel %vm1208, %v5134, %v5279
        %5281 = vst [vmem:[%s5239 + $0x34] sm:$0x1] %v5280
        %v5282 = vld [vmem:[%s5239 + $0x38] sm:$0xf]
        %v5283 = vsel %vm1202, %v5141, %v5282
        %5284 = vst [vmem:[%s5239 + $0x38] sm:$0xf] %v5283
        %v5285 = vld [vmem:[%s5239 + $0x3c] sm:$0x1]
        %v5286 = vsel %vm1208, %v5142, %v5285
        %5287 = vst [vmem:[%s5239 + $0x3c] sm:$0x1] %v5286
        %v5288 = vld [vmem:[%s5239 + $0x50] sm:$0xf]
        %v5289 = vsel %vm1202, %v5149, %v5288
        %5290 = vst [vmem:[%s5239 + $0x50] sm:$0xf] %v5289
        %v5291 = vld [vmem:[%s5239 + $0x54] sm:$0x1]
        %v5292 = vsel %vm1208, %v5150, %v5291
        %5293 = vst [vmem:[%s5239 + $0x54] sm:$0x1] %v5292
        %v5294 = vld [vmem:[%s5239 + $0x58] sm:$0xf]
        %v5295 = vsel %vm1202, %v5157, %v5294
        %5296 = vst [vmem:[%s5239 + $0x58] sm:$0xf] %v5295
        %v5297 = vld [vmem:[%s5239 + $0x5c] sm:$0x1]
        %v5298 = vsel %vm1208, %v5158, %v5297
        %5299 = vst [vmem:[%s5239 + $0x5c] sm:$0x1] %v5298
        %v5300 = vld [vmem:[%s5239 + $0x60] sm:$0xf]
        %v5301 = vsel %vm1202, %v5165, %v5300
        %5302 = vst [vmem:[%s5239 + $0x60] sm:$0xf] %v5301
        %v5303 = vld [vmem:[%s5239 + $0x64] sm:$0x1]
        %v5304 = vsel %vm1208, %v5166, %v5303
        %5305 = vst [vmem:[%s5239 + $0x64] sm:$0x1] %v5304
        %v5306 = vld [vmem:[%s5239 + $0x68] sm:$0xf]
        %v5307 = vsel %vm1202, %v5173, %v5306
        %5308 = vst [vmem:[%s5239 + $0x68] sm:$0xf] %v5307
        %v5309 = vld [vmem:[%s5239 + $0x6c] sm:$0x1]
        %v5310 = vsel %vm1208, %v5174, %v5309
        %5311 = vst [vmem:[%s5239 + $0x6c] sm:$0x1] %v5310
        %v5312 = vld [vmem:[%s5239 + $0x70] sm:$0xf]
        %v5313 = vsel %vm1202, %v5181, %v5312
        %5314 = vst [vmem:[%s5239 + $0x70] sm:$0xf] %v5313
        %v5315 = vld [vmem:[%s5239 + $0x74] sm:$0x1]
        %v5316 = vsel %vm1208, %v5182, %v5315
        %5317 = vst [vmem:[%s5239 + $0x74] sm:$0x1] %v5316
        %v5318 = vld [vmem:[%s5239 + $0x78] sm:$0xf]
        %v5319 = vsel %vm1202, %v5189, %v5318
        %5320 = vst [vmem:[%s5239 + $0x78] sm:$0xf] %v5319
        %v5321 = vld [vmem:[%s5239 + $0x7c] sm:$0x1]
        %v5322 = vsel %vm1208, %v5190, %v5321
        %5323 = vst [vmem:[%s5239 + $0x7c] sm:$0x1] %v5322
        %v5324 = vld [vmem:[%s5239 + $0x80] sm:$0xf]
        %v5325 = vsel %vm1202, %v5197, %v5324
        %5326 = vst [vmem:[%s5239 + $0x80] sm:$0xf] %v5325
        %v5327 = vld [vmem:[%s5239 + $0x84] sm:$0x1]
        %v5328 = vsel %vm1208, %v5198, %v5327
        %5329 = vst [vmem:[%s5239 + $0x84] sm:$0x1] %v5328
        %v5330 = vld [vmem:[%s5239 + $0x88] sm:$0xf]
        %v5331 = vsel %vm1202, %v5205, %v5330
        %5332 = vst [vmem:[%s5239 + $0x88] sm:$0xf] %v5331
        %v5333 = vld [vmem:[%s5239 + $0x8c] sm:$0x1]
        %v5334 = vsel %vm1208, %v5206, %v5333
        %5335 = vst [vmem:[%s5239 + $0x8c] sm:$0x1] %v5334
        %v5336 = vld [vmem:[#allocation3] sm:$0xf]
        %v5337 = vld [vmem:[#allocation3 + $0x8] sm:$0xf]
        %v5338 = vld [vmem:[#allocation3 + $0x10] sm:$0xf]
        %v5339 = vld [vmem:[#allocation3 + $0x18] sm:$0xf]
        %v5340 = vld [vmem:[#allocation3 + $0x20] sm:$0xf]
        %v5341 = vld [vmem:[#allocation3 + $0x28] sm:$0xf]
        %v5342 = vld [vmem:[#allocation3 + $0x30] sm:$0xf]
        %v5343 = vld [vmem:[#allocation3 + $0x38] sm:$0xf]
        %v5344 = vld [vmem:[#allocation3 + $0x50] sm:$0xf]
        %v5345 = vld [vmem:[#allocation3 + $0x58] sm:$0xf]
        %v5346 = vld [vmem:[#allocation3 + $0x60] sm:$0xf]
        %v5347 = vld [vmem:[#allocation3 + $0x68] sm:$0xf]
        %v5348 = vld [vmem:[#allocation3 + $0x70] sm:$0xf]
        %v5349 = vld [vmem:[#allocation3 + $0x78] sm:$0xf]
        %v5350 = vld [vmem:[#allocation3 + $0x80] sm:$0xf]
        %v5351 = vld [vmem:[#allocation3 + $0x88] sm:$0xf]
        %v5352 = vsel %vm1322, %v5336, 0
        %v5353 = vsel %vm1322, %v5337, 0
        %v5354 = vsel %vm1322, %v5338, 0
        %v5355 = vsel %vm1322, %v5339, 0
        %v5356 = vsel %vm1322, %v5340, 0
        %v5357 = vsel %vm1322, %v5341, 0
        %v5358 = vsel %vm1322, %v5342, 0
        %v5359 = vsel %vm1322, %v5343, 0
        %v5360 = vsel %vm1322, %v5344, 0
        %v5361 = vsel %vm1322, %v5345, 0
        %v5362 = vsel %vm1322, %v5346, 0
        %v5363 = vsel %vm1322, %v5347, 0
        %v5364 = vsel %vm1322, %v5348, 0
        %v5365 = vsel %vm1322, %v5349, 0
        %v5366 = vsel %vm1322, %v5350, 0
        %v5367 = vsel %vm1322, %v5351, 0
        %v5368 = vld [vmem:[#allocation12] sm:$0xf]
        %v5369 = vld [vmem:[#allocation12 + $0x4] sm:$0xf]
        %v5370 = vld [vmem:[#allocation12 + $0x8] sm:$0xf]
        %v5371 = vld [vmem:[#allocation12 + $0xc] sm:$0xf]
        %v5372 = vld [vmem:[#allocation12 + $0x10] sm:$0xf]
        %v5373 = vld [vmem:[#allocation12 + $0x14] sm:$0xf]
        %v5374 = vld [vmem:[#allocation12 + $0x18] sm:$0xf]
        %v5375 = vld [vmem:[#allocation12 + $0x1c] sm:$0xf]
        %v5376 = vld [vmem:[#allocation12 + $0x20] sm:$0xf]
        %v5377 = vld [vmem:[#allocation12 + $0x24] sm:$0xf]
        %v5378 = vld [vmem:[#allocation12 + $0x28] sm:$0xf]
        %v5379 = vld [vmem:[#allocation12 + $0x2c] sm:$0xf]
        %v5380 = vld [vmem:[#allocation12 + $0x30] sm:$0xf]
        %v5381 = vld [vmem:[#allocation12 + $0x34] sm:$0xf]
        %v5382 = vld [vmem:[#allocation12 + $0x38] sm:$0xf]
        %v5383 = vld [vmem:[#allocation12 + $0x3c] sm:$0xf]
        %v5384 = vld [vmem:[#allocation3 + $0x4] sm:$0x1]
        %v5385 = vld [vmem:[#allocation3 + $0xc] sm:$0x1]
        %v5386 = vld [vmem:[#allocation3 + $0x14] sm:$0x1]
        %v5387 = vld [vmem:[#allocation3 + $0x1c] sm:$0x1]
        %v5388 = vld [vmem:[#allocation3 + $0x24] sm:$0x1]
        %v5389 = vld [vmem:[#allocation3 + $0x2c] sm:$0x1]
        %v5390 = vld [vmem:[#allocation3 + $0x34] sm:$0x1]
        %v5391 = vld [vmem:[#allocation3 + $0x3c] sm:$0x1]
        %v5392 = vld [vmem:[#allocation3 + $0x54] sm:$0x1]
        %v5393 = vld [vmem:[#allocation3 + $0x5c] sm:$0x1]
        %v5394 = vld [vmem:[#allocation3 + $0x64] sm:$0x1]
        %v5395 = vld [vmem:[#allocation3 + $0x6c] sm:$0x1]
        %v5396 = vld [vmem:[#allocation3 + $0x74] sm:$0x1]
        %v5397 = vld [vmem:[#allocation3 + $0x7c] sm:$0x1]
        %v5398 = vld [vmem:[#allocation3 + $0x84] sm:$0x1]
        %v5399 = vld [vmem:[#allocation3 + $0x8c] sm:$0x1]
        %v5401 = vshrl.u32 %v5336, 16
        %v5403 = vrot.slane %v5401, 4
        %v5404 = vshll.u32 %v5336, 16
        %v5406 = vrot.slane %v5404, 5
        %v5407 = vor.u32 %v5403, %v5406
        %v5408 = vrot.slane %v5407, 4
        %v5410 = vshll.u32 %v5384, 16
        %v5412 = vrot.slane %v5410, 5
        %v5413 = vsel %vm1373, %v5408, %v5412
        %v5415 = vshrl.u32 %v5337, 16
        %v5417 = vrot.slane %v5415, 4
        %v5418 = vshll.u32 %v5337, 16
        %v5420 = vrot.slane %v5418, 5
        %v5421 = vor.u32 %v5417, %v5420
        %v5422 = vrot.slane %v5421, 4
        %v5424 = vshll.u32 %v5385, 16
        %v5426 = vrot.slane %v5424, 5
        %v5427 = vsel %vm1373, %v5422, %v5426
        %v5429 = vshrl.u32 %v5338, 16
        %v5431 = vrot.slane %v5429, 4
        %v5432 = vshll.u32 %v5338, 16
        %v5434 = vrot.slane %v5432, 5
        %v5435 = vor.u32 %v5431, %v5434
        %v5436 = vrot.slane %v5435, 4
        %v5438 = vshll.u32 %v5386, 16
        %v5440 = vrot.slane %v5438, 5
        %v5441 = vsel %vm1373, %v5436, %v5440
        %v5443 = vshrl.u32 %v5339, 16
        %v5445 = vrot.slane %v5443, 4
        %v5446 = vshll.u32 %v5339, 16
        %v5448 = vrot.slane %v5446, 5
        %v5449 = vor.u32 %v5445, %v5448
        %v5450 = vrot.slane %v5449, 4
        %v5452 = vshll.u32 %v5387, 16
        %v5454 = vrot.slane %v5452, 5
        %v5455 = vsel %vm1373, %v5450, %v5454
        %v5457 = vshrl.u32 %v5340, 16
        %v5459 = vrot.slane %v5457, 4
        %v5460 = vshll.u32 %v5340, 16
        %v5462 = vrot.slane %v5460, 5
        %v5463 = vor.u32 %v5459, %v5462
        %v5464 = vrot.slane %v5463, 4
        %v5466 = vshll.u32 %v5388, 16
        %v5468 = vrot.slane %v5466, 5
        %v5469 = vsel %vm1373, %v5464, %v5468
        %v5471 = vshrl.u32 %v5341, 16
        %v5473 = vrot.slane %v5471, 4
        %v5474 = vshll.u32 %v5341, 16
        %v5476 = vrot.slane %v5474, 5
        %v5477 = vor.u32 %v5473, %v5476
        %v5478 = vrot.slane %v5477, 4
        %v5480 = vshll.u32 %v5389, 16
        %v5482 = vrot.slane %v5480, 5
        %v5483 = vsel %vm1373, %v5478, %v5482
        %v5485 = vshrl.u32 %v5342, 16
        %v5487 = vrot.slane %v5485, 4
        %v5488 = vshll.u32 %v5342, 16
        %v5490 = vrot.slane %v5488, 5
        %v5491 = vor.u32 %v5487, %v5490
        %v5492 = vrot.slane %v5491, 4
        %v5494 = vshll.u32 %v5390, 16
        %v5496 = vrot.slane %v5494, 5
        %v5497 = vsel %vm1373, %v5492, %v5496
        %v5499 = vshrl.u32 %v5343, 16
        %v5501 = vrot.slane %v5499, 4
        %v5502 = vshll.u32 %v5343, 16
        %v5504 = vrot.slane %v5502, 5
        %v5505 = vor.u32 %v5501, %v5504
        %v5506 = vrot.slane %v5505, 4
        %v5508 = vshll.u32 %v5391, 16
        %v5510 = vrot.slane %v5508, 5
        %v5511 = vsel %vm1373, %v5506, %v5510
        %v5513 = vshrl.u32 %v5344, 16
        %v5515 = vrot.slane %v5513, 4
        %v5516 = vshll.u32 %v5344, 16
        %v5518 = vrot.slane %v5516, 5
        %v5519 = vor.u32 %v5515, %v5518
        %v5520 = vrot.slane %v5519, 4
        %v5522 = vshll.u32 %v5392, 16
        %v5524 = vrot.slane %v5522, 5
        %v5525 = vsel %vm1373, %v5520, %v5524
        %v5527 = vshrl.u32 %v5345, 16
        %v5529 = vrot.slane %v5527, 4
        %v5530 = vshll.u32 %v5345, 16
        %v5532 = vrot.slane %v5530, 5
        %v5533 = vor.u32 %v5529, %v5532
        %v5534 = vrot.slane %v5533, 4
        %v5536 = vshll.u32 %v5393, 16
        %v5538 = vrot.slane %v5536, 5
        %v5539 = vsel %vm1373, %v5534, %v5538
        %v5541 = vshrl.u32 %v5346, 16
        %v5543 = vrot.slane %v5541, 4
        %v5544 = vshll.u32 %v5346, 16
        %v5546 = vrot.slane %v5544, 5
        %v5547 = vor.u32 %v5543, %v5546
        %v5548 = vrot.slane %v5547, 4
        %v5550 = vshll.u32 %v5394, 16
        %v5552 = vrot.slane %v5550, 5
        %v5553 = vsel %vm1373, %v5548, %v5552
        %v5555 = vshrl.u32 %v5347, 16
        %v5557 = vrot.slane %v5555, 4
        %v5558 = vshll.u32 %v5347, 16
        %v5560 = vrot.slane %v5558, 5
        %v5561 = vor.u32 %v5557, %v5560
        %v5562 = vrot.slane %v5561, 4
        %v5564 = vshll.u32 %v5395, 16
        %v5566 = vrot.slane %v5564, 5
        %v5567 = vsel %vm1373, %v5562, %v5566
        %v5569 = vshrl.u32 %v5348, 16
        %v5571 = vrot.slane %v5569, 4
        %v5572 = vshll.u32 %v5348, 16
        %v5574 = vrot.slane %v5572, 5
        %v5575 = vor.u32 %v5571, %v5574
        %v5576 = vrot.slane %v5575, 4
        %v5578 = vshll.u32 %v5396, 16
        %v5580 = vrot.slane %v5578, 5
        %v5581 = vsel %vm1373, %v5576, %v5580
        %v5583 = vshrl.u32 %v5349, 16
        %v5585 = vrot.slane %v5583, 4
        %v5586 = vshll.u32 %v5349, 16
        %v5588 = vrot.slane %v5586, 5
        %v5589 = vor.u32 %v5585, %v5588
        %v5590 = vrot.slane %v5589, 4
        %v5592 = vshll.u32 %v5397, 16
        %v5594 = vrot.slane %v5592, 5
        %v5595 = vsel %vm1373, %v5590, %v5594
        %v5597 = vshrl.u32 %v5350, 16
        %v5599 = vrot.slane %v5597, 4
        %v5600 = vshll.u32 %v5350, 16
        %v5602 = vrot.slane %v5600, 5
        %v5603 = vor.u32 %v5599, %v5602
        %v5604 = vrot.slane %v5603, 4
        %v5606 = vshll.u32 %v5398, 16
        %v5608 = vrot.slane %v5606, 5
        %v5609 = vsel %vm1373, %v5604, %v5608
        %v5611 = vshrl.u32 %v5351, 16
        %v5613 = vrot.slane %v5611, 4
        %v5614 = vshll.u32 %v5351, 16
        %v5616 = vrot.slane %v5614, 5
        %v5617 = vor.u32 %v5613, %v5616
        %v5618 = vrot.slane %v5617, 4
        %v5620 = vshll.u32 %v5399, 16
        %v5622 = vrot.slane %v5620, 5
        %v5623 = vsel %vm1373, %v5618, %v5622
        %s5624 = scalar_lea.vmem [#allocation12], 64
        %v5625 = vld [vmem:[%s5624] sm:$0xf]
        %v5626 = vld [vmem:[%s5624 + $0x4] sm:$0xf]
        %v5627 = vld [vmem:[%s5624 + $0x8] sm:$0xf]
        %v5628 = vld [vmem:[%s5624 + $0xc] sm:$0xf]
        %v5629 = vld [vmem:[%s5624 + $0x10] sm:$0xf]
        %v5630 = vld [vmem:[%s5624 + $0x14] sm:$0xf]
        %v5631 = vld [vmem:[%s5624 + $0x18] sm:$0xf]
        %v5632 = vld [vmem:[%s5624 + $0x1c] sm:$0xf]
        %v5633 = vld [vmem:[%s5624 + $0x20] sm:$0xf]
        %v5634 = vld [vmem:[%s5624 + $0x24] sm:$0xf]
        %v5635 = vld [vmem:[%s5624 + $0x28] sm:$0xf]
        %v5636 = vld [vmem:[%s5624 + $0x2c] sm:$0xf]
        %v5637 = vld [vmem:[%s5624 + $0x30] sm:$0xf]
        %v5638 = vld [vmem:[%s5624 + $0x34] sm:$0xf]
        %v5639 = vld [vmem:[%s5624 + $0x38] sm:$0xf]
        %v5640 = vld [vmem:[%s5624 + $0x3c] sm:$0xf]
        %v5641 = vunpack.c.l.b16 %v5413
        %v5642 = vunpack.c.l.b16 %v5427
        %v5643 = vunpack.c.l.b16 %v5441
        %v5644 = vunpack.c.l.b16 %v5455
        %v5645 = vunpack.c.l.b16 %v5469
        %v5646 = vunpack.c.l.b16 %v5483
        %v5647 = vunpack.c.l.b16 %v5497
        %v5648 = vunpack.c.l.b16 %v5511
        %v5649 = vunpack.c.l.b16 %v5525
        %v5650 = vunpack.c.l.b16 %v5539
        %v5651 = vunpack.c.l.b16 %v5553
        %v5652 = vunpack.c.l.b16 %v5567
        %v5653 = vunpack.c.l.b16 %v5581
        %v5654 = vunpack.c.l.b16 %v5595
        %v5655 = vunpack.c.l.b16 %v5609
        %v5656 = vunpack.c.l.b16 %v5623
        %v5657 = vpack.c.b16 %v5642, %v5641
        %v5658 = vpack.c.b16 %v5644, %v5643
        %v5659 = vpack.c.b16 %v5646, %v5645
        %v5660 = vpack.c.b16 %v5648, %v5647
        %v5661 = vpack.c.b16 %v5650, %v5649
        %v5662 = vpack.c.b16 %v5652, %v5651
        %v5663 = vpack.c.b16 %v5654, %v5653
        %v5664 = vpack.c.b16 %v5656, %v5655
        %v5689 = vunpack.c.l.b16 %v5625
        %v5690 = vunpack.c.l.b16 %v5626
        %v5691 = vunpack.c.l.b16 %v5627
        %v5692 = vunpack.c.l.b16 %v5628
        %v5693 = vunpack.c.l.b16 %v5629
        %v5694 = vunpack.c.l.b16 %v5630
        %v5695 = vunpack.c.l.b16 %v5631
        %v5696 = vunpack.c.l.b16 %v5632
        %v5697 = vunpack.c.l.b16 %v5633
        %v5698 = vunpack.c.l.b16 %v5634
        %v5699 = vunpack.c.l.b16 %v5635
        %v5700 = vunpack.c.l.b16 %v5636
        %v5701 = vunpack.c.l.b16 %v5637
        %v5702 = vunpack.c.l.b16 %v5638
        %v5703 = vunpack.c.l.b16 %v5639
        %v5704 = vunpack.c.l.b16 %v5640
        %v5705 = vpack.c.b16 %v5690, %v5689
        %v5706 = vpack.c.b16 %v5692, %v5691
        %v5707 = vpack.c.b16 %v5694, %v5693
        %v5708 = vpack.c.b16 %v5696, %v5695
        %v5709 = vpack.c.b16 %v5698, %v5697
        %v5710 = vpack.c.b16 %v5700, %v5699
        %v5711 = vpack.c.b16 %v5702, %v5701
        %v5712 = vpack.c.b16 %v5704, %v5703
        %5721 = vmatprep.subr.bf16.mxu0 0
        %5722 = vmatpush1.bf16.msra.mxu0 %v5712
        %5723 = vmatprep.subr.bf16.mxu0 0
        %5724 = vmatpush1.bf16.msra.mxu0 %v5711
        %5725 = vmatprep.subr.bf16.mxu0 0
        %5726 = vmatpush1.bf16.msra.mxu0 %v5710
        %5727 = vmatprep.subr.bf16.mxu0 0
        %5728 = vmatpush1.bf16.msra.mxu0 %v5709
        %5729 = vmatprep.subr.bf16.mxu0 0
        %5730 = vmatpush1.bf16.msra.mxu0 %v5708
        %5731 = vmatprep.subr.bf16.mxu0 0
        %5732 = vmatpush1.bf16.msra.mxu0 %v5707
        %5733 = vmatprep.subr.bf16.mxu0 0
        %5734 = vmatpush1.bf16.msra.mxu0 %v5706
        %5735 = vmatprep.subr.bf16.mxu0 0
        %5736 = vmatpush1.bf16.msra.mxu0 %v5705
        %5737 = vmatprep.subr.bf16.mxu0 0
        %5738 = vmatpush2.bf16.msra.mxu0 0
        %5739 = vmatprep.subr.bf16.mxu0 0
        %5740 = vmatpush2.bf16.msra.mxu0 0
        %5741 = vmatprep.subr.bf16.mxu0 0
        %5742 = vmatpush2.bf16.msra.mxu0 0
        %5743 = vmatprep.subr.bf16.mxu0 0
        %5744 = vmatpush2.bf16.msra.mxu0 0
        %5745 = vmatprep.subr.bf16.mxu0 0
        %5746 = vmatpush2.bf16.msra.mxu0 0
        %5747 = vmatprep.subr.bf16.mxu0 0
        %5748 = vmatpush2.bf16.msra.mxu0 0
        %5749 = vmatprep.subr.bf16.mxu0 0
        %5750 = vmatpush2.bf16.msra.mxu0 0
        %5751 = vmatprep.subr.bf16.mxu0 0
        %5752 = vmatpush2.bf16.msra.mxu0 0
        %5753 = vmatprep.mubr.bf16.mxu0 0
        %5754 = vmatmul.mubr.bf16.gmra.mxu0 %v5657
        %v5755 = vpop.f32.mrf.mxu0
        %v5756 = vadd.f32 0.0, %v5755
        %v5757 = vpop.f32.mrf.mxu0
        %v5758 = vpop.f32.mrf.mxu0
        %v5759 = vadd.f32 0.0, %v5758
        %v5760 = vpop.f32.mrf.mxu0
        %5761 = vmatprep.mubr.bf16.mxu0 0
        %5762 = vmatmul.mubr.bf16.gmra.mxu0 %v5658
        %v5763 = vpop.f32.mrf.mxu0
        %v5764 = vadd.f32 0.0, %v5763
        %v5765 = vpop.f32.mrf.mxu0
        %v5766 = vpop.f32.mrf.mxu0
        %v5767 = vadd.f32 0.0, %v5766
        %v5768 = vpop.f32.mrf.mxu0
        %5769 = vmatprep.mubr.bf16.mxu0 0
        %5770 = vmatmul.mubr.bf16.gmra.mxu0 %v5659
        %v5771 = vpop.f32.mrf.mxu0
        %v5772 = vadd.f32 0.0, %v5771
        %v5773 = vpop.f32.mrf.mxu0
        %v5774 = vpop.f32.mrf.mxu0
        %v5775 = vadd.f32 0.0, %v5774
        %v5776 = vpop.f32.mrf.mxu0
        %5777 = vmatprep.mubr.bf16.mxu0 0
        %5778 = vmatmul.mubr.bf16.gmra.mxu0 %v5660
        %v5779 = vpop.f32.mrf.mxu0
        %v5780 = vadd.f32 0.0, %v5779
        %v5781 = vpop.f32.mrf.mxu0
        %v5782 = vpop.f32.mrf.mxu0
        %v5783 = vadd.f32 0.0, %v5782
        %v5784 = vpop.f32.mrf.mxu0
        %5785 = vmatprep.mubr.bf16.mxu0 0
        %5786 = vmatmul.mubr.bf16.gmra.mxu0 %v5661
        %v5787 = vpop.f32.mrf.mxu0
        %v5788 = vadd.f32 0.0, %v5787
        %v5789 = vpop.f32.mrf.mxu0
        %v5790 = vpop.f32.mrf.mxu0
        %v5791 = vadd.f32 0.0, %v5790
        %v5792 = vpop.f32.mrf.mxu0
        %5793 = vmatprep.mubr.bf16.mxu0 0
        %5794 = vmatmul.mubr.bf16.gmra.mxu0 %v5662
        %v5795 = vpop.f32.mrf.mxu0
        %v5796 = vadd.f32 0.0, %v5795
        %v5797 = vpop.f32.mrf.mxu0
        %v5798 = vpop.f32.mrf.mxu0
        %v5799 = vadd.f32 0.0, %v5798
        %v5800 = vpop.f32.mrf.mxu0
        %5801 = vmatprep.mubr.bf16.mxu0 0
        %5802 = vmatmul.mubr.bf16.gmra.mxu0 %v5663
        %v5803 = vpop.f32.mrf.mxu0
        %v5804 = vadd.f32 0.0, %v5803
        %v5805 = vpop.f32.mrf.mxu0
        %v5806 = vpop.f32.mrf.mxu0
        %v5807 = vadd.f32 0.0, %v5806
        %v5808 = vpop.f32.mrf.mxu0
        %5809 = vmatprep.mubr.bf16.mxu0 0
        %5810 = vmatmul.mubr.bf16.gmra.mxu0 %v5664
        %v5811 = vpop.f32.mrf.mxu0
        %v5812 = vadd.f32 0.0, %v5811
        %v5813 = vpop.f32.mrf.mxu0
        %v5814 = vpop.f32.mrf.mxu0
        %v5815 = vadd.f32 0.0, %v5814
        %v5816 = vpop.f32.mrf.mxu0
        %5817 = vdwg.mxu0
        %v5834 = vunpack.c.l.b16 %v5352
        %v5835 = vunpack.c.l.b16 %v5353
        %v5836 = vunpack.c.l.b16 %v5354
        %v5837 = vunpack.c.l.b16 %v5355
        %v5838 = vunpack.c.l.b16 %v5356
        %v5839 = vunpack.c.l.b16 %v5357
        %v5840 = vunpack.c.l.b16 %v5358
        %v5841 = vunpack.c.l.b16 %v5359
        %v5842 = vunpack.c.l.b16 %v5360
        %v5843 = vunpack.c.l.b16 %v5361
        %v5844 = vunpack.c.l.b16 %v5362
        %v5845 = vunpack.c.l.b16 %v5363
        %v5846 = vunpack.c.l.b16 %v5364
        %v5847 = vunpack.c.l.b16 %v5365
        %v5848 = vunpack.c.l.b16 %v5366
        %v5849 = vunpack.c.l.b16 %v5367
        %v5850 = vpack.c.b16 %v5835, %v5834
        %v5851 = vpack.c.b16 %v5837, %v5836
        %v5852 = vpack.c.b16 %v5839, %v5838
        %v5853 = vpack.c.b16 %v5841, %v5840
        %v5854 = vpack.c.b16 %v5843, %v5842
        %v5855 = vpack.c.b16 %v5845, %v5844
        %v5856 = vpack.c.b16 %v5847, %v5846
        %v5857 = vpack.c.b16 %v5849, %v5848
        %v5882 = vunpack.c.l.b16 %v5368
        %v5883 = vunpack.c.l.b16 %v5369
        %v5884 = vunpack.c.l.b16 %v5370
        %v5885 = vunpack.c.l.b16 %v5371
        %v5886 = vunpack.c.l.b16 %v5372
        %v5887 = vunpack.c.l.b16 %v5373
        %v5888 = vunpack.c.l.b16 %v5374
        %v5889 = vunpack.c.l.b16 %v5375
        %v5890 = vunpack.c.l.b16 %v5376
        %v5891 = vunpack.c.l.b16 %v5377
        %v5892 = vunpack.c.l.b16 %v5378
        %v5893 = vunpack.c.l.b16 %v5379
        %v5894 = vunpack.c.l.b16 %v5380
        %v5895 = vunpack.c.l.b16 %v5381
        %v5896 = vunpack.c.l.b16 %v5382
        %v5897 = vunpack.c.l.b16 %v5383
        %v5898 = vpack.c.b16 %v5883, %v5882
        %v5899 = vpack.c.b16 %v5885, %v5884
        %v5900 = vpack.c.b16 %v5887, %v5886
        %v5901 = vpack.c.b16 %v5889, %v5888
        %v5902 = vpack.c.b16 %v5891, %v5890
        %v5903 = vpack.c.b16 %v5893, %v5892
        %v5904 = vpack.c.b16 %v5895, %v5894
        %v5905 = vpack.c.b16 %v5897, %v5896
        %5914 = vmatprep.subr.bf16.mxu0 0
        %5915 = vmatpush1.bf16.msra.mxu0 %v5905
        %5916 = vmatprep.subr.bf16.mxu0 0
        %5917 = vmatpush1.bf16.msra.mxu0 %v5904
        %5918 = vmatprep.subr.bf16.mxu0 0
        %5919 = vmatpush1.bf16.msra.mxu0 %v5903
        %5920 = vmatprep.subr.bf16.mxu0 0
        %5921 = vmatpush1.bf16.msra.mxu0 %v5902
        %5922 = vmatprep.subr.bf16.mxu0 0
        %5923 = vmatpush1.bf16.msra.mxu0 %v5901
        %5924 = vmatprep.subr.bf16.mxu0 0
        %5925 = vmatpush1.bf16.msra.mxu0 %v5900
        %5926 = vmatprep.subr.bf16.mxu0 0
        %5927 = vmatpush1.bf16.msra.mxu0 %v5899
        %5928 = vmatprep.subr.bf16.mxu0 0
        %5929 = vmatpush1.bf16.msra.mxu0 %v5898
        %5930 = vmatprep.subr.bf16.mxu0 0
        %5931 = vmatpush2.bf16.msra.mxu0 0
        %5932 = vmatprep.subr.bf16.mxu0 0
        %5933 = vmatpush2.bf16.msra.mxu0 0
        %5934 = vmatprep.subr.bf16.mxu0 0
        %5935 = vmatpush2.bf16.msra.mxu0 0
        %5936 = vmatprep.subr.bf16.mxu0 0
        %5937 = vmatpush2.bf16.msra.mxu0 0
        %5938 = vmatprep.subr.bf16.mxu0 0
        %5939 = vmatpush2.bf16.msra.mxu0 0
        %5940 = vmatprep.subr.bf16.mxu0 0
        %5941 = vmatpush2.bf16.msra.mxu0 0
        %5942 = vmatprep.subr.bf16.mxu0 0
        %5943 = vmatpush2.bf16.msra.mxu0 0
        %5944 = vmatprep.subr.bf16.mxu0 0
        %5945 = vmatpush2.bf16.msra.mxu0 0
        %5946 = vmatprep.mubr.bf16.mxu0 0
        %5947 = vmatmul.mubr.bf16.gmra.mxu0 %v5850
        %v5948 = vpop.f32.mrf.mxu0
        %v5949 = vadd.f32 %v5756, %v5948
        %v5950 = vpop.f32.mrf.mxu0
        %v5951 = vpop.f32.mrf.mxu0
        %v5952 = vadd.f32 %v5759, %v5951
        %v5953 = vpop.f32.mrf.mxu0
        %5954 = vmatprep.mubr.bf16.mxu0 0
        %5955 = vmatmul.mubr.bf16.gmra.mxu0 %v5851
        %v5956 = vpop.f32.mrf.mxu0
        %v5957 = vadd.f32 %v5764, %v5956
        %v5958 = vpop.f32.mrf.mxu0
        %v5959 = vpop.f32.mrf.mxu0
        %v5960 = vadd.f32 %v5767, %v5959
        %v5961 = vpop.f32.mrf.mxu0
        %5962 = vmatprep.mubr.bf16.mxu0 0
        %5963 = vmatmul.mubr.bf16.gmra.mxu0 %v5852
        %v5964 = vpop.f32.mrf.mxu0
        %v5965 = vadd.f32 %v5772, %v5964
        %v5966 = vpop.f32.mrf.mxu0
        %v5967 = vpop.f32.mrf.mxu0
        %v5968 = vadd.f32 %v5775, %v5967
        %v5969 = vpop.f32.mrf.mxu0
        %5970 = vmatprep.mubr.bf16.mxu0 0
        %5971 = vmatmul.mubr.bf16.gmra.mxu0 %v5853
        %v5972 = vpop.f32.mrf.mxu0
        %v5973 = vadd.f32 %v5780, %v5972
        %v5974 = vpop.f32.mrf.mxu0
        %v5975 = vpop.f32.mrf.mxu0
        %v5976 = vadd.f32 %v5783, %v5975
        %v5977 = vpop.f32.mrf.mxu0
        %5978 = vmatprep.mubr.bf16.mxu0 0
        %5979 = vmatmul.mubr.bf16.gmra.mxu0 %v5854
        %v5980 = vpop.f32.mrf.mxu0
        %v5981 = vadd.f32 %v5788, %v5980
        %v5982 = vpop.f32.mrf.mxu0
        %v5983 = vpop.f32.mrf.mxu0
        %v5984 = vadd.f32 %v5791, %v5983
        %v5985 = vpop.f32.mrf.mxu0
        %5986 = vmatprep.mubr.bf16.mxu0 0
        %5987 = vmatmul.mubr.bf16.gmra.mxu0 %v5855
        %v5988 = vpop.f32.mrf.mxu0
        %v5989 = vadd.f32 %v5796, %v5988
        %v5990 = vpop.f32.mrf.mxu0
        %v5991 = vpop.f32.mrf.mxu0
        %v5992 = vadd.f32 %v5799, %v5991
        %v5993 = vpop.f32.mrf.mxu0
        %5994 = vmatprep.mubr.bf16.mxu0 0
        %5995 = vmatmul.mubr.bf16.gmra.mxu0 %v5856
        %v5996 = vpop.f32.mrf.mxu0
        %v5997 = vadd.f32 %v5804, %v5996
        %v5998 = vpop.f32.mrf.mxu0
        %v5999 = vpop.f32.mrf.mxu0
        %v6000 = vadd.f32 %v5807, %v5999
        %v6001 = vpop.f32.mrf.mxu0
        %6002 = vmatprep.mubr.bf16.mxu0 0
        %6003 = vmatmul.mubr.bf16.gmra.mxu0 %v5857
        %v6004 = vpop.f32.mrf.mxu0
        %v6005 = vadd.f32 %v5812, %v6004
        %v6006 = vpop.f32.mrf.mxu0
        %v6007 = vpop.f32.mrf.mxu0
        %v6008 = vadd.f32 %v5815, %v6007
        %v6009 = vpop.f32.mrf.mxu0
        %6010 = vdwg.mxu0
        %v6011 = vld [vmem:[#allocation3] sm:$0xe]
        %v6012 = vld [vmem:[#allocation3 + $0x8] sm:$0xe]
        %v6013 = vld [vmem:[#allocation3 + $0x10] sm:$0xe]
        %v6014 = vld [vmem:[#allocation3 + $0x18] sm:$0xe]
        %v6015 = vld [vmem:[#allocation3 + $0x20] sm:$0xe]
        %v6016 = vld [vmem:[#allocation3 + $0x28] sm:$0xe]
        %v6017 = vld [vmem:[#allocation3 + $0x30] sm:$0xe]
        %v6018 = vld [vmem:[#allocation3 + $0x38] sm:$0xe]
        %v6019 = vld [vmem:[#allocation3 + $0x50] sm:$0xe]
        %v6020 = vld [vmem:[#allocation3 + $0x58] sm:$0xe]
        %v6021 = vld [vmem:[#allocation3 + $0x60] sm:$0xe]
        %v6022 = vld [vmem:[#allocation3 + $0x68] sm:$0xe]
        %v6023 = vld [vmem:[#allocation3 + $0x70] sm:$0xe]
        %v6024 = vld [vmem:[#allocation3 + $0x78] sm:$0xe]
        %v6025 = vld [vmem:[#allocation3 + $0x80] sm:$0xe]
        %v6026 = vld [vmem:[#allocation3 + $0x88] sm:$0xe]
        %v6027 = vsel %vm2005, %v6011, 0
        %v6028 = vsel %vm2006, %v5384, 0
        %v6029 = vsel %vm2005, %v6012, 0
        %v6030 = vsel %vm2006, %v5385, 0
        %v6031 = vsel %vm2005, %v6013, 0
        %v6032 = vsel %vm2006, %v5386, 0
        %v6033 = vsel %vm2005, %v6014, 0
        %v6034 = vsel %vm2006, %v5387, 0
        %v6035 = vsel %vm2005, %v6015, 0
        %v6036 = vsel %vm2006, %v5388, 0
        %v6037 = vsel %vm2005, %v6016, 0
        %v6038 = vsel %vm2006, %v5389, 0
        %v6039 = vsel %vm2005, %v6017, 0
        %v6040 = vsel %vm2006, %v5390, 0
        %v6041 = vsel %vm2005, %v6018, 0
        %v6042 = vsel %vm2006, %v5391, 0
        %v6043 = vsel %vm2005, %v6019, 0
        %v6044 = vsel %vm2006, %v5392, 0
        %v6045 = vsel %vm2005, %v6020, 0
        %v6046 = vsel %vm2006, %v5393, 0
        %v6047 = vsel %vm2005, %v6021, 0
        %v6048 = vsel %vm2006, %v5394, 0
        %v6049 = vsel %vm2005, %v6022, 0
        %v6050 = vsel %vm2006, %v5395, 0
        %v6051 = vsel %vm2005, %v6023, 0
        %v6052 = vsel %vm2006, %v5396, 0
        %v6053 = vsel %vm2005, %v6024, 0
        %v6054 = vsel %vm2006, %v5397, 0
        %v6055 = vsel %vm2005, %v6025, 0
        %v6056 = vsel %vm2006, %v5398, 0
        %v6057 = vsel %vm2005, %v6026, 0
        %v6058 = vsel %vm2006, %v5399, 0
        %v6091 = vrot.slane %v6027, 5
        %v6092 = vrot.slane %v6091, 4
        %v6093 = vrot.slane %v6028, 5
        %v6094 = vsel %vm2073, %v6092, %v6093
        %v6095 = vrot.slane %v6029, 5
        %v6096 = vrot.slane %v6095, 4
        %v6097 = vrot.slane %v6030, 5
        %v6098 = vsel %vm2073, %v6096, %v6097
        %v6099 = vrot.slane %v6031, 5
        %v6100 = vrot.slane %v6099, 4
        %v6101 = vrot.slane %v6032, 5
        %v6102 = vsel %vm2073, %v6100, %v6101
        %v6103 = vrot.slane %v6033, 5
        %v6104 = vrot.slane %v6103, 4
        %v6105 = vrot.slane %v6034, 5
        %v6106 = vsel %vm2073, %v6104, %v6105
        %v6107 = vrot.slane %v6035, 5
        %v6108 = vrot.slane %v6107, 4
        %v6109 = vrot.slane %v6036, 5
        %v6110 = vsel %vm2073, %v6108, %v6109
        %v6111 = vrot.slane %v6037, 5
        %v6112 = vrot.slane %v6111, 4
        %v6113 = vrot.slane %v6038, 5
        %v6114 = vsel %vm2073, %v6112, %v6113
        %v6115 = vrot.slane %v6039, 5
        %v6116 = vrot.slane %v6115, 4
        %v6117 = vrot.slane %v6040, 5
        %v6118 = vsel %vm2073, %v6116, %v6117
        %v6119 = vrot.slane %v6041, 5
        %v6120 = vrot.slane %v6119, 4
        %v6121 = vrot.slane %v6042, 5
        %v6122 = vsel %vm2073, %v6120, %v6121
        %v6123 = vrot.slane %v6043, 5
        %v6124 = vrot.slane %v6123, 4
        %v6125 = vrot.slane %v6044, 5
        %v6126 = vsel %vm2073, %v6124, %v6125
        %v6127 = vrot.slane %v6045, 5
        %v6128 = vrot.slane %v6127, 4
        %v6129 = vrot.slane %v6046, 5
        %v6130 = vsel %vm2073, %v6128, %v6129
        %v6131 = vrot.slane %v6047, 5
        %v6132 = vrot.slane %v6131, 4
        %v6133 = vrot.slane %v6048, 5
        %v6134 = vsel %vm2073, %v6132, %v6133
        %v6135 = vrot.slane %v6049, 5
        %v6136 = vrot.slane %v6135, 4
        %v6137 = vrot.slane %v6050, 5
        %v6138 = vsel %vm2073, %v6136, %v6137
        %v6139 = vrot.slane %v6051, 5
        %v6140 = vrot.slane %v6139, 4
        %v6141 = vrot.slane %v6052, 5
        %v6142 = vsel %vm2073, %v6140, %v6141
        %v6143 = vrot.slane %v6053, 5
        %v6144 = vrot.slane %v6143, 4
        %v6145 = vrot.slane %v6054, 5
        %v6146 = vsel %vm2073, %v6144, %v6145
        %v6147 = vrot.slane %v6055, 5
        %v6148 = vrot.slane %v6147, 4
        %v6149 = vrot.slane %v6056, 5
        %v6150 = vsel %vm2073, %v6148, %v6149
        %v6151 = vrot.slane %v6057, 5
        %v6152 = vrot.slane %v6151, 4
        %v6153 = vrot.slane %v6058, 5
        %v6154 = vsel %vm2073, %v6152, %v6153
        %s6155 = scalar_lea.vmem [#allocation12], 128
        %v6156 = vld [vmem:[%s6155] sm:$0xf]
        %v6157 = vld [vmem:[%s6155 + $0x4] sm:$0xf]
        %v6158 = vld [vmem:[%s6155 + $0x8] sm:$0xf]
        %v6159 = vld [vmem:[%s6155 + $0xc] sm:$0xf]
        %v6160 = vld [vmem:[%s6155 + $0x10] sm:$0xf]
        %v6161 = vld [vmem:[%s6155 + $0x14] sm:$0xf]
        %v6162 = vld [vmem:[%s6155 + $0x18] sm:$0xf]
        %v6163 = vld [vmem:[%s6155 + $0x1c] sm:$0xf]
        %v6164 = vld [vmem:[%s6155 + $0x20] sm:$0xf]
        %v6165 = vld [vmem:[%s6155 + $0x24] sm:$0xf]
        %v6166 = vld [vmem:[%s6155 + $0x28] sm:$0xf]
        %v6167 = vld [vmem:[%s6155 + $0x2c] sm:$0xf]
        %v6168 = vld [vmem:[%s6155 + $0x30] sm:$0xf]
        %v6169 = vld [vmem:[%s6155 + $0x34] sm:$0xf]
        %v6170 = vld [vmem:[%s6155 + $0x38] sm:$0xf]
        %v6171 = vld [vmem:[%s6155 + $0x3c] sm:$0xf]
        %v6172 = vunpack.c.l.b16 %v6094
        %v6173 = vunpack.c.l.b16 %v6098
        %v6174 = vunpack.c.l.b16 %v6102
        %v6175 = vunpack.c.l.b16 %v6106
        %v6176 = vunpack.c.l.b16 %v6110
        %v6177 = vunpack.c.l.b16 %v6114
        %v6178 = vunpack.c.l.b16 %v6118
        %v6179 = vunpack.c.l.b16 %v6122
        %v6180 = vunpack.c.l.b16 %v6126
        %v6181 = vunpack.c.l.b16 %v6130
        %v6182 = vunpack.c.l.b16 %v6134
        %v6183 = vunpack.c.l.b16 %v6138
        %v6184 = vunpack.c.l.b16 %v6142
        %v6185 = vunpack.c.l.b16 %v6146
        %v6186 = vunpack.c.l.b16 %v6150
        %v6187 = vunpack.c.l.b16 %v6154
        %v6188 = vpack.c.b16 %v6173, %v6172
        %v6189 = vpack.c.b16 %v6175, %v6174
        %v6190 = vpack.c.b16 %v6177, %v6176
        %v6191 = vpack.c.b16 %v6179, %v6178
        %v6192 = vpack.c.b16 %v6181, %v6180
        %v6193 = vpack.c.b16 %v6183, %v6182
        %v6194 = vpack.c.b16 %v6185, %v6184
        %v6195 = vpack.c.b16 %v6187, %v6186
        %v6220 = vunpack.c.l.b16 %v6156
        %v6221 = vunpack.c.l.b16 %v6157
        %v6222 = vunpack.c.l.b16 %v6158
        %v6223 = vunpack.c.l.b16 %v6159
        %v6224 = vunpack.c.l.b16 %v6160
        %v6225 = vunpack.c.l.b16 %v6161
        %v6226 = vunpack.c.l.b16 %v6162
        %v6227 = vunpack.c.l.b16 %v6163
        %v6228 = vunpack.c.l.b16 %v6164
        %v6229 = vunpack.c.l.b16 %v6165
        %v6230 = vunpack.c.l.b16 %v6166
        %v6231 = vunpack.c.l.b16 %v6167
        %v6232 = vunpack.c.l.b16 %v6168
        %v6233 = vunpack.c.l.b16 %v6169
        %v6234 = vunpack.c.l.b16 %v6170
        %v6235 = vunpack.c.l.b16 %v6171
        %v6236 = vpack.c.b16 %v6221, %v6220
        %v6237 = vpack.c.b16 %v6223, %v6222
        %v6238 = vpack.c.b16 %v6225, %v6224
        %v6239 = vpack.c.b16 %v6227, %v6226
        %v6240 = vpack.c.b16 %v6229, %v6228
        %v6241 = vpack.c.b16 %v6231, %v6230
        %v6242 = vpack.c.b16 %v6233, %v6232
        %v6243 = vpack.c.b16 %v6235, %v6234
        %6252 = vmatprep.subr.bf16.mxu0 0
        %6253 = vmatpush1.bf16.msra.mxu0 %v6243
        %6254 = vmatprep.subr.bf16.mxu0 0
        %6255 = vmatpush1.bf16.msra.mxu0 %v6242
        %6256 = vmatprep.subr.bf16.mxu0 0
        %6257 = vmatpush1.bf16.msra.mxu0 %v6241
        %6258 = vmatprep.subr.bf16.mxu0 0
        %6259 = vmatpush1.bf16.msra.mxu0 %v6240
        %6260 = vmatprep.subr.bf16.mxu0 0
        %6261 = vmatpush1.bf16.msra.mxu0 %v6239
        %6262 = vmatprep.subr.bf16.mxu0 0
        %6263 = vmatpush1.bf16.msra.mxu0 %v6238
        %6264 = vmatprep.subr.bf16.mxu0 0
        %6265 = vmatpush1.bf16.msra.mxu0 %v6237
        %6266 = vmatprep.subr.bf16.mxu0 0
        %6267 = vmatpush1.bf16.msra.mxu0 %v6236
        %6268 = vmatprep.subr.bf16.mxu0 0
        %6269 = vmatpush2.bf16.msra.mxu0 0
        %6270 = vmatprep.subr.bf16.mxu0 0
        %6271 = vmatpush2.bf16.msra.mxu0 0
        %6272 = vmatprep.subr.bf16.mxu0 0
        %6273 = vmatpush2.bf16.msra.mxu0 0
        %6274 = vmatprep.subr.bf16.mxu0 0
        %6275 = vmatpush2.bf16.msra.mxu0 0
        %6276 = vmatprep.subr.bf16.mxu0 0
        %6277 = vmatpush2.bf16.msra.mxu0 0
        %6278 = vmatprep.subr.bf16.mxu0 0
        %6279 = vmatpush2.bf16.msra.mxu0 0
        %6280 = vmatprep.subr.bf16.mxu0 0
        %6281 = vmatpush2.bf16.msra.mxu0 0
        %6282 = vmatprep.subr.bf16.mxu0 0
        %6283 = vmatpush2.bf16.msra.mxu0 0
        %6284 = vmatprep.mubr.bf16.mxu0 0
        %6285 = vmatmul.mubr.bf16.gmra.mxu0 %v6188
        %v6286 = vpop.f32.mrf.mxu0
        %v6287 = vadd.f32 0.0, %v6286
        %v6288 = vpop.f32.mrf.mxu0
        %v6289 = vpop.f32.mrf.mxu0
        %v6290 = vadd.f32 0.0, %v6289
        %v6291 = vpop.f32.mrf.mxu0
        %6292 = vmatprep.mubr.bf16.mxu0 0
        %6293 = vmatmul.mubr.bf16.gmra.mxu0 %v6189
        %v6294 = vpop.f32.mrf.mxu0
        %v6295 = vadd.f32 0.0, %v6294
        %v6296 = vpop.f32.mrf.mxu0
        %v6297 = vpop.f32.mrf.mxu0
        %v6298 = vadd.f32 0.0, %v6297
        %v6299 = vpop.f32.mrf.mxu0
        %6300 = vmatprep.mubr.bf16.mxu0 0
        %6301 = vmatmul.mubr.bf16.gmra.mxu0 %v6190
        %v6302 = vpop.f32.mrf.mxu0
        %v6303 = vadd.f32 0.0, %v6302
        %v6304 = vpop.f32.mrf.mxu0
        %v6305 = vpop.f32.mrf.mxu0
        %v6306 = vadd.f32 0.0, %v6305
        %v6307 = vpop.f32.mrf.mxu0
        %6308 = vmatprep.mubr.bf16.mxu0 0
        %6309 = vmatmul.mubr.bf16.gmra.mxu0 %v6191
        %v6310 = vpop.f32.mrf.mxu0
        %v6311 = vadd.f32 0.0, %v6310
        %v6312 = vpop.f32.mrf.mxu0
        %v6313 = vpop.f32.mrf.mxu0
        %v6314 = vadd.f32 0.0, %v6313
        %v6315 = vpop.f32.mrf.mxu0
        %6316 = vmatprep.mubr.bf16.mxu0 0
        %6317 = vmatmul.mubr.bf16.gmra.mxu0 %v6192
        %v6318 = vpop.f32.mrf.mxu0
        %v6319 = vadd.f32 0.0, %v6318
        %v6320 = vpop.f32.mrf.mxu0
        %v6321 = vpop.f32.mrf.mxu0
        %v6322 = vadd.f32 0.0, %v6321
        %v6323 = vpop.f32.mrf.mxu0
        %6324 = vmatprep.mubr.bf16.mxu0 0
        %6325 = vmatmul.mubr.bf16.gmra.mxu0 %v6193
        %v6326 = vpop.f32.mrf.mxu0
        %v6327 = vadd.f32 0.0, %v6326
        %v6328 = vpop.f32.mrf.mxu0
        %v6329 = vpop.f32.mrf.mxu0
        %v6330 = vadd.f32 0.0, %v6329
        %v6331 = vpop.f32.mrf.mxu0
        %6332 = vmatprep.mubr.bf16.mxu0 0
        %6333 = vmatmul.mubr.bf16.gmra.mxu0 %v6194
        %v6334 = vpop.f32.mrf.mxu0
        %v6335 = vadd.f32 0.0, %v6334
        %v6336 = vpop.f32.mrf.mxu0
        %v6337 = vpop.f32.mrf.mxu0
        %v6338 = vadd.f32 0.0, %v6337
        %v6339 = vpop.f32.mrf.mxu0
        %6340 = vmatprep.mubr.bf16.mxu0 0
        %6341 = vmatmul.mubr.bf16.gmra.mxu0 %v6195
        %v6342 = vpop.f32.mrf.mxu0
        %v6343 = vadd.f32 0.0, %v6342
        %v6344 = vpop.f32.mrf.mxu0
        %v6345 = vpop.f32.mrf.mxu0
        %v6346 = vadd.f32 0.0, %v6345
        %v6347 = vpop.f32.mrf.mxu0
        %6348 = vdwg.mxu0
        %v6349 = vadd.f32 %v5949, %v6287
        %v6350 = vadd.f32 %v5952, %v6290
        %v6351 = vadd.f32 %v5957, %v6295
        %v6352 = vadd.f32 %v5960, %v6298
        %v6353 = vadd.f32 %v5965, %v6303
        %v6354 = vadd.f32 %v5968, %v6306
        %v6355 = vadd.f32 %v5973, %v6311
        %v6356 = vadd.f32 %v5976, %v6314
        %v6357 = vadd.f32 %v5981, %v6319
        %v6358 = vadd.f32 %v5984, %v6322
        %v6359 = vadd.f32 %v5989, %v6327
        %v6360 = vadd.f32 %v5992, %v6330
        %v6361 = vadd.f32 %v5997, %v6335
        %v6362 = vadd.f32 %v6000, %v6338
        %v6363 = vadd.f32 %v6005, %v6343
        %v6364 = vadd.f32 %v6008, %v6346
        %v6365 = vld [vmem:[%s5239] sm:$0xf]
        %v6366 = vld [vmem:[%s5239 + $0x8] sm:$0xf]
        %v6367 = vld [vmem:[%s5239 + $0x10] sm:$0xf]
        %v6368 = vld [vmem:[%s5239 + $0x18] sm:$0xf]
        %v6369 = vld [vmem:[%s5239 + $0x20] sm:$0xf]
        %v6370 = vld [vmem:[%s5239 + $0x28] sm:$0xf]
        %v6371 = vld [vmem:[%s5239 + $0x30] sm:$0xf]
        %v6372 = vld [vmem:[%s5239 + $0x38] sm:$0xf]
        %v6373 = vld [vmem:[%s5239 + $0x50] sm:$0xf]
        %v6374 = vld [vmem:[%s5239 + $0x58] sm:$0xf]
        %v6375 = vld [vmem:[%s5239 + $0x60] sm:$0xf]
        %v6376 = vld [vmem:[%s5239 + $0x68] sm:$0xf]
        %v6377 = vld [vmem:[%s5239 + $0x70] sm:$0xf]
        %v6378 = vld [vmem:[%s5239 + $0x78] sm:$0xf]
        %v6379 = vld [vmem:[%s5239 + $0x80] sm:$0xf]
        %v6380 = vld [vmem:[%s5239 + $0x88] sm:$0xf]
        %v6381 = vsel %vm1322, %v6365, 0
        %v6382 = vsel %vm1322, %v6366, 0
        %v6383 = vsel %vm1322, %v6367, 0
        %v6384 = vsel %vm1322, %v6368, 0
        %v6385 = vsel %vm1322, %v6369, 0
        %v6386 = vsel %vm1322, %v6370, 0
        %v6387 = vsel %vm1322, %v6371, 0
        %v6388 = vsel %vm1322, %v6372, 0
        %v6389 = vsel %vm1322, %v6373, 0
        %v6390 = vsel %vm1322, %v6374, 0
        %v6391 = vsel %vm1322, %v6375, 0
        %v6392 = vsel %vm1322, %v6376, 0
        %v6393 = vsel %vm1322, %v6377, 0
        %v6394 = vsel %vm1322, %v6378, 0
        %v6395 = vsel %vm1322, %v6379, 0
        %v6396 = vsel %vm1322, %v6380, 0
        %s6397 = scalar_lea.vmem [#allocation12], 192
        %v6398 = vld [vmem:[%s6397] sm:$0xf]
        %v6399 = vld [vmem:[%s6397 + $0x4] sm:$0xf]
        %v6400 = vld [vmem:[%s6397 + $0x8] sm:$0xf]
        %v6401 = vld [vmem:[%s6397 + $0xc] sm:$0xf]
        %v6402 = vld [vmem:[%s6397 + $0x10] sm:$0xf]
        %v6403 = vld [vmem:[%s6397 + $0x14] sm:$0xf]
        %v6404 = vld [vmem:[%s6397 + $0x18] sm:$0xf]
        %v6405 = vld [vmem:[%s6397 + $0x1c] sm:$0xf]
        %v6406 = vld [vmem:[%s6397 + $0x20] sm:$0xf]
        %v6407 = vld [vmem:[%s6397 + $0x24] sm:$0xf]
        %v6408 = vld [vmem:[%s6397 + $0x28] sm:$0xf]
        %v6409 = vld [vmem:[%s6397 + $0x2c] sm:$0xf]
        %v6410 = vld [vmem:[%s6397 + $0x30] sm:$0xf]
        %v6411 = vld [vmem:[%s6397 + $0x34] sm:$0xf]
        %v6412 = vld [vmem:[%s6397 + $0x38] sm:$0xf]
        %v6413 = vld [vmem:[%s6397 + $0x3c] sm:$0xf]
        %v6430 = vunpack.c.l.b16 %v6381
        %v6431 = vunpack.c.l.b16 %v6382
        %v6432 = vunpack.c.l.b16 %v6383
        %v6433 = vunpack.c.l.b16 %v6384
        %v6434 = vunpack.c.l.b16 %v6385
        %v6435 = vunpack.c.l.b16 %v6386
        %v6436 = vunpack.c.l.b16 %v6387
        %v6437 = vunpack.c.l.b16 %v6388
        %v6438 = vunpack.c.l.b16 %v6389
        %v6439 = vunpack.c.l.b16 %v6390
        %v6440 = vunpack.c.l.b16 %v6391
        %v6441 = vunpack.c.l.b16 %v6392
        %v6442 = vunpack.c.l.b16 %v6393
        %v6443 = vunpack.c.l.b16 %v6394
        %v6444 = vunpack.c.l.b16 %v6395
        %v6445 = vunpack.c.l.b16 %v6396
        %v6446 = vpack.c.b16 %v6431, %v6430
        %v6447 = vpack.c.b16 %v6433, %v6432
        %v6448 = vpack.c.b16 %v6435, %v6434
        %v6449 = vpack.c.b16 %v6437, %v6436
        %v6450 = vpack.c.b16 %v6439, %v6438
        %v6451 = vpack.c.b16 %v6441, %v6440
        %v6452 = vpack.c.b16 %v6443, %v6442
        %v6453 = vpack.c.b16 %v6445, %v6444
        %v6478 = vunpack.c.l.b16 %v6398
        %v6479 = vunpack.c.l.b16 %v6399
        %v6480 = vunpack.c.l.b16 %v6400
        %v6481 = vunpack.c.l.b16 %v6401
        %v6482 = vunpack.c.l.b16 %v6402
        %v6483 = vunpack.c.l.b16 %v6403
        %v6484 = vunpack.c.l.b16 %v6404
        %v6485 = vunpack.c.l.b16 %v6405
        %v6486 = vunpack.c.l.b16 %v6406
        %v6487 = vunpack.c.l.b16 %v6407
        %v6488 = vunpack.c.l.b16 %v6408
        %v6489 = vunpack.c.l.b16 %v6409
        %v6490 = vunpack.c.l.b16 %v6410
        %v6491 = vunpack.c.l.b16 %v6411
        %v6492 = vunpack.c.l.b16 %v6412
        %v6493 = vunpack.c.l.b16 %v6413
        %v6494 = vpack.c.b16 %v6479, %v6478
        %v6495 = vpack.c.b16 %v6481, %v6480
        %v6496 = vpack.c.b16 %v6483, %v6482
        %v6497 = vpack.c.b16 %v6485, %v6484
        %v6498 = vpack.c.b16 %v6487, %v6486
        %v6499 = vpack.c.b16 %v6489, %v6488
        %v6500 = vpack.c.b16 %v6491, %v6490
        %v6501 = vpack.c.b16 %v6493, %v6492
        %6510 = vmatprep.subr.bf16.mxu0 0
        %6511 = vmatpush1.bf16.msra.mxu0 %v6501
        %6512 = vmatprep.subr.bf16.mxu0 0
        %6513 = vmatpush1.bf16.msra.mxu0 %v6500
        %6514 = vmatprep.subr.bf16.mxu0 0
        %6515 = vmatpush1.bf16.msra.mxu0 %v6499
        %6516 = vmatprep.subr.bf16.mxu0 0
        %6517 = vmatpush1.bf16.msra.mxu0 %v6498
        %6518 = vmatprep.subr.bf16.mxu0 0
        %6519 = vmatpush1.bf16.msra.mxu0 %v6497
        %6520 = vmatprep.subr.bf16.mxu0 0
        %6521 = vmatpush1.bf16.msra.mxu0 %v6496
        %6522 = vmatprep.subr.bf16.mxu0 0
        %6523 = vmatpush1.bf16.msra.mxu0 %v6495
        %6524 = vmatprep.subr.bf16.mxu0 0
        %6525 = vmatpush1.bf16.msra.mxu0 %v6494
        %6526 = vmatprep.subr.bf16.mxu0 0
        %6527 = vmatpush2.bf16.msra.mxu0 0
        %6528 = vmatprep.subr.bf16.mxu0 0
        %6529 = vmatpush2.bf16.msra.mxu0 0
        %6530 = vmatprep.subr.bf16.mxu0 0
        %6531 = vmatpush2.bf16.msra.mxu0 0
        %6532 = vmatprep.subr.bf16.mxu0 0
        %6533 = vmatpush2.bf16.msra.mxu0 0
        %6534 = vmatprep.subr.bf16.mxu0 0
        %6535 = vmatpush2.bf16.msra.mxu0 0
        %6536 = vmatprep.subr.bf16.mxu0 0
        %6537 = vmatpush2.bf16.msra.mxu0 0
        %6538 = vmatprep.subr.bf16.mxu0 0
        %6539 = vmatpush2.bf16.msra.mxu0 0
        %6540 = vmatprep.subr.bf16.mxu0 0
        %6541 = vmatpush2.bf16.msra.mxu0 0
        %6542 = vmatprep.mubr.bf16.mxu0 0
        %6543 = vmatmul.mubr.bf16.gmra.mxu0 %v6446
        %v6544 = vpop.f32.mrf.mxu0
        %v6545 = vadd.f32 0.0, %v6544
        %v6546 = vpop.f32.mrf.mxu0
        %v6547 = vpop.f32.mrf.mxu0
        %v6548 = vadd.f32 0.0, %v6547
        %v6549 = vpop.f32.mrf.mxu0
        %6550 = vmatprep.mubr.bf16.mxu0 0
        %6551 = vmatmul.mubr.bf16.gmra.mxu0 %v6447
        %v6552 = vpop.f32.mrf.mxu0
        %v6553 = vadd.f32 0.0, %v6552
        %v6554 = vpop.f32.mrf.mxu0
        %v6555 = vpop.f32.mrf.mxu0
        %v6556 = vadd.f32 0.0, %v6555
        %v6557 = vpop.f32.mrf.mxu0
        %6558 = vmatprep.mubr.bf16.mxu0 0
        %6559 = vmatmul.mubr.bf16.gmra.mxu0 %v6448
        %v6560 = vpop.f32.mrf.mxu0
        %v6561 = vadd.f32 0.0, %v6560
        %v6562 = vpop.f32.mrf.mxu0
        %v6563 = vpop.f32.mrf.mxu0
        %v6564 = vadd.f32 0.0, %v6563
        %v6565 = vpop.f32.mrf.mxu0
        %6566 = vmatprep.mubr.bf16.mxu0 0
        %6567 = vmatmul.mubr.bf16.gmra.mxu0 %v6449
        %v6568 = vpop.f32.mrf.mxu0
        %v6569 = vadd.f32 0.0, %v6568
        %v6570 = vpop.f32.mrf.mxu0
        %v6571 = vpop.f32.mrf.mxu0
        %v6572 = vadd.f32 0.0, %v6571
        %v6573 = vpop.f32.mrf.mxu0
        %6574 = vmatprep.mubr.bf16.mxu0 0
        %6575 = vmatmul.mubr.bf16.gmra.mxu0 %v6450
        %v6576 = vpop.f32.mrf.mxu0
        %v6577 = vadd.f32 0.0, %v6576
        %v6578 = vpop.f32.mrf.mxu0
        %v6579 = vpop.f32.mrf.mxu0
        %v6580 = vadd.f32 0.0, %v6579
        %v6581 = vpop.f32.mrf.mxu0
        %6582 = vmatprep.mubr.bf16.mxu0 0
        %6583 = vmatmul.mubr.bf16.gmra.mxu0 %v6451
        %v6584 = vpop.f32.mrf.mxu0
        %v6585 = vadd.f32 0.0, %v6584
        %v6586 = vpop.f32.mrf.mxu0
        %v6587 = vpop.f32.mrf.mxu0
        %v6588 = vadd.f32 0.0, %v6587
        %v6589 = vpop.f32.mrf.mxu0
        %6590 = vmatprep.mubr.bf16.mxu0 0
        %6591 = vmatmul.mubr.bf16.gmra.mxu0 %v6452
        %v6592 = vpop.f32.mrf.mxu0
        %v6593 = vadd.f32 0.0, %v6592
        %v6594 = vpop.f32.mrf.mxu0
        %v6595 = vpop.f32.mrf.mxu0
        %v6596 = vadd.f32 0.0, %v6595
        %v6597 = vpop.f32.mrf.mxu0
        %6598 = vmatprep.mubr.bf16.mxu0 0
        %6599 = vmatmul.mubr.bf16.gmra.mxu0 %v6453
        %v6600 = vpop.f32.mrf.mxu0
        %v6601 = vadd.f32 0.0, %v6600
        %v6602 = vpop.f32.mrf.mxu0
        %v6603 = vpop.f32.mrf.mxu0
        %v6604 = vadd.f32 0.0, %v6603
        %v6605 = vpop.f32.mrf.mxu0
        %6606 = vdwg.mxu0
        %v6607 = vadd.f32 %v6349, %v6545
        %v6608 = vadd.f32 %v6350, %v6548
        %v6609 = vadd.f32 %v6351, %v6553
        %v6610 = vadd.f32 %v6352, %v6556
        %v6611 = vadd.f32 %v6353, %v6561
        %v6612 = vadd.f32 %v6354, %v6564
        %v6613 = vadd.f32 %v6355, %v6569
        %v6614 = vadd.f32 %v6356, %v6572
        %v6615 = vadd.f32 %v6357, %v6577
        %v6616 = vadd.f32 %v6358, %v6580
        %v6617 = vadd.f32 %v6359, %v6585
        %v6618 = vadd.f32 %v6360, %v6588
        %v6619 = vadd.f32 %v6361, %v6593
        %v6620 = vadd.f32 %v6362, %v6596
        %v6621 = vadd.f32 %v6363, %v6601
        %v6622 = vadd.f32 %v6364, %v6604
        %v6623 = vld [vmem:[%s5239] sm:$0xf]
        %v6624 = vld [vmem:[%s5239 + $0x4] sm:$0x1]
        %v6625 = vld [vmem:[%s5239 + $0x8] sm:$0xf]
        %v6626 = vld [vmem:[%s5239 + $0xc] sm:$0x1]
        %v6627 = vld [vmem:[%s5239 + $0x10] sm:$0xf]
        %v6628 = vld [vmem:[%s5239 + $0x14] sm:$0x1]
        %v6629 = vld [vmem:[%s5239 + $0x18] sm:$0xf]
        %v6630 = vld [vmem:[%s5239 + $0x1c] sm:$0x1]
        %v6631 = vld [vmem:[%s5239 + $0x20] sm:$0xf]
        %v6632 = vld [vmem:[%s5239 + $0x24] sm:$0x1]
        %v6633 = vld [vmem:[%s5239 + $0x28] sm:$0xf]
        %v6634 = vld [vmem:[%s5239 + $0x2c] sm:$0x1]
        %v6635 = vld [vmem:[%s5239 + $0x30] sm:$0xf]
        %v6636 = vld [vmem:[%s5239 + $0x34] sm:$0x1]
        %v6637 = vld [vmem:[%s5239 + $0x38] sm:$0xf]
        %v6638 = vld [vmem:[%s5239 + $0x3c] sm:$0x1]
        %v6639 = vld [vmem:[%s5239 + $0x50] sm:$0xf]
        %v6640 = vld [vmem:[%s5239 + $0x54] sm:$0x1]
        %v6641 = vld [vmem:[%s5239 + $0x58] sm:$0xf]
        %v6642 = vld [vmem:[%s5239 + $0x5c] sm:$0x1]
        %v6643 = vld [vmem:[%s5239 + $0x60] sm:$0xf]
        %v6644 = vld [vmem:[%s5239 + $0x64] sm:$0x1]
        %v6645 = vld [vmem:[%s5239 + $0x68] sm:$0xf]
        %v6646 = vld [vmem:[%s5239 + $0x6c] sm:$0x1]
        %v6647 = vld [vmem:[%s5239 + $0x70] sm:$0xf]
        %v6648 = vld [vmem:[%s5239 + $0x74] sm:$0x1]
        %v6649 = vld [vmem:[%s5239 + $0x78] sm:$0xf]
        %v6650 = vld [vmem:[%s5239 + $0x7c] sm:$0x1]
        %v6651 = vld [vmem:[%s5239 + $0x80] sm:$0xf]
        %v6652 = vld [vmem:[%s5239 + $0x84] sm:$0x1]
        %v6653 = vld [vmem:[%s5239 + $0x88] sm:$0xf]
        %v6654 = vld [vmem:[%s5239 + $0x8c] sm:$0x1]
        %v6656 = vshrl.u32 %v6623, 16
        %v6658 = vrot.slane %v6656, 4
        %v6659 = vshll.u32 %v6623, 16
        %v6661 = vrot.slane %v6659, 5
        %v6662 = vor.u32 %v6658, %v6661
        %v6663 = vrot.slane %v6662, 4
        %v6665 = vshll.u32 %v6624, 16
        %v6667 = vrot.slane %v6665, 5
        %v6668 = vsel %vm1373, %v6663, %v6667
        %v6670 = vshrl.u32 %v6625, 16
        %v6672 = vrot.slane %v6670, 4
        %v6673 = vshll.u32 %v6625, 16
        %v6675 = vrot.slane %v6673, 5
        %v6676 = vor.u32 %v6672, %v6675
        %v6677 = vrot.slane %v6676, 4
        %v6679 = vshll.u32 %v6626, 16
        %v6681 = vrot.slane %v6679, 5
        %v6682 = vsel %vm1373, %v6677, %v6681
        %v6684 = vshrl.u32 %v6627, 16
        %v6686 = vrot.slane %v6684, 4
        %v6687 = vshll.u32 %v6627, 16
        %v6689 = vrot.slane %v6687, 5
        %v6690 = vor.u32 %v6686, %v6689
        %v6691 = vrot.slane %v6690, 4
        %v6693 = vshll.u32 %v6628, 16
        %v6695 = vrot.slane %v6693, 5
        %v6696 = vsel %vm1373, %v6691, %v6695
        %v6698 = vshrl.u32 %v6629, 16
        %v6700 = vrot.slane %v6698, 4
        %v6701 = vshll.u32 %v6629, 16
        %v6703 = vrot.slane %v6701, 5
        %v6704 = vor.u32 %v6700, %v6703
        %v6705 = vrot.slane %v6704, 4
        %v6707 = vshll.u32 %v6630, 16
        %v6709 = vrot.slane %v6707, 5
        %v6710 = vsel %vm1373, %v6705, %v6709
        %v6712 = vshrl.u32 %v6631, 16
        %v6714 = vrot.slane %v6712, 4
        %v6715 = vshll.u32 %v6631, 16
        %v6717 = vrot.slane %v6715, 5
        %v6718 = vor.u32 %v6714, %v6717
        %v6719 = vrot.slane %v6718, 4
        %v6721 = vshll.u32 %v6632, 16
        %v6723 = vrot.slane %v6721, 5
        %v6724 = vsel %vm1373, %v6719, %v6723
        %v6726 = vshrl.u32 %v6633, 16
        %v6728 = vrot.slane %v6726, 4
        %v6729 = vshll.u32 %v6633, 16
        %v6731 = vrot.slane %v6729, 5
        %v6732 = vor.u32 %v6728, %v6731
        %v6733 = vrot.slane %v6732, 4
        %v6735 = vshll.u32 %v6634, 16
        %v6737 = vrot.slane %v6735, 5
        %v6738 = vsel %vm1373, %v6733, %v6737
        %v6740 = vshrl.u32 %v6635, 16
        %v6742 = vrot.slane %v6740, 4
        %v6743 = vshll.u32 %v6635, 16
        %v6745 = vrot.slane %v6743, 5
        %v6746 = vor.u32 %v6742, %v6745
        %v6747 = vrot.slane %v6746, 4
        %v6749 = vshll.u32 %v6636, 16
        %v6751 = vrot.slane %v6749, 5
        %v6752 = vsel %vm1373, %v6747, %v6751
        %v6754 = vshrl.u32 %v6637, 16
        %v6756 = vrot.slane %v6754, 4
        %v6757 = vshll.u32 %v6637, 16
        %v6759 = vrot.slane %v6757, 5
        %v6760 = vor.u32 %v6756, %v6759
        %v6761 = vrot.slane %v6760, 4
        %v6763 = vshll.u32 %v6638, 16
        %v6765 = vrot.slane %v6763, 5
        %v6766 = vsel %vm1373, %v6761, %v6765
        %v6768 = vshrl.u32 %v6639, 16
        %v6770 = vrot.slane %v6768, 4
        %v6771 = vshll.u32 %v6639, 16
        %v6773 = vrot.slane %v6771, 5
        %v6774 = vor.u32 %v6770, %v6773
        %v6775 = vrot.slane %v6774, 4
        %v6777 = vshll.u32 %v6640, 16
        %v6779 = vrot.slane %v6777, 5
        %v6780 = vsel %vm1373, %v6775, %v6779
        %v6782 = vshrl.u32 %v6641, 16
        %v6784 = vrot.slane %v6782, 4
        %v6785 = vshll.u32 %v6641, 16
        %v6787 = vrot.slane %v6785, 5
        %v6788 = vor.u32 %v6784, %v6787
        %v6789 = vrot.slane %v6788, 4
        %v6791 = vshll.u32 %v6642, 16
        %v6793 = vrot.slane %v6791, 5
        %v6794 = vsel %vm1373, %v6789, %v6793
        %v6796 = vshrl.u32 %v6643, 16
        %v6798 = vrot.slane %v6796, 4
        %v6799 = vshll.u32 %v6643, 16
        %v6801 = vrot.slane %v6799, 5
        %v6802 = vor.u32 %v6798, %v6801
        %v6803 = vrot.slane %v6802, 4
        %v6805 = vshll.u32 %v6644, 16
        %v6807 = vrot.slane %v6805, 5
        %v6808 = vsel %vm1373, %v6803, %v6807
        %v6810 = vshrl.u32 %v6645, 16
        %v6812 = vrot.slane %v6810, 4
        %v6813 = vshll.u32 %v6645, 16
        %v6815 = vrot.slane %v6813, 5
        %v6816 = vor.u32 %v6812, %v6815
        %v6817 = vrot.slane %v6816, 4
        %v6819 = vshll.u32 %v6646, 16
        %v6821 = vrot.slane %v6819, 5
        %v6822 = vsel %vm1373, %v6817, %v6821
        %v6824 = vshrl.u32 %v6647, 16
        %v6826 = vrot.slane %v6824, 4
        %v6827 = vshll.u32 %v6647, 16
        %v6829 = vrot.slane %v6827, 5
        %v6830 = vor.u32 %v6826, %v6829
        %v6831 = vrot.slane %v6830, 4
        %v6833 = vshll.u32 %v6648, 16
        %v6835 = vrot.slane %v6833, 5
        %v6836 = vsel %vm1373, %v6831, %v6835
        %v6838 = vshrl.u32 %v6649, 16
        %v6840 = vrot.slane %v6838, 4
        %v6841 = vshll.u32 %v6649, 16
        %v6843 = vrot.slane %v6841, 5
        %v6844 = vor.u32 %v6840, %v6843
        %v6845 = vrot.slane %v6844, 4
        %v6847 = vshll.u32 %v6650, 16
        %v6849 = vrot.slane %v6847, 5
        %v6850 = vsel %vm1373, %v6845, %v6849
        %v6852 = vshrl.u32 %v6651, 16
        %v6854 = vrot.slane %v6852, 4
        %v6855 = vshll.u32 %v6651, 16
        %v6857 = vrot.slane %v6855, 5
        %v6858 = vor.u32 %v6854, %v6857
        %v6859 = vrot.slane %v6858, 4
        %v6861 = vshll.u32 %v6652, 16
        %v6863 = vrot.slane %v6861, 5
        %v6864 = vsel %vm1373, %v6859, %v6863
        %v6866 = vshrl.u32 %v6653, 16
        %v6868 = vrot.slane %v6866, 4
        %v6869 = vshll.u32 %v6653, 16
        %v6871 = vrot.slane %v6869, 5
        %v6872 = vor.u32 %v6868, %v6871
        %v6873 = vrot.slane %v6872, 4
        %v6875 = vshll.u32 %v6654, 16
        %v6877 = vrot.slane %v6875, 5
        %v6878 = vsel %vm1373, %v6873, %v6877
        %s6879 = scalar_lea.vmem [#allocation12], 256
        %v6880 = vld [vmem:[%s6879] sm:$0xf]
        %v6881 = vld [vmem:[%s6879 + $0x4] sm:$0xf]
        %v6882 = vld [vmem:[%s6879 + $0x8] sm:$0xf]
        %v6883 = vld [vmem:[%s6879 + $0xc] sm:$0xf]
        %v6884 = vld [vmem:[%s6879 + $0x10] sm:$0xf]
        %v6885 = vld [vmem:[%s6879 + $0x14] sm:$0xf]
        %v6886 = vld [vmem:[%s6879 + $0x18] sm:$0xf]
        %v6887 = vld [vmem:[%s6879 + $0x1c] sm:$0xf]
        %v6888 = vld [vmem:[%s6879 + $0x20] sm:$0xf]
        %v6889 = vld [vmem:[%s6879 + $0x24] sm:$0xf]
        %v6890 = vld [vmem:[%s6879 + $0x28] sm:$0xf]
        %v6891 = vld [vmem:[%s6879 + $0x2c] sm:$0xf]
        %v6892 = vld [vmem:[%s6879 + $0x30] sm:$0xf]
        %v6893 = vld [vmem:[%s6879 + $0x34] sm:$0xf]
        %v6894 = vld [vmem:[%s6879 + $0x38] sm:$0xf]
        %v6895 = vld [vmem:[%s6879 + $0x3c] sm:$0xf]
        %v6896 = vunpack.c.l.b16 %v6668
        %v6897 = vunpack.c.l.b16 %v6682
        %v6898 = vunpack.c.l.b16 %v6696
        %v6899 = vunpack.c.l.b16 %v6710
        %v6900 = vunpack.c.l.b16 %v6724
        %v6901 = vunpack.c.l.b16 %v6738
        %v6902 = vunpack.c.l.b16 %v6752
        %v6903 = vunpack.c.l.b16 %v6766
        %v6904 = vunpack.c.l.b16 %v6780
        %v6905 = vunpack.c.l.b16 %v6794
        %v6906 = vunpack.c.l.b16 %v6808
        %v6907 = vunpack.c.l.b16 %v6822
        %v6908 = vunpack.c.l.b16 %v6836
        %v6909 = vunpack.c.l.b16 %v6850
        %v6910 = vunpack.c.l.b16 %v6864
        %v6911 = vunpack.c.l.b16 %v6878
        %v6912 = vpack.c.b16 %v6897, %v6896
        %v6913 = vpack.c.b16 %v6899, %v6898
        %v6914 = vpack.c.b16 %v6901, %v6900
        %v6915 = vpack.c.b16 %v6903, %v6902
        %v6916 = vpack.c.b16 %v6905, %v6904
        %v6917 = vpack.c.b16 %v6907, %v6906
        %v6918 = vpack.c.b16 %v6909, %v6908
        %v6919 = vpack.c.b16 %v6911, %v6910
        %v6944 = vunpack.c.l.b16 %v6880
        %v6945 = vunpack.c.l.b16 %v6881
        %v6946 = vunpack.c.l.b16 %v6882
        %v6947 = vunpack.c.l.b16 %v6883
        %v6948 = vunpack.c.l.b16 %v6884
        %v6949 = vunpack.c.l.b16 %v6885
        %v6950 = vunpack.c.l.b16 %v6886
        %v6951 = vunpack.c.l.b16 %v6887
        %v6952 = vunpack.c.l.b16 %v6888
        %v6953 = vunpack.c.l.b16 %v6889
        %v6954 = vunpack.c.l.b16 %v6890
        %v6955 = vunpack.c.l.b16 %v6891
        %v6956 = vunpack.c.l.b16 %v6892
        %v6957 = vunpack.c.l.b16 %v6893
        %v6958 = vunpack.c.l.b16 %v6894
        %v6959 = vunpack.c.l.b16 %v6895
        %v6960 = vpack.c.b16 %v6945, %v6944
        %v6961 = vpack.c.b16 %v6947, %v6946
        %v6962 = vpack.c.b16 %v6949, %v6948
        %v6963 = vpack.c.b16 %v6951, %v6950
        %v6964 = vpack.c.b16 %v6953, %v6952
        %v6965 = vpack.c.b16 %v6955, %v6954
        %v6966 = vpack.c.b16 %v6957, %v6956
        %v6967 = vpack.c.b16 %v6959, %v6958
        %6976 = vmatprep.subr.bf16.mxu0 0
        %6977 = vmatpush1.bf16.msra.mxu0 %v6967
        %6978 = vmatprep.subr.bf16.mxu0 0
        %6979 = vmatpush1.bf16.msra.mxu0 %v6966
        %6980 = vmatprep.subr.bf16.mxu0 0
        %6981 = vmatpush1.bf16.msra.mxu0 %v6965
        %6982 = vmatprep.subr.bf16.mxu0 0
        %6983 = vmatpush1.bf16.msra.mxu0 %v6964
        %6984 = vmatprep.subr.bf16.mxu0 0
        %6985 = vmatpush1.bf16.msra.mxu0 %v6963
        %6986 = vmatprep.subr.bf16.mxu0 0
        %6987 = vmatpush1.bf16.msra.mxu0 %v6962
        %6988 = vmatprep.subr.bf16.mxu0 0
        %6989 = vmatpush1.bf16.msra.mxu0 %v6961
        %6990 = vmatprep.subr.bf16.mxu0 0
        %6991 = vmatpush1.bf16.msra.mxu0 %v6960
        %6992 = vmatprep.subr.bf16.mxu0 0
        %6993 = vmatpush2.bf16.msra.mxu0 0
        %6994 = vmatprep.subr.bf16.mxu0 0
        %6995 = vmatpush2.bf16.msra.mxu0 0
        %6996 = vmatprep.subr.bf16.mxu0 0
        %6997 = vmatpush2.bf16.msra.mxu0 0
        %6998 = vmatprep.subr.bf16.mxu0 0
        %6999 = vmatpush2.bf16.msra.mxu0 0
        %7000 = vmatprep.subr.bf16.mxu0 0
        %7001 = vmatpush2.bf16.msra.mxu0 0
        %7002 = vmatprep.subr.bf16.mxu0 0
        %7003 = vmatpush2.bf16.msra.mxu0 0
        %7004 = vmatprep.subr.bf16.mxu0 0
        %7005 = vmatpush2.bf16.msra.mxu0 0
        %7006 = vmatprep.subr.bf16.mxu0 0
        %7007 = vmatpush2.bf16.msra.mxu0 0
        %7008 = vmatprep.mubr.bf16.mxu0 0
        %7009 = vmatmul.mubr.bf16.gmra.mxu0 %v6912
        %v7010 = vpop.f32.mrf.mxu0
        %v7011 = vadd.f32 0.0, %v7010
        %v7012 = vpop.f32.mrf.mxu0
        %v7013 = vpop.f32.mrf.mxu0
        %v7014 = vadd.f32 0.0, %v7013
        %v7015 = vpop.f32.mrf.mxu0
        %7016 = vmatprep.mubr.bf16.mxu0 0
        %7017 = vmatmul.mubr.bf16.gmra.mxu0 %v6913
        %v7018 = vpop.f32.mrf.mxu0
        %v7019 = vadd.f32 0.0, %v7018
        %v7020 = vpop.f32.mrf.mxu0
        %v7021 = vpop.f32.mrf.mxu0
        %v7022 = vadd.f32 0.0, %v7021
        %v7023 = vpop.f32.mrf.mxu0
        %7024 = vmatprep.mubr.bf16.mxu0 0
        %7025 = vmatmul.mubr.bf16.gmra.mxu0 %v6914
        %v7026 = vpop.f32.mrf.mxu0
        %v7027 = vadd.f32 0.0, %v7026
        %v7028 = vpop.f32.mrf.mxu0
        %v7029 = vpop.f32.mrf.mxu0
        %v7030 = vadd.f32 0.0, %v7029
        %v7031 = vpop.f32.mrf.mxu0
        %7032 = vmatprep.mubr.bf16.mxu0 0
        %7033 = vmatmul.mubr.bf16.gmra.mxu0 %v6915
        %v7034 = vpop.f32.mrf.mxu0
        %v7035 = vadd.f32 0.0, %v7034
        %v7036 = vpop.f32.mrf.mxu0
        %v7037 = vpop.f32.mrf.mxu0
        %v7038 = vadd.f32 0.0, %v7037
        %v7039 = vpop.f32.mrf.mxu0
        %7040 = vmatprep.mubr.bf16.mxu0 0
        %7041 = vmatmul.mubr.bf16.gmra.mxu0 %v6916
        %v7042 = vpop.f32.mrf.mxu0
        %v7043 = vadd.f32 0.0, %v7042
        %v7044 = vpop.f32.mrf.mxu0
        %v7045 = vpop.f32.mrf.mxu0
        %v7046 = vadd.f32 0.0, %v7045
        %v7047 = vpop.f32.mrf.mxu0
        %7048 = vmatprep.mubr.bf16.mxu0 0
        %7049 = vmatmul.mubr.bf16.gmra.mxu0 %v6917
        %v7050 = vpop.f32.mrf.mxu0
        %v7051 = vadd.f32 0.0, %v7050
        %v7052 = vpop.f32.mrf.mxu0
        %v7053 = vpop.f32.mrf.mxu0
        %v7054 = vadd.f32 0.0, %v7053
        %v7055 = vpop.f32.mrf.mxu0
        %7056 = vmatprep.mubr.bf16.mxu0 0
        %7057 = vmatmul.mubr.bf16.gmra.mxu0 %v6918
        %v7058 = vpop.f32.mrf.mxu0
        %v7059 = vadd.f32 0.0, %v7058
        %v7060 = vpop.f32.mrf.mxu0
        %v7061 = vpop.f32.mrf.mxu0
        %v7062 = vadd.f32 0.0, %v7061
        %v7063 = vpop.f32.mrf.mxu0
        %7064 = vmatprep.mubr.bf16.mxu0 0
        %7065 = vmatmul.mubr.bf16.gmra.mxu0 %v6919
        %v7066 = vpop.f32.mrf.mxu0
        %v7067 = vadd.f32 0.0, %v7066
        %v7068 = vpop.f32.mrf.mxu0
        %v7069 = vpop.f32.mrf.mxu0
        %v7070 = vadd.f32 0.0, %v7069
        %v7071 = vpop.f32.mrf.mxu0
        %7072 = vdwg.mxu0
        %v7073 = vadd.f32 %v6607, %v7011
        %v7074 = vadd.f32 %v6608, %v7014
        %v7075 = vadd.f32 %v6609, %v7019
        %v7076 = vadd.f32 %v6610, %v7022
        %v7077 = vadd.f32 %v6611, %v7027
        %v7078 = vadd.f32 %v6612, %v7030
        %v7079 = vadd.f32 %v6613, %v7035
        %v7080 = vadd.f32 %v6614, %v7038
        %v7081 = vadd.f32 %v6615, %v7043
        %v7082 = vadd.f32 %v6616, %v7046
        %v7083 = vadd.f32 %v6617, %v7051
        %v7084 = vadd.f32 %v6618, %v7054
        %v7085 = vadd.f32 %v6619, %v7059
        %v7086 = vadd.f32 %v6620, %v7062
        %v7087 = vadd.f32 %v6621, %v7067
        %v7088 = vadd.f32 %v6622, %v7070
        %v7089 = vld [vmem:[%s5239] sm:$0xe]
        %v7090 = vld [vmem:[%s5239 + $0x8] sm:$0xe]
        %v7091 = vld [vmem:[%s5239 + $0x10] sm:$0xe]
        %v7092 = vld [vmem:[%s5239 + $0x18] sm:$0xe]
        %v7093 = vld [vmem:[%s5239 + $0x20] sm:$0xe]
        %v7094 = vld [vmem:[%s5239 + $0x28] sm:$0xe]
        %v7095 = vld [vmem:[%s5239 + $0x30] sm:$0xe]
        %v7096 = vld [vmem:[%s5239 + $0x38] sm:$0xe]
        %v7097 = vld [vmem:[%s5239 + $0x50] sm:$0xe]
        %v7098 = vld [vmem:[%s5239 + $0x58] sm:$0xe]
        %v7099 = vld [vmem:[%s5239 + $0x60] sm:$0xe]
        %v7100 = vld [vmem:[%s5239 + $0x68] sm:$0xe]
        %v7101 = vld [vmem:[%s5239 + $0x70] sm:$0xe]
        %v7102 = vld [vmem:[%s5239 + $0x78] sm:$0xe]
        %v7103 = vld [vmem:[%s5239 + $0x80] sm:$0xe]
        %v7104 = vld [vmem:[%s5239 + $0x88] sm:$0xe]
        %v7105 = vsel %vm2005, %v7089, 0
        %v7106 = vsel %vm2006, %v6624, 0
        %v7107 = vsel %vm2005, %v7090, 0
        %v7108 = vsel %vm2006, %v6626, 0
        %v7109 = vsel %vm2005, %v7091, 0
        %v7110 = vsel %vm2006, %v6628, 0
        %v7111 = vsel %vm2005, %v7092, 0
        %v7112 = vsel %vm2006, %v6630, 0
        %v7113 = vsel %vm2005, %v7093, 0
        %v7114 = vsel %vm2006, %v6632, 0
        %v7115 = vsel %vm2005, %v7094, 0
        %v7116 = vsel %vm2006, %v6634, 0
        %v7117 = vsel %vm2005, %v7095, 0
        %v7118 = vsel %vm2006, %v6636, 0
        %v7119 = vsel %vm2005, %v7096, 0
        %v7120 = vsel %vm2006, %v6638, 0
        %v7121 = vsel %vm2005, %v7097, 0
        %v7122 = vsel %vm2006, %v6640, 0
        %v7123 = vsel %vm2005, %v7098, 0
        %v7124 = vsel %vm2006, %v6642, 0
        %v7125 = vsel %vm2005, %v7099, 0
        %v7126 = vsel %vm2006, %v6644, 0
        %v7127 = vsel %vm2005, %v7100, 0
        %v7128 = vsel %vm2006, %v6646, 0
        %v7129 = vsel %vm2005, %v7101, 0
        %v7130 = vsel %vm2006, %v6648, 0
        %v7131 = vsel %vm2005, %v7102, 0
        %v7132 = vsel %vm2006, %v6650, 0
        %v7133 = vsel %vm2005, %v7103, 0
        %v7134 = vsel %vm2006, %v6652, 0
        %v7135 = vsel %vm2005, %v7104, 0
        %v7136 = vsel %vm2006, %v6654, 0
        %v7169 = vrot.slane %v7105, 5
        %v7170 = vrot.slane %v7169, 4
        %v7171 = vrot.slane %v7106, 5
        %v7172 = vsel %vm2073, %v7170, %v7171
        %v7173 = vrot.slane %v7107, 5
        %v7174 = vrot.slane %v7173, 4
        %v7175 = vrot.slane %v7108, 5
        %v7176 = vsel %vm2073, %v7174, %v7175
        %v7177 = vrot.slane %v7109, 5
        %v7178 = vrot.slane %v7177, 4
        %v7179 = vrot.slane %v7110, 5
        %v7180 = vsel %vm2073, %v7178, %v7179
        %v7181 = vrot.slane %v7111, 5
        %v7182 = vrot.slane %v7181, 4
        %v7183 = vrot.slane %v7112, 5
        %v7184 = vsel %vm2073, %v7182, %v7183
        %v7185 = vrot.slane %v7113, 5
        %v7186 = vrot.slane %v7185, 4
        %v7187 = vrot.slane %v7114, 5
        %v7188 = vsel %vm2073, %v7186, %v7187
        %v7189 = vrot.slane %v7115, 5
        %v7190 = vrot.slane %v7189, 4
        %v7191 = vrot.slane %v7116, 5
        %v7192 = vsel %vm2073, %v7190, %v7191
        %v7193 = vrot.slane %v7117, 5
        %v7194 = vrot.slane %v7193, 4
        %v7195 = vrot.slane %v7118, 5
        %v7196 = vsel %vm2073, %v7194, %v7195
        %v7197 = vrot.slane %v7119, 5
        %v7198 = vrot.slane %v7197, 4
        %v7199 = vrot.slane %v7120, 5
        %v7200 = vsel %vm2073, %v7198, %v7199
        %v7201 = vrot.slane %v7121, 5
        %v7202 = vrot.slane %v7201, 4
        %v7203 = vrot.slane %v7122, 5
        %v7204 = vsel %vm2073, %v7202, %v7203
        %v7205 = vrot.slane %v7123, 5
        %v7206 = vrot.slane %v7205, 4
        %v7207 = vrot.slane %v7124, 5
        %v7208 = vsel %vm2073, %v7206, %v7207
        %v7209 = vrot.slane %v7125, 5
        %v7210 = vrot.slane %v7209, 4
        %v7211 = vrot.slane %v7126, 5
        %v7212 = vsel %vm2073, %v7210, %v7211
        %v7213 = vrot.slane %v7127, 5
        %v7214 = vrot.slane %v7213, 4
        %v7215 = vrot.slane %v7128, 5
        %v7216 = vsel %vm2073, %v7214, %v7215
        %v7217 = vrot.slane %v7129, 5
        %v7218 = vrot.slane %v7217, 4
        %v7219 = vrot.slane %v7130, 5
        %v7220 = vsel %vm2073, %v7218, %v7219
        %v7221 = vrot.slane %v7131, 5
        %v7222 = vrot.slane %v7221, 4
        %v7223 = vrot.slane %v7132, 5
        %v7224 = vsel %vm2073, %v7222, %v7223
        %v7225 = vrot.slane %v7133, 5
        %v7226 = vrot.slane %v7225, 4
        %v7227 = vrot.slane %v7134, 5
        %v7228 = vsel %vm2073, %v7226, %v7227
        %v7229 = vrot.slane %v7135, 5
        %v7230 = vrot.slane %v7229, 4
        %v7231 = vrot.slane %v7136, 5
        %v7232 = vsel %vm2073, %v7230, %v7231
        %s7233 = scalar_lea.vmem [#allocation12], 320
        %v7234 = vld [vmem:[%s7233] sm:$0xf]
        %v7235 = vld [vmem:[%s7233 + $0x4] sm:$0xf]
        %v7236 = vld [vmem:[%s7233 + $0x8] sm:$0xf]
        %v7237 = vld [vmem:[%s7233 + $0xc] sm:$0xf]
        %v7238 = vld [vmem:[%s7233 + $0x10] sm:$0xf]
        %v7239 = vld [vmem:[%s7233 + $0x14] sm:$0xf]
        %v7240 = vld [vmem:[%s7233 + $0x18] sm:$0xf]
        %v7241 = vld [vmem:[%s7233 + $0x1c] sm:$0xf]
        %v7242 = vld [vmem:[%s7233 + $0x20] sm:$0xf]
        %v7243 = vld [vmem:[%s7233 + $0x24] sm:$0xf]
        %v7244 = vld [vmem:[%s7233 + $0x28] sm:$0xf]
        %v7245 = vld [vmem:[%s7233 + $0x2c] sm:$0xf]
        %v7246 = vld [vmem:[%s7233 + $0x30] sm:$0xf]
        %v7247 = vld [vmem:[%s7233 + $0x34] sm:$0xf]
        %v7248 = vld [vmem:[%s7233 + $0x38] sm:$0xf]
        %v7249 = vld [vmem:[%s7233 + $0x3c] sm:$0xf]
        %v7250 = vunpack.c.l.b16 %v7172
        %v7251 = vunpack.c.l.b16 %v7176
        %v7252 = vunpack.c.l.b16 %v7180
        %v7253 = vunpack.c.l.b16 %v7184
        %v7254 = vunpack.c.l.b16 %v7188
        %v7255 = vunpack.c.l.b16 %v7192
        %v7256 = vunpack.c.l.b16 %v7196
        %v7257 = vunpack.c.l.b16 %v7200
        %v7258 = vunpack.c.l.b16 %v7204
        %v7259 = vunpack.c.l.b16 %v7208
        %v7260 = vunpack.c.l.b16 %v7212
        %v7261 = vunpack.c.l.b16 %v7216
        %v7262 = vunpack.c.l.b16 %v7220
        %v7263 = vunpack.c.l.b16 %v7224
        %v7264 = vunpack.c.l.b16 %v7228
        %v7265 = vunpack.c.l.b16 %v7232
        %v7266 = vpack.c.b16 %v7251, %v7250
        %v7267 = vpack.c.b16 %v7253, %v7252
        %v7268 = vpack.c.b16 %v7255, %v7254
        %v7269 = vpack.c.b16 %v7257, %v7256
        %v7270 = vpack.c.b16 %v7259, %v7258
        %v7271 = vpack.c.b16 %v7261, %v7260
        %v7272 = vpack.c.b16 %v7263, %v7262
        %v7273 = vpack.c.b16 %v7265, %v7264
        %v7298 = vunpack.c.l.b16 %v7234
        %v7299 = vunpack.c.l.b16 %v7235
        %v7300 = vunpack.c.l.b16 %v7236
        %v7301 = vunpack.c.l.b16 %v7237
        %v7302 = vunpack.c.l.b16 %v7238
        %v7303 = vunpack.c.l.b16 %v7239
        %v7304 = vunpack.c.l.b16 %v7240
        %v7305 = vunpack.c.l.b16 %v7241
        %v7306 = vunpack.c.l.b16 %v7242
        %v7307 = vunpack.c.l.b16 %v7243
        %v7308 = vunpack.c.l.b16 %v7244
        %v7309 = vunpack.c.l.b16 %v7245
        %v7310 = vunpack.c.l.b16 %v7246
        %v7311 = vunpack.c.l.b16 %v7247
        %v7312 = vunpack.c.l.b16 %v7248
        %v7313 = vunpack.c.l.b16 %v7249
        %v7314 = vpack.c.b16 %v7299, %v7298
        %v7315 = vpack.c.b16 %v7301, %v7300
        %v7316 = vpack.c.b16 %v7303, %v7302
        %v7317 = vpack.c.b16 %v7305, %v7304
        %v7318 = vpack.c.b16 %v7307, %v7306
        %v7319 = vpack.c.b16 %v7309, %v7308
        %v7320 = vpack.c.b16 %v7311, %v7310
        %v7321 = vpack.c.b16 %v7313, %v7312
        %7330 = vmatprep.subr.bf16.mxu0 0
        %7331 = vmatpush1.bf16.msra.mxu0 %v7321
        %7332 = vmatprep.subr.bf16.mxu0 0
        %7333 = vmatpush1.bf16.msra.mxu0 %v7320
        %7334 = vmatprep.subr.bf16.mxu0 0
        %7335 = vmatpush1.bf16.msra.mxu0 %v7319
        %7336 = vmatprep.subr.bf16.mxu0 0
        %7337 = vmatpush1.bf16.msra.mxu0 %v7318
        %7338 = vmatprep.subr.bf16.mxu0 0
        %7339 = vmatpush1.bf16.msra.mxu0 %v7317
        %7340 = vmatprep.subr.bf16.mxu0 0
        %7341 = vmatpush1.bf16.msra.mxu0 %v7316
        %7342 = vmatprep.subr.bf16.mxu0 0
        %7343 = vmatpush1.bf16.msra.mxu0 %v7315
        %7344 = vmatprep.subr.bf16.mxu0 0
        %7345 = vmatpush1.bf16.msra.mxu0 %v7314
        %7346 = vmatprep.subr.bf16.mxu0 0
        %7347 = vmatpush2.bf16.msra.mxu0 0
        %7348 = vmatprep.subr.bf16.mxu0 0
        %7349 = vmatpush2.bf16.msra.mxu0 0
        %7350 = vmatprep.subr.bf16.mxu0 0
        %7351 = vmatpush2.bf16.msra.mxu0 0
        %7352 = vmatprep.subr.bf16.mxu0 0
        %7353 = vmatpush2.bf16.msra.mxu0 0
        %7354 = vmatprep.subr.bf16.mxu0 0
        %7355 = vmatpush2.bf16.msra.mxu0 0
        %7356 = vmatprep.subr.bf16.mxu0 0
        %7357 = vmatpush2.bf16.msra.mxu0 0
        %7358 = vmatprep.subr.bf16.mxu0 0
        %7359 = vmatpush2.bf16.msra.mxu0 0
        %7360 = vmatprep.subr.bf16.mxu0 0
        %7361 = vmatpush2.bf16.msra.mxu0 0
        %7362 = vmatprep.mubr.bf16.mxu0 0
        %7363 = vmatmul.mubr.bf16.gmra.mxu0 %v7266
        %v7364 = vpop.f32.mrf.mxu0
        %v7365 = vadd.f32 0.0, %v7364
        %v7366 = vpop.f32.mrf.mxu0
        %v7367 = vpop.f32.mrf.mxu0
        %v7368 = vadd.f32 0.0, %v7367
        %v7369 = vpop.f32.mrf.mxu0
        %7370 = vmatprep.mubr.bf16.mxu0 0
        %7371 = vmatmul.mubr.bf16.gmra.mxu0 %v7267
        %v7372 = vpop.f32.mrf.mxu0
        %v7373 = vadd.f32 0.0, %v7372
        %v7374 = vpop.f32.mrf.mxu0
        %v7375 = vpop.f32.mrf.mxu0
        %v7376 = vadd.f32 0.0, %v7375
        %v7377 = vpop.f32.mrf.mxu0
        %7378 = vmatprep.mubr.bf16.mxu0 0
        %7379 = vmatmul.mubr.bf16.gmra.mxu0 %v7268
        %v7380 = vpop.f32.mrf.mxu0
        %v7381 = vadd.f32 0.0, %v7380
        %v7382 = vpop.f32.mrf.mxu0
        %v7383 = vpop.f32.mrf.mxu0
        %v7384 = vadd.f32 0.0, %v7383
        %v7385 = vpop.f32.mrf.mxu0
        %7386 = vmatprep.mubr.bf16.mxu0 0
        %7387 = vmatmul.mubr.bf16.gmra.mxu0 %v7269
        %v7388 = vpop.f32.mrf.mxu0
        %v7389 = vadd.f32 0.0, %v7388
        %v7390 = vpop.f32.mrf.mxu0
        %v7391 = vpop.f32.mrf.mxu0
        %v7392 = vadd.f32 0.0, %v7391
        %v7393 = vpop.f32.mrf.mxu0
        %7394 = vmatprep.mubr.bf16.mxu0 0
        %7395 = vmatmul.mubr.bf16.gmra.mxu0 %v7270
        %v7396 = vpop.f32.mrf.mxu0
        %v7397 = vadd.f32 0.0, %v7396
        %v7398 = vpop.f32.mrf.mxu0
        %v7399 = vpop.f32.mrf.mxu0
        %v7400 = vadd.f32 0.0, %v7399
        %v7401 = vpop.f32.mrf.mxu0
        %7402 = vmatprep.mubr.bf16.mxu0 0
        %7403 = vmatmul.mubr.bf16.gmra.mxu0 %v7271
        %v7404 = vpop.f32.mrf.mxu0
        %v7405 = vadd.f32 0.0, %v7404
        %v7406 = vpop.f32.mrf.mxu0
        %v7407 = vpop.f32.mrf.mxu0
        %v7408 = vadd.f32 0.0, %v7407
        %v7409 = vpop.f32.mrf.mxu0
        %7410 = vmatprep.mubr.bf16.mxu0 0
        %7411 = vmatmul.mubr.bf16.gmra.mxu0 %v7272
        %v7412 = vpop.f32.mrf.mxu0
        %v7413 = vadd.f32 0.0, %v7412
        %v7414 = vpop.f32.mrf.mxu0
        %v7415 = vpop.f32.mrf.mxu0
        %v7416 = vadd.f32 0.0, %v7415
        %v7417 = vpop.f32.mrf.mxu0
        %7418 = vmatprep.mubr.bf16.mxu0 0
        %7419 = vmatmul.mubr.bf16.gmra.mxu0 %v7273
        %v7420 = vpop.f32.mrf.mxu0
        %v7421 = vadd.f32 0.0, %v7420
        %v7422 = vpop.f32.mrf.mxu0
        %v7423 = vpop.f32.mrf.mxu0
        %v7424 = vadd.f32 0.0, %v7423
        %v7425 = vpop.f32.mrf.mxu0
        %7426 = vdwg.mxu0
        %v7427 = vadd.f32 %v7073, %v7365
        %v7428 = vadd.f32 %v7074, %v7368
        %v7429 = vadd.f32 %v7075, %v7373
        %v7430 = vadd.f32 %v7076, %v7376
        %v7431 = vadd.f32 %v7077, %v7381
        %v7432 = vadd.f32 %v7078, %v7384
        %v7433 = vadd.f32 %v7079, %v7389
        %v7434 = vadd.f32 %v7080, %v7392
        %v7435 = vadd.f32 %v7081, %v7397
        %v7436 = vadd.f32 %v7082, %v7400
        %v7437 = vadd.f32 %v7083, %v7405
        %v7438 = vadd.f32 %v7084, %v7408
        %v7439 = vadd.f32 %v7085, %v7413
        %v7440 = vadd.f32 %v7086, %v7416
        %v7441 = vadd.f32 %v7087, %v7421
        %v7442 = vadd.f32 %v7088, %v7424
        %s7443 = scalar_lea.vmem [#allocation3], 16
        %v7444 = vld [vmem:[%s7443] sm:$0xf]
        %v7445 = vld [vmem:[%s7443 + $0x8] sm:$0xf]
        %v7446 = vld [vmem:[%s7443 + $0x10] sm:$0xf]
        %v7447 = vld [vmem:[%s7443 + $0x18] sm:$0xf]
        %v7448 = vld [vmem:[%s7443 + $0x20] sm:$0xf]
        %v7449 = vld [vmem:[%s7443 + $0x28] sm:$0xf]
        %v7450 = vld [vmem:[%s7443 + $0x30] sm:$0xf]
        %v7451 = vld [vmem:[%s7443 + $0x38] sm:$0xf]
        %v7452 = vld [vmem:[%s7443 + $0x50] sm:$0xf]
        %v7453 = vld [vmem:[%s7443 + $0x58] sm:$0xf]
        %v7454 = vld [vmem:[%s7443 + $0x60] sm:$0xf]
        %v7455 = vld [vmem:[%s7443 + $0x68] sm:$0xf]
        %v7456 = vld [vmem:[%s7443 + $0x70] sm:$0xf]
        %v7457 = vld [vmem:[%s7443 + $0x78] sm:$0xf]
        %v7458 = vld [vmem:[%s7443 + $0x80] sm:$0xf]
        %v7459 = vld [vmem:[%s7443 + $0x88] sm:$0xf]
        %v7460 = vsel %vm1322, %v7444, 0
        %v7461 = vsel %vm1322, %v7445, 0
        %v7462 = vsel %vm1322, %v7446, 0
        %v7463 = vsel %vm1322, %v7447, 0
        %v7464 = vsel %vm1322, %v7448, 0
        %v7465 = vsel %vm1322, %v7449, 0
        %v7466 = vsel %vm1322, %v7450, 0
        %v7467 = vsel %vm1322, %v7451, 0
        %v7468 = vsel %vm1322, %v7452, 0
        %v7469 = vsel %vm1322, %v7453, 0
        %v7470 = vsel %vm1322, %v7454, 0
        %v7471 = vsel %vm1322, %v7455, 0
        %v7472 = vsel %vm1322, %v7456, 0
        %v7473 = vsel %vm1322, %v7457, 0
        %v7474 = vsel %vm1322, %v7458, 0
        %v7475 = vsel %vm1322, %v7459, 0
        %s7476 = scalar_lea.vmem [#allocation12], 384
        %v7477 = vld [vmem:[%s7476] sm:$0xf]
        %v7478 = vld [vmem:[%s7476 + $0x4] sm:$0xf]
        %v7479 = vld [vmem:[%s7476 + $0x8] sm:$0xf]
        %v7480 = vld [vmem:[%s7476 + $0xc] sm:$0xf]
        %v7481 = vld [vmem:[%s7476 + $0x10] sm:$0xf]
        %v7482 = vld [vmem:[%s7476 + $0x14] sm:$0xf]
        %v7483 = vld [vmem:[%s7476 + $0x18] sm:$0xf]
        %v7484 = vld [vmem:[%s7476 + $0x1c] sm:$0xf]
        %v7485 = vld [vmem:[%s7476 + $0x20] sm:$0xf]
        %v7486 = vld [vmem:[%s7476 + $0x24] sm:$0xf]
        %v7487 = vld [vmem:[%s7476 + $0x28] sm:$0xf]
        %v7488 = vld [vmem:[%s7476 + $0x2c] sm:$0xf]
        %v7489 = vld [vmem:[%s7476 + $0x30] sm:$0xf]
        %v7490 = vld [vmem:[%s7476 + $0x34] sm:$0xf]
        %v7491 = vld [vmem:[%s7476 + $0x38] sm:$0xf]
        %v7492 = vld [vmem:[%s7476 + $0x3c] sm:$0xf]
        %v7509 = vunpack.c.l.b16 %v7460
        %v7510 = vunpack.c.l.b16 %v7461
        %v7511 = vunpack.c.l.b16 %v7462
        %v7512 = vunpack.c.l.b16 %v7463
        %v7513 = vunpack.c.l.b16 %v7464
        %v7514 = vunpack.c.l.b16 %v7465
        %v7515 = vunpack.c.l.b16 %v7466
        %v7516 = vunpack.c.l.b16 %v7467
        %v7517 = vunpack.c.l.b16 %v7468
        %v7518 = vunpack.c.l.b16 %v7469
        %v7519 = vunpack.c.l.b16 %v7470
        %v7520 = vunpack.c.l.b16 %v7471
        %v7521 = vunpack.c.l.b16 %v7472
        %v7522 = vunpack.c.l.b16 %v7473
        %v7523 = vunpack.c.l.b16 %v7474
        %v7524 = vunpack.c.l.b16 %v7475
        %v7525 = vpack.c.b16 %v7510, %v7509
        %v7526 = vpack.c.b16 %v7512, %v7511
        %v7527 = vpack.c.b16 %v7514, %v7513
        %v7528 = vpack.c.b16 %v7516, %v7515
        %v7529 = vpack.c.b16 %v7518, %v7517
        %v7530 = vpack.c.b16 %v7520, %v7519
        %v7531 = vpack.c.b16 %v7522, %v7521
        %v7532 = vpack.c.b16 %v7524, %v7523
        %v7557 = vunpack.c.l.b16 %v7477
        %v7558 = vunpack.c.l.b16 %v7478
        %v7559 = vunpack.c.l.b16 %v7479
        %v7560 = vunpack.c.l.b16 %v7480
        %v7561 = vunpack.c.l.b16 %v7481
        %v7562 = vunpack.c.l.b16 %v7482
        %v7563 = vunpack.c.l.b16 %v7483
        %v7564 = vunpack.c.l.b16 %v7484
        %v7565 = vunpack.c.l.b16 %v7485
        %v7566 = vunpack.c.l.b16 %v7486
        %v7567 = vunpack.c.l.b16 %v7487
        %v7568 = vunpack.c.l.b16 %v7488
        %v7569 = vunpack.c.l.b16 %v7489
        %v7570 = vunpack.c.l.b16 %v7490
        %v7571 = vunpack.c.l.b16 %v7491
        %v7572 = vunpack.c.l.b16 %v7492
        %v7573 = vpack.c.b16 %v7558, %v7557
        %v7574 = vpack.c.b16 %v7560, %v7559
        %v7575 = vpack.c.b16 %v7562, %v7561
        %v7576 = vpack.c.b16 %v7564, %v7563
        %v7577 = vpack.c.b16 %v7566, %v7565
        %v7578 = vpack.c.b16 %v7568, %v7567
        %v7579 = vpack.c.b16 %v7570, %v7569
        %v7580 = vpack.c.b16 %v7572, %v7571
        %7589 = vmatprep.subr.bf16.mxu0 0
        %7590 = vmatpush1.bf16.msra.mxu0 %v7580
        %7591 = vmatprep.subr.bf16.mxu0 0
        %7592 = vmatpush1.bf16.msra.mxu0 %v7579
        %7593 = vmatprep.subr.bf16.mxu0 0
        %7594 = vmatpush1.bf16.msra.mxu0 %v7578
        %7595 = vmatprep.subr.bf16.mxu0 0
        %7596 = vmatpush1.bf16.msra.mxu0 %v7577
        %7597 = vmatprep.subr.bf16.mxu0 0
        %7598 = vmatpush1.bf16.msra.mxu0 %v7576
        %7599 = vmatprep.subr.bf16.mxu0 0
        %7600 = vmatpush1.bf16.msra.mxu0 %v7575
        %7601 = vmatprep.subr.bf16.mxu0 0
        %7602 = vmatpush1.bf16.msra.mxu0 %v7574
        %7603 = vmatprep.subr.bf16.mxu0 0
        %7604 = vmatpush1.bf16.msra.mxu0 %v7573
        %7605 = vmatprep.subr.bf16.mxu0 0
        %7606 = vmatpush2.bf16.msra.mxu0 0
        %7607 = vmatprep.subr.bf16.mxu0 0
        %7608 = vmatpush2.bf16.msra.mxu0 0
        %7609 = vmatprep.subr.bf16.mxu0 0
        %7610 = vmatpush2.bf16.msra.mxu0 0
        %7611 = vmatprep.subr.bf16.mxu0 0
        %7612 = vmatpush2.bf16.msra.mxu0 0
        %7613 = vmatprep.subr.bf16.mxu0 0
        %7614 = vmatpush2.bf16.msra.mxu0 0
        %7615 = vmatprep.subr.bf16.mxu0 0
        %7616 = vmatpush2.bf16.msra.mxu0 0
        %7617 = vmatprep.subr.bf16.mxu0 0
        %7618 = vmatpush2.bf16.msra.mxu0 0
        %7619 = vmatprep.subr.bf16.mxu0 0
        %7620 = vmatpush2.bf16.msra.mxu0 0
        %7621 = vmatprep.mubr.bf16.mxu0 0
        %7622 = vmatmul.mubr.bf16.gmra.mxu0 %v7525
        %v7623 = vpop.f32.mrf.mxu0
        %v7624 = vadd.f32 0.0, %v7623
        %v7625 = vpop.f32.mrf.mxu0
        %v7626 = vpop.f32.mrf.mxu0
        %v7627 = vadd.f32 0.0, %v7626
        %v7628 = vpop.f32.mrf.mxu0
        %7629 = vmatprep.mubr.bf16.mxu0 0
        %7630 = vmatmul.mubr.bf16.gmra.mxu0 %v7526
        %v7631 = vpop.f32.mrf.mxu0
        %v7632 = vadd.f32 0.0, %v7631
        %v7633 = vpop.f32.mrf.mxu0
        %v7634 = vpop.f32.mrf.mxu0
        %v7635 = vadd.f32 0.0, %v7634
        %v7636 = vpop.f32.mrf.mxu0
        %7637 = vmatprep.mubr.bf16.mxu0 0
        %7638 = vmatmul.mubr.bf16.gmra.mxu0 %v7527
        %v7639 = vpop.f32.mrf.mxu0
        %v7640 = vadd.f32 0.0, %v7639
        %v7641 = vpop.f32.mrf.mxu0
        %v7642 = vpop.f32.mrf.mxu0
        %v7643 = vadd.f32 0.0, %v7642
        %v7644 = vpop.f32.mrf.mxu0
        %7645 = vmatprep.mubr.bf16.mxu0 0
        %7646 = vmatmul.mubr.bf16.gmra.mxu0 %v7528
        %v7647 = vpop.f32.mrf.mxu0
        %v7648 = vadd.f32 0.0, %v7647
        %v7649 = vpop.f32.mrf.mxu0
        %v7650 = vpop.f32.mrf.mxu0
        %v7651 = vadd.f32 0.0, %v7650
        %v7652 = vpop.f32.mrf.mxu0
        %7653 = vmatprep.mubr.bf16.mxu0 0
        %7654 = vmatmul.mubr.bf16.gmra.mxu0 %v7529
        %v7655 = vpop.f32.mrf.mxu0
        %v7656 = vadd.f32 0.0, %v7655
        %v7657 = vpop.f32.mrf.mxu0
        %v7658 = vpop.f32.mrf.mxu0
        %v7659 = vadd.f32 0.0, %v7658
        %v7660 = vpop.f32.mrf.mxu0
        %7661 = vmatprep.mubr.bf16.mxu0 0
        %7662 = vmatmul.mubr.bf16.gmra.mxu0 %v7530
        %v7663 = vpop.f32.mrf.mxu0
        %v7664 = vadd.f32 0.0, %v7663
        %v7665 = vpop.f32.mrf.mxu0
        %v7666 = vpop.f32.mrf.mxu0
        %v7667 = vadd.f32 0.0, %v7666
        %v7668 = vpop.f32.mrf.mxu0
        %7669 = vmatprep.mubr.bf16.mxu0 0
        %7670 = vmatmul.mubr.bf16.gmra.mxu0 %v7531
        %v7671 = vpop.f32.mrf.mxu0
        %v7672 = vadd.f32 0.0, %v7671
        %v7673 = vpop.f32.mrf.mxu0
        %v7674 = vpop.f32.mrf.mxu0
        %v7675 = vadd.f32 0.0, %v7674
        %v7676 = vpop.f32.mrf.mxu0
        %7677 = vmatprep.mubr.bf16.mxu0 0
        %7678 = vmatmul.mubr.bf16.gmra.mxu0 %v7532
        %v7679 = vpop.f32.mrf.mxu0
        %v7680 = vadd.f32 0.0, %v7679
        %v7681 = vpop.f32.mrf.mxu0
        %v7682 = vpop.f32.mrf.mxu0
        %v7683 = vadd.f32 0.0, %v7682
        %v7684 = vpop.f32.mrf.mxu0
        %7685 = vdwg.mxu0
        %v7686 = vadd.f32 %v7427, %v7624
        %v7687 = vadd.f32 %v7428, %v7627
        %v7688 = vadd.f32 %v7429, %v7632
        %v7689 = vadd.f32 %v7430, %v7635
        %v7690 = vadd.f32 %v7431, %v7640
        %v7691 = vadd.f32 %v7432, %v7643
        %v7692 = vadd.f32 %v7433, %v7648
        %v7693 = vadd.f32 %v7434, %v7651
        %v7694 = vadd.f32 %v7435, %v7656
        %v7695 = vadd.f32 %v7436, %v7659
        %v7696 = vadd.f32 %v7437, %v7664
        %v7697 = vadd.f32 %v7438, %v7667
        %v7698 = vadd.f32 %v7439, %v7672
        %v7699 = vadd.f32 %v7440, %v7675
        %v7700 = vadd.f32 %v7441, %v7680
        %v7701 = vadd.f32 %v7442, %v7683
        %v7702 = vld [vmem:[%s7443] sm:$0xf]
        %v7703 = vld [vmem:[%s7443 + $0x4] sm:$0x1]
        %v7704 = vld [vmem:[%s7443 + $0x8] sm:$0xf]
        %v7705 = vld [vmem:[%s7443 + $0xc] sm:$0x1]
        %v7706 = vld [vmem:[%s7443 + $0x10] sm:$0xf]
        %v7707 = vld [vmem:[%s7443 + $0x14] sm:$0x1]
        %v7708 = vld [vmem:[%s7443 + $0x18] sm:$0xf]
        %v7709 = vld [vmem:[%s7443 + $0x1c] sm:$0x1]
        %v7710 = vld [vmem:[%s7443 + $0x20] sm:$0xf]
        %v7711 = vld [vmem:[%s7443 + $0x24] sm:$0x1]
        %v7712 = vld [vmem:[%s7443 + $0x28] sm:$0xf]
        %v7713 = vld [vmem:[%s7443 + $0x2c] sm:$0x1]
        %v7714 = vld [vmem:[%s7443 + $0x30] sm:$0xf]
        %v7715 = vld [vmem:[%s7443 + $0x34] sm:$0x1]
        %v7716 = vld [vmem:[%s7443 + $0x38] sm:$0xf]
        %v7717 = vld [vmem:[%s7443 + $0x3c] sm:$0x1]
        %v7718 = vld [vmem:[%s7443 + $0x50] sm:$0xf]
        %v7719 = vld [vmem:[%s7443 + $0x54] sm:$0x1]
        %v7720 = vld [vmem:[%s7443 + $0x58] sm:$0xf]
        %v7721 = vld [vmem:[%s7443 + $0x5c] sm:$0x1]
        %v7722 = vld [vmem:[%s7443 + $0x60] sm:$0xf]
        %v7723 = vld [vmem:[%s7443 + $0x64] sm:$0x1]
        %v7724 = vld [vmem:[%s7443 + $0x68] sm:$0xf]
        %v7725 = vld [vmem:[%s7443 + $0x6c] sm:$0x1]
        %v7726 = vld [vmem:[%s7443 + $0x70] sm:$0xf]
        %v7727 = vld [vmem:[%s7443 + $0x74] sm:$0x1]
        %v7728 = vld [vmem:[%s7443 + $0x78] sm:$0xf]
        %v7729 = vld [vmem:[%s7443 + $0x7c] sm:$0x1]
        %v7730 = vld [vmem:[%s7443 + $0x80] sm:$0xf]
        %v7731 = vld [vmem:[%s7443 + $0x84] sm:$0x1]
        %v7732 = vld [vmem:[%s7443 + $0x88] sm:$0xf]
        %v7733 = vld [vmem:[%s7443 + $0x8c] sm:$0x1]
        %v7735 = vshrl.u32 %v7702, 16
        %v7737 = vrot.slane %v7735, 4
        %v7738 = vshll.u32 %v7702, 16
        %v7740 = vrot.slane %v7738, 5
        %v7741 = vor.u32 %v7737, %v7740
        %v7742 = vrot.slane %v7741, 4
        %v7744 = vshll.u32 %v7703, 16
        %v7746 = vrot.slane %v7744, 5
        %v7747 = vsel %vm1373, %v7742, %v7746
        %v7749 = vshrl.u32 %v7704, 16
        %v7751 = vrot.slane %v7749, 4
        %v7752 = vshll.u32 %v7704, 16
        %v7754 = vrot.slane %v7752, 5
        %v7755 = vor.u32 %v7751, %v7754
        %v7756 = vrot.slane %v7755, 4
        %v7758 = vshll.u32 %v7705, 16
        %v7760 = vrot.slane %v7758, 5
        %v7761 = vsel %vm1373, %v7756, %v7760
        %v7763 = vshrl.u32 %v7706, 16
        %v7765 = vrot.slane %v7763, 4
        %v7766 = vshll.u32 %v7706, 16
        %v7768 = vrot.slane %v7766, 5
        %v7769 = vor.u32 %v7765, %v7768
        %v7770 = vrot.slane %v7769, 4
        %v7772 = vshll.u32 %v7707, 16
        %v7774 = vrot.slane %v7772, 5
        %v7775 = vsel %vm1373, %v7770, %v7774
        %v7777 = vshrl.u32 %v7708, 16
        %v7779 = vrot.slane %v7777, 4
        %v7780 = vshll.u32 %v7708, 16
        %v7782 = vrot.slane %v7780, 5
        %v7783 = vor.u32 %v7779, %v7782
        %v7784 = vrot.slane %v7783, 4
        %v7786 = vshll.u32 %v7709, 16
        %v7788 = vrot.slane %v7786, 5
        %v7789 = vsel %vm1373, %v7784, %v7788
        %v7791 = vshrl.u32 %v7710, 16
        %v7793 = vrot.slane %v7791, 4
        %v7794 = vshll.u32 %v7710, 16
        %v7796 = vrot.slane %v7794, 5
        %v7797 = vor.u32 %v7793, %v7796
        %v7798 = vrot.slane %v7797, 4
        %v7800 = vshll.u32 %v7711, 16
        %v7802 = vrot.slane %v7800, 5
        %v7803 = vsel %vm1373, %v7798, %v7802
        %v7805 = vshrl.u32 %v7712, 16
        %v7807 = vrot.slane %v7805, 4
        %v7808 = vshll.u32 %v7712, 16
        %v7810 = vrot.slane %v7808, 5
        %v7811 = vor.u32 %v7807, %v7810
        %v7812 = vrot.slane %v7811, 4
        %v7814 = vshll.u32 %v7713, 16
        %v7816 = vrot.slane %v7814, 5
        %v7817 = vsel %vm1373, %v7812, %v7816
        %v7819 = vshrl.u32 %v7714, 16
        %v7821 = vrot.slane %v7819, 4
        %v7822 = vshll.u32 %v7714, 16
        %v7824 = vrot.slane %v7822, 5
        %v7825 = vor.u32 %v7821, %v7824
        %v7826 = vrot.slane %v7825, 4
        %v7828 = vshll.u32 %v7715, 16
        %v7830 = vrot.slane %v7828, 5
        %v7831 = vsel %vm1373, %v7826, %v7830
        %v7833 = vshrl.u32 %v7716, 16
        %v7835 = vrot.slane %v7833, 4
        %v7836 = vshll.u32 %v7716, 16
        %v7838 = vrot.slane %v7836, 5
        %v7839 = vor.u32 %v7835, %v7838
        %v7840 = vrot.slane %v7839, 4
        %v7842 = vshll.u32 %v7717, 16
        %v7844 = vrot.slane %v7842, 5
        %v7845 = vsel %vm1373, %v7840, %v7844
        %v7847 = vshrl.u32 %v7718, 16
        %v7849 = vrot.slane %v7847, 4
        %v7850 = vshll.u32 %v7718, 16
        %v7852 = vrot.slane %v7850, 5
        %v7853 = vor.u32 %v7849, %v7852
        %v7854 = vrot.slane %v7853, 4
        %v7856 = vshll.u32 %v7719, 16
        %v7858 = vrot.slane %v7856, 5
        %v7859 = vsel %vm1373, %v7854, %v7858
        %v7861 = vshrl.u32 %v7720, 16
        %v7863 = vrot.slane %v7861, 4
        %v7864 = vshll.u32 %v7720, 16
        %v7866 = vrot.slane %v7864, 5
        %v7867 = vor.u32 %v7863, %v7866
        %v7868 = vrot.slane %v7867, 4
        %v7870 = vshll.u32 %v7721, 16
        %v7872 = vrot.slane %v7870, 5
        %v7873 = vsel %vm1373, %v7868, %v7872
        %v7875 = vshrl.u32 %v7722, 16
        %v7877 = vrot.slane %v7875, 4
        %v7878 = vshll.u32 %v7722, 16
        %v7880 = vrot.slane %v7878, 5
        %v7881 = vor.u32 %v7877, %v7880
        %v7882 = vrot.slane %v7881, 4
        %v7884 = vshll.u32 %v7723, 16
        %v7886 = vrot.slane %v7884, 5
        %v7887 = vsel %vm1373, %v7882, %v7886
        %v7889 = vshrl.u32 %v7724, 16
        %v7891 = vrot.slane %v7889, 4
        %v7892 = vshll.u32 %v7724, 16
        %v7894 = vrot.slane %v7892, 5
        %v7895 = vor.u32 %v7891, %v7894
        %v7896 = vrot.slane %v7895, 4
        %v7898 = vshll.u32 %v7725, 16
        %v7900 = vrot.slane %v7898, 5
        %v7901 = vsel %vm1373, %v7896, %v7900
        %v7903 = vshrl.u32 %v7726, 16
        %v7905 = vrot.slane %v7903, 4
        %v7906 = vshll.u32 %v7726, 16
        %v7908 = vrot.slane %v7906, 5
        %v7909 = vor.u32 %v7905, %v7908
        %v7910 = vrot.slane %v7909, 4
        %v7912 = vshll.u32 %v7727, 16
        %v7914 = vrot.slane %v7912, 5
        %v7915 = vsel %vm1373, %v7910, %v7914
        %v7917 = vshrl.u32 %v7728, 16
        %v7919 = vrot.slane %v7917, 4
        %v7920 = vshll.u32 %v7728, 16
        %v7922 = vrot.slane %v7920, 5
        %v7923 = vor.u32 %v7919, %v7922
        %v7924 = vrot.slane %v7923, 4
        %v7926 = vshll.u32 %v7729, 16
        %v7928 = vrot.slane %v7926, 5
        %v7929 = vsel %vm1373, %v7924, %v7928
        %v7931 = vshrl.u32 %v7730, 16
        %v7933 = vrot.slane %v7931, 4
        %v7934 = vshll.u32 %v7730, 16
        %v7936 = vrot.slane %v7934, 5
        %v7937 = vor.u32 %v7933, %v7936
        %v7938 = vrot.slane %v7937, 4
        %v7940 = vshll.u32 %v7731, 16
        %v7942 = vrot.slane %v7940, 5
        %v7943 = vsel %vm1373, %v7938, %v7942
        %v7945 = vshrl.u32 %v7732, 16
        %v7947 = vrot.slane %v7945, 4
        %v7948 = vshll.u32 %v7732, 16
        %v7950 = vrot.slane %v7948, 5
        %v7951 = vor.u32 %v7947, %v7950
        %v7952 = vrot.slane %v7951, 4
        %v7954 = vshll.u32 %v7733, 16
        %v7956 = vrot.slane %v7954, 5
        %v7957 = vsel %vm1373, %v7952, %v7956
        %s7958 = scalar_lea.vmem [#allocation12], 448
        %v7959 = vld [vmem:[%s7958] sm:$0xf]
        %v7960 = vld [vmem:[%s7958 + $0x4] sm:$0xf]
        %v7961 = vld [vmem:[%s7958 + $0x8] sm:$0xf]
        %v7962 = vld [vmem:[%s7958 + $0xc] sm:$0xf]
        %v7963 = vld [vmem:[%s7958 + $0x10] sm:$0xf]
        %v7964 = vld [vmem:[%s7958 + $0x14] sm:$0xf]
        %v7965 = vld [vmem:[%s7958 + $0x18] sm:$0xf]
        %v7966 = vld [vmem:[%s7958 + $0x1c] sm:$0xf]
        %v7967 = vld [vmem:[%s7958 + $0x20] sm:$0xf]
        %v7968 = vld [vmem:[%s7958 + $0x24] sm:$0xf]
        %v7969 = vld [vmem:[%s7958 + $0x28] sm:$0xf]
        %v7970 = vld [vmem:[%s7958 + $0x2c] sm:$0xf]
        %v7971 = vld [vmem:[%s7958 + $0x30] sm:$0xf]
        %v7972 = vld [vmem:[%s7958 + $0x34] sm:$0xf]
        %v7973 = vld [vmem:[%s7958 + $0x38] sm:$0xf]
        %v7974 = vld [vmem:[%s7958 + $0x3c] sm:$0xf]
        %v7975 = vunpack.c.l.b16 %v7747
        %v7976 = vunpack.c.l.b16 %v7761
        %v7977 = vunpack.c.l.b16 %v7775
        %v7978 = vunpack.c.l.b16 %v7789
        %v7979 = vunpack.c.l.b16 %v7803
        %v7980 = vunpack.c.l.b16 %v7817
        %v7981 = vunpack.c.l.b16 %v7831
        %v7982 = vunpack.c.l.b16 %v7845
        %v7983 = vunpack.c.l.b16 %v7859
        %v7984 = vunpack.c.l.b16 %v7873
        %v7985 = vunpack.c.l.b16 %v7887
        %v7986 = vunpack.c.l.b16 %v7901
        %v7987 = vunpack.c.l.b16 %v7915
        %v7988 = vunpack.c.l.b16 %v7929
        %v7989 = vunpack.c.l.b16 %v7943
        %v7990 = vunpack.c.l.b16 %v7957
        %v7991 = vpack.c.b16 %v7976, %v7975
        %v7992 = vpack.c.b16 %v7978, %v7977
        %v7993 = vpack.c.b16 %v7980, %v7979
        %v7994 = vpack.c.b16 %v7982, %v7981
        %v7995 = vpack.c.b16 %v7984, %v7983
        %v7996 = vpack.c.b16 %v7986, %v7985
        %v7997 = vpack.c.b16 %v7988, %v7987
        %v7998 = vpack.c.b16 %v7990, %v7989
        %v8023 = vunpack.c.l.b16 %v7959
        %v8024 = vunpack.c.l.b16 %v7960
        %v8025 = vunpack.c.l.b16 %v7961
        %v8026 = vunpack.c.l.b16 %v7962
        %v8027 = vunpack.c.l.b16 %v7963
        %v8028 = vunpack.c.l.b16 %v7964
        %v8029 = vunpack.c.l.b16 %v7965
        %v8030 = vunpack.c.l.b16 %v7966
        %v8031 = vunpack.c.l.b16 %v7967
        %v8032 = vunpack.c.l.b16 %v7968
        %v8033 = vunpack.c.l.b16 %v7969
        %v8034 = vunpack.c.l.b16 %v7970
        %v8035 = vunpack.c.l.b16 %v7971
        %v8036 = vunpack.c.l.b16 %v7972
        %v8037 = vunpack.c.l.b16 %v7973
        %v8038 = vunpack.c.l.b16 %v7974
        %v8039 = vpack.c.b16 %v8024, %v8023
        %v8040 = vpack.c.b16 %v8026, %v8025
        %v8041 = vpack.c.b16 %v8028, %v8027
        %v8042 = vpack.c.b16 %v8030, %v8029
        %v8043 = vpack.c.b16 %v8032, %v8031
        %v8044 = vpack.c.b16 %v8034, %v8033
        %v8045 = vpack.c.b16 %v8036, %v8035
        %v8046 = vpack.c.b16 %v8038, %v8037
        %8055 = vmatprep.subr.bf16.mxu0 0
        %8056 = vmatpush1.bf16.msra.mxu0 %v8046
        %8057 = vmatprep.subr.bf16.mxu0 0
        %8058 = vmatpush1.bf16.msra.mxu0 %v8045
        %8059 = vmatprep.subr.bf16.mxu0 0
        %8060 = vmatpush1.bf16.msra.mxu0 %v8044
        %8061 = vmatprep.subr.bf16.mxu0 0
        %8062 = vmatpush1.bf16.msra.mxu0 %v8043
        %8063 = vmatprep.subr.bf16.mxu0 0
        %8064 = vmatpush1.bf16.msra.mxu0 %v8042
        %8065 = vmatprep.subr.bf16.mxu0 0
        %8066 = vmatpush1.bf16.msra.mxu0 %v8041
        %8067 = vmatprep.subr.bf16.mxu0 0
        %8068 = vmatpush1.bf16.msra.mxu0 %v8040
        %8069 = vmatprep.subr.bf16.mxu0 0
        %8070 = vmatpush1.bf16.msra.mxu0 %v8039
        %8071 = vmatprep.subr.bf16.mxu0 0
        %8072 = vmatpush2.bf16.msra.mxu0 0
        %8073 = vmatprep.subr.bf16.mxu0 0
        %8074 = vmatpush2.bf16.msra.mxu0 0
        %8075 = vmatprep.subr.bf16.mxu0 0
        %8076 = vmatpush2.bf16.msra.mxu0 0
        %8077 = vmatprep.subr.bf16.mxu0 0
        %8078 = vmatpush2.bf16.msra.mxu0 0
        %8079 = vmatprep.subr.bf16.mxu0 0
        %8080 = vmatpush2.bf16.msra.mxu0 0
        %8081 = vmatprep.subr.bf16.mxu0 0
        %8082 = vmatpush2.bf16.msra.mxu0 0
        %8083 = vmatprep.subr.bf16.mxu0 0
        %8084 = vmatpush2.bf16.msra.mxu0 0
        %8085 = vmatprep.subr.bf16.mxu0 0
        %8086 = vmatpush2.bf16.msra.mxu0 0
        %8087 = vmatprep.mubr.bf16.mxu0 0
        %8088 = vmatmul.mubr.bf16.gmra.mxu0 %v7991
        %v8089 = vpop.f32.mrf.mxu0
        %v8090 = vadd.f32 0.0, %v8089
        %v8091 = vpop.f32.mrf.mxu0
        %v8092 = vpop.f32.mrf.mxu0
        %v8093 = vadd.f32 0.0, %v8092
        %v8094 = vpop.f32.mrf.mxu0
        %8095 = vmatprep.mubr.bf16.mxu0 0
        %8096 = vmatmul.mubr.bf16.gmra.mxu0 %v7992
        %v8097 = vpop.f32.mrf.mxu0
        %v8098 = vadd.f32 0.0, %v8097
        %v8099 = vpop.f32.mrf.mxu0
        %v8100 = vpop.f32.mrf.mxu0
        %v8101 = vadd.f32 0.0, %v8100
        %v8102 = vpop.f32.mrf.mxu0
        %8103 = vmatprep.mubr.bf16.mxu0 0
        %8104 = vmatmul.mubr.bf16.gmra.mxu0 %v7993
        %v8105 = vpop.f32.mrf.mxu0
        %v8106 = vadd.f32 0.0, %v8105
        %v8107 = vpop.f32.mrf.mxu0
        %v8108 = vpop.f32.mrf.mxu0
        %v8109 = vadd.f32 0.0, %v8108
        %v8110 = vpop.f32.mrf.mxu0
        %8111 = vmatprep.mubr.bf16.mxu0 0
        %8112 = vmatmul.mubr.bf16.gmra.mxu0 %v7994
        %v8113 = vpop.f32.mrf.mxu0
        %v8114 = vadd.f32 0.0, %v8113
        %v8115 = vpop.f32.mrf.mxu0
        %v8116 = vpop.f32.mrf.mxu0
        %v8117 = vadd.f32 0.0, %v8116
        %v8118 = vpop.f32.mrf.mxu0
        %8119 = vmatprep.mubr.bf16.mxu0 0
        %8120 = vmatmul.mubr.bf16.gmra.mxu0 %v7995
        %v8121 = vpop.f32.mrf.mxu0
        %v8122 = vadd.f32 0.0, %v8121
        %v8123 = vpop.f32.mrf.mxu0
        %v8124 = vpop.f32.mrf.mxu0
        %v8125 = vadd.f32 0.0, %v8124
        %v8126 = vpop.f32.mrf.mxu0
        %8127 = vmatprep.mubr.bf16.mxu0 0
        %8128 = vmatmul.mubr.bf16.gmra.mxu0 %v7996
        %v8129 = vpop.f32.mrf.mxu0
        %v8130 = vadd.f32 0.0, %v8129
        %v8131 = vpop.f32.mrf.mxu0
        %v8132 = vpop.f32.mrf.mxu0
        %v8133 = vadd.f32 0.0, %v8132
        %v8134 = vpop.f32.mrf.mxu0
        %8135 = vmatprep.mubr.bf16.mxu0 0
        %8136 = vmatmul.mubr.bf16.gmra.mxu0 %v7997
        %v8137 = vpop.f32.mrf.mxu0
        %v8138 = vadd.f32 0.0, %v8137
        %v8139 = vpop.f32.mrf.mxu0
        %v8140 = vpop.f32.mrf.mxu0
        %v8141 = vadd.f32 0.0, %v8140
        %v8142 = vpop.f32.mrf.mxu0
        %8143 = vmatprep.mubr.bf16.mxu0 0
        %8144 = vmatmul.mubr.bf16.gmra.mxu0 %v7998
        %v8145 = vpop.f32.mrf.mxu0
        %v8146 = vadd.f32 0.0, %v8145
        %v8147 = vpop.f32.mrf.mxu0
        %v8148 = vpop.f32.mrf.mxu0
        %v8149 = vadd.f32 0.0, %v8148
        %v8150 = vpop.f32.mrf.mxu0
        %8151 = vdwg.mxu0
        %v8152 = vadd.f32 %v7686, %v8090
        %v8153 = vadd.f32 %v7687, %v8093
        %v8154 = vadd.f32 %v7688, %v8098
        %v8155 = vadd.f32 %v7689, %v8101
        %v8156 = vadd.f32 %v7690, %v8106
        %v8157 = vadd.f32 %v7691, %v8109
        %v8158 = vadd.f32 %v7692, %v8114
        %v8159 = vadd.f32 %v7693, %v8117
        %v8160 = vadd.f32 %v7694, %v8122
        %v8161 = vadd.f32 %v7695, %v8125
        %v8162 = vadd.f32 %v7696, %v8130
        %v8163 = vadd.f32 %v7697, %v8133
        %v8164 = vadd.f32 %v7698, %v8138
        %v8165 = vadd.f32 %v7699, %v8141
        %v8166 = vadd.f32 %v7700, %v8146
        %v8167 = vadd.f32 %v7701, %v8149
        %v8168 = vld [vmem:[%s7443] sm:$0xe]
        %v8169 = vld [vmem:[%s7443 + $0x8] sm:$0xe]
        %v8170 = vld [vmem:[%s7443 + $0x10] sm:$0xe]
        %v8171 = vld [vmem:[%s7443 + $0x18] sm:$0xe]
        %v8172 = vld [vmem:[%s7443 + $0x20] sm:$0xe]
        %v8173 = vld [vmem:[%s7443 + $0x28] sm:$0xe]
        %v8174 = vld [vmem:[%s7443 + $0x30] sm:$0xe]
        %v8175 = vld [vmem:[%s7443 + $0x38] sm:$0xe]
        %v8176 = vld [vmem:[%s7443 + $0x50] sm:$0xe]
        %v8177 = vld [vmem:[%s7443 + $0x58] sm:$0xe]
        %v8178 = vld [vmem:[%s7443 + $0x60] sm:$0xe]
        %v8179 = vld [vmem:[%s7443 + $0x68] sm:$0xe]
        %v8180 = vld [vmem:[%s7443 + $0x70] sm:$0xe]
        %v8181 = vld [vmem:[%s7443 + $0x78] sm:$0xe]
        %v8182 = vld [vmem:[%s7443 + $0x80] sm:$0xe]
        %v8183 = vld [vmem:[%s7443 + $0x88] sm:$0xe]
        %v8184 = vsel %vm2005, %v8168, 0
        %v8185 = vsel %vm2006, %v7703, 0
        %v8186 = vsel %vm2005, %v8169, 0
        %v8187 = vsel %vm2006, %v7705, 0
        %v8188 = vsel %vm2005, %v8170, 0
        %v8189 = vsel %vm2006, %v7707, 0
        %v8190 = vsel %vm2005, %v8171, 0
        %v8191 = vsel %vm2006, %v7709, 0
        %v8192 = vsel %vm2005, %v8172, 0
        %v8193 = vsel %vm2006, %v7711, 0
        %v8194 = vsel %vm2005, %v8173, 0
        %v8195 = vsel %vm2006, %v7713, 0
        %v8196 = vsel %vm2005, %v8174, 0
        %v8197 = vsel %vm2006, %v7715, 0
        %v8198 = vsel %vm2005, %v8175, 0
        %v8199 = vsel %vm2006, %v7717, 0
        %v8200 = vsel %vm2005, %v8176, 0
        %v8201 = vsel %vm2006, %v7719, 0
        %v8202 = vsel %vm2005, %v8177, 0
        %v8203 = vsel %vm2006, %v7721, 0
        %v8204 = vsel %vm2005, %v8178, 0
        %v8205 = vsel %vm2006, %v7723, 0
        %v8206 = vsel %vm2005, %v8179, 0
        %v8207 = vsel %vm2006, %v7725, 0
        %v8208 = vsel %vm2005, %v8180, 0
        %v8209 = vsel %vm2006, %v7727, 0
        %v8210 = vsel %vm2005, %v8181, 0
        %v8211 = vsel %vm2006, %v7729, 0
        %v8212 = vsel %vm2005, %v8182, 0
        %v8213 = vsel %vm2006, %v7731, 0
        %v8214 = vsel %vm2005, %v8183, 0
        %v8215 = vsel %vm2006, %v7733, 0
        %v8248 = vrot.slane %v8184, 5
        %v8249 = vrot.slane %v8248, 4
        %v8250 = vrot.slane %v8185, 5
        %v8251 = vsel %vm2073, %v8249, %v8250
        %v8252 = vrot.slane %v8186, 5
        %v8253 = vrot.slane %v8252, 4
        %v8254 = vrot.slane %v8187, 5
        %v8255 = vsel %vm2073, %v8253, %v8254
        %v8256 = vrot.slane %v8188, 5
        %v8257 = vrot.slane %v8256, 4
        %v8258 = vrot.slane %v8189, 5
        %v8259 = vsel %vm2073, %v8257, %v8258
        %v8260 = vrot.slane %v8190, 5
        %v8261 = vrot.slane %v8260, 4
        %v8262 = vrot.slane %v8191, 5
        %v8263 = vsel %vm2073, %v8261, %v8262
        %v8264 = vrot.slane %v8192, 5
        %v8265 = vrot.slane %v8264, 4
        %v8266 = vrot.slane %v8193, 5
        %v8267 = vsel %vm2073, %v8265, %v8266
        %v8268 = vrot.slane %v8194, 5
        %v8269 = vrot.slane %v8268, 4
        %v8270 = vrot.slane %v8195, 5
        %v8271 = vsel %vm2073, %v8269, %v8270
        %v8272 = vrot.slane %v8196, 5
        %v8273 = vrot.slane %v8272, 4
        %v8274 = vrot.slane %v8197, 5
        %v8275 = vsel %vm2073, %v8273, %v8274
        %v8276 = vrot.slane %v8198, 5
        %v8277 = vrot.slane %v8276, 4
        %v8278 = vrot.slane %v8199, 5
        %v8279 = vsel %vm2073, %v8277, %v8278
        %v8280 = vrot.slane %v8200, 5
        %v8281 = vrot.slane %v8280, 4
        %v8282 = vrot.slane %v8201, 5
        %v8283 = vsel %vm2073, %v8281, %v8282
        %v8284 = vrot.slane %v8202, 5
        %v8285 = vrot.slane %v8284, 4
        %v8286 = vrot.slane %v8203, 5
        %v8287 = vsel %vm2073, %v8285, %v8286
        %v8288 = vrot.slane %v8204, 5
        %v8289 = vrot.slane %v8288, 4
        %v8290 = vrot.slane %v8205, 5
        %v8291 = vsel %vm2073, %v8289, %v8290
        %v8292 = vrot.slane %v8206, 5
        %v8293 = vrot.slane %v8292, 4
        %v8294 = vrot.slane %v8207, 5
        %v8295 = vsel %vm2073, %v8293, %v8294
        %v8296 = vrot.slane %v8208, 5
        %v8297 = vrot.slane %v8296, 4
        %v8298 = vrot.slane %v8209, 5
        %v8299 = vsel %vm2073, %v8297, %v8298
        %v8300 = vrot.slane %v8210, 5
        %v8301 = vrot.slane %v8300, 4
        %v8302 = vrot.slane %v8211, 5
        %v8303 = vsel %vm2073, %v8301, %v8302
        %v8304 = vrot.slane %v8212, 5
        %v8305 = vrot.slane %v8304, 4
        %v8306 = vrot.slane %v8213, 5
        %v8307 = vsel %vm2073, %v8305, %v8306
        %v8308 = vrot.slane %v8214, 5
        %v8309 = vrot.slane %v8308, 4
        %v8310 = vrot.slane %v8215, 5
        %v8311 = vsel %vm2073, %v8309, %v8310
        %s8312 = scalar_lea.vmem [#allocation12], 512
        %v8313 = vld [vmem:[%s8312] sm:$0xf]
        %v8314 = vld [vmem:[%s8312 + $0x4] sm:$0xf]
        %v8315 = vld [vmem:[%s8312 + $0x8] sm:$0xf]
        %v8316 = vld [vmem:[%s8312 + $0xc] sm:$0xf]
        %v8317 = vld [vmem:[%s8312 + $0x10] sm:$0xf]
        %v8318 = vld [vmem:[%s8312 + $0x14] sm:$0xf]
        %v8319 = vld [vmem:[%s8312 + $0x18] sm:$0xf]
        %v8320 = vld [vmem:[%s8312 + $0x1c] sm:$0xf]
        %v8321 = vld [vmem:[%s8312 + $0x20] sm:$0xf]
        %v8322 = vld [vmem:[%s8312 + $0x24] sm:$0xf]
        %v8323 = vld [vmem:[%s8312 + $0x28] sm:$0xf]
        %v8324 = vld [vmem:[%s8312 + $0x2c] sm:$0xf]
        %v8325 = vld [vmem:[%s8312 + $0x30] sm:$0xf]
        %v8326 = vld [vmem:[%s8312 + $0x34] sm:$0xf]
        %v8327 = vld [vmem:[%s8312 + $0x38] sm:$0xf]
        %v8328 = vld [vmem:[%s8312 + $0x3c] sm:$0xf]
        %v8329 = vunpack.c.l.b16 %v8251
        %v8330 = vunpack.c.l.b16 %v8255
        %v8331 = vunpack.c.l.b16 %v8259
        %v8332 = vunpack.c.l.b16 %v8263
        %v8333 = vunpack.c.l.b16 %v8267
        %v8334 = vunpack.c.l.b16 %v8271
        %v8335 = vunpack.c.l.b16 %v8275
        %v8336 = vunpack.c.l.b16 %v8279
        %v8337 = vunpack.c.l.b16 %v8283
        %v8338 = vunpack.c.l.b16 %v8287
        %v8339 = vunpack.c.l.b16 %v8291
        %v8340 = vunpack.c.l.b16 %v8295
        %v8341 = vunpack.c.l.b16 %v8299
        %v8342 = vunpack.c.l.b16 %v8303
        %v8343 = vunpack.c.l.b16 %v8307
        %v8344 = vunpack.c.l.b16 %v8311
        %v8345 = vpack.c.b16 %v8330, %v8329
        %v8346 = vpack.c.b16 %v8332, %v8331
        %v8347 = vpack.c.b16 %v8334, %v8333
        %v8348 = vpack.c.b16 %v8336, %v8335
        %v8349 = vpack.c.b16 %v8338, %v8337
        %v8350 = vpack.c.b16 %v8340, %v8339
        %v8351 = vpack.c.b16 %v8342, %v8341
        %v8352 = vpack.c.b16 %v8344, %v8343
        %v8377 = vunpack.c.l.b16 %v8313
        %v8378 = vunpack.c.l.b16 %v8314
        %v8379 = vunpack.c.l.b16 %v8315
        %v8380 = vunpack.c.l.b16 %v8316
        %v8381 = vunpack.c.l.b16 %v8317
        %v8382 = vunpack.c.l.b16 %v8318
        %v8383 = vunpack.c.l.b16 %v8319
        %v8384 = vunpack.c.l.b16 %v8320
        %v8385 = vunpack.c.l.b16 %v8321
        %v8386 = vunpack.c.l.b16 %v8322
        %v8387 = vunpack.c.l.b16 %v8323
        %v8388 = vunpack.c.l.b16 %v8324
        %v8389 = vunpack.c.l.b16 %v8325
        %v8390 = vunpack.c.l.b16 %v8326
        %v8391 = vunpack.c.l.b16 %v8327
        %v8392 = vunpack.c.l.b16 %v8328
        %v8393 = vpack.c.b16 %v8378, %v8377
        %v8394 = vpack.c.b16 %v8380, %v8379
        %v8395 = vpack.c.b16 %v8382, %v8381
        %v8396 = vpack.c.b16 %v8384, %v8383
        %v8397 = vpack.c.b16 %v8386, %v8385
        %v8398 = vpack.c.b16 %v8388, %v8387
        %v8399 = vpack.c.b16 %v8390, %v8389
        %v8400 = vpack.c.b16 %v8392, %v8391
        %8409 = vmatprep.subr.bf16.mxu0 0
        %8410 = vmatpush1.bf16.msra.mxu0 %v8400
        %8411 = vmatprep.subr.bf16.mxu0 0
        %8412 = vmatpush1.bf16.msra.mxu0 %v8399
        %8413 = vmatprep.subr.bf16.mxu0 0
        %8414 = vmatpush1.bf16.msra.mxu0 %v8398
        %8415 = vmatprep.subr.bf16.mxu0 0
        %8416 = vmatpush1.bf16.msra.mxu0 %v8397
        %8417 = vmatprep.subr.bf16.mxu0 0
        %8418 = vmatpush1.bf16.msra.mxu0 %v8396
        %8419 = vmatprep.subr.bf16.mxu0 0
        %8420 = vmatpush1.bf16.msra.mxu0 %v8395
        %8421 = vmatprep.subr.bf16.mxu0 0
        %8422 = vmatpush1.bf16.msra.mxu0 %v8394
        %8423 = vmatprep.subr.bf16.mxu0 0
        %8424 = vmatpush1.bf16.msra.mxu0 %v8393
        %8425 = vmatprep.subr.bf16.mxu0 0
        %8426 = vmatpush2.bf16.msra.mxu0 0
        %8427 = vmatprep.subr.bf16.mxu0 0
        %8428 = vmatpush2.bf16.msra.mxu0 0
        %8429 = vmatprep.subr.bf16.mxu0 0
        %8430 = vmatpush2.bf16.msra.mxu0 0
        %8431 = vmatprep.subr.bf16.mxu0 0
        %8432 = vmatpush2.bf16.msra.mxu0 0
        %8433 = vmatprep.subr.bf16.mxu0 0
        %8434 = vmatpush2.bf16.msra.mxu0 0
        %8435 = vmatprep.subr.bf16.mxu0 0
        %8436 = vmatpush2.bf16.msra.mxu0 0
        %8437 = vmatprep.subr.bf16.mxu0 0
        %8438 = vmatpush2.bf16.msra.mxu0 0
        %8439 = vmatprep.subr.bf16.mxu0 0
        %8440 = vmatpush2.bf16.msra.mxu0 0
        %8441 = vmatprep.mubr.bf16.mxu0 0
        %8442 = vmatmul.mubr.bf16.gmra.mxu0 %v8345
        %v8443 = vpop.f32.mrf.mxu0
        %v8444 = vadd.f32 0.0, %v8443
        %v8445 = vpop.f32.mrf.mxu0
        %v8446 = vpop.f32.mrf.mxu0
        %v8447 = vadd.f32 0.0, %v8446
        %v8448 = vpop.f32.mrf.mxu0
        %8449 = vmatprep.mubr.bf16.mxu0 0
        %8450 = vmatmul.mubr.bf16.gmra.mxu0 %v8346
        %v8451 = vpop.f32.mrf.mxu0
        %v8452 = vadd.f32 0.0, %v8451
        %v8453 = vpop.f32.mrf.mxu0
        %v8454 = vpop.f32.mrf.mxu0
        %v8455 = vadd.f32 0.0, %v8454
        %v8456 = vpop.f32.mrf.mxu0
        %8457 = vmatprep.mubr.bf16.mxu0 0
        %8458 = vmatmul.mubr.bf16.gmra.mxu0 %v8347
        %v8459 = vpop.f32.mrf.mxu0
        %v8460 = vadd.f32 0.0, %v8459
        %v8461 = vpop.f32.mrf.mxu0
        %v8462 = vpop.f32.mrf.mxu0
        %v8463 = vadd.f32 0.0, %v8462
        %v8464 = vpop.f32.mrf.mxu0
        %8465 = vmatprep.mubr.bf16.mxu0 0
        %8466 = vmatmul.mubr.bf16.gmra.mxu0 %v8348
        %v8467 = vpop.f32.mrf.mxu0
        %v8468 = vadd.f32 0.0, %v8467
        %v8469 = vpop.f32.mrf.mxu0
        %v8470 = vpop.f32.mrf.mxu0
        %v8471 = vadd.f32 0.0, %v8470
        %v8472 = vpop.f32.mrf.mxu0
        %8473 = vmatprep.mubr.bf16.mxu0 0
        %8474 = vmatmul.mubr.bf16.gmra.mxu0 %v8349
        %v8475 = vpop.f32.mrf.mxu0
        %v8476 = vadd.f32 0.0, %v8475
        %v8477 = vpop.f32.mrf.mxu0
        %v8478 = vpop.f32.mrf.mxu0
        %v8479 = vadd.f32 0.0, %v8478
        %v8480 = vpop.f32.mrf.mxu0
        %8481 = vmatprep.mubr.bf16.mxu0 0
        %8482 = vmatmul.mubr.bf16.gmra.mxu0 %v8350
        %v8483 = vpop.f32.mrf.mxu0
        %v8484 = vadd.f32 0.0, %v8483
        %v8485 = vpop.f32.mrf.mxu0
        %v8486 = vpop.f32.mrf.mxu0
        %v8487 = vadd.f32 0.0, %v8486
        %v8488 = vpop.f32.mrf.mxu0
        %8489 = vmatprep.mubr.bf16.mxu0 0
        %8490 = vmatmul.mubr.bf16.gmra.mxu0 %v8351
        %v8491 = vpop.f32.mrf.mxu0
        %v8492 = vadd.f32 0.0, %v8491
        %v8493 = vpop.f32.mrf.mxu0
        %v8494 = vpop.f32.mrf.mxu0
        %v8495 = vadd.f32 0.0, %v8494
        %v8496 = vpop.f32.mrf.mxu0
        %8497 = vmatprep.mubr.bf16.mxu0 0
        %8498 = vmatmul.mubr.bf16.gmra.mxu0 %v8352
        %v8499 = vpop.f32.mrf.mxu0
        %v8500 = vadd.f32 0.0, %v8499
        %v8501 = vpop.f32.mrf.mxu0
        %v8502 = vpop.f32.mrf.mxu0
        %v8503 = vadd.f32 0.0, %v8502
        %v8504 = vpop.f32.mrf.mxu0
        %8505 = vdwg.mxu0
        %v8506 = vadd.f32 %v8152, %v8444
        %v8507 = vadd.f32 %v8153, %v8447
        %v8508 = vadd.f32 %v8154, %v8452
        %v8509 = vadd.f32 %v8155, %v8455
        %v8510 = vadd.f32 %v8156, %v8460
        %v8511 = vadd.f32 %v8157, %v8463
        %v8512 = vadd.f32 %v8158, %v8468
        %v8513 = vadd.f32 %v8159, %v8471
        %v8514 = vadd.f32 %v8160, %v8476
        %v8515 = vadd.f32 %v8161, %v8479
        %v8516 = vadd.f32 %v8162, %v8484
        %v8517 = vadd.f32 %v8163, %v8487
        %v8518 = vadd.f32 %v8164, %v8492
        %v8519 = vadd.f32 %v8165, %v8495
        %v8520 = vadd.f32 %v8166, %v8500
        %v8521 = vadd.f32 %v8167, %v8503
        %v8523 = vlaneseq
        %v8524 = vshrl.u32 %v8523, 7
        %v8525 = vsub.s32 0, %v8524
        %v8526 = vrot.slane %v5005, %v8525
        %v8528 = vadd.f32 %v8506, %v8526
        %v8529 = vadd.f32 %v8507, %v8526
        %v8530 = vadd.f32 %v8508, %v8526
        %v8531 = vadd.f32 %v8509, %v8526
        %v8532 = vadd.f32 %v8510, %v8526
        %v8533 = vadd.f32 %v8511, %v8526
        %v8534 = vadd.f32 %v8512, %v8526
        %v8535 = vadd.f32 %v8513, %v8526
        %v8536 = vadd.f32 %v8514, %v8526
        %v8537 = vadd.f32 %v8515, %v8526
        %v8538 = vadd.f32 %v8516, %v8526
        %v8539 = vadd.f32 %v8517, %v8526
        %v8540 = vadd.f32 %v8518, %v8526
        %v8541 = vadd.f32 %v8519, %v8526
        %v8542 = vadd.f32 %v8520, %v8526
        %v8543 = vadd.f32 %v8521, %v8526
        %8544 = vst [vmem:[%s463] sm:$0xff] %v8528
        %8545 = vst [vmem:[%s463 + $0x8] sm:$0xff] %v8529
        %8546 = vst [vmem:[%s463 + $0x10] sm:$0xff] %v8530
        %8547 = vst [vmem:[%s463 + $0x18] sm:$0xff] %v8531
        %8548 = vst [vmem:[%s463 + $0x20] sm:$0xff] %v8532
        %8549 = vst [vmem:[%s463 + $0x28] sm:$0xff] %v8533
        %8550 = vst [vmem:[%s463 + $0x30] sm:$0xff] %v8534
        %8551 = vst [vmem:[%s463 + $0x38] sm:$0xff] %v8535
        %8552 = vst [vmem:[%s463 + $0x40] sm:$0xff] %v8536
        %8553 = vst [vmem:[%s463 + $0x48] sm:$0xff] %v8537
        %8554 = vst [vmem:[%s463 + $0x50] sm:$0xff] %v8538
        %8555 = vst [vmem:[%s463 + $0x58] sm:$0xff] %v8539
        %8556 = vst [vmem:[%s463 + $0x60] sm:$0xff] %v8540
        %8557 = vst [vmem:[%s463 + $0x68] sm:$0xff] %v8541
        %8558 = vst [vmem:[%s463 + $0x70] sm:$0xff] %v8542
        %8559 = vst [vmem:[%s463 + $0x78] sm:$0xff] %v8543
        %s8560 = sand.u32 %s274, 1
        %s8561 = scalar_lea.sflag [#allocation6], %s8560
        %s8562 = sand.u32 %s274, 1
        %s8563 = smul.addr %s8562, 128
        %s8564 = scalar_lea.vmem [#allocation13], %s8563
        // Predicated region
        $region85: #{tpu_custom_call.1} parent=63 // pred_check
          %p8565 = pneg %p284
        $region86: #{tpu_custom_call.1} parent=63 // pred_check_branch
          %8567 = sbr.rel (%p8565) target = $region88
        $region87: #{tpu_custom_call.1} parent=63 // pred_region
          %s8568 = smul.u32 2, %s30
          %s8570 = ssub.s32 2048, 2048
          %8571 = vsyncadd %s8561, %s8570
          %s8572 = smul.addr %s8568, 8
          %s8573 = smul.addr %s8572, 128
          %s8574 = scalar_lea.hbm %s11, %s8573
          %s8575 = sshll.u32 %s8564, 4
          %s8576 = int_to_ptr.vmem [resolvable:$true] %s8575
          %8581 = dma.vmem_to_hbm [thread:$0]  %s8576, 2048, %s8574, %s8561, 128, 128, 8
        $region88: #{tpu_custom_call.1} parent=63 // pred_fallthru
          _
      $region64: #{tpu_custom_call.1} parent=5 // pred_fallthru
        _
      %p8582 = scmp.le.s32.totalorder 2, %s25
      // Predicated region
      $region89: #{tpu_custom_call.1} parent=5 // pred_check
        %p8583 = pneg %p8582
      $region90: #{tpu_custom_call.1} parent=5 // pred_check_branch
        %8585 = sbr.rel (%p8583) target = $region92
      $region91: #{tpu_custom_call.1} parent=5 // pred_region
        %s8586 = ssub.s32 %s25, 2
        // Predicated region
        $region93: #{tpu_custom_call.1} parent=91 // pred_check
          %p8587 = pneg %p290
        $region94: #{tpu_custom_call.1} parent=91 // pred_check_branch
          %8589 = sbr.rel (%p8587) target = $region96
        $region95: #{tpu_custom_call.1} parent=91 // pred_region
          %s8590 = sand.u32 %s275, 1
          %s8591 = scalar_lea.sflag [#allocation6], %s8590
          %s8592 = sand.u32 %s275, 1
          %s8593 = smul.addr %s8592, 128
          %s8594 = scalar_lea.vmem [#allocation13], %s8593
          %8595 = dma.done %s8591, 2048
        $region96: #{tpu_custom_call.1} parent=91 // pred_fallthru
          _
      $region92: #{tpu_custom_call.1} parent=5 // pred_fallthru
        _
    $region6: #{tpu_custom_call.1} parent=1 // loop_footer
      %s29 = sadd.s32 1, %s25
    $region7: #{tpu_custom_call.1} parent=1 // loop_footer_branch
      %24 = sbr.rel target = $region3
    $region8: #{tpu_custom_call.1} parent=1 // loop_exit
      _
    %8596 = vsyncpa [#allocation5], 1
    %s8597 = scalar_lea.sflag [#allocation5], 1
    %8598 = vsyncpa %s8597, 1
    %8599 = vsyncpa [#allocation8], 1
    %8600 = vsyncpa [#allocation11], 1
    %8601 = vsyncpa [#allocation6], 1
    %s8602 = scalar_lea.sflag [#allocation6], 1
    %8603 = vsyncpa %s8602, 1

</llo_original>
